<compile_context>
chip_gen: v7x
topology: tpu7x:2x2x1
jax: 0.10.0
libtpu: 0.0.40
codegen_flags: <defaults>
</compile_context>

<pallas_src>
import jax
import jax.numpy as jnp
from jax.experimental import pallas as pl
from jax.experimental.pallas import tpu as pltpu


# ------------------------------ fused kernel --------------------------------

def _fused_kernel(p1_ref, w1_ref, b1_ref, w2_ref, b2_ref, s_ref,
                  wfc_ref, bfc_ref, out_ref):
    # ---- conv1 as 4 quarter matmuls (one per 2x2 pool tap) + pool + bias + relu
    # p1 rows are ordered (a, b, ph, pw): each 144-row quarter is one pool tap.
    m = None
    for q in range(4):
        quarter = jnp.dot(p1_ref[0, q * 144:(q + 1) * 144, :], w1_ref[...],
                          preferred_element_type=jnp.float32)        # (144, 10)
        m = quarter if m is None else jnp.maximum(m, quarter)
    pooled1 = jnp.maximum(m + b1_ref[...], 0.0)      # (144, 10), rows = h*12 + w

    # ---- conv2: 25 taps, each a shifted static slice + (92,10)@(10,20) matmul
    acc = None
    for i in range(5):
        for j in range(5):
            d = i * 12 + j
            tap = jnp.dot(pooled1[d:d + 92, :], w2_ref[i * 5 + j],
                          preferred_element_type=jnp.float32)        # (92, 20)
            acc = tap if acc is None else acc + tap
    # TODO(synk): conv2_drop (nn.Dropout2d) is stochastic; implemented as
    # identity (eval-mode semantics).

    # ---- select the 64 valid conv2 rows, reordered pool-friendly, add bias
    c2 = jnp.dot(s_ref[...], acc,
                 preferred_element_type=jnp.float32) + b2_ref[...]   # (64, 20)

    # ---- 2x2 max-pool + relu: max over four aligned 16-row slabs
    p2 = jnp.maximum(jnp.maximum(c2[0:16], c2[16:32]),
                     jnp.maximum(c2[32:48], c2[48:64]))
    p2 = jnp.maximum(p2, 0.0)                        # (16, 20), rows = ph*4 + pw

    # ---- fc1 (320 -> 50) + relu: contraction over (spatial, channel) as 16
    #      row-matmuls against the pre-permuted weight slabs
    o = bfc_ref[...]                                                  # (1, 50)
    for p in range(16):
        o = o + jnp.dot(p2[p:p + 1, :], wfc_ref[p],
                        preferred_element_type=jnp.float32)
    out_ref[0] = jnp.maximum(o, 0.0)


# ------------------------------ forward wrapper -----------------------------

def net_without_last_forward(x_nchw, params):
    N = x_nchw.shape[0]
    xs = x_nchw[:, 0, :, :].astype(jnp.float32)                  # (N, 28, 28)

    # conv1 im2col with pool-friendly row ordering: row = a*288 + b*144 + ph*12 + pw
    taps = [xs[:, i:i + 24, j:j + 24] for i in range(5) for j in range(5)]
    pat = jnp.stack(taps, axis=-1)                               # (N, 24, 24, 25)
    pat = pat.reshape(N, 12, 2, 12, 2, 25).transpose(0, 2, 4, 1, 3, 5)
    p1 = pat.reshape(N, 576, 25)

    w1m = params["conv1_w"][:, 0].transpose(1, 2, 0).reshape(25, 10)
    b1 = params["conv1_b"].reshape(1, 10)
    w2m = params["conv2_w"].transpose(2, 3, 1, 0).reshape(25, 10, 20)
    b2 = params["conv2_b"].reshape(1, 20)

    # selection matrix: conv2 output row (2*ph+a)*12 + (2*pw+b)  ->  a*32+b*16+ph*4+pw
    r2 = jnp.arange(64)
    a = r2 // 32
    b = (r2 // 16) % 2
    ph = (r2 % 16) // 4
    pw = r2 % 4
    src = (2 * ph + a) * 12 + (2 * pw + b)
    sel = (src[:, None] == jnp.arange(92)[None, :]).astype(jnp.float32)  # (64, 92)

    # fc1 weights permuted to kernel layout: Wr[p, c, f] = fc1_w[f, c*16 + p]
    wfc = params["fc1_w"].reshape(50, 20, 16).transpose(2, 1, 0)  # (16, 20, 50)
    bfc = params["fc1_b"].reshape(1, 50)

    out = pl.pallas_call(
        _fused_kernel,
        out_shape=jax.ShapeDtypeStruct((N, 1, 50), jnp.float32),
        grid=(N,),
        in_specs=[
            pl.BlockSpec((1, 576, 25), lambda n: (n, 0, 0)),
            pl.BlockSpec((25, 10), lambda n: (0, 0)),
            pl.BlockSpec((1, 10), lambda n: (0, 0)),
            pl.BlockSpec((25, 10, 20), lambda n: (0, 0, 0)),
            pl.BlockSpec((1, 20), lambda n: (0, 0)),
            pl.BlockSpec((64, 92), lambda n: (0, 0)),
            pl.BlockSpec((16, 20, 50), lambda n: (0, 0, 0)),
            pl.BlockSpec((1, 50), lambda n: (0, 0)),
        ],
        out_specs=pl.BlockSpec((1, 1, 50), lambda n: (n, 0, 0)),
        compiler_params=pltpu.CompilerParams(
            dimension_semantics=("parallel",)),
    )(p1, w1m, b1, w2m, b2, sel, wfc, bfc)
    return out.reshape(N, 50)


# ------------------------------ pure-JAX reference --------------------------

def _reference_forward(x, params):
    def conv(inp, w, bias):
        out = jax.lax.conv_general_dilated(
            inp, w, window_strides=(1, 1), padding="VALID",
            dimension_numbers=("NCHW", "OIHW", "NCHW"))
        return out + bias[None, :, None, None]

    def pool2(inp):
        n, c, h, w = inp.shape
        return inp.reshape(n, c, h // 2, 2, w // 2, 2).max(axis=(3, 5))

    y = jnp.maximum(pool2(conv(x, params["conv1_w"], params["conv1_b"])), 0.0)
    y = jnp.maximum(pool2(conv(y, params["conv2_w"], params["conv2_b"])), 0.0)
    y = y.reshape(x.shape[0], 320)
    return jnp.maximum(y @ params["fc1_w"].T + params["fc1_b"], 0.0)


# ------------------------------ synthetic params ----------------------------

def init_params(key):
    ks = jax.random.split(key, 6)

    def u(k, shape, fan_in):
        bound = 1.0 / jnp.sqrt(jnp.float32(fan_in))
        return jax.random.uniform(k, shape, jnp.float32, -bound, bound)

    return {
        "conv1_w": u(ks[0], (10, 1, 5, 5), 25),      # nn.Conv2d(1, 10, 5)
        "conv1_b": u(ks[1], (10,), 25),
        "conv2_w": u(ks[2], (20, 10, 5, 5), 250),    # nn.Conv2d(10, 20, 5)
        "conv2_b": u(ks[3], (20,), 250),
        "fc1_w": u(ks[4], (50, 320), 320),           # nn.Linear(320, 50)
        "fc1_b": u(ks[5], (50,), 320),
    }


if __name__ == "__main__":
    key = jax.random.PRNGKey(0)
    pkey, xkey = jax.random.split(key)
    params = init_params(pkey)
    # Input must be (N, 1, 28, 28): view(-1, 320) pins spatial to 28x28.
    x = jax.random.normal(xkey, (2, 1, 28, 28), jnp.float32)

    fwd = jax.jit(net_without_last_forward)
    out = jax.block_until_ready(fwd(x, params))

    assert out.shape == (2, 50) and out.dtype == jnp.float32
    assert bool(jnp.all(out >= 0.0))  # post-relu
    ref = jax.jit(_reference_forward)(x, params)
    assert float(jnp.max(jnp.abs(out - ref))) < 5e-2
    print("KERNEL_OK")
</pallas_src>

<mosaic_0001>
module attributes {stable_mosaic.version = 11 : i64} {
  func.func @_fused_kernel(%arg0: i32, %arg1: memref<1x576x25xf32, #tpu.memory_space<vmem>>, %arg2: memref<25x10xf32, #tpu.memory_space<vmem>>, %arg3: memref<1x10xf32, #tpu.memory_space<vmem>>, %arg4: memref<25x10x20xf32, #tpu.memory_space<vmem>>, %arg5: memref<1x20xf32, #tpu.memory_space<vmem>>, %arg6: memref<64x92xf32, #tpu.memory_space<vmem>>, %arg7: memref<16x20x50xf32, #tpu.memory_space<vmem>>, %arg8: memref<1x50xf32, #tpu.memory_space<vmem>>, %arg9: memref<1x1x50xf32, #tpu.memory_space<vmem>>) attributes {dimension_semantics = [#tpu.dimension_semantics<parallel>], iteration_bounds = array<i64: 2>, scalar_prefetch = 0 : i64, scratch_operands = 0 : i64, tpu.core_type = #tpu.core_type<tc>, window_params = [{transform_indices = @transform_0, window_bounds = array<i64: 1, 576, 25>}, {pipeline_mode = #tpu.pipeline_mode<synchronous>, transform_indices = @transform_1, window_bounds = array<i64: 25, 10>}, {pipeline_mode = #tpu.pipeline_mode<synchronous>, transform_indices = @transform_2, window_bounds = array<i64: 1, 10>}, {pipeline_mode = #tpu.pipeline_mode<synchronous>, transform_indices = @transform_3, window_bounds = array<i64: 25, 10, 20>}, {pipeline_mode = #tpu.pipeline_mode<synchronous>, transform_indices = @transform_4, window_bounds = array<i64: 1, 20>}, {pipeline_mode = #tpu.pipeline_mode<synchronous>, transform_indices = @transform_5, window_bounds = array<i64: 64, 92>}, {pipeline_mode = #tpu.pipeline_mode<synchronous>, transform_indices = @transform_6, window_bounds = array<i64: 16, 20, 50>}, {pipeline_mode = #tpu.pipeline_mode<synchronous>, transform_indices = @transform_7, window_bounds = array<i64: 1, 50>}, {transform_indices = @transform_8, window_bounds = array<i64: 1, 1, 50>}]} {
    %c0 = arith.constant 0 : index
    %c0_0 = arith.constant 0 : index
    %c0_1 = arith.constant 0 : index
    %0 = vector.load %arg1[%c0, %c0_0, %c0_1] : memref<1x576x25xf32, #tpu.memory_space<vmem>>, vector<1x144x25xf32>
    %1 = vector.shape_cast %0 : vector<1x144x25xf32> to vector<144x25xf32>
    %c0_2 = arith.constant 0 : index
    %c0_3 = arith.constant 0 : index
    %2 = vector.load %arg2[%c0_2, %c0_3] : memref<25x10xf32, #tpu.memory_space<vmem>>, vector<25x10xf32>
    %cst = arith.constant dense<0.000000e+00> : vector<144x10xf32>
    %3 = tpu.matmul %1, %2, %cst {dimension_numbers = #tpu.dot_dimension_numbers<[1], [0], [0], [1], [0, 0, 1, 1], [], []>} : vector<144x25xf32>, vector<25x10xf32>, vector<144x10xf32> -> vector<144x10xf32>
    %c0_4 = arith.constant 0 : index
    %c144 = arith.constant 144 : index
    %c0_5 = arith.constant 0 : index
    %4 = vector.load %arg1[%c0_4, %c144, %c0_5] : memref<1x576x25xf32, #tpu.memory_space<vmem>>, vector<1x144x25xf32>
    %5 = vector.shape_cast %4 : vector<1x144x25xf32> to vector<144x25xf32>
    %c0_6 = arith.constant 0 : index
    %c0_7 = arith.constant 0 : index
    %6 = vector.load %arg2[%c0_6, %c0_7] : memref<25x10xf32, #tpu.memory_space<vmem>>, vector<25x10xf32>
    %cst_8 = arith.constant dense<0.000000e+00> : vector<144x10xf32>
    %7 = tpu.matmul %5, %6, %cst_8 {dimension_numbers = #tpu.dot_dimension_numbers<[1], [0], [0], [1], [0, 0, 1, 1], [], []>} : vector<144x25xf32>, vector<25x10xf32>, vector<144x10xf32> -> vector<144x10xf32>
    %8 = arith.maximumf %3, %7 : vector<144x10xf32>
    %c0_9 = arith.constant 0 : index
    %c288 = arith.constant 288 : index
    %c0_10 = arith.constant 0 : index
    %9 = vector.load %arg1[%c0_9, %c288, %c0_10] : memref<1x576x25xf32, #tpu.memory_space<vmem>>, vector<1x144x25xf32>
    %10 = vector.shape_cast %9 : vector<1x144x25xf32> to vector<144x25xf32>
    %c0_11 = arith.constant 0 : index
    %c0_12 = arith.constant 0 : index
    %11 = vector.load %arg2[%c0_11, %c0_12] : memref<25x10xf32, #tpu.memory_space<vmem>>, vector<25x10xf32>
    %cst_13 = arith.constant dense<0.000000e+00> : vector<144x10xf32>
    %12 = tpu.matmul %10, %11, %cst_13 {dimension_numbers = #tpu.dot_dimension_numbers<[1], [0], [0], [1], [0, 0, 1, 1], [], []>} : vector<144x25xf32>, vector<25x10xf32>, vector<144x10xf32> -> vector<144x10xf32>
    %13 = arith.maximumf %8, %12 : vector<144x10xf32>
    %c0_14 = arith.constant 0 : index
    %c432 = arith.constant 432 : index
    %c0_15 = arith.constant 0 : index
    %14 = vector.load %arg1[%c0_14, %c432, %c0_15] : memref<1x576x25xf32, #tpu.memory_space<vmem>>, vector<1x144x25xf32>
    %15 = vector.shape_cast %14 : vector<1x144x25xf32> to vector<144x25xf32>
    %c0_16 = arith.constant 0 : index
    %c0_17 = arith.constant 0 : index
    %16 = vector.load %arg2[%c0_16, %c0_17] : memref<25x10xf32, #tpu.memory_space<vmem>>, vector<25x10xf32>
    %cst_18 = arith.constant dense<0.000000e+00> : vector<144x10xf32>
    %17 = tpu.matmul %15, %16, %cst_18 {dimension_numbers = #tpu.dot_dimension_numbers<[1], [0], [0], [1], [0, 0, 1, 1], [], []>} : vector<144x25xf32>, vector<25x10xf32>, vector<144x10xf32> -> vector<144x10xf32>
    %18 = arith.maximumf %13, %17 : vector<144x10xf32>
    %c0_19 = arith.constant 0 : index
    %c0_20 = arith.constant 0 : index
    %19 = vector.load %arg3[%c0_19, %c0_20] : memref<1x10xf32, #tpu.memory_space<vmem>>, vector<1x10xf32>
    %20 = vector.broadcast %19 : vector<1x10xf32> to vector<144x10xf32>
    %21 = arith.addf %18, %20 : vector<144x10xf32>
    %cst_21 = arith.constant 0.000000e+00 : f32
    %22 = vector.broadcast %cst_21 : f32 to vector<144x10xf32>
    %23 = arith.maximumf %21, %22 : vector<144x10xf32>
    %24 = vector.extract_strided_slice %23 {offsets = [0, 0], sizes = [92, 10], strides = [1, 1]} : vector<144x10xf32> to vector<92x10xf32>
    %c0_22 = arith.constant 0 : index
    %c0_23 = arith.constant 0 : index
    %c0_24 = arith.constant 0 : index
    %25 = vector.load %arg4[%c0_22, %c0_23, %c0_24] : memref<25x10x20xf32, #tpu.memory_space<vmem>>, vector<1x10x20xf32>
    %26 = vector.shape_cast %25 : vector<1x10x20xf32> to vector<10x20xf32>
    %cst_25 = arith.constant dense<0.000000e+00> : vector<92x20xf32>
    %27 = tpu.matmul %24, %26, %cst_25 {dimension_numbers = #tpu.dot_dimension_numbers<[1], [0], [0], [1], [0, 0, 1, 1], [], []>} : vector<92x10xf32>, vector<10x20xf32>, vector<92x20xf32> -> vector<92x20xf32>
    %28 = vector.extract_strided_slice %23 {offsets = [1, 0], sizes = [92, 10], strides = [1, 1]} : vector<144x10xf32> to vector<92x10xf32>
    %c1 = arith.constant 1 : index
    %c0_26 = arith.constant 0 : index
    %c0_27 = arith.constant 0 : index
    %29 = vector.load %arg4[%c1, %c0_26, %c0_27] : memref<25x10x20xf32, #tpu.memory_space<vmem>>, vector<1x10x20xf32>
    %30 = vector.shape_cast %29 : vector<1x10x20xf32> to vector<10x20xf32>
    %cst_28 = arith.constant dense<0.000000e+00> : vector<92x20xf32>
    %31 = tpu.matmul %28, %30, %cst_28 {dimension_numbers = #tpu.dot_dimension_numbers<[1], [0], [0], [1], [0, 0, 1, 1], [], []>} : vector<92x10xf32>, vector<10x20xf32>, vector<92x20xf32> -> vector<92x20xf32>
    %32 = arith.addf %27, %31 : vector<92x20xf32>
    %33 = vector.extract_strided_slice %23 {offsets = [2, 0], sizes = [92, 10], strides = [1, 1]} : vector<144x10xf32> to vector<92x10xf32>
    %c2 = arith.constant 2 : index
    %c0_29 = arith.constant 0 : index
    %c0_30 = arith.constant 0 : index
    %34 = vector.load %arg4[%c2, %c0_29, %c0_30] : memref<25x10x20xf32, #tpu.memory_space<vmem>>, vector<1x10x20xf32>
    %35 = vector.shape_cast %34 : vector<1x10x20xf32> to vector<10x20xf32>
    %cst_31 = arith.constant dense<0.000000e+00> : vector<92x20xf32>
    %36 = tpu.matmul %33, %35, %cst_31 {dimension_numbers = #tpu.dot_dimension_numbers<[1], [0], [0], [1], [0, 0, 1, 1], [], []>} : vector<92x10xf32>, vector<10x20xf32>, vector<92x20xf32> -> vector<92x20xf32>
    %37 = arith.addf %32, %36 : vector<92x20xf32>
    %38 = vector.extract_strided_slice %23 {offsets = [3, 0], sizes = [92, 10], strides = [1, 1]} : vector<144x10xf32> to vector<92x10xf32>
    %c3 = arith.constant 3 : index
    %c0_32 = arith.constant 0 : index
    %c0_33 = arith.constant 0 : index
    %39 = vector.load %arg4[%c3, %c0_32, %c0_33] : memref<25x10x20xf32, #tpu.memory_space<vmem>>, vector<1x10x20xf32>
    %40 = vector.shape_cast %39 : vector<1x10x20xf32> to vector<10x20xf32>
    %cst_34 = arith.constant dense<0.000000e+00> : vector<92x20xf32>
    %41 = tpu.matmul %38, %40, %cst_34 {dimension_numbers = #tpu.dot_dimension_numbers<[1], [0], [0], [1], [0, 0, 1, 1], [], []>} : vector<92x10xf32>, vector<10x20xf32>, vector<92x20xf32> -> vector<92x20xf32>
    %42 = arith.addf %37, %41 : vector<92x20xf32>
    %43 = vector.extract_strided_slice %23 {offsets = [4, 0], sizes = [92, 10], strides = [1, 1]} : vector<144x10xf32> to vector<92x10xf32>
    %c4 = arith.constant 4 : index
    %c0_35 = arith.constant 0 : index
    %c0_36 = arith.constant 0 : index
    %44 = vector.load %arg4[%c4, %c0_35, %c0_36] : memref<25x10x20xf32, #tpu.memory_space<vmem>>, vector<1x10x20xf32>
    %45 = vector.shape_cast %44 : vector<1x10x20xf32> to vector<10x20xf32>
    %cst_37 = arith.constant dense<0.000000e+00> : vector<92x20xf32>
    %46 = tpu.matmul %43, %45, %cst_37 {dimension_numbers = #tpu.dot_dimension_numbers<[1], [0], [0], [1], [0, 0, 1, 1], [], []>} : vector<92x10xf32>, vector<10x20xf32>, vector<92x20xf32> -> vector<92x20xf32>
    %47 = arith.addf %42, %46 : vector<92x20xf32>
    %48 = vector.extract_strided_slice %23 {offsets = [12, 0], sizes = [92, 10], strides = [1, 1]} : vector<144x10xf32> to vector<92x10xf32>
    %c5 = arith.constant 5 : index
    %c0_38 = arith.constant 0 : index
    %c0_39 = arith.constant 0 : index
    %49 = vector.load %arg4[%c5, %c0_38, %c0_39] : memref<25x10x20xf32, #tpu.memory_space<vmem>>, vector<1x10x20xf32>
    %50 = vector.shape_cast %49 : vector<1x10x20xf32> to vector<10x20xf32>
    %cst_40 = arith.constant dense<0.000000e+00> : vector<92x20xf32>
    %51 = tpu.matmul %48, %50, %cst_40 {dimension_numbers = #tpu.dot_dimension_numbers<[1], [0], [0], [1], [0, 0, 1, 1], [], []>} : vector<92x10xf32>, vector<10x20xf32>, vector<92x20xf32> -> vector<92x20xf32>
    %52 = arith.addf %47, %51 : vector<92x20xf32>
    %53 = vector.extract_strided_slice %23 {offsets = [13, 0], sizes = [92, 10], strides = [1, 1]} : vector<144x10xf32> to vector<92x10xf32>
    %c6 = arith.constant 6 : index
    %c0_41 = arith.constant 0 : index
    %c0_42 = arith.constant 0 : index
    %54 = vector.load %arg4[%c6, %c0_41, %c0_42] : memref<25x10x20xf32, #tpu.memory_space<vmem>>, vector<1x10x20xf32>
    %55 = vector.shape_cast %54 : vector<1x10x20xf32> to vector<10x20xf32>
    %cst_43 = arith.constant dense<0.000000e+00> : vector<92x20xf32>
    %56 = tpu.matmul %53, %55, %cst_43 {dimension_numbers = #tpu.dot_dimension_numbers<[1], [0], [0], [1], [0, 0, 1, 1], [], []>} : vector<92x10xf32>, vector<10x20xf32>, vector<92x20xf32> -> vector<92x20xf32>
    %57 = arith.addf %52, %56 : vector<92x20xf32>
    %58 = vector.extract_strided_slice %23 {offsets = [14, 0], sizes = [92, 10], strides = [1, 1]} : vector<144x10xf32> to vector<92x10xf32>
    %c7 = arith.constant 7 : index
    %c0_44 = arith.constant 0 : index
    %c0_45 = arith.constant 0 : index
    %59 = vector.load %arg4[%c7, %c0_44, %c0_45] : memref<25x10x20xf32, #tpu.memory_space<vmem>>, vector<1x10x20xf32>
    %60 = vector.shape_cast %59 : vector<1x10x20xf32> to vector<10x20xf32>
    %cst_46 = arith.constant dense<0.000000e+00> : vector<92x20xf32>
    %61 = tpu.matmul %58, %60, %cst_46 {dimension_numbers = #tpu.dot_dimension_numbers<[1], [0], [0], [1], [0, 0, 1, 1], [], []>} : vector<92x10xf32>, vector<10x20xf32>, vector<92x20xf32> -> vector<92x20xf32>
    %62 = arith.addf %57, %61 : vector<92x20xf32>
    %63 = vector.extract_strided_slice %23 {offsets = [15, 0], sizes = [92, 10], strides = [1, 1]} : vector<144x10xf32> to vector<92x10xf32>
    %c8 = arith.constant 8 : index
    %c0_47 = arith.constant 0 : index
    %c0_48 = arith.constant 0 : index
    %64 = vector.load %arg4[%c8, %c0_47, %c0_48] : memref<25x10x20xf32, #tpu.memory_space<vmem>>, vector<1x10x20xf32>
    %65 = vector.shape_cast %64 : vector<1x10x20xf32> to vector<10x20xf32>
    %cst_49 = arith.constant dense<0.000000e+00> : vector<92x20xf32>
    %66 = tpu.matmul %63, %65, %cst_49 {dimension_numbers = #tpu.dot_dimension_numbers<[1], [0], [0], [1], [0, 0, 1, 1], [], []>} : vector<92x10xf32>, vector<10x20xf32>, vector<92x20xf32> -> vector<92x20xf32>
    %67 = arith.addf %62, %66 : vector<92x20xf32>
    %68 = vector.extract_strided_slice %23 {offsets = [16, 0], sizes = [92, 10], strides = [1, 1]} : vector<144x10xf32> to vector<92x10xf32>
    %c9 = arith.constant 9 : index
    %c0_50 = arith.constant 0 : index
    %c0_51 = arith.constant 0 : index
    %69 = vector.load %arg4[%c9, %c0_50, %c0_51] : memref<25x10x20xf32, #tpu.memory_space<vmem>>, vector<1x10x20xf32>
    %70 = vector.shape_cast %69 : vector<1x10x20xf32> to vector<10x20xf32>
    %cst_52 = arith.constant dense<0.000000e+00> : vector<92x20xf32>
    %71 = tpu.matmul %68, %70, %cst_52 {dimension_numbers = #tpu.dot_dimension_numbers<[1], [0], [0], [1], [0, 0, 1, 1], [], []>} : vector<92x10xf32>, vector<10x20xf32>, vector<92x20xf32> -> vector<92x20xf32>
    %72 = arith.addf %67, %71 : vector<92x20xf32>
    %73 = vector.extract_strided_slice %23 {offsets = [24, 0], sizes = [92, 10], strides = [1, 1]} : vector<144x10xf32> to vector<92x10xf32>
    %c10 = arith.constant 10 : index
    %c0_53 = arith.constant 0 : index
    %c0_54 = arith.constant 0 : index
    %74 = vector.load %arg4[%c10, %c0_53, %c0_54] : memref<25x10x20xf32, #tpu.memory_space<vmem>>, vector<1x10x20xf32>
    %75 = vector.shape_cast %74 : vector<1x10x20xf32> to vector<10x20xf32>
    %cst_55 = arith.constant dense<0.000000e+00> : vector<92x20xf32>
    %76 = tpu.matmul %73, %75, %cst_55 {dimension_numbers = #tpu.dot_dimension_numbers<[1], [0], [0], [1], [0, 0, 1, 1], [], []>} : vector<92x10xf32>, vector<10x20xf32>, vector<92x20xf32> -> vector<92x20xf32>
    %77 = arith.addf %72, %76 : vector<92x20xf32>
    %78 = vector.extract_strided_slice %23 {offsets = [25, 0], sizes = [92, 10], strides = [1, 1]} : vector<144x10xf32> to vector<92x10xf32>
    %c11 = arith.constant 11 : index
    %c0_56 = arith.constant 0 : index
    %c0_57 = arith.constant 0 : index
    %79 = vector.load %arg4[%c11, %c0_56, %c0_57] : memref<25x10x20xf32, #tpu.memory_space<vmem>>, vector<1x10x20xf32>
    %80 = vector.shape_cast %79 : vector<1x10x20xf32> to vector<10x20xf32>
    %cst_58 = arith.constant dense<0.000000e+00> : vector<92x20xf32>
    %81 = tpu.matmul %78, %80, %cst_58 {dimension_numbers = #tpu.dot_dimension_numbers<[1], [0], [0], [1], [0, 0, 1, 1], [], []>} : vector<92x10xf32>, vector<10x20xf32>, vector<92x20xf32> -> vector<92x20xf32>
    %82 = arith.addf %77, %81 : vector<92x20xf32>
    %83 = vector.extract_strided_slice %23 {offsets = [26, 0], sizes = [92, 10], strides = [1, 1]} : vector<144x10xf32> to vector<92x10xf32>
    %c12 = arith.constant 12 : index
    %c0_59 = arith.constant 0 : index
    %c0_60 = arith.constant 0 : index
    %84 = vector.load %arg4[%c12, %c0_59, %c0_60] : memref<25x10x20xf32, #tpu.memory_space<vmem>>, vector<1x10x20xf32>
    %85 = vector.shape_cast %84 : vector<1x10x20xf32> to vector<10x20xf32>
    %cst_61 = arith.constant dense<0.000000e+00> : vector<92x20xf32>
    %86 = tpu.matmul %83, %85, %cst_61 {dimension_numbers = #tpu.dot_dimension_numbers<[1], [0], [0], [1], [0, 0, 1, 1], [], []>} : vector<92x10xf32>, vector<10x20xf32>, vector<92x20xf32> -> vector<92x20xf32>
    %87 = arith.addf %82, %86 : vector<92x20xf32>
    %88 = vector.extract_strided_slice %23 {offsets = [27, 0], sizes = [92, 10], strides = [1, 1]} : vector<144x10xf32> to vector<92x10xf32>
    %c13 = arith.constant 13 : index
    %c0_62 = arith.constant 0 : index
    %c0_63 = arith.constant 0 : index
    %89 = vector.load %arg4[%c13, %c0_62, %c0_63] : memref<25x10x20xf32, #tpu.memory_space<vmem>>, vector<1x10x20xf32>
    %90 = vector.shape_cast %89 : vector<1x10x20xf32> to vector<10x20xf32>
    %cst_64 = arith.constant dense<0.000000e+00> : vector<92x20xf32>
    %91 = tpu.matmul %88, %90, %cst_64 {dimension_numbers = #tpu.dot_dimension_numbers<[1], [0], [0], [1], [0, 0, 1, 1], [], []>} : vector<92x10xf32>, vector<10x20xf32>, vector<92x20xf32> -> vector<92x20xf32>
    %92 = arith.addf %87, %91 : vector<92x20xf32>
    %93 = vector.extract_strided_slice %23 {offsets = [28, 0], sizes = [92, 10], strides = [1, 1]} : vector<144x10xf32> to vector<92x10xf32>
    %c14 = arith.constant 14 : index
    %c0_65 = arith.constant 0 : index
    %c0_66 = arith.constant 0 : index
    %94 = vector.load %arg4[%c14, %c0_65, %c0_66] : memref<25x10x20xf32, #tpu.memory_space<vmem>>, vector<1x10x20xf32>
    %95 = vector.shape_cast %94 : vector<1x10x20xf32> to vector<10x20xf32>
    %cst_67 = arith.constant dense<0.000000e+00> : vector<92x20xf32>
    %96 = tpu.matmul %93, %95, %cst_67 {dimension_numbers = #tpu.dot_dimension_numbers<[1], [0], [0], [1], [0, 0, 1, 1], [], []>} : vector<92x10xf32>, vector<10x20xf32>, vector<92x20xf32> -> vector<92x20xf32>
    %97 = arith.addf %92, %96 : vector<92x20xf32>
    %98 = vector.extract_strided_slice %23 {offsets = [36, 0], sizes = [92, 10], strides = [1, 1]} : vector<144x10xf32> to vector<92x10xf32>
    %c15 = arith.constant 15 : index
    %c0_68 = arith.constant 0 : index
    %c0_69 = arith.constant 0 : index
    %99 = vector.load %arg4[%c15, %c0_68, %c0_69] : memref<25x10x20xf32, #tpu.memory_space<vmem>>, vector<1x10x20xf32>
    %100 = vector.shape_cast %99 : vector<1x10x20xf32> to vector<10x20xf32>
    %cst_70 = arith.constant dense<0.000000e+00> : vector<92x20xf32>
    %101 = tpu.matmul %98, %100, %cst_70 {dimension_numbers = #tpu.dot_dimension_numbers<[1], [0], [0], [1], [0, 0, 1, 1], [], []>} : vector<92x10xf32>, vector<10x20xf32>, vector<92x20xf32> -> vector<92x20xf32>
    %102 = arith.addf %97, %101 : vector<92x20xf32>
    %103 = vector.extract_strided_slice %23 {offsets = [37, 0], sizes = [92, 10], strides = [1, 1]} : vector<144x10xf32> to vector<92x10xf32>
    %c16 = arith.constant 16 : index
    %c0_71 = arith.constant 0 : index
    %c0_72 = arith.constant 0 : index
    %104 = vector.load %arg4[%c16, %c0_71, %c0_72] : memref<25x10x20xf32, #tpu.memory_space<vmem>>, vector<1x10x20xf32>
    %105 = vector.shape_cast %104 : vector<1x10x20xf32> to vector<10x20xf32>
    %cst_73 = arith.constant dense<0.000000e+00> : vector<92x20xf32>
    %106 = tpu.matmul %103, %105, %cst_73 {dimension_numbers = #tpu.dot_dimension_numbers<[1], [0], [0], [1], [0, 0, 1, 1], [], []>} : vector<92x10xf32>, vector<10x20xf32>, vector<92x20xf32> -> vector<92x20xf32>
    %107 = arith.addf %102, %106 : vector<92x20xf32>
    %108 = vector.extract_strided_slice %23 {offsets = [38, 0], sizes = [92, 10], strides = [1, 1]} : vector<144x10xf32> to vector<92x10xf32>
    %c17 = arith.constant 17 : index
    %c0_74 = arith.constant 0 : index
    %c0_75 = arith.constant 0 : index
    %109 = vector.load %arg4[%c17, %c0_74, %c0_75] : memref<25x10x20xf32, #tpu.memory_space<vmem>>, vector<1x10x20xf32>
    %110 = vector.shape_cast %109 : vector<1x10x20xf32> to vector<10x20xf32>
    %cst_76 = arith.constant dense<0.000000e+00> : vector<92x20xf32>
    %111 = tpu.matmul %108, %110, %cst_76 {dimension_numbers = #tpu.dot_dimension_numbers<[1], [0], [0], [1], [0, 0, 1, 1], [], []>} : vector<92x10xf32>, vector<10x20xf32>, vector<92x20xf32> -> vector<92x20xf32>
    %112 = arith.addf %107, %111 : vector<92x20xf32>
    %113 = vector.extract_strided_slice %23 {offsets = [39, 0], sizes = [92, 10], strides = [1, 1]} : vector<144x10xf32> to vector<92x10xf32>
    %c18 = arith.constant 18 : index
    %c0_77 = arith.constant 0 : index
    %c0_78 = arith.constant 0 : index
    %114 = vector.load %arg4[%c18, %c0_77, %c0_78] : memref<25x10x20xf32, #tpu.memory_space<vmem>>, vector<1x10x20xf32>
    %115 = vector.shape_cast %114 : vector<1x10x20xf32> to vector<10x20xf32>
    %cst_79 = arith.constant dense<0.000000e+00> : vector<92x20xf32>
    %116 = tpu.matmul %113, %115, %cst_79 {dimension_numbers = #tpu.dot_dimension_numbers<[1], [0], [0], [1], [0, 0, 1, 1], [], []>} : vector<92x10xf32>, vector<10x20xf32>, vector<92x20xf32> -> vector<92x20xf32>
    %117 = arith.addf %112, %116 : vector<92x20xf32>
    %118 = vector.extract_strided_slice %23 {offsets = [40, 0], sizes = [92, 10], strides = [1, 1]} : vector<144x10xf32> to vector<92x10xf32>
    %c19 = arith.constant 19 : index
    %c0_80 = arith.constant 0 : index
    %c0_81 = arith.constant 0 : index
    %119 = vector.load %arg4[%c19, %c0_80, %c0_81] : memref<25x10x20xf32, #tpu.memory_space<vmem>>, vector<1x10x20xf32>
    %120 = vector.shape_cast %119 : vector<1x10x20xf32> to vector<10x20xf32>
    %cst_82 = arith.constant dense<0.000000e+00> : vector<92x20xf32>
    %121 = tpu.matmul %118, %120, %cst_82 {dimension_numbers = #tpu.dot_dimension_numbers<[1], [0], [0], [1], [0, 0, 1, 1], [], []>} : vector<92x10xf32>, vector<10x20xf32>, vector<92x20xf32> -> vector<92x20xf32>
    %122 = arith.addf %117, %121 : vector<92x20xf32>
    %123 = vector.extract_strided_slice %23 {offsets = [48, 0], sizes = [92, 10], strides = [1, 1]} : vector<144x10xf32> to vector<92x10xf32>
    %c20 = arith.constant 20 : index
    %c0_83 = arith.constant 0 : index
    %c0_84 = arith.constant 0 : index
    %124 = vector.load %arg4[%c20, %c0_83, %c0_84] : memref<25x10x20xf32, #tpu.memory_space<vmem>>, vector<1x10x20xf32>
    %125 = vector.shape_cast %124 : vector<1x10x20xf32> to vector<10x20xf32>
    %cst_85 = arith.constant dense<0.000000e+00> : vector<92x20xf32>
    %126 = tpu.matmul %123, %125, %cst_85 {dimension_numbers = #tpu.dot_dimension_numbers<[1], [0], [0], [1], [0, 0, 1, 1], [], []>} : vector<92x10xf32>, vector<10x20xf32>, vector<92x20xf32> -> vector<92x20xf32>
    %127 = arith.addf %122, %126 : vector<92x20xf32>
    %128 = vector.extract_strided_slice %23 {offsets = [49, 0], sizes = [92, 10], strides = [1, 1]} : vector<144x10xf32> to vector<92x10xf32>
    %c21 = arith.constant 21 : index
    %c0_86 = arith.constant 0 : index
    %c0_87 = arith.constant 0 : index
    %129 = vector.load %arg4[%c21, %c0_86, %c0_87] : memref<25x10x20xf32, #tpu.memory_space<vmem>>, vector<1x10x20xf32>
    %130 = vector.shape_cast %129 : vector<1x10x20xf32> to vector<10x20xf32>
    %cst_88 = arith.constant dense<0.000000e+00> : vector<92x20xf32>
    %131 = tpu.matmul %128, %130, %cst_88 {dimension_numbers = #tpu.dot_dimension_numbers<[1], [0], [0], [1], [0, 0, 1, 1], [], []>} : vector<92x10xf32>, vector<10x20xf32>, vector<92x20xf32> -> vector<92x20xf32>
    %132 = arith.addf %127, %131 : vector<92x20xf32>
    %133 = vector.extract_strided_slice %23 {offsets = [50, 0], sizes = [92, 10], strides = [1, 1]} : vector<144x10xf32> to vector<92x10xf32>
    %c22 = arith.constant 22 : index
    %c0_89 = arith.constant 0 : index
    %c0_90 = arith.constant 0 : index
    %134 = vector.load %arg4[%c22, %c0_89, %c0_90] : memref<25x10x20xf32, #tpu.memory_space<vmem>>, vector<1x10x20xf32>
    %135 = vector.shape_cast %134 : vector<1x10x20xf32> to vector<10x20xf32>
    %cst_91 = arith.constant dense<0.000000e+00> : vector<92x20xf32>
    %136 = tpu.matmul %133, %135, %cst_91 {dimension_numbers = #tpu.dot_dimension_numbers<[1], [0], [0], [1], [0, 0, 1, 1], [], []>} : vector<92x10xf32>, vector<10x20xf32>, vector<92x20xf32> -> vector<92x20xf32>
    %137 = arith.addf %132, %136 : vector<92x20xf32>
    %138 = vector.extract_strided_slice %23 {offsets = [51, 0], sizes = [92, 10], strides = [1, 1]} : vector<144x10xf32> to vector<92x10xf32>
    %c23 = arith.constant 23 : index
    %c0_92 = arith.constant 0 : index
    %c0_93 = arith.constant 0 : index
    %139 = vector.load %arg4[%c23, %c0_92, %c0_93] : memref<25x10x20xf32, #tpu.memory_space<vmem>>, vector<1x10x20xf32>
    %140 = vector.shape_cast %139 : vector<1x10x20xf32> to vector<10x20xf32>
    %cst_94 = arith.constant dense<0.000000e+00> : vector<92x20xf32>
    %141 = tpu.matmul %138, %140, %cst_94 {dimension_numbers = #tpu.dot_dimension_numbers<[1], [0], [0], [1], [0, 0, 1, 1], [], []>} : vector<92x10xf32>, vector<10x20xf32>, vector<92x20xf32> -> vector<92x20xf32>
    %142 = arith.addf %137, %141 : vector<92x20xf32>
    %143 = vector.extract_strided_slice %23 {offsets = [52, 0], sizes = [92, 10], strides = [1, 1]} : vector<144x10xf32> to vector<92x10xf32>
    %c24 = arith.constant 24 : index
    %c0_95 = arith.constant 0 : index
    %c0_96 = arith.constant 0 : index
    %144 = vector.load %arg4[%c24, %c0_95, %c0_96] : memref<25x10x20xf32, #tpu.memory_space<vmem>>, vector<1x10x20xf32>
    %145 = vector.shape_cast %144 : vector<1x10x20xf32> to vector<10x20xf32>
    %cst_97 = arith.constant dense<0.000000e+00> : vector<92x20xf32>
    %146 = tpu.matmul %143, %145, %cst_97 {dimension_numbers = #tpu.dot_dimension_numbers<[1], [0], [0], [1], [0, 0, 1, 1], [], []>} : vector<92x10xf32>, vector<10x20xf32>, vector<92x20xf32> -> vector<92x20xf32>
    %147 = arith.addf %142, %146 : vector<92x20xf32>
    %c0_98 = arith.constant 0 : index
    %c0_99 = arith.constant 0 : index
    %148 = vector.load %arg6[%c0_98, %c0_99] : memref<64x92xf32, #tpu.memory_space<vmem>>, vector<64x92xf32>
    %cst_100 = arith.constant dense<0.000000e+00> : vector<64x20xf32>
    %149 = tpu.matmul %148, %147, %cst_100 {dimension_numbers = #tpu.dot_dimension_numbers<[1], [0], [0], [1], [0, 0, 1, 1], [], []>} : vector<64x92xf32>, vector<92x20xf32>, vector<64x20xf32> -> vector<64x20xf32>
    %c0_101 = arith.constant 0 : index
    %c0_102 = arith.constant 0 : index
    %150 = vector.load %arg5[%c0_101, %c0_102] : memref<1x20xf32, #tpu.memory_space<vmem>>, vector<1x20xf32>
    %151 = vector.broadcast %150 : vector<1x20xf32> to vector<64x20xf32>
    %152 = arith.addf %149, %151 : vector<64x20xf32>
    %153 = vector.extract_strided_slice %152 {offsets = [0, 0], sizes = [16, 20], strides = [1, 1]} : vector<64x20xf32> to vector<16x20xf32>
    %154 = vector.extract_strided_slice %152 {offsets = [16, 0], sizes = [16, 20], strides = [1, 1]} : vector<64x20xf32> to vector<16x20xf32>
    %155 = arith.maximumf %153, %154 : vector<16x20xf32>
    %156 = vector.extract_strided_slice %152 {offsets = [32, 0], sizes = [16, 20], strides = [1, 1]} : vector<64x20xf32> to vector<16x20xf32>
    %157 = vector.extract_strided_slice %152 {offsets = [48, 0], sizes = [16, 20], strides = [1, 1]} : vector<64x20xf32> to vector<16x20xf32>
    %158 = arith.maximumf %156, %157 : vector<16x20xf32>
    %159 = arith.maximumf %155, %158 : vector<16x20xf32>
    %cst_103 = arith.constant 0.000000e+00 : f32
    %160 = vector.broadcast %cst_103 : f32 to vector<16x20xf32>
    %161 = arith.maximumf %159, %160 : vector<16x20xf32>
    %c0_104 = arith.constant 0 : index
    %c0_105 = arith.constant 0 : index
    %162 = vector.load %arg8[%c0_104, %c0_105] : memref<1x50xf32, #tpu.memory_space<vmem>>, vector<1x50xf32>
    %163 = vector.extract_strided_slice %161 {offsets = [0, 0], sizes = [1, 20], strides = [1, 1]} : vector<16x20xf32> to vector<1x20xf32>
    %c0_106 = arith.constant 0 : index
    %c0_107 = arith.constant 0 : index
    %c0_108 = arith.constant 0 : index
    %164 = vector.load %arg7[%c0_106, %c0_107, %c0_108] : memref<16x20x50xf32, #tpu.memory_space<vmem>>, vector<1x20x50xf32>
    %165 = vector.shape_cast %164 : vector<1x20x50xf32> to vector<20x50xf32>
    %cst_109 = arith.constant dense<0.000000e+00> : vector<1x50xf32>
    %166 = tpu.matmul %163, %165, %cst_109 {dimension_numbers = #tpu.dot_dimension_numbers<[1], [0], [0], [1], [0, 0, 1, 1], [], []>} : vector<1x20xf32>, vector<20x50xf32>, vector<1x50xf32> -> vector<1x50xf32>
    %167 = arith.addf %162, %166 : vector<1x50xf32>
    %168 = vector.extract_strided_slice %161 {offsets = [1, 0], sizes = [1, 20], strides = [1, 1]} : vector<16x20xf32> to vector<1x20xf32>
    %c1_110 = arith.constant 1 : index
    %c0_111 = arith.constant 0 : index
    %c0_112 = arith.constant 0 : index
    %169 = vector.load %arg7[%c1_110, %c0_111, %c0_112] : memref<16x20x50xf32, #tpu.memory_space<vmem>>, vector<1x20x50xf32>
    %170 = vector.shape_cast %169 : vector<1x20x50xf32> to vector<20x50xf32>
    %cst_113 = arith.constant dense<0.000000e+00> : vector<1x50xf32>
    %171 = tpu.matmul %168, %170, %cst_113 {dimension_numbers = #tpu.dot_dimension_numbers<[1], [0], [0], [1], [0, 0, 1, 1], [], []>} : vector<1x20xf32>, vector<20x50xf32>, vector<1x50xf32> -> vector<1x50xf32>
    %172 = arith.addf %167, %171 : vector<1x50xf32>
    %173 = vector.extract_strided_slice %161 {offsets = [2, 0], sizes = [1, 20], strides = [1, 1]} : vector<16x20xf32> to vector<1x20xf32>
    %c2_114 = arith.constant 2 : index
    %c0_115 = arith.constant 0 : index
    %c0_116 = arith.constant 0 : index
    %174 = vector.load %arg7[%c2_114, %c0_115, %c0_116] : memref<16x20x50xf32, #tpu.memory_space<vmem>>, vector<1x20x50xf32>
    %175 = vector.shape_cast %174 : vector<1x20x50xf32> to vector<20x50xf32>
    %cst_117 = arith.constant dense<0.000000e+00> : vector<1x50xf32>
    %176 = tpu.matmul %173, %175, %cst_117 {dimension_numbers = #tpu.dot_dimension_numbers<[1], [0], [0], [1], [0, 0, 1, 1], [], []>} : vector<1x20xf32>, vector<20x50xf32>, vector<1x50xf32> -> vector<1x50xf32>
    %177 = arith.addf %172, %176 : vector<1x50xf32>
    %178 = vector.extract_strided_slice %161 {offsets = [3, 0], sizes = [1, 20], strides = [1, 1]} : vector<16x20xf32> to vector<1x20xf32>
    %c3_118 = arith.constant 3 : index
    %c0_119 = arith.constant 0 : index
    %c0_120 = arith.constant 0 : index
    %179 = vector.load %arg7[%c3_118, %c0_119, %c0_120] : memref<16x20x50xf32, #tpu.memory_space<vmem>>, vector<1x20x50xf32>
    %180 = vector.shape_cast %179 : vector<1x20x50xf32> to vector<20x50xf32>
    %cst_121 = arith.constant dense<0.000000e+00> : vector<1x50xf32>
    %181 = tpu.matmul %178, %180, %cst_121 {dimension_numbers = #tpu.dot_dimension_numbers<[1], [0], [0], [1], [0, 0, 1, 1], [], []>} : vector<1x20xf32>, vector<20x50xf32>, vector<1x50xf32> -> vector<1x50xf32>
    %182 = arith.addf %177, %181 : vector<1x50xf32>
    %183 = vector.extract_strided_slice %161 {offsets = [4, 0], sizes = [1, 20], strides = [1, 1]} : vector<16x20xf32> to vector<1x20xf32>
    %c4_122 = arith.constant 4 : index
    %c0_123 = arith.constant 0 : index
    %c0_124 = arith.constant 0 : index
    %184 = vector.load %arg7[%c4_122, %c0_123, %c0_124] : memref<16x20x50xf32, #tpu.memory_space<vmem>>, vector<1x20x50xf32>
    %185 = vector.shape_cast %184 : vector<1x20x50xf32> to vector<20x50xf32>
    %cst_125 = arith.constant dense<0.000000e+00> : vector<1x50xf32>
    %186 = tpu.matmul %183, %185, %cst_125 {dimension_numbers = #tpu.dot_dimension_numbers<[1], [0], [0], [1], [0, 0, 1, 1], [], []>} : vector<1x20xf32>, vector<20x50xf32>, vector<1x50xf32> -> vector<1x50xf32>
    %187 = arith.addf %182, %186 : vector<1x50xf32>
    %188 = vector.extract_strided_slice %161 {offsets = [5, 0], sizes = [1, 20], strides = [1, 1]} : vector<16x20xf32> to vector<1x20xf32>
    %c5_126 = arith.constant 5 : index
    %c0_127 = arith.constant 0 : index
    %c0_128 = arith.constant 0 : index
    %189 = vector.load %arg7[%c5_126, %c0_127, %c0_128] : memref<16x20x50xf32, #tpu.memory_space<vmem>>, vector<1x20x50xf32>
    %190 = vector.shape_cast %189 : vector<1x20x50xf32> to vector<20x50xf32>
    %cst_129 = arith.constant dense<0.000000e+00> : vector<1x50xf32>
    %191 = tpu.matmul %188, %190, %cst_129 {dimension_numbers = #tpu.dot_dimension_numbers<[1], [0], [0], [1], [0, 0, 1, 1], [], []>} : vector<1x20xf32>, vector<20x50xf32>, vector<1x50xf32> -> vector<1x50xf32>
    %192 = arith.addf %187, %191 : vector<1x50xf32>
    %193 = vector.extract_strided_slice %161 {offsets = [6, 0], sizes = [1, 20], strides = [1, 1]} : vector<16x20xf32> to vector<1x20xf32>
    %c6_130 = arith.constant 6 : index
    %c0_131 = arith.constant 0 : index
    %c0_132 = arith.constant 0 : index
    %194 = vector.load %arg7[%c6_130, %c0_131, %c0_132] : memref<16x20x50xf32, #tpu.memory_space<vmem>>, vector<1x20x50xf32>
    %195 = vector.shape_cast %194 : vector<1x20x50xf32> to vector<20x50xf32>
    %cst_133 = arith.constant dense<0.000000e+00> : vector<1x50xf32>
    %196 = tpu.matmul %193, %195, %cst_133 {dimension_numbers = #tpu.dot_dimension_numbers<[1], [0], [0], [1], [0, 0, 1, 1], [], []>} : vector<1x20xf32>, vector<20x50xf32>, vector<1x50xf32> -> vector<1x50xf32>
    %197 = arith.addf %192, %196 : vector<1x50xf32>
    %198 = vector.extract_strided_slice %161 {offsets = [7, 0], sizes = [1, 20], strides = [1, 1]} : vector<16x20xf32> to vector<1x20xf32>
    %c7_134 = arith.constant 7 : index
    %c0_135 = arith.constant 0 : index
    %c0_136 = arith.constant 0 : index
    %199 = vector.load %arg7[%c7_134, %c0_135, %c0_136] : memref<16x20x50xf32, #tpu.memory_space<vmem>>, vector<1x20x50xf32>
    %200 = vector.shape_cast %199 : vector<1x20x50xf32> to vector<20x50xf32>
    %cst_137 = arith.constant dense<0.000000e+00> : vector<1x50xf32>
    %201 = tpu.matmul %198, %200, %cst_137 {dimension_numbers = #tpu.dot_dimension_numbers<[1], [0], [0], [1], [0, 0, 1, 1], [], []>} : vector<1x20xf32>, vector<20x50xf32>, vector<1x50xf32> -> vector<1x50xf32>
    %202 = arith.addf %197, %201 : vector<1x50xf32>
    %203 = vector.extract_strided_slice %161 {offsets = [8, 0], sizes = [1, 20], strides = [1, 1]} : vector<16x20xf32> to vector<1x20xf32>
    %c8_138 = arith.constant 8 : index
    %c0_139 = arith.constant 0 : index
    %c0_140 = arith.constant 0 : index
    %204 = vector.load %arg7[%c8_138, %c0_139, %c0_140] : memref<16x20x50xf32, #tpu.memory_space<vmem>>, vector<1x20x50xf32>
    %205 = vector.shape_cast %204 : vector<1x20x50xf32> to vector<20x50xf32>
    %cst_141 = arith.constant dense<0.000000e+00> : vector<1x50xf32>
    %206 = tpu.matmul %203, %205, %cst_141 {dimension_numbers = #tpu.dot_dimension_numbers<[1], [0], [0], [1], [0, 0, 1, 1], [], []>} : vector<1x20xf32>, vector<20x50xf32>, vector<1x50xf32> -> vector<1x50xf32>
    %207 = arith.addf %202, %206 : vector<1x50xf32>
    %208 = vector.extract_strided_slice %161 {offsets = [9, 0], sizes = [1, 20], strides = [1, 1]} : vector<16x20xf32> to vector<1x20xf32>
    %c9_142 = arith.constant 9 : index
    %c0_143 = arith.constant 0 : index
    %c0_144 = arith.constant 0 : index
    %209 = vector.load %arg7[%c9_142, %c0_143, %c0_144] : memref<16x20x50xf32, #tpu.memory_space<vmem>>, vector<1x20x50xf32>
    %210 = vector.shape_cast %209 : vector<1x20x50xf32> to vector<20x50xf32>
    %cst_145 = arith.constant dense<0.000000e+00> : vector<1x50xf32>
    %211 = tpu.matmul %208, %210, %cst_145 {dimension_numbers = #tpu.dot_dimension_numbers<[1], [0], [0], [1], [0, 0, 1, 1], [], []>} : vector<1x20xf32>, vector<20x50xf32>, vector<1x50xf32> -> vector<1x50xf32>
    %212 = arith.addf %207, %211 : vector<1x50xf32>
    %213 = vector.extract_strided_slice %161 {offsets = [10, 0], sizes = [1, 20], strides = [1, 1]} : vector<16x20xf32> to vector<1x20xf32>
    %c10_146 = arith.constant 10 : index
    %c0_147 = arith.constant 0 : index
    %c0_148 = arith.constant 0 : index
    %214 = vector.load %arg7[%c10_146, %c0_147, %c0_148] : memref<16x20x50xf32, #tpu.memory_space<vmem>>, vector<1x20x50xf32>
    %215 = vector.shape_cast %214 : vector<1x20x50xf32> to vector<20x50xf32>
    %cst_149 = arith.constant dense<0.000000e+00> : vector<1x50xf32>
    %216 = tpu.matmul %213, %215, %cst_149 {dimension_numbers = #tpu.dot_dimension_numbers<[1], [0], [0], [1], [0, 0, 1, 1], [], []>} : vector<1x20xf32>, vector<20x50xf32>, vector<1x50xf32> -> vector<1x50xf32>
    %217 = arith.addf %212, %216 : vector<1x50xf32>
    %218 = vector.extract_strided_slice %161 {offsets = [11, 0], sizes = [1, 20], strides = [1, 1]} : vector<16x20xf32> to vector<1x20xf32>
    %c11_150 = arith.constant 11 : index
    %c0_151 = arith.constant 0 : index
    %c0_152 = arith.constant 0 : index
    %219 = vector.load %arg7[%c11_150, %c0_151, %c0_152] : memref<16x20x50xf32, #tpu.memory_space<vmem>>, vector<1x20x50xf32>
    %220 = vector.shape_cast %219 : vector<1x20x50xf32> to vector<20x50xf32>
    %cst_153 = arith.constant dense<0.000000e+00> : vector<1x50xf32>
    %221 = tpu.matmul %218, %220, %cst_153 {dimension_numbers = #tpu.dot_dimension_numbers<[1], [0], [0], [1], [0, 0, 1, 1], [], []>} : vector<1x20xf32>, vector<20x50xf32>, vector<1x50xf32> -> vector<1x50xf32>
    %222 = arith.addf %217, %221 : vector<1x50xf32>
    %223 = vector.extract_strided_slice %161 {offsets = [12, 0], sizes = [1, 20], strides = [1, 1]} : vector<16x20xf32> to vector<1x20xf32>
    %c12_154 = arith.constant 12 : index
    %c0_155 = arith.constant 0 : index
    %c0_156 = arith.constant 0 : index
    %224 = vector.load %arg7[%c12_154, %c0_155, %c0_156] : memref<16x20x50xf32, #tpu.memory_space<vmem>>, vector<1x20x50xf32>
    %225 = vector.shape_cast %224 : vector<1x20x50xf32> to vector<20x50xf32>
    %cst_157 = arith.constant dense<0.000000e+00> : vector<1x50xf32>
    %226 = tpu.matmul %223, %225, %cst_157 {dimension_numbers = #tpu.dot_dimension_numbers<[1], [0], [0], [1], [0, 0, 1, 1], [], []>} : vector<1x20xf32>, vector<20x50xf32>, vector<1x50xf32> -> vector<1x50xf32>
    %227 = arith.addf %222, %226 : vector<1x50xf32>
    %228 = vector.extract_strided_slice %161 {offsets = [13, 0], sizes = [1, 20], strides = [1, 1]} : vector<16x20xf32> to vector<1x20xf32>
    %c13_158 = arith.constant 13 : index
    %c0_159 = arith.constant 0 : index
    %c0_160 = arith.constant 0 : index
    %229 = vector.load %arg7[%c13_158, %c0_159, %c0_160] : memref<16x20x50xf32, #tpu.memory_space<vmem>>, vector<1x20x50xf32>
    %230 = vector.shape_cast %229 : vector<1x20x50xf32> to vector<20x50xf32>
    %cst_161 = arith.constant dense<0.000000e+00> : vector<1x50xf32>
    %231 = tpu.matmul %228, %230, %cst_161 {dimension_numbers = #tpu.dot_dimension_numbers<[1], [0], [0], [1], [0, 0, 1, 1], [], []>} : vector<1x20xf32>, vector<20x50xf32>, vector<1x50xf32> -> vector<1x50xf32>
    %232 = arith.addf %227, %231 : vector<1x50xf32>
    %233 = vector.extract_strided_slice %161 {offsets = [14, 0], sizes = [1, 20], strides = [1, 1]} : vector<16x20xf32> to vector<1x20xf32>
    %c14_162 = arith.constant 14 : index
    %c0_163 = arith.constant 0 : index
    %c0_164 = arith.constant 0 : index
    %234 = vector.load %arg7[%c14_162, %c0_163, %c0_164] : memref<16x20x50xf32, #tpu.memory_space<vmem>>, vector<1x20x50xf32>
    %235 = vector.shape_cast %234 : vector<1x20x50xf32> to vector<20x50xf32>
    %cst_165 = arith.constant dense<0.000000e+00> : vector<1x50xf32>
    %236 = tpu.matmul %233, %235, %cst_165 {dimension_numbers = #tpu.dot_dimension_numbers<[1], [0], [0], [1], [0, 0, 1, 1], [], []>} : vector<1x20xf32>, vector<20x50xf32>, vector<1x50xf32> -> vector<1x50xf32>
    %237 = arith.addf %232, %236 : vector<1x50xf32>
    %238 = vector.extract_strided_slice %161 {offsets = [15, 0], sizes = [1, 20], strides = [1, 1]} : vector<16x20xf32> to vector<1x20xf32>
    %c15_166 = arith.constant 15 : index
    %c0_167 = arith.constant 0 : index
    %c0_168 = arith.constant 0 : index
    %239 = vector.load %arg7[%c15_166, %c0_167, %c0_168] : memref<16x20x50xf32, #tpu.memory_space<vmem>>, vector<1x20x50xf32>
    %240 = vector.shape_cast %239 : vector<1x20x50xf32> to vector<20x50xf32>
    %cst_169 = arith.constant dense<0.000000e+00> : vector<1x50xf32>
    %241 = tpu.matmul %238, %240, %cst_169 {dimension_numbers = #tpu.dot_dimension_numbers<[1], [0], [0], [1], [0, 0, 1, 1], [], []>} : vector<1x20xf32>, vector<20x50xf32>, vector<1x50xf32> -> vector<1x50xf32>
    %242 = arith.addf %237, %241 : vector<1x50xf32>
    %cst_170 = arith.constant 0.000000e+00 : f32
    %243 = vector.broadcast %cst_170 : f32 to vector<1x50xf32>
    %244 = arith.maximumf %242, %243 : vector<1x50xf32>
    %c0_171 = arith.constant 0 : index
    %c0_172 = arith.constant 0 : index
    %c0_173 = arith.constant 0 : index
    %245 = vector.load %arg9[%c0_171, %c0_172, %c0_173] : memref<1x1x50xf32, #tpu.memory_space<vmem>>, vector<1x1x50xf32>
    %246 = vector.shape_cast %245 : vector<1x1x50xf32> to vector<1x50xf32>
    %247 = vector.shape_cast %244 : vector<1x50xf32> to vector<1x1x50xf32>
    tpu.vector_store %arg9[%c0_171, %c0_172, %c0_173], %247 {strides = array<i32>} : memref<1x1x50xf32, #tpu.memory_space<vmem>>, vector<1x1x50xf32>,
    return
  }
  func.func @transform_0(%arg0: i32) -> (i32, i32, i32) {
    %c0_i32 = arith.constant 0 : i32
    %c0_i32_0 = arith.constant 0 : i32
    %c0_i32_1 = arith.constant 0 : i32
    return %arg0, %c0_i32, %c0_i32_0 : i32, i32, i32
  }
  func.func @transform_1(%arg0: i32) -> (i32, i32) {
    %c0_i32 = arith.constant 0 : i32
    %c0_i32_0 = arith.constant 0 : i32
    %c0_i32_1 = arith.constant 0 : i32
    return %c0_i32, %c0_i32_0 : i32, i32
  }
  func.func @transform_2(%arg0: i32) -> (i32, i32) {
    %c0_i32 = arith.constant 0 : i32
    %c0_i32_0 = arith.constant 0 : i32
    %c0_i32_1 = arith.constant 0 : i32
    return %c0_i32, %c0_i32_0 : i32, i32
  }
  func.func @transform_3(%arg0: i32) -> (i32, i32, i32) {
    %c0_i32 = arith.constant 0 : i32
    %c0_i32_0 = arith.constant 0 : i32
    %c0_i32_1 = arith.constant 0 : i32
    %c0_i32_2 = arith.constant 0 : i32
    return %c0_i32, %c0_i32_0, %c0_i32_1 : i32, i32, i32
  }
  func.func @transform_4(%arg0: i32) -> (i32, i32) {
    %c0_i32 = arith.constant 0 : i32
    %c0_i32_0 = arith.constant 0 : i32
    %c0_i32_1 = arith.constant 0 : i32
    return %c0_i32, %c0_i32_0 : i32, i32
  }
  func.func @transform_5(%arg0: i32) -> (i32, i32) {
    %c0_i32 = arith.constant 0 : i32
    %c0_i32_0 = arith.constant 0 : i32
    %c0_i32_1 = arith.constant 0 : i32
    return %c0_i32, %c0_i32_0 : i32, i32
  }
  func.func @transform_6(%arg0: i32) -> (i32, i32, i32) {
    %c0_i32 = arith.constant 0 : i32
    %c0_i32_0 = arith.constant 0 : i32
    %c0_i32_1 = arith.constant 0 : i32
    %c0_i32_2 = arith.constant 0 : i32
    return %c0_i32, %c0_i32_0, %c0_i32_1 : i32, i32, i32
  }
  func.func @transform_7(%arg0: i32) -> (i32, i32) {
    %c0_i32 = arith.constant 0 : i32
    %c0_i32_0 = arith.constant 0 : i32
    %c0_i32_1 = arith.constant 0 : i32
    return %c0_i32, %c0_i32_0 : i32, i32
  }
  func.func @transform_8(%arg0: i32) -> (i32, i32, i32) {
    %c0_i32 = arith.constant 0 : i32
    %c0_i32_0 = arith.constant 0 : i32
    %c0_i32_1 = arith.constant 0 : i32
    return %arg0, %c0_i32, %c0_i32_0 : i32, i32, i32
  }
}

</mosaic_0001>

<llo_original>
// kernel: net_without_last_forward.1
$region0: #{net_without_last_forward.1}
  #allocation0 [shape = 'u32[]', space=smem, size = 0x4, offset = 0x4, fixed_abs, tag = 'smem constant byte address 0x4 - core index']
  #allocation1 [shape = 'u32[144,128]{1,0:T(1,128)}', space=vmem, size = 0x12000, scoped, tag = 'internal scratch']
  %s0 = inlined_call_operand.vmem [shape: f32[2,576,25], index: 0, kind: input, shape index: {}]
  %s1 = inlined_call_operand.vmem [shape: f32[25,10], index: 1, kind: input, shape index: {}]
  %s2 = inlined_call_operand.vmem [shape: f32[1,10], index: 2, kind: input, shape index: {}]
  %s3 = inlined_call_operand.vmem [shape: f32[25,10,20], index: 3, kind: input, shape index: {}]
  %s4 = inlined_call_operand.vmem [shape: f32[1,20], index: 4, kind: input, shape index: {}]
  %s5 = inlined_call_operand.vmem [shape: f32[64,92], index: 5, kind: input, shape index: {}]
  %s6 = inlined_call_operand.vmem [shape: f32[16,20,50], index: 6, kind: input, shape index: {}]
  %s7 = inlined_call_operand.vmem [shape: f32[1,50], index: 7, kind: input, shape index: {}]
  %s8 = inlined_call_operand.hbm [shape: f32[2,1,50], index: 8, kind: output, shape index: {}]
  %s9 = sld [smem:[#allocation0]]
  $region65: #{net_without_last_forward.1} parent=0
    _
  %s11 = ssub.s32 1, %s9
  %s12 = scalar_select 0, %s11, %s9
  $region1: #{net_without_last_forward.1} parent=0
    #allocation2 [shape = 'u8[1024]{0}', space=vmem, size = 0x400, scoped, tag = 'output window, operand 0']
    #allocation3 [shape = 's32[2]{0}', space=sflag, size = 0x8, scoped, tag = 'scoped memory for net_without_last_forward.1']
    %13 = vsyncpa [#allocation3], 0
    %s14 = scalar_lea.sflag [#allocation3], 1
    %15 = vsyncpa %s14, 0
    loop: start=0, step=1, limit=4
    $region2: #{net_without_last_forward.1} parent=1 // loop_pre_header
      _
    $region3: #{net_without_last_forward.1} parent=1 // loop_header
      %s17 = sphi 0, %s21
      %p18 = scmp.ge.s32.totalorder %s17, 4
      %s27 = sphi 0, %s29
      %s30 = sphi 0, %s27
      %s31 = sphi 0, %s30
      %s47 = sphi 0, %s31
      %s51 = sphi 0, %s51
      %s53 = sphi 0, %s51
      %s54 = sphi 0, %s53
      %s68 = sphi 0, %s54
      %s72 = sphi 0, %s72
      %s74 = sphi 0, %s72
      %s75 = sphi 0, %s74
      %s89 = sphi 0, %s75
      %s93 = sphi 0, %s93
      %s95 = sphi 0, %s93
      %s96 = sphi 0, %s95
      %s110 = sphi 0, %s96
      %s114 = sphi 0, %s114
      %s116 = sphi 0, %s114
      %s117 = sphi 0, %s116
      %s131 = sphi 0, %s117
      %s135 = sphi 0, %s135
      %s137 = sphi 0, %s135
      %s138 = sphi 0, %s137
      %s152 = sphi 0, %s138
      %s156 = sphi 0, %s156
      %s158 = sphi 0, %s156
      %s159 = sphi 0, %s158
      %s173 = sphi 0, %s159
      %s177 = sphi 0, %s177
      %s179 = sphi 0, %s177
      %s180 = sphi 0, %s179
      %s194 = sphi 0, %s180
      %s200 = sphi 0, %s202
      %s203 = sphi 0, %s200
      %s204 = sphi 0, %s203
      %s220 = sphi 0, %s204
    $region4: #{net_without_last_forward.1} parent=1 // loop_header_branch
      %20 = sbr.rel (%p18) target = $region8
    $region5: #{net_without_last_forward.1} parent=1 // loop_body
      %s22 = ssub.s32 %s17, 1
      %s23 = ssub.s32 %s17, 2
      %s24 = sadd.s32 %s17, 1
      %s25 = ssub.s32 %s17, %s24
      %p26 = scmp.eq.s32.totalorder %s25, 0
      %s28 = sadd.s32 %s27, 1
      %s29 = scalar_select %p26, %s27, %s28
      %p32 = pneg %p26
      %p33 = scmp.eq.s32.totalorder %s17, 1
      %p34 = por %p32, %p33
      %p35 = scmp.ne.s32.totalorder %s27, %s30
      %p36 = scmp.eq.s32.totalorder %s17, 0
      %p37 = por %p35, %p36
      %p38 = scmp.ne.s32.totalorder %s27, %s30
      %p39 = scmp.eq.s32.totalorder %s22, 1
      %p40 = por %p38, %p39
      %p41 = scmp.ne.s32.totalorder %s30, %s31
      %p42 = scmp.eq.s32.totalorder %s22, 0
      %p43 = por %p41, %p42
      %p44 = scmp.ne.s32.totalorder %s30, %s31
      %p45 = scmp.eq.s32.totalorder %s23, 1
      %p46 = por %p44, %p45
      %p48 = scmp.ne.s32.totalorder %s31, %s47
      %p49 = scmp.eq.s32.totalorder %s23, 0
      %p50 = por %p48, %p49
      %s52 = sadd.s32 %s51, 1
      %p55 = scmp.eq.s32.totalorder %s17, 1
      %p56 = scmp.ne.s32.totalorder %s51, %s53
      %p57 = scmp.eq.s32.totalorder %s17, 0
      %p58 = por %p56, %p57
      %p59 = scmp.ne.s32.totalorder %s51, %s53
      %p60 = scmp.eq.s32.totalorder %s22, 1
      %p61 = por %p59, %p60
      %p62 = scmp.ne.s32.totalorder %s53, %s54
      %p63 = scmp.eq.s32.totalorder %s22, 0
      %p64 = por %p62, %p63
      %p65 = scmp.ne.s32.totalorder %s53, %s54
      %p66 = scmp.eq.s32.totalorder %s23, 1
      %p67 = por %p65, %p66
      %p69 = scmp.ne.s32.totalorder %s54, %s68
      %p70 = scmp.eq.s32.totalorder %s23, 0
      %p71 = por %p69, %p70
      %s73 = sadd.s32 %s72, 1
      %p76 = scmp.eq.s32.totalorder %s17, 1
      %p77 = scmp.ne.s32.totalorder %s72, %s74
      %p78 = scmp.eq.s32.totalorder %s17, 0
      %p79 = por %p77, %p78
      %p80 = scmp.ne.s32.totalorder %s72, %s74
      %p81 = scmp.eq.s32.totalorder %s22, 1
      %p82 = por %p80, %p81
      %p83 = scmp.ne.s32.totalorder %s74, %s75
      %p84 = scmp.eq.s32.totalorder %s22, 0
      %p85 = por %p83, %p84
      %p86 = scmp.ne.s32.totalorder %s74, %s75
      %p87 = scmp.eq.s32.totalorder %s23, 1
      %p88 = por %p86, %p87
      %p90 = scmp.ne.s32.totalorder %s75, %s89
      %p91 = scmp.eq.s32.totalorder %s23, 0
      %p92 = por %p90, %p91
      %s94 = sadd.s32 %s93, 1
      %p97 = scmp.eq.s32.totalorder %s17, 1
      %p98 = scmp.ne.s32.totalorder %s93, %s95
      %p99 = scmp.eq.s32.totalorder %s17, 0
      %p100 = por %p98, %p99
      %p101 = scmp.ne.s32.totalorder %s93, %s95
      %p102 = scmp.eq.s32.totalorder %s22, 1
      %p103 = por %p101, %p102
      %p104 = scmp.ne.s32.totalorder %s95, %s96
      %p105 = scmp.eq.s32.totalorder %s22, 0
      %p106 = por %p104, %p105
      %p107 = scmp.ne.s32.totalorder %s95, %s96
      %p108 = scmp.eq.s32.totalorder %s23, 1
      %p109 = por %p107, %p108
      %p111 = scmp.ne.s32.totalorder %s96, %s110
      %p112 = scmp.eq.s32.totalorder %s23, 0
      %p113 = por %p111, %p112
      %s115 = sadd.s32 %s114, 1
      %p118 = scmp.eq.s32.totalorder %s17, 1
      %p119 = scmp.ne.s32.totalorder %s114, %s116
      %p120 = scmp.eq.s32.totalorder %s17, 0
      %p121 = por %p119, %p120
      %p122 = scmp.ne.s32.totalorder %s114, %s116
      %p123 = scmp.eq.s32.totalorder %s22, 1
      %p124 = por %p122, %p123
      %p125 = scmp.ne.s32.totalorder %s116, %s117
      %p126 = scmp.eq.s32.totalorder %s22, 0
      %p127 = por %p125, %p126
      %p128 = scmp.ne.s32.totalorder %s116, %s117
      %p129 = scmp.eq.s32.totalorder %s23, 1
      %p130 = por %p128, %p129
      %p132 = scmp.ne.s32.totalorder %s117, %s131
      %p133 = scmp.eq.s32.totalorder %s23, 0
      %p134 = por %p132, %p133
      %s136 = sadd.s32 %s135, 1
      %p139 = scmp.eq.s32.totalorder %s17, 1
      %p140 = scmp.ne.s32.totalorder %s135, %s137
      %p141 = scmp.eq.s32.totalorder %s17, 0
      %p142 = por %p140, %p141
      %p143 = scmp.ne.s32.totalorder %s135, %s137
      %p144 = scmp.eq.s32.totalorder %s22, 1
      %p145 = por %p143, %p144
      %p146 = scmp.ne.s32.totalorder %s137, %s138
      %p147 = scmp.eq.s32.totalorder %s22, 0
      %p148 = por %p146, %p147
      %p149 = scmp.ne.s32.totalorder %s137, %s138
      %p150 = scmp.eq.s32.totalorder %s23, 1
      %p151 = por %p149, %p150
      %p153 = scmp.ne.s32.totalorder %s138, %s152
      %p154 = scmp.eq.s32.totalorder %s23, 0
      %p155 = por %p153, %p154
      %s157 = sadd.s32 %s156, 1
      %p160 = scmp.eq.s32.totalorder %s17, 1
      %p161 = scmp.ne.s32.totalorder %s156, %s158
      %p162 = scmp.eq.s32.totalorder %s17, 0
      %p163 = por %p161, %p162
      %p164 = scmp.ne.s32.totalorder %s156, %s158
      %p165 = scmp.eq.s32.totalorder %s22, 1
      %p166 = por %p164, %p165
      %p167 = scmp.ne.s32.totalorder %s158, %s159
      %p168 = scmp.eq.s32.totalorder %s22, 0
      %p169 = por %p167, %p168
      %p170 = scmp.ne.s32.totalorder %s158, %s159
      %p171 = scmp.eq.s32.totalorder %s23, 1
      %p172 = por %p170, %p171
      %p174 = scmp.ne.s32.totalorder %s159, %s173
      %p175 = scmp.eq.s32.totalorder %s23, 0
      %p176 = por %p174, %p175
      %s178 = sadd.s32 %s177, 1
      %p181 = scmp.eq.s32.totalorder %s17, 1
      %p182 = scmp.ne.s32.totalorder %s177, %s179
      %p183 = scmp.eq.s32.totalorder %s17, 0
      %p184 = por %p182, %p183
      %p185 = scmp.ne.s32.totalorder %s177, %s179
      %p186 = scmp.eq.s32.totalorder %s22, 1
      %p187 = por %p185, %p186
      %p188 = scmp.ne.s32.totalorder %s179, %s180
      %p189 = scmp.eq.s32.totalorder %s22, 0
      %p190 = por %p188, %p189
      %p191 = scmp.ne.s32.totalorder %s179, %s180
      %p192 = scmp.eq.s32.totalorder %s23, 1
      %p193 = por %p191, %p192
      %p195 = scmp.ne.s32.totalorder %s180, %s194
      %p196 = scmp.eq.s32.totalorder %s23, 0
      %p197 = por %p195, %p196
      %s198 = ssub.s32 %s17, %s24
      %p199 = scmp.eq.s32.totalorder %s198, 0
      %s201 = sadd.s32 %s200, 1
      %s202 = scalar_select %p199, %s200, %s201
      %p205 = pneg %p199
      %p206 = scmp.eq.s32.totalorder %s17, 1
      %p207 = por %p205, %p206
      %p208 = scmp.ne.s32.totalorder %s200, %s203
      %p209 = scmp.eq.s32.totalorder %s17, 0
      %p210 = por %p208, %p209
      %p211 = scmp.ne.s32.totalorder %s200, %s203
      %p212 = scmp.eq.s32.totalorder %s22, 1
      %p213 = por %p211, %p212
      %p214 = scmp.ne.s32.totalorder %s203, %s204
      %p215 = scmp.eq.s32.totalorder %s22, 0
      %p216 = por %p214, %p215
      %p217 = scmp.ne.s32.totalorder %s203, %s204
      %p218 = scmp.eq.s32.totalorder %s23, 1
      %p219 = por %p217, %p218
      %p221 = scmp.ne.s32.totalorder %s204, %s220
      %p222 = scmp.eq.s32.totalorder %s23, 0
      %p223 = por %p221, %p222
      %p224 = scmp.le.s32.totalorder 1, %s17
      %p225 = scmp.lt.s32.totalorder %s17, 3
      %p226 = pnand %p224, %p225
      %p227 = pneg %p226
      // Predicated region
      $region9: #{net_without_last_forward.1} parent=5 // pred_check
        _
      $region10: #{net_without_last_forward.1} parent=5 // pred_check_branch
        %229 = sbr.rel (%p226) target = $region12
      $region11: #{net_without_last_forward.1} parent=5 // pred_region
        %s230 = ssub.s32 %s17, 1
        // Predicated region
        $region13: #{net_without_last_forward.1} parent=11 // pred_check
          %p231 = pneg %p64
        $region14: #{net_without_last_forward.1} parent=11 // pred_check_branch
          %233 = sbr.rel (%p231) target = $region16
        $region15: #{net_without_last_forward.1} parent=11 // pred_region
          _
        $region16: #{net_without_last_forward.1} parent=11 // pred_fallthru
          _
        // Predicated region
        $region17: #{net_without_last_forward.1} parent=11 // pred_check
          %p234 = pneg %p85
        $region18: #{net_without_last_forward.1} parent=11 // pred_check_branch
          %236 = sbr.rel (%p234) target = $region20
        $region19: #{net_without_last_forward.1} parent=11 // pred_region
          _
        $region20: #{net_without_last_forward.1} parent=11 // pred_fallthru
          _
        // Predicated region
        $region21: #{net_without_last_forward.1} parent=11 // pred_check
          %p237 = pneg %p106
        $region22: #{net_without_last_forward.1} parent=11 // pred_check_branch
          %239 = sbr.rel (%p237) target = $region24
        $region23: #{net_without_last_forward.1} parent=11 // pred_region
          _
        $region24: #{net_without_last_forward.1} parent=11 // pred_fallthru
          _
        // Predicated region
        $region25: #{net_without_last_forward.1} parent=11 // pred_check
          %p240 = pneg %p127
        $region26: #{net_without_last_forward.1} parent=11 // pred_check_branch
          %242 = sbr.rel (%p240) target = $region28
        $region27: #{net_without_last_forward.1} parent=11 // pred_region
          _
        $region28: #{net_without_last_forward.1} parent=11 // pred_fallthru
          _
        // Predicated region
        $region29: #{net_without_last_forward.1} parent=11 // pred_check
          %p243 = pneg %p148
        $region30: #{net_without_last_forward.1} parent=11 // pred_check_branch
          %245 = sbr.rel (%p243) target = $region32
        $region31: #{net_without_last_forward.1} parent=11 // pred_region
          _
        $region32: #{net_without_last_forward.1} parent=11 // pred_fallthru
          _
        // Predicated region
        $region33: #{net_without_last_forward.1} parent=11 // pred_check
          %p246 = pneg %p169
        $region34: #{net_without_last_forward.1} parent=11 // pred_check_branch
          %248 = sbr.rel (%p246) target = $region36
        $region35: #{net_without_last_forward.1} parent=11 // pred_region
          _
        $region36: #{net_without_last_forward.1} parent=11 // pred_fallthru
          _
        // Predicated region
        $region37: #{net_without_last_forward.1} parent=11 // pred_check
          %p249 = pneg %p190
        $region38: #{net_without_last_forward.1} parent=11 // pred_check_branch
          %251 = sbr.rel (%p249) target = $region40
        $region39: #{net_without_last_forward.1} parent=11 // pred_region
          _
        $region40: #{net_without_last_forward.1} parent=11 // pred_fallthru
          _
      $region12: #{net_without_last_forward.1} parent=5 // pred_fallthru
        _
      %p252 = scmp.lt.s32.totalorder %s17, 2
      // Predicated region
      $region41: #{net_without_last_forward.1} parent=5 // pred_check
        %p253 = pneg %p252
      $region42: #{net_without_last_forward.1} parent=5 // pred_check_branch
        %255 = sbr.rel (%p253) target = $region44
      $region43: #{net_without_last_forward.1} parent=5 // pred_region
        // Predicated region
        $region45: #{net_without_last_forward.1} parent=43 // pred_check
          %p256 = pneg %p37
        $region46: #{net_without_last_forward.1} parent=43 // pred_check_branch
          %258 = sbr.rel (%p256) target = $region48
        $region47: #{net_without_last_forward.1} parent=43 // pred_region
          %p259 = scmp.lt.s32.totalorder %s17, 1
          %s260 = scalar_select %p259, %s17, 1
          %s261 = smul.addr %s260, 72
          %s262 = smul.addr %s261, 8
          %s263 = scalar_lea.vmem %s0, %s262
        $region48: #{net_without_last_forward.1} parent=43 // pred_fallthru
          _
      $region44: #{net_without_last_forward.1} parent=5 // pred_fallthru
        _
      %p264 = scmp.le.s32.totalorder 1, %s17
      %p265 = scmp.lt.s32.totalorder %s17, 3
      %p266 = pnand %p264, %p265
      %p267 = pneg %p266
      // Predicated region
      $region49: #{net_without_last_forward.1} parent=5 // pred_check
        _
      $region50: #{net_without_last_forward.1} parent=5 // pred_check_branch
        %269 = sbr.rel (%p266) target = $region52
      $region51: #{net_without_last_forward.1} parent=5 // pred_region
        %s270 = ssub.s32 %s17, 1
        %p271 = scmp.lt.s32.totalorder %s22, 1
        %s272 = scalar_select %p271, %s22, 1
        %s273 = smul.addr %s272, 72
        %s274 = smul.addr %s273, 8
        %s275 = scalar_lea.vmem %s0, %s274
        %p276 = pneg %p43
        %p277 = pneg %p40
        %p278 = pneg %p64
        %p279 = pneg %p61
        %p280 = pneg %p85
        %p281 = pneg %p82
        %p282 = pneg %p106
        %p283 = pneg %p103
        %p284 = pneg %p127
        %p285 = pneg %p124
        %p286 = pneg %p148
        %p287 = pneg %p145
        %p288 = pneg %p169
        %p289 = pneg %p166
        %p290 = pneg %p190
        %p291 = pneg %p187
        %p292 = pneg %p216
        %p293 = pneg %p213
        %s294 = sand.u32 %s203, 1
        %s295 = scalar_lea.sflag [#allocation3], %s294
        %s296 = sand.u32 %s203, 1
        %s297 = scalar_lea.vmem [#allocation2], %s296
        %p298 = scmp.lt.s32.totalorder %s22, 1
        %s299 = scalar_select %p298, %s22, 1
        %s300 = smul.addr %s299, 72
        %s301 = smul.addr %s300, 8
        %s302 = scalar_lea.vmem %s0, %s301
        %v303 = vld [vmem:[%s302] sm:$0xff]
        %v304 = vld [vmem:[%s302 + $0x8] sm:$0xff]
        %v305 = vld [vmem:[%s302 + $0x10] sm:$0xff]
        %v306 = vld [vmem:[%s302 + $0x18] sm:$0xff]
        %v307 = vld [vmem:[%s302 + $0x20] sm:$0xff]
        %v308 = vld [vmem:[%s302 + $0x28] sm:$0xff]
        %v309 = vld [vmem:[%s302 + $0x30] sm:$0xff]
        %v310 = vld [vmem:[%s302 + $0x38] sm:$0xff]
        %v311 = vld [vmem:[%s302 + $0x40] sm:$0xff]
        %v312 = vld [vmem:[%s302 + $0x48] sm:$0xff]
        %v313 = vld [vmem:[%s302 + $0x50] sm:$0xff]
        %v314 = vld [vmem:[%s302 + $0x58] sm:$0xff]
        %v315 = vld [vmem:[%s302 + $0x60] sm:$0xff]
        %v316 = vld [vmem:[%s302 + $0x68] sm:$0xff]
        %v317 = vld [vmem:[%s302 + $0x70] sm:$0xff]
        %v318 = vld [vmem:[%s302 + $0x78] sm:$0xff]
        %v319 = vld [vmem:[%s302 + $0x80] sm:$0xff]
        %v320 = vld [vmem:[%s302 + $0x88] sm:$0xff]
        %v321 = vld [vmem:[%s1] sm:$0xff]
        %v322 = vld [vmem:[%s1 + $0x8] sm:$0xff]
        %v323 = vld [vmem:[%s1 + $0x10] sm:$0xff]
        %v324 = vld [vmem:[%s1 + $0x18] sm:$0x1]
        %vm325 = vcmask 203776
        %v327 = vsel %vm325, %v303, 0
        %v330 = vsel %vm325, %v304, 0
        %v333 = vsel %vm325, %v305, 0
        %v336 = vsel %vm325, %v306, 0
        %v339 = vsel %vm325, %v307, 0
        %v342 = vsel %vm325, %v308, 0
        %v345 = vsel %vm325, %v309, 0
        %v348 = vsel %vm325, %v310, 0
        %v351 = vsel %vm325, %v311, 0
        %v354 = vsel %vm325, %v312, 0
        %v357 = vsel %vm325, %v313, 0
        %v360 = vsel %vm325, %v314, 0
        %v363 = vsel %vm325, %v315, 0
        %v366 = vsel %vm325, %v316, 0
        %v369 = vsel %vm325, %v317, 0
        %v372 = vsel %vm325, %v318, 0
        %v375 = vsel %vm325, %v319, 0
        %v378 = vsel %vm325, %v320, 0
        %vm380 = vcmask 1040384
        %v382 = vsel %vm380, %v324, 0
        %384 = vmatprep.subr.mxu0 0.0
        %385 = vmatpush1.msra.mxu0 %v321
        %386 = vmatprep.subr.mxu0 0.0
        %387 = vmatpush1.msra.mxu0 %v322
        %388 = vmatprep.subr.mxu0 0.0
        %389 = vmatpush1.msra.mxu0 %v323
        %390 = vmatprep.subr.mxu0 0.0
        %391 = vmatpush1.msra.mxu0 %v382
        %392 = vmatprep.subr.mxu0 0.0
        %393 = vmatpush1.msra.mxu0 0.0
        %394 = vmatprep.subr.mxu0 0.0
        %395 = vmatpush1.msra.mxu0 0.0
        %396 = vmatprep.subr.mxu0 0.0
        %397 = vmatpush1.msra.mxu0 0.0
        %398 = vmatprep.subr.mxu0 0.0
        %399 = vmatpush1.msra.mxu0 0.0
        %400 = vmatprep.subr.mxu0 0.0
        %401 = vmatpush1.msra.mxu0 0.0
        %402 = vmatprep.subr.mxu0 0.0
        %403 = vmatpush1.msra.mxu0 0.0
        %404 = vmatprep.subr.mxu0 0.0
        %405 = vmatpush1.msra.mxu0 0.0
        %406 = vmatprep.subr.mxu0 0.0
        %407 = vmatpush1.msra.mxu0 0.0
        %408 = vmatprep.subr.mxu0 0.0
        %409 = vmatpush1.msra.mxu0 0.0
        %410 = vmatprep.subr.mxu0 0.0
        %411 = vmatpush1.msra.mxu0 0.0
        %412 = vmatprep.subr.mxu0 0.0
        %413 = vmatpush1.msra.mxu0 0.0
        %414 = vmatprep.subr.mxu0 0.0
        %415 = vmatpush1.msra.mxu0 0.0
        %416 = vmatprep.subr.mxu0 0.0
        %417 = vmatpush1.msra.mxu0 0.0
        %418 = vmatprep.subr.mxu0 0.0
        %419 = vmatpush1.msra.mxu0 0.0
        %420 = vmatprep.subr.mxu0 0.0
        %421 = vmatpush1.msra.mxu0 0.0
        %422 = vmatprep.subr.mxu0 0.0
        %423 = vmatpush1.msra.mxu0 0.0
        %424 = vmatprep.subr.mxu0 0.0
        %425 = vmatpush1.msra.mxu0 0.0
        %426 = vmatprep.subr.mxu0 0.0
        %427 = vmatpush1.msra.mxu0 0.0
        %428 = vmatprep.subr.mxu0 0.0
        %429 = vmatpush1.msra.mxu0 0.0
        %430 = vmatprep.subr.mxu0 0.0
        %431 = vmatpush1.msra.mxu0 0.0
        %432 = vmatprep.subr.mxu0 0.0
        %433 = vmatpush1.msra.mxu0 0.0
        %434 = vmatprep.subr.mxu0 0.0
        %435 = vmatpush1.msra.mxu0 0.0
        %436 = vmatprep.subr.mxu0 0.0
        %437 = vmatpush1.msra.mxu0 0.0
        %438 = vmatprep.subr.mxu0 0.0
        %439 = vmatpush1.msra.mxu0 0.0
        %440 = vmatprep.subr.mxu0 0.0
        %441 = vmatpush1.msra.mxu0 0.0
        %442 = vmatprep.subr.mxu0 0.0
        %443 = vmatpush1.msra.mxu0 0.0
        %444 = vmatprep.subr.mxu0 0.0
        %445 = vmatpush1.msra.mxu0 0.0
        %446 = vmatprep.subr.mxu0 0.0
        %447 = vmatpush1.msra.mxu0 0.0
        %448 = vmatprep.mubr.f32.mxu0 0.0
        %449 = vmatmul.mubr.f32.gmra.mrb[0].mxu0 %v327
        %v450 = vpop.f32.mrb[0].mxu0
        %v451 = vadd.f32 0.0, %v450
        %v452 = vpop.f32.mrb[0].mxu0
        %453 = vmatprep.mubr.f32.mxu0 0.0
        %454 = vmatmul.mubr.f32.gmra.mrb[0].mxu0 %v330
        %v455 = vpop.f32.mrb[0].mxu0
        %v456 = vadd.f32 0.0, %v455
        %v457 = vpop.f32.mrb[0].mxu0
        %458 = vmatprep.mubr.f32.mxu0 0.0
        %459 = vmatmul.mubr.f32.gmra.mrb[0].mxu0 %v333
        %v460 = vpop.f32.mrb[0].mxu0
        %v461 = vadd.f32 0.0, %v460
        %v462 = vpop.f32.mrb[0].mxu0
        %463 = vmatprep.mubr.f32.mxu0 0.0
        %464 = vmatmul.mubr.f32.gmra.mrb[0].mxu0 %v336
        %v465 = vpop.f32.mrb[0].mxu0
        %v466 = vadd.f32 0.0, %v465
        %v467 = vpop.f32.mrb[0].mxu0
        %468 = vmatprep.mubr.f32.mxu0 0.0
        %469 = vmatmul.mubr.f32.gmra.mrb[0].mxu0 %v339
        %v470 = vpop.f32.mrb[0].mxu0
        %v471 = vadd.f32 0.0, %v470
        %v472 = vpop.f32.mrb[0].mxu0
        %473 = vmatprep.mubr.f32.mxu0 0.0
        %474 = vmatmul.mubr.f32.gmra.mrb[0].mxu0 %v342
        %v475 = vpop.f32.mrb[0].mxu0
        %v476 = vadd.f32 0.0, %v475
        %v477 = vpop.f32.mrb[0].mxu0
        %478 = vmatprep.mubr.f32.mxu0 0.0
        %479 = vmatmul.mubr.f32.gmra.mrb[0].mxu0 %v345
        %v480 = vpop.f32.mrb[0].mxu0
        %v481 = vadd.f32 0.0, %v480
        %v482 = vpop.f32.mrb[0].mxu0
        %483 = vmatprep.mubr.f32.mxu0 0.0
        %484 = vmatmul.mubr.f32.gmra.mrb[0].mxu0 %v348
        %v485 = vpop.f32.mrb[0].mxu0
        %v486 = vadd.f32 0.0, %v485
        %v487 = vpop.f32.mrb[0].mxu0
        %488 = vmatprep.mubr.f32.mxu0 0.0
        %489 = vmatmul.mubr.f32.gmra.mrb[0].mxu0 %v351
        %v490 = vpop.f32.mrb[0].mxu0
        %v491 = vadd.f32 0.0, %v490
        %v492 = vpop.f32.mrb[0].mxu0
        %493 = vmatprep.mubr.f32.mxu0 0.0
        %494 = vmatmul.mubr.f32.gmra.mrb[0].mxu0 %v354
        %v495 = vpop.f32.mrb[0].mxu0
        %v496 = vadd.f32 0.0, %v495
        %v497 = vpop.f32.mrb[0].mxu0
        %498 = vmatprep.mubr.f32.mxu0 0.0
        %499 = vmatmul.mubr.f32.gmra.mrb[0].mxu0 %v357
        %v500 = vpop.f32.mrb[0].mxu0
        %v501 = vadd.f32 0.0, %v500
        %v502 = vpop.f32.mrb[0].mxu0
        %503 = vmatprep.mubr.f32.mxu0 0.0
        %504 = vmatmul.mubr.f32.gmra.mrb[0].mxu0 %v360
        %v505 = vpop.f32.mrb[0].mxu0
        %v506 = vadd.f32 0.0, %v505
        %v507 = vpop.f32.mrb[0].mxu0
        %508 = vmatprep.mubr.f32.mxu0 0.0
        %509 = vmatmul.mubr.f32.gmra.mrb[0].mxu0 %v363
        %v510 = vpop.f32.mrb[0].mxu0
        %v511 = vadd.f32 0.0, %v510
        %v512 = vpop.f32.mrb[0].mxu0
        %513 = vmatprep.mubr.f32.mxu0 0.0
        %514 = vmatmul.mubr.f32.gmra.mrb[0].mxu0 %v366
        %v515 = vpop.f32.mrb[0].mxu0
        %v516 = vadd.f32 0.0, %v515
        %v517 = vpop.f32.mrb[0].mxu0
        %518 = vmatprep.mubr.f32.mxu0 0.0
        %519 = vmatmul.mubr.f32.gmra.mrb[0].mxu0 %v369
        %v520 = vpop.f32.mrb[0].mxu0
        %v521 = vadd.f32 0.0, %v520
        %v522 = vpop.f32.mrb[0].mxu0
        %523 = vmatprep.mubr.f32.mxu0 0.0
        %524 = vmatmul.mubr.f32.gmra.mrb[0].mxu0 %v372
        %v525 = vpop.f32.mrb[0].mxu0
        %v526 = vadd.f32 0.0, %v525
        %v527 = vpop.f32.mrb[0].mxu0
        %528 = vmatprep.mubr.f32.mxu0 0.0
        %529 = vmatmul.mubr.f32.gmra.mrb[0].mxu0 %v375
        %v530 = vpop.f32.mrb[0].mxu0
        %v531 = vadd.f32 0.0, %v530
        %v532 = vpop.f32.mrb[0].mxu0
        %533 = vmatprep.mubr.f32.mxu0 0.0
        %534 = vmatmul.mubr.f32.gmra.mrb[0].mxu0 %v378
        %v535 = vpop.f32.mrb[0].mxu0
        %v536 = vadd.f32 0.0, %v535
        %v537 = vpop.f32.mrb[0].mxu0
        %538 = vdwg.mxu0
        %v539 = vld [vmem:[%s302 + $0x90] sm:$0xff]
        %v540 = vld [vmem:[%s302 + $0x98] sm:$0xff]
        %v541 = vld [vmem:[%s302 + $0xa0] sm:$0xff]
        %v542 = vld [vmem:[%s302 + $0xa8] sm:$0xff]
        %v543 = vld [vmem:[%s302 + $0xb0] sm:$0xff]
        %v544 = vld [vmem:[%s302 + $0xb8] sm:$0xff]
        %v545 = vld [vmem:[%s302 + $0xc0] sm:$0xff]
        %v546 = vld [vmem:[%s302 + $0xc8] sm:$0xff]
        %v547 = vld [vmem:[%s302 + $0xd0] sm:$0xff]
        %v548 = vld [vmem:[%s302 + $0xd8] sm:$0xff]
        %v549 = vld [vmem:[%s302 + $0xe0] sm:$0xff]
        %v550 = vld [vmem:[%s302 + $0xe8] sm:$0xff]
        %v551 = vld [vmem:[%s302 + $0xf0] sm:$0xff]
        %v552 = vld [vmem:[%s302 + $0xf8] sm:$0xff]
        %v553 = vld [vmem:[%s302 + $0x100] sm:$0xff]
        %v554 = vld [vmem:[%s302 + $0x108] sm:$0xff]
        %v555 = vld [vmem:[%s302 + $0x110] sm:$0xff]
        %v556 = vld [vmem:[%s302 + $0x118] sm:$0xff]
        %v558 = vsel %vm325, %v539, 0
        %v561 = vsel %vm325, %v540, 0
        %v564 = vsel %vm325, %v541, 0
        %v567 = vsel %vm325, %v542, 0
        %v570 = vsel %vm325, %v543, 0
        %v573 = vsel %vm325, %v544, 0
        %v576 = vsel %vm325, %v545, 0
        %v579 = vsel %vm325, %v546, 0
        %v582 = vsel %vm325, %v547, 0
        %v585 = vsel %vm325, %v548, 0
        %v588 = vsel %vm325, %v549, 0
        %v591 = vsel %vm325, %v550, 0
        %v594 = vsel %vm325, %v551, 0
        %v597 = vsel %vm325, %v552, 0
        %v600 = vsel %vm325, %v553, 0
        %v603 = vsel %vm325, %v554, 0
        %v606 = vsel %vm325, %v555, 0
        %v609 = vsel %vm325, %v556, 0
        %611 = vmatprep.subr.mxu0 0.0
        %612 = vmatpush1.msra.mxu0 %v321
        %613 = vmatprep.subr.mxu0 0.0
        %614 = vmatpush1.msra.mxu0 %v322
        %615 = vmatprep.subr.mxu0 0.0
        %616 = vmatpush1.msra.mxu0 %v323
        %617 = vmatprep.subr.mxu0 0.0
        %618 = vmatpush1.msra.mxu0 %v382
        %619 = vmatprep.subr.mxu0 0.0
        %620 = vmatpush1.msra.mxu0 0.0
        %621 = vmatprep.subr.mxu0 0.0
        %622 = vmatpush1.msra.mxu0 0.0
        %623 = vmatprep.subr.mxu0 0.0
        %624 = vmatpush1.msra.mxu0 0.0
        %625 = vmatprep.subr.mxu0 0.0
        %626 = vmatpush1.msra.mxu0 0.0
        %627 = vmatprep.subr.mxu0 0.0
        %628 = vmatpush1.msra.mxu0 0.0
        %629 = vmatprep.subr.mxu0 0.0
        %630 = vmatpush1.msra.mxu0 0.0
        %631 = vmatprep.subr.mxu0 0.0
        %632 = vmatpush1.msra.mxu0 0.0
        %633 = vmatprep.subr.mxu0 0.0
        %634 = vmatpush1.msra.mxu0 0.0
        %635 = vmatprep.subr.mxu0 0.0
        %636 = vmatpush1.msra.mxu0 0.0
        %637 = vmatprep.subr.mxu0 0.0
        %638 = vmatpush1.msra.mxu0 0.0
        %639 = vmatprep.subr.mxu0 0.0
        %640 = vmatpush1.msra.mxu0 0.0
        %641 = vmatprep.subr.mxu0 0.0
        %642 = vmatpush1.msra.mxu0 0.0
        %643 = vmatprep.subr.mxu0 0.0
        %644 = vmatpush1.msra.mxu0 0.0
        %645 = vmatprep.subr.mxu0 0.0
        %646 = vmatpush1.msra.mxu0 0.0
        %647 = vmatprep.subr.mxu0 0.0
        %648 = vmatpush1.msra.mxu0 0.0
        %649 = vmatprep.subr.mxu0 0.0
        %650 = vmatpush1.msra.mxu0 0.0
        %651 = vmatprep.subr.mxu0 0.0
        %652 = vmatpush1.msra.mxu0 0.0
        %653 = vmatprep.subr.mxu0 0.0
        %654 = vmatpush1.msra.mxu0 0.0
        %655 = vmatprep.subr.mxu0 0.0
        %656 = vmatpush1.msra.mxu0 0.0
        %657 = vmatprep.subr.mxu0 0.0
        %658 = vmatpush1.msra.mxu0 0.0
        %659 = vmatprep.subr.mxu0 0.0
        %660 = vmatpush1.msra.mxu0 0.0
        %661 = vmatprep.subr.mxu0 0.0
        %662 = vmatpush1.msra.mxu0 0.0
        %663 = vmatprep.subr.mxu0 0.0
        %664 = vmatpush1.msra.mxu0 0.0
        %665 = vmatprep.subr.mxu0 0.0
        %666 = vmatpush1.msra.mxu0 0.0
        %667 = vmatprep.subr.mxu0 0.0
        %668 = vmatpush1.msra.mxu0 0.0
        %669 = vmatprep.subr.mxu0 0.0
        %670 = vmatpush1.msra.mxu0 0.0
        %671 = vmatprep.subr.mxu0 0.0
        %672 = vmatpush1.msra.mxu0 0.0
        %673 = vmatprep.subr.mxu0 0.0
        %674 = vmatpush1.msra.mxu0 0.0
        %675 = vmatprep.mubr.f32.mxu0 0.0
        %676 = vmatmul.mubr.f32.gmra.mrb[0].mxu0 %v558
        %v677 = vpop.f32.mrb[0].mxu0
        %v678 = vadd.f32 0.0, %v677
        %v679 = vpop.f32.mrb[0].mxu0
        %680 = vmatprep.mubr.f32.mxu0 0.0
        %681 = vmatmul.mubr.f32.gmra.mrb[0].mxu0 %v561
        %v682 = vpop.f32.mrb[0].mxu0
        %v683 = vadd.f32 0.0, %v682
        %v684 = vpop.f32.mrb[0].mxu0
        %685 = vmatprep.mubr.f32.mxu0 0.0
        %686 = vmatmul.mubr.f32.gmra.mrb[0].mxu0 %v564
        %v687 = vpop.f32.mrb[0].mxu0
        %v688 = vadd.f32 0.0, %v687
        %v689 = vpop.f32.mrb[0].mxu0
        %690 = vmatprep.mubr.f32.mxu0 0.0
        %691 = vmatmul.mubr.f32.gmra.mrb[0].mxu0 %v567
        %v692 = vpop.f32.mrb[0].mxu0
        %v693 = vadd.f32 0.0, %v692
        %v694 = vpop.f32.mrb[0].mxu0
        %695 = vmatprep.mubr.f32.mxu0 0.0
        %696 = vmatmul.mubr.f32.gmra.mrb[0].mxu0 %v570
        %v697 = vpop.f32.mrb[0].mxu0
        %v698 = vadd.f32 0.0, %v697
        %v699 = vpop.f32.mrb[0].mxu0
        %700 = vmatprep.mubr.f32.mxu0 0.0
        %701 = vmatmul.mubr.f32.gmra.mrb[0].mxu0 %v573
        %v702 = vpop.f32.mrb[0].mxu0
        %v703 = vadd.f32 0.0, %v702
        %v704 = vpop.f32.mrb[0].mxu0
        %705 = vmatprep.mubr.f32.mxu0 0.0
        %706 = vmatmul.mubr.f32.gmra.mrb[0].mxu0 %v576
        %v707 = vpop.f32.mrb[0].mxu0
        %v708 = vadd.f32 0.0, %v707
        %v709 = vpop.f32.mrb[0].mxu0
        %710 = vmatprep.mubr.f32.mxu0 0.0
        %711 = vmatmul.mubr.f32.gmra.mrb[0].mxu0 %v579
        %v712 = vpop.f32.mrb[0].mxu0
        %v713 = vadd.f32 0.0, %v712
        %v714 = vpop.f32.mrb[0].mxu0
        %715 = vmatprep.mubr.f32.mxu0 0.0
        %716 = vmatmul.mubr.f32.gmra.mrb[0].mxu0 %v582
        %v717 = vpop.f32.mrb[0].mxu0
        %v718 = vadd.f32 0.0, %v717
        %v719 = vpop.f32.mrb[0].mxu0
        %720 = vmatprep.mubr.f32.mxu0 0.0
        %721 = vmatmul.mubr.f32.gmra.mrb[0].mxu0 %v585
        %v722 = vpop.f32.mrb[0].mxu0
        %v723 = vadd.f32 0.0, %v722
        %v724 = vpop.f32.mrb[0].mxu0
        %725 = vmatprep.mubr.f32.mxu0 0.0
        %726 = vmatmul.mubr.f32.gmra.mrb[0].mxu0 %v588
        %v727 = vpop.f32.mrb[0].mxu0
        %v728 = vadd.f32 0.0, %v727
        %v729 = vpop.f32.mrb[0].mxu0
        %730 = vmatprep.mubr.f32.mxu0 0.0
        %731 = vmatmul.mubr.f32.gmra.mrb[0].mxu0 %v591
        %v732 = vpop.f32.mrb[0].mxu0
        %v733 = vadd.f32 0.0, %v732
        %v734 = vpop.f32.mrb[0].mxu0
        %735 = vmatprep.mubr.f32.mxu0 0.0
        %736 = vmatmul.mubr.f32.gmra.mrb[0].mxu0 %v594
        %v737 = vpop.f32.mrb[0].mxu0
        %v738 = vadd.f32 0.0, %v737
        %v739 = vpop.f32.mrb[0].mxu0
        %740 = vmatprep.mubr.f32.mxu0 0.0
        %741 = vmatmul.mubr.f32.gmra.mrb[0].mxu0 %v597
        %v742 = vpop.f32.mrb[0].mxu0
        %v743 = vadd.f32 0.0, %v742
        %v744 = vpop.f32.mrb[0].mxu0
        %745 = vmatprep.mubr.f32.mxu0 0.0
        %746 = vmatmul.mubr.f32.gmra.mrb[0].mxu0 %v600
        %v747 = vpop.f32.mrb[0].mxu0
        %v748 = vadd.f32 0.0, %v747
        %v749 = vpop.f32.mrb[0].mxu0
        %750 = vmatprep.mubr.f32.mxu0 0.0
        %751 = vmatmul.mubr.f32.gmra.mrb[0].mxu0 %v603
        %v752 = vpop.f32.mrb[0].mxu0
        %v753 = vadd.f32 0.0, %v752
        %v754 = vpop.f32.mrb[0].mxu0
        %755 = vmatprep.mubr.f32.mxu0 0.0
        %756 = vmatmul.mubr.f32.gmra.mrb[0].mxu0 %v606
        %v757 = vpop.f32.mrb[0].mxu0
        %v758 = vadd.f32 0.0, %v757
        %v759 = vpop.f32.mrb[0].mxu0
        %760 = vmatprep.mubr.f32.mxu0 0.0
        %761 = vmatmul.mubr.f32.gmra.mrb[0].mxu0 %v609
        %v762 = vpop.f32.mrb[0].mxu0
        %v763 = vadd.f32 0.0, %v762
        %v764 = vpop.f32.mrb[0].mxu0
        %765 = vdwg.mxu0
        %v766 = vmax.f32 %v451, %v678
        %v767 = vmax.f32 %v456, %v683
        %v768 = vmax.f32 %v461, %v688
        %v769 = vmax.f32 %v466, %v693
        %v770 = vmax.f32 %v471, %v698
        %v771 = vmax.f32 %v476, %v703
        %v772 = vmax.f32 %v481, %v708
        %v773 = vmax.f32 %v486, %v713
        %v774 = vmax.f32 %v491, %v718
        %v775 = vmax.f32 %v496, %v723
        %v776 = vmax.f32 %v501, %v728
        %v777 = vmax.f32 %v506, %v733
        %v778 = vmax.f32 %v511, %v738
        %v779 = vmax.f32 %v516, %v743
        %v780 = vmax.f32 %v521, %v748
        %v781 = vmax.f32 %v526, %v753
        %v782 = vmax.f32 %v531, %v758
        %v783 = vmax.f32 %v536, %v763
        %v784 = vld [vmem:[%s302 + $0x120] sm:$0xff]
        %v785 = vld [vmem:[%s302 + $0x128] sm:$0xff]
        %v786 = vld [vmem:[%s302 + $0x130] sm:$0xff]
        %v787 = vld [vmem:[%s302 + $0x138] sm:$0xff]
        %v788 = vld [vmem:[%s302 + $0x140] sm:$0xff]
        %v789 = vld [vmem:[%s302 + $0x148] sm:$0xff]
        %v790 = vld [vmem:[%s302 + $0x150] sm:$0xff]
        %v791 = vld [vmem:[%s302 + $0x158] sm:$0xff]
        %v792 = vld [vmem:[%s302 + $0x160] sm:$0xff]
        %v793 = vld [vmem:[%s302 + $0x168] sm:$0xff]
        %v794 = vld [vmem:[%s302 + $0x170] sm:$0xff]
        %v795 = vld [vmem:[%s302 + $0x178] sm:$0xff]
        %v796 = vld [vmem:[%s302 + $0x180] sm:$0xff]
        %v797 = vld [vmem:[%s302 + $0x188] sm:$0xff]
        %v798 = vld [vmem:[%s302 + $0x190] sm:$0xff]
        %v799 = vld [vmem:[%s302 + $0x198] sm:$0xff]
        %v800 = vld [vmem:[%s302 + $0x1a0] sm:$0xff]
        %v801 = vld [vmem:[%s302 + $0x1a8] sm:$0xff]
        %v803 = vsel %vm325, %v784, 0
        %v806 = vsel %vm325, %v785, 0
        %v809 = vsel %vm325, %v786, 0
        %v812 = vsel %vm325, %v787, 0
        %v815 = vsel %vm325, %v788, 0
        %v818 = vsel %vm325, %v789, 0
        %v821 = vsel %vm325, %v790, 0
        %v824 = vsel %vm325, %v791, 0
        %v827 = vsel %vm325, %v792, 0
        %v830 = vsel %vm325, %v793, 0
        %v833 = vsel %vm325, %v794, 0
        %v836 = vsel %vm325, %v795, 0
        %v839 = vsel %vm325, %v796, 0
        %v842 = vsel %vm325, %v797, 0
        %v845 = vsel %vm325, %v798, 0
        %v848 = vsel %vm325, %v799, 0
        %v851 = vsel %vm325, %v800, 0
        %v854 = vsel %vm325, %v801, 0
        %856 = vmatprep.subr.mxu0 0.0
        %857 = vmatpush1.msra.mxu0 %v321
        %858 = vmatprep.subr.mxu0 0.0
        %859 = vmatpush1.msra.mxu0 %v322
        %860 = vmatprep.subr.mxu0 0.0
        %861 = vmatpush1.msra.mxu0 %v323
        %862 = vmatprep.subr.mxu0 0.0
        %863 = vmatpush1.msra.mxu0 %v382
        %864 = vmatprep.subr.mxu0 0.0
        %865 = vmatpush1.msra.mxu0 0.0
        %866 = vmatprep.subr.mxu0 0.0
        %867 = vmatpush1.msra.mxu0 0.0
        %868 = vmatprep.subr.mxu0 0.0
        %869 = vmatpush1.msra.mxu0 0.0
        %870 = vmatprep.subr.mxu0 0.0
        %871 = vmatpush1.msra.mxu0 0.0
        %872 = vmatprep.subr.mxu0 0.0
        %873 = vmatpush1.msra.mxu0 0.0
        %874 = vmatprep.subr.mxu0 0.0
        %875 = vmatpush1.msra.mxu0 0.0
        %876 = vmatprep.subr.mxu0 0.0
        %877 = vmatpush1.msra.mxu0 0.0
        %878 = vmatprep.subr.mxu0 0.0
        %879 = vmatpush1.msra.mxu0 0.0
        %880 = vmatprep.subr.mxu0 0.0
        %881 = vmatpush1.msra.mxu0 0.0
        %882 = vmatprep.subr.mxu0 0.0
        %883 = vmatpush1.msra.mxu0 0.0
        %884 = vmatprep.subr.mxu0 0.0
        %885 = vmatpush1.msra.mxu0 0.0
        %886 = vmatprep.subr.mxu0 0.0
        %887 = vmatpush1.msra.mxu0 0.0
        %888 = vmatprep.subr.mxu0 0.0
        %889 = vmatpush1.msra.mxu0 0.0
        %890 = vmatprep.subr.mxu0 0.0
        %891 = vmatpush1.msra.mxu0 0.0
        %892 = vmatprep.subr.mxu0 0.0
        %893 = vmatpush1.msra.mxu0 0.0
        %894 = vmatprep.subr.mxu0 0.0
        %895 = vmatpush1.msra.mxu0 0.0
        %896 = vmatprep.subr.mxu0 0.0
        %897 = vmatpush1.msra.mxu0 0.0
        %898 = vmatprep.subr.mxu0 0.0
        %899 = vmatpush1.msra.mxu0 0.0
        %900 = vmatprep.subr.mxu0 0.0
        %901 = vmatpush1.msra.mxu0 0.0
        %902 = vmatprep.subr.mxu0 0.0
        %903 = vmatpush1.msra.mxu0 0.0
        %904 = vmatprep.subr.mxu0 0.0
        %905 = vmatpush1.msra.mxu0 0.0
        %906 = vmatprep.subr.mxu0 0.0
        %907 = vmatpush1.msra.mxu0 0.0
        %908 = vmatprep.subr.mxu0 0.0
        %909 = vmatpush1.msra.mxu0 0.0
        %910 = vmatprep.subr.mxu0 0.0
        %911 = vmatpush1.msra.mxu0 0.0
        %912 = vmatprep.subr.mxu0 0.0
        %913 = vmatpush1.msra.mxu0 0.0
        %914 = vmatprep.subr.mxu0 0.0
        %915 = vmatpush1.msra.mxu0 0.0
        %916 = vmatprep.subr.mxu0 0.0
        %917 = vmatpush1.msra.mxu0 0.0
        %918 = vmatprep.subr.mxu0 0.0
        %919 = vmatpush1.msra.mxu0 0.0
        %920 = vmatprep.mubr.f32.mxu0 0.0
        %921 = vmatmul.mubr.f32.gmra.mrb[0].mxu0 %v803
        %v922 = vpop.f32.mrb[0].mxu0
        %v923 = vadd.f32 0.0, %v922
        %v924 = vpop.f32.mrb[0].mxu0
        %925 = vmatprep.mubr.f32.mxu0 0.0
        %926 = vmatmul.mubr.f32.gmra.mrb[0].mxu0 %v806
        %v927 = vpop.f32.mrb[0].mxu0
        %v928 = vadd.f32 0.0, %v927
        %v929 = vpop.f32.mrb[0].mxu0
        %930 = vmatprep.mubr.f32.mxu0 0.0
        %931 = vmatmul.mubr.f32.gmra.mrb[0].mxu0 %v809
        %v932 = vpop.f32.mrb[0].mxu0
        %v933 = vadd.f32 0.0, %v932
        %v934 = vpop.f32.mrb[0].mxu0
        %935 = vmatprep.mubr.f32.mxu0 0.0
        %936 = vmatmul.mubr.f32.gmra.mrb[0].mxu0 %v812
        %v937 = vpop.f32.mrb[0].mxu0
        %v938 = vadd.f32 0.0, %v937
        %v939 = vpop.f32.mrb[0].mxu0
        %940 = vmatprep.mubr.f32.mxu0 0.0
        %941 = vmatmul.mubr.f32.gmra.mrb[0].mxu0 %v815
        %v942 = vpop.f32.mrb[0].mxu0
        %v943 = vadd.f32 0.0, %v942
        %v944 = vpop.f32.mrb[0].mxu0
        %945 = vmatprep.mubr.f32.mxu0 0.0
        %946 = vmatmul.mubr.f32.gmra.mrb[0].mxu0 %v818
        %v947 = vpop.f32.mrb[0].mxu0
        %v948 = vadd.f32 0.0, %v947
        %v949 = vpop.f32.mrb[0].mxu0
        %950 = vmatprep.mubr.f32.mxu0 0.0
        %951 = vmatmul.mubr.f32.gmra.mrb[0].mxu0 %v821
        %v952 = vpop.f32.mrb[0].mxu0
        %v953 = vadd.f32 0.0, %v952
        %v954 = vpop.f32.mrb[0].mxu0
        %955 = vmatprep.mubr.f32.mxu0 0.0
        %956 = vmatmul.mubr.f32.gmra.mrb[0].mxu0 %v824
        %v957 = vpop.f32.mrb[0].mxu0
        %v958 = vadd.f32 0.0, %v957
        %v959 = vpop.f32.mrb[0].mxu0
        %960 = vmatprep.mubr.f32.mxu0 0.0
        %961 = vmatmul.mubr.f32.gmra.mrb[0].mxu0 %v827
        %v962 = vpop.f32.mrb[0].mxu0
        %v963 = vadd.f32 0.0, %v962
        %v964 = vpop.f32.mrb[0].mxu0
        %965 = vmatprep.mubr.f32.mxu0 0.0
        %966 = vmatmul.mubr.f32.gmra.mrb[0].mxu0 %v830
        %v967 = vpop.f32.mrb[0].mxu0
        %v968 = vadd.f32 0.0, %v967
        %v969 = vpop.f32.mrb[0].mxu0
        %970 = vmatprep.mubr.f32.mxu0 0.0
        %971 = vmatmul.mubr.f32.gmra.mrb[0].mxu0 %v833
        %v972 = vpop.f32.mrb[0].mxu0
        %v973 = vadd.f32 0.0, %v972
        %v974 = vpop.f32.mrb[0].mxu0
        %975 = vmatprep.mubr.f32.mxu0 0.0
        %976 = vmatmul.mubr.f32.gmra.mrb[0].mxu0 %v836
        %v977 = vpop.f32.mrb[0].mxu0
        %v978 = vadd.f32 0.0, %v977
        %v979 = vpop.f32.mrb[0].mxu0
        %980 = vmatprep.mubr.f32.mxu0 0.0
        %981 = vmatmul.mubr.f32.gmra.mrb[0].mxu0 %v839
        %v982 = vpop.f32.mrb[0].mxu0
        %v983 = vadd.f32 0.0, %v982
        %v984 = vpop.f32.mrb[0].mxu0
        %985 = vmatprep.mubr.f32.mxu0 0.0
        %986 = vmatmul.mubr.f32.gmra.mrb[0].mxu0 %v842
        %v987 = vpop.f32.mrb[0].mxu0
        %v988 = vadd.f32 0.0, %v987
        %v989 = vpop.f32.mrb[0].mxu0
        %990 = vmatprep.mubr.f32.mxu0 0.0
        %991 = vmatmul.mubr.f32.gmra.mrb[0].mxu0 %v845
        %v992 = vpop.f32.mrb[0].mxu0
        %v993 = vadd.f32 0.0, %v992
        %v994 = vpop.f32.mrb[0].mxu0
        %995 = vmatprep.mubr.f32.mxu0 0.0
        %996 = vmatmul.mubr.f32.gmra.mrb[0].mxu0 %v848
        %v997 = vpop.f32.mrb[0].mxu0
        %v998 = vadd.f32 0.0, %v997
        %v999 = vpop.f32.mrb[0].mxu0
        %1000 = vmatprep.mubr.f32.mxu0 0.0
        %1001 = vmatmul.mubr.f32.gmra.mrb[0].mxu0 %v851
        %v1002 = vpop.f32.mrb[0].mxu0
        %v1003 = vadd.f32 0.0, %v1002
        %v1004 = vpop.f32.mrb[0].mxu0
        %1005 = vmatprep.mubr.f32.mxu0 0.0
        %1006 = vmatmul.mubr.f32.gmra.mrb[0].mxu0 %v854
        %v1007 = vpop.f32.mrb[0].mxu0
        %v1008 = vadd.f32 0.0, %v1007
        %v1009 = vpop.f32.mrb[0].mxu0
        %1010 = vdwg.mxu0
        %v1011 = vmax.f32 %v766, %v923
        %v1012 = vmax.f32 %v767, %v928
        %v1013 = vmax.f32 %v768, %v933
        %v1014 = vmax.f32 %v769, %v938
        %v1015 = vmax.f32 %v770, %v943
        %v1016 = vmax.f32 %v771, %v948
        %v1017 = vmax.f32 %v772, %v953
        %v1018 = vmax.f32 %v773, %v958
        %v1019 = vmax.f32 %v774, %v963
        %v1020 = vmax.f32 %v775, %v968
        %v1021 = vmax.f32 %v776, %v973
        %v1022 = vmax.f32 %v777, %v978
        %v1023 = vmax.f32 %v778, %v983
        %v1024 = vmax.f32 %v779, %v988
        %v1025 = vmax.f32 %v780, %v993
        %v1026 = vmax.f32 %v781, %v998
        %v1027 = vmax.f32 %v782, %v1003
        %v1028 = vmax.f32 %v783, %v1008
        %v1029 = vld [vmem:[%s302 + $0x1b0] sm:$0xff]
        %v1030 = vld [vmem:[%s302 + $0x1b8] sm:$0xff]
        %v1031 = vld [vmem:[%s302 + $0x1c0] sm:$0xff]
        %v1032 = vld [vmem:[%s302 + $0x1c8] sm:$0xff]
        %v1033 = vld [vmem:[%s302 + $0x1d0] sm:$0xff]
        %v1034 = vld [vmem:[%s302 + $0x1d8] sm:$0xff]
        %v1035 = vld [vmem:[%s302 + $0x1e0] sm:$0xff]
        %v1036 = vld [vmem:[%s302 + $0x1e8] sm:$0xff]
        %v1037 = vld [vmem:[%s302 + $0x1f0] sm:$0xff]
        %v1038 = vld [vmem:[%s302 + $0x1f8] sm:$0xff]
        %v1039 = vld [vmem:[%s302 + $0x200] sm:$0xff]
        %v1040 = vld [vmem:[%s302 + $0x208] sm:$0xff]
        %v1041 = vld [vmem:[%s302 + $0x210] sm:$0xff]
        %v1042 = vld [vmem:[%s302 + $0x218] sm:$0xff]
        %v1043 = vld [vmem:[%s302 + $0x220] sm:$0xff]
        %v1044 = vld [vmem:[%s302 + $0x228] sm:$0xff]
        %v1045 = vld [vmem:[%s302 + $0x230] sm:$0xff]
        %v1046 = vld [vmem:[%s302 + $0x238] sm:$0xff]
        %v1048 = vsel %vm325, %v1029, 0
        %v1051 = vsel %vm325, %v1030, 0
        %v1054 = vsel %vm325, %v1031, 0
        %v1057 = vsel %vm325, %v1032, 0
        %v1060 = vsel %vm325, %v1033, 0
        %v1063 = vsel %vm325, %v1034, 0
        %v1066 = vsel %vm325, %v1035, 0
        %v1069 = vsel %vm325, %v1036, 0
        %v1072 = vsel %vm325, %v1037, 0
        %v1075 = vsel %vm325, %v1038, 0
        %v1078 = vsel %vm325, %v1039, 0
        %v1081 = vsel %vm325, %v1040, 0
        %v1084 = vsel %vm325, %v1041, 0
        %v1087 = vsel %vm325, %v1042, 0
        %v1090 = vsel %vm325, %v1043, 0
        %v1093 = vsel %vm325, %v1044, 0
        %v1096 = vsel %vm325, %v1045, 0
        %v1099 = vsel %vm325, %v1046, 0
        %1101 = vmatprep.subr.mxu0 0.0
        %1102 = vmatpush1.msra.mxu0 %v321
        %1103 = vmatprep.subr.mxu0 0.0
        %1104 = vmatpush1.msra.mxu0 %v322
        %1105 = vmatprep.subr.mxu0 0.0
        %1106 = vmatpush1.msra.mxu0 %v323
        %1107 = vmatprep.subr.mxu0 0.0
        %1108 = vmatpush1.msra.mxu0 %v382
        %1109 = vmatprep.subr.mxu0 0.0
        %1110 = vmatpush1.msra.mxu0 0.0
        %1111 = vmatprep.subr.mxu0 0.0
        %1112 = vmatpush1.msra.mxu0 0.0
        %1113 = vmatprep.subr.mxu0 0.0
        %1114 = vmatpush1.msra.mxu0 0.0
        %1115 = vmatprep.subr.mxu0 0.0
        %1116 = vmatpush1.msra.mxu0 0.0
        %1117 = vmatprep.subr.mxu0 0.0
        %1118 = vmatpush1.msra.mxu0 0.0
        %1119 = vmatprep.subr.mxu0 0.0
        %1120 = vmatpush1.msra.mxu0 0.0
        %1121 = vmatprep.subr.mxu0 0.0
        %1122 = vmatpush1.msra.mxu0 0.0
        %1123 = vmatprep.subr.mxu0 0.0
        %1124 = vmatpush1.msra.mxu0 0.0
        %1125 = vmatprep.subr.mxu0 0.0
        %1126 = vmatpush1.msra.mxu0 0.0
        %1127 = vmatprep.subr.mxu0 0.0
        %1128 = vmatpush1.msra.mxu0 0.0
        %1129 = vmatprep.subr.mxu0 0.0
        %1130 = vmatpush1.msra.mxu0 0.0
        %1131 = vmatprep.subr.mxu0 0.0
        %1132 = vmatpush1.msra.mxu0 0.0
        %1133 = vmatprep.subr.mxu0 0.0
        %1134 = vmatpush1.msra.mxu0 0.0
        %1135 = vmatprep.subr.mxu0 0.0
        %1136 = vmatpush1.msra.mxu0 0.0
        %1137 = vmatprep.subr.mxu0 0.0
        %1138 = vmatpush1.msra.mxu0 0.0
        %1139 = vmatprep.subr.mxu0 0.0
        %1140 = vmatpush1.msra.mxu0 0.0
        %1141 = vmatprep.subr.mxu0 0.0
        %1142 = vmatpush1.msra.mxu0 0.0
        %1143 = vmatprep.subr.mxu0 0.0
        %1144 = vmatpush1.msra.mxu0 0.0
        %1145 = vmatprep.subr.mxu0 0.0
        %1146 = vmatpush1.msra.mxu0 0.0
        %1147 = vmatprep.subr.mxu0 0.0
        %1148 = vmatpush1.msra.mxu0 0.0
        %1149 = vmatprep.subr.mxu0 0.0
        %1150 = vmatpush1.msra.mxu0 0.0
        %1151 = vmatprep.subr.mxu0 0.0
        %1152 = vmatpush1.msra.mxu0 0.0
        %1153 = vmatprep.subr.mxu0 0.0
        %1154 = vmatpush1.msra.mxu0 0.0
        %1155 = vmatprep.subr.mxu0 0.0
        %1156 = vmatpush1.msra.mxu0 0.0
        %1157 = vmatprep.subr.mxu0 0.0
        %1158 = vmatpush1.msra.mxu0 0.0
        %1159 = vmatprep.subr.mxu0 0.0
        %1160 = vmatpush1.msra.mxu0 0.0
        %1161 = vmatprep.subr.mxu0 0.0
        %1162 = vmatpush1.msra.mxu0 0.0
        %1163 = vmatprep.subr.mxu0 0.0
        %1164 = vmatpush1.msra.mxu0 0.0
        %1165 = vmatprep.mubr.f32.mxu0 0.0
        %1166 = vmatmul.mubr.f32.gmra.mrb[0].mxu0 %v1048
        %v1167 = vpop.f32.mrb[0].mxu0
        %v1168 = vadd.f32 0.0, %v1167
        %v1169 = vpop.f32.mrb[0].mxu0
        %1170 = vmatprep.mubr.f32.mxu0 0.0
        %1171 = vmatmul.mubr.f32.gmra.mrb[0].mxu0 %v1051
        %v1172 = vpop.f32.mrb[0].mxu0
        %v1173 = vadd.f32 0.0, %v1172
        %v1174 = vpop.f32.mrb[0].mxu0
        %1175 = vmatprep.mubr.f32.mxu0 0.0
        %1176 = vmatmul.mubr.f32.gmra.mrb[0].mxu0 %v1054
        %v1177 = vpop.f32.mrb[0].mxu0
        %v1178 = vadd.f32 0.0, %v1177
        %v1179 = vpop.f32.mrb[0].mxu0
        %1180 = vmatprep.mubr.f32.mxu0 0.0
        %1181 = vmatmul.mubr.f32.gmra.mrb[0].mxu0 %v1057
        %v1182 = vpop.f32.mrb[0].mxu0
        %v1183 = vadd.f32 0.0, %v1182
        %v1184 = vpop.f32.mrb[0].mxu0
        %1185 = vmatprep.mubr.f32.mxu0 0.0
        %1186 = vmatmul.mubr.f32.gmra.mrb[0].mxu0 %v1060
        %v1187 = vpop.f32.mrb[0].mxu0
        %v1188 = vadd.f32 0.0, %v1187
        %v1189 = vpop.f32.mrb[0].mxu0
        %1190 = vmatprep.mubr.f32.mxu0 0.0
        %1191 = vmatmul.mubr.f32.gmra.mrb[0].mxu0 %v1063
        %v1192 = vpop.f32.mrb[0].mxu0
        %v1193 = vadd.f32 0.0, %v1192
        %v1194 = vpop.f32.mrb[0].mxu0
        %1195 = vmatprep.mubr.f32.mxu0 0.0
        %1196 = vmatmul.mubr.f32.gmra.mrb[0].mxu0 %v1066
        %v1197 = vpop.f32.mrb[0].mxu0
        %v1198 = vadd.f32 0.0, %v1197
        %v1199 = vpop.f32.mrb[0].mxu0
        %1200 = vmatprep.mubr.f32.mxu0 0.0
        %1201 = vmatmul.mubr.f32.gmra.mrb[0].mxu0 %v1069
        %v1202 = vpop.f32.mrb[0].mxu0
        %v1203 = vadd.f32 0.0, %v1202
        %v1204 = vpop.f32.mrb[0].mxu0
        %1205 = vmatprep.mubr.f32.mxu0 0.0
        %1206 = vmatmul.mubr.f32.gmra.mrb[0].mxu0 %v1072
        %v1207 = vpop.f32.mrb[0].mxu0
        %v1208 = vadd.f32 0.0, %v1207
        %v1209 = vpop.f32.mrb[0].mxu0
        %1210 = vmatprep.mubr.f32.mxu0 0.0
        %1211 = vmatmul.mubr.f32.gmra.mrb[0].mxu0 %v1075
        %v1212 = vpop.f32.mrb[0].mxu0
        %v1213 = vadd.f32 0.0, %v1212
        %v1214 = vpop.f32.mrb[0].mxu0
        %1215 = vmatprep.mubr.f32.mxu0 0.0
        %1216 = vmatmul.mubr.f32.gmra.mrb[0].mxu0 %v1078
        %v1217 = vpop.f32.mrb[0].mxu0
        %v1218 = vadd.f32 0.0, %v1217
        %v1219 = vpop.f32.mrb[0].mxu0
        %1220 = vmatprep.mubr.f32.mxu0 0.0
        %1221 = vmatmul.mubr.f32.gmra.mrb[0].mxu0 %v1081
        %v1222 = vpop.f32.mrb[0].mxu0
        %v1223 = vadd.f32 0.0, %v1222
        %v1224 = vpop.f32.mrb[0].mxu0
        %1225 = vmatprep.mubr.f32.mxu0 0.0
        %1226 = vmatmul.mubr.f32.gmra.mrb[0].mxu0 %v1084
        %v1227 = vpop.f32.mrb[0].mxu0
        %v1228 = vadd.f32 0.0, %v1227
        %v1229 = vpop.f32.mrb[0].mxu0
        %1230 = vmatprep.mubr.f32.mxu0 0.0
        %1231 = vmatmul.mubr.f32.gmra.mrb[0].mxu0 %v1087
        %v1232 = vpop.f32.mrb[0].mxu0
        %v1233 = vadd.f32 0.0, %v1232
        %v1234 = vpop.f32.mrb[0].mxu0
        %1235 = vmatprep.mubr.f32.mxu0 0.0
        %1236 = vmatmul.mubr.f32.gmra.mrb[0].mxu0 %v1090
        %v1237 = vpop.f32.mrb[0].mxu0
        %v1238 = vadd.f32 0.0, %v1237
        %v1239 = vpop.f32.mrb[0].mxu0
        %1240 = vmatprep.mubr.f32.mxu0 0.0
        %1241 = vmatmul.mubr.f32.gmra.mrb[0].mxu0 %v1093
        %v1242 = vpop.f32.mrb[0].mxu0
        %v1243 = vadd.f32 0.0, %v1242
        %v1244 = vpop.f32.mrb[0].mxu0
        %1245 = vmatprep.mubr.f32.mxu0 0.0
        %1246 = vmatmul.mubr.f32.gmra.mrb[0].mxu0 %v1096
        %v1247 = vpop.f32.mrb[0].mxu0
        %v1248 = vadd.f32 0.0, %v1247
        %v1249 = vpop.f32.mrb[0].mxu0
        %1250 = vmatprep.mubr.f32.mxu0 0.0
        %1251 = vmatmul.mubr.f32.gmra.mrb[0].mxu0 %v1099
        %v1252 = vpop.f32.mrb[0].mxu0
        %v1253 = vadd.f32 0.0, %v1252
        %v1254 = vpop.f32.mrb[0].mxu0
        %1255 = vdwg.mxu0
        %v1256 = vmax.f32 %v1011, %v1168
        %v1257 = vmax.f32 %v1012, %v1173
        %v1258 = vmax.f32 %v1013, %v1178
        %v1259 = vmax.f32 %v1014, %v1183
        %v1260 = vmax.f32 %v1015, %v1188
        %v1261 = vmax.f32 %v1016, %v1193
        %v1262 = vmax.f32 %v1017, %v1198
        %v1263 = vmax.f32 %v1018, %v1203
        %v1264 = vmax.f32 %v1019, %v1208
        %v1265 = vmax.f32 %v1020, %v1213
        %v1266 = vmax.f32 %v1021, %v1218
        %v1267 = vmax.f32 %v1022, %v1223
        %v1268 = vmax.f32 %v1023, %v1228
        %v1269 = vmax.f32 %v1024, %v1233
        %v1270 = vmax.f32 %v1025, %v1238
        %v1271 = vmax.f32 %v1026, %v1243
        %v1272 = vmax.f32 %v1027, %v1248
        %v1273 = vmax.f32 %v1028, %v1253
        %v1274 = vld [vmem:[%s2] sm:$0x1]
        %v1276 = vlaneseq
        %v1277 = vshrl.u32 %v1276, 7
        %v1278 = vsub.s32 0, %v1277
        %v1279 = vrot.slane %v1274, %v1278
        %v1281 = vadd.f32 %v1256, %v1279
        %v1282 = vadd.f32 %v1257, %v1279
        %v1283 = vadd.f32 %v1258, %v1279
        %v1284 = vadd.f32 %v1259, %v1279
        %v1285 = vadd.f32 %v1260, %v1279
        %v1286 = vadd.f32 %v1261, %v1279
        %v1287 = vadd.f32 %v1262, %v1279
        %v1288 = vadd.f32 %v1263, %v1279
        %v1289 = vadd.f32 %v1264, %v1279
        %v1290 = vadd.f32 %v1265, %v1279
        %v1291 = vadd.f32 %v1266, %v1279
        %v1292 = vadd.f32 %v1267, %v1279
        %v1293 = vadd.f32 %v1268, %v1279
        %v1294 = vadd.f32 %v1269, %v1279
        %v1295 = vadd.f32 %v1270, %v1279
        %v1296 = vadd.f32 %v1271, %v1279
        %v1297 = vadd.f32 %v1272, %v1279
        %v1298 = vadd.f32 %v1273, %v1279
        %v1299 = vmax.f32 %v1281, 0.0
        %v1300 = vmax.f32 %v1282, 0.0
        %v1301 = vmax.f32 %v1283, 0.0
        %v1302 = vmax.f32 %v1284, 0.0
        %v1303 = vmax.f32 %v1285, 0.0
        %v1304 = vmax.f32 %v1286, 0.0
        %v1305 = vmax.f32 %v1287, 0.0
        %v1306 = vmax.f32 %v1288, 0.0
        %v1307 = vmax.f32 %v1289, 0.0
        %v1308 = vmax.f32 %v1290, 0.0
        %v1309 = vmax.f32 %v1291, 0.0
        %v1310 = vmax.f32 %v1292, 0.0
        %v1311 = vmax.f32 %v1293, 0.0
        %v1312 = vmax.f32 %v1294, 0.0
        %v1313 = vmax.f32 %v1295, 0.0
        %v1314 = vmax.f32 %v1296, 0.0
        %v1315 = vmax.f32 %v1297, 0.0
        %v1316 = vmax.f32 %v1298, 0.0
        %v1317 = vld [vmem:[%s3] sm:$0xff]
        %v1318 = vld [vmem:[%s3 + $0x8] sm:$0x3]
        %s1319 = scalar_lea.vmem %s3, 16
        %v1320 = vld [vmem:[%s1319] sm:$0xff]
        %v1321 = vld [vmem:[%s1319 + $0x8] sm:$0x3]
        %vm1334 = vcmask 1046528
        %v1335 = vrot.slane %v1299, 1
        %v1336 = vrot.slane %v1300, 1
        %v1337 = vsel %vm1334, %v1335, %v1336
        %v1338 = vrot.slane %v1301, 1
        %v1339 = vsel %vm1334, %v1336, %v1338
        %v1340 = vrot.slane %v1302, 1
        %v1341 = vsel %vm1334, %v1338, %v1340
        %v1342 = vrot.slane %v1303, 1
        %v1343 = vsel %vm1334, %v1340, %v1342
        %v1344 = vrot.slane %v1304, 1
        %v1345 = vsel %vm1334, %v1342, %v1344
        %v1346 = vrot.slane %v1305, 1
        %v1347 = vsel %vm1334, %v1344, %v1346
        %v1348 = vrot.slane %v1306, 1
        %v1349 = vsel %vm1334, %v1346, %v1348
        %v1350 = vrot.slane %v1307, 1
        %v1351 = vsel %vm1334, %v1348, %v1350
        %v1352 = vrot.slane %v1308, 1
        %v1353 = vsel %vm1334, %v1350, %v1352
        %v1354 = vrot.slane %v1309, 1
        %v1355 = vsel %vm1334, %v1352, %v1354
        %v1356 = vrot.slane %v1310, 1
        %v1357 = vsel %vm1334, %v1354, %v1356
        %vm1358 = vcmask 80896
        %v1359 = vsel %vm1358, %v1337, 0
        %v1361 = vsel %vm1358, %v1339, 0
        %v1363 = vsel %vm1358, %v1341, 0
        %v1365 = vsel %vm1358, %v1343, 0
        %v1367 = vsel %vm1358, %v1345, 0
        %v1369 = vsel %vm1358, %v1347, 0
        %v1371 = vsel %vm1358, %v1349, 0
        %v1373 = vsel %vm1358, %v1351, 0
        %v1375 = vsel %vm1358, %v1353, 0
        %v1377 = vsel %vm1358, %v1355, 0
        %v1379 = vsel %vm1358, %v1357, 0
        %v1381 = vsel %vm1358, %v1356, 0
        %vm1383 = vcmask 1041408
        %v1385 = vsel %vm1383, %v1321, 0
        %1387 = vmatprep.subr.mxu0 0.0
        %1388 = vmatpush1.msra.mxu0 %v1320
        %1389 = vmatprep.subr.mxu0 0.0
        %1390 = vmatpush1.msra.mxu0 %v1385
        %1391 = vmatprep.subr.mxu0 0.0
        %1392 = vmatpush1.msra.mxu0 0.0
        %1393 = vmatprep.subr.mxu0 0.0
        %1394 = vmatpush1.msra.mxu0 0.0
        %1395 = vmatprep.subr.mxu0 0.0
        %1396 = vmatpush1.msra.mxu0 0.0
        %1397 = vmatprep.subr.mxu0 0.0
        %1398 = vmatpush1.msra.mxu0 0.0
        %1399 = vmatprep.subr.mxu0 0.0
        %1400 = vmatpush1.msra.mxu0 0.0
        %1401 = vmatprep.subr.mxu0 0.0
        %1402 = vmatpush1.msra.mxu0 0.0
        %1403 = vmatprep.subr.mxu0 0.0
        %1404 = vmatpush1.msra.mxu0 0.0
        %1405 = vmatprep.subr.mxu0 0.0
        %1406 = vmatpush1.msra.mxu0 0.0
        %1407 = vmatprep.subr.mxu0 0.0
        %1408 = vmatpush1.msra.mxu0 0.0
        %1409 = vmatprep.subr.mxu0 0.0
        %1410 = vmatpush1.msra.mxu0 0.0
        %1411 = vmatprep.subr.mxu0 0.0
        %1412 = vmatpush1.msra.mxu0 0.0
        %1413 = vmatprep.subr.mxu0 0.0
        %1414 = vmatpush1.msra.mxu0 0.0
        %1415 = vmatprep.subr.mxu0 0.0
        %1416 = vmatpush1.msra.mxu0 0.0
        %1417 = vmatprep.subr.mxu0 0.0
        %1418 = vmatpush1.msra.mxu0 0.0
        %1419 = vmatprep.subr.mxu0 0.0
        %1420 = vmatpush1.msra.mxu0 0.0
        %1421 = vmatprep.subr.mxu0 0.0
        %1422 = vmatpush1.msra.mxu0 0.0
        %1423 = vmatprep.subr.mxu0 0.0
        %1424 = vmatpush1.msra.mxu0 0.0
        %1425 = vmatprep.subr.mxu0 0.0
        %1426 = vmatpush1.msra.mxu0 0.0
        %1427 = vmatprep.subr.mxu0 0.0
        %1428 = vmatpush1.msra.mxu0 0.0
        %1429 = vmatprep.subr.mxu0 0.0
        %1430 = vmatpush1.msra.mxu0 0.0
        %1431 = vmatprep.subr.mxu0 0.0
        %1432 = vmatpush1.msra.mxu0 0.0
        %1433 = vmatprep.subr.mxu0 0.0
        %1434 = vmatpush1.msra.mxu0 0.0
        %1435 = vmatprep.subr.mxu0 0.0
        %1436 = vmatpush1.msra.mxu0 0.0
        %1437 = vmatprep.subr.mxu0 0.0
        %1438 = vmatpush1.msra.mxu0 0.0
        %1439 = vmatprep.subr.mxu0 0.0
        %1440 = vmatpush1.msra.mxu0 0.0
        %1441 = vmatprep.subr.mxu0 0.0
        %1442 = vmatpush1.msra.mxu0 0.0
        %1443 = vmatprep.subr.mxu0 0.0
        %1444 = vmatpush1.msra.mxu0 0.0
        %1445 = vmatprep.subr.mxu0 0.0
        %1446 = vmatpush1.msra.mxu0 0.0
        %1447 = vmatprep.subr.mxu0 0.0
        %1448 = vmatpush1.msra.mxu0 0.0
        %1449 = vmatprep.subr.mxu0 0.0
        %1450 = vmatpush1.msra.mxu0 0.0
        %1451 = vmatprep.mubr.f32.mxu0 0.0
        %1452 = vmatmul.mubr.f32.gmra.mrb[0].mxu0 %v1359
        %v1453 = vpop.f32.mrb[0].mxu0
        %v1454 = vadd.f32 0.0, %v1453
        %v1455 = vpop.f32.mrb[0].mxu0
        %1456 = vmatprep.mubr.f32.mxu0 0.0
        %1457 = vmatmul.mubr.f32.gmra.mrb[0].mxu0 %v1361
        %v1458 = vpop.f32.mrb[0].mxu0
        %v1459 = vadd.f32 0.0, %v1458
        %v1460 = vpop.f32.mrb[0].mxu0
        %1461 = vmatprep.mubr.f32.mxu0 0.0
        %1462 = vmatmul.mubr.f32.gmra.mrb[0].mxu0 %v1363
        %v1463 = vpop.f32.mrb[0].mxu0
        %v1464 = vadd.f32 0.0, %v1463
        %v1465 = vpop.f32.mrb[0].mxu0
        %1466 = vmatprep.mubr.f32.mxu0 0.0
        %1467 = vmatmul.mubr.f32.gmra.mrb[0].mxu0 %v1365
        %v1468 = vpop.f32.mrb[0].mxu0
        %v1469 = vadd.f32 0.0, %v1468
        %v1470 = vpop.f32.mrb[0].mxu0
        %1471 = vmatprep.mubr.f32.mxu0 0.0
        %1472 = vmatmul.mubr.f32.gmra.mrb[0].mxu0 %v1367
        %v1473 = vpop.f32.mrb[0].mxu0
        %v1474 = vadd.f32 0.0, %v1473
        %v1475 = vpop.f32.mrb[0].mxu0
        %1476 = vmatprep.mubr.f32.mxu0 0.0
        %1477 = vmatmul.mubr.f32.gmra.mrb[0].mxu0 %v1369
        %v1478 = vpop.f32.mrb[0].mxu0
        %v1479 = vadd.f32 0.0, %v1478
        %v1480 = vpop.f32.mrb[0].mxu0
        %1481 = vmatprep.mubr.f32.mxu0 0.0
        %1482 = vmatmul.mubr.f32.gmra.mrb[0].mxu0 %v1371
        %v1483 = vpop.f32.mrb[0].mxu0
        %v1484 = vadd.f32 0.0, %v1483
        %v1485 = vpop.f32.mrb[0].mxu0
        %1486 = vmatprep.mubr.f32.mxu0 0.0
        %1487 = vmatmul.mubr.f32.gmra.mrb[0].mxu0 %v1373
        %v1488 = vpop.f32.mrb[0].mxu0
        %v1489 = vadd.f32 0.0, %v1488
        %v1490 = vpop.f32.mrb[0].mxu0
        %1491 = vmatprep.mubr.f32.mxu0 0.0
        %1492 = vmatmul.mubr.f32.gmra.mrb[0].mxu0 %v1375
        %v1493 = vpop.f32.mrb[0].mxu0
        %v1494 = vadd.f32 0.0, %v1493
        %v1495 = vpop.f32.mrb[0].mxu0
        %1496 = vmatprep.mubr.f32.mxu0 0.0
        %1497 = vmatmul.mubr.f32.gmra.mrb[0].mxu0 %v1377
        %v1498 = vpop.f32.mrb[0].mxu0
        %v1499 = vadd.f32 0.0, %v1498
        %v1500 = vpop.f32.mrb[0].mxu0
        %1501 = vmatprep.mubr.f32.mxu0 0.0
        %1502 = vmatmul.mubr.f32.gmra.mrb[0].mxu0 %v1379
        %v1503 = vpop.f32.mrb[0].mxu0
        %v1504 = vadd.f32 0.0, %v1503
        %v1505 = vpop.f32.mrb[0].mxu0
        %1506 = vmatprep.mubr.f32.mxu0 0.0
        %1507 = vmatmul.mubr.f32.gmra.mrb[0].mxu0 %v1381
        %v1508 = vpop.f32.mrb[0].mxu0
        %v1509 = vadd.f32 0.0, %v1508
        %v1510 = vpop.f32.mrb[0].mxu0
        %1511 = vdwg.mxu0
        %v1512 = vsel %vm1358, %v1299, 0
        %v1514 = vsel %vm1358, %v1300, 0
        %v1516 = vsel %vm1358, %v1301, 0
        %v1518 = vsel %vm1358, %v1302, 0
        %v1520 = vsel %vm1358, %v1303, 0
        %v1522 = vsel %vm1358, %v1304, 0
        %v1524 = vsel %vm1358, %v1305, 0
        %v1526 = vsel %vm1358, %v1306, 0
        %v1528 = vsel %vm1358, %v1307, 0
        %v1530 = vsel %vm1358, %v1308, 0
        %v1532 = vsel %vm1358, %v1309, 0
        %v1534 = vsel %vm1358, %v1310, 0
        %v1537 = vsel %vm1383, %v1318, 0
        %1539 = vmatprep.subr.mxu0 0.0
        %1540 = vmatpush1.msra.mxu0 %v1317
        %1541 = vmatprep.subr.mxu0 0.0
        %1542 = vmatpush1.msra.mxu0 %v1537
        %1543 = vmatprep.subr.mxu0 0.0
        %1544 = vmatpush1.msra.mxu0 0.0
        %1545 = vmatprep.subr.mxu0 0.0
        %1546 = vmatpush1.msra.mxu0 0.0
        %1547 = vmatprep.subr.mxu0 0.0
        %1548 = vmatpush1.msra.mxu0 0.0
        %1549 = vmatprep.subr.mxu0 0.0
        %1550 = vmatpush1.msra.mxu0 0.0
        %1551 = vmatprep.subr.mxu0 0.0
        %1552 = vmatpush1.msra.mxu0 0.0
        %1553 = vmatprep.subr.mxu0 0.0
        %1554 = vmatpush1.msra.mxu0 0.0
        %1555 = vmatprep.subr.mxu0 0.0
        %1556 = vmatpush1.msra.mxu0 0.0
        %1557 = vmatprep.subr.mxu0 0.0
        %1558 = vmatpush1.msra.mxu0 0.0
        %1559 = vmatprep.subr.mxu0 0.0
        %1560 = vmatpush1.msra.mxu0 0.0
        %1561 = vmatprep.subr.mxu0 0.0
        %1562 = vmatpush1.msra.mxu0 0.0
        %1563 = vmatprep.subr.mxu0 0.0
        %1564 = vmatpush1.msra.mxu0 0.0
        %1565 = vmatprep.subr.mxu0 0.0
        %1566 = vmatpush1.msra.mxu0 0.0
        %1567 = vmatprep.subr.mxu0 0.0
        %1568 = vmatpush1.msra.mxu0 0.0
        %1569 = vmatprep.subr.mxu0 0.0
        %1570 = vmatpush1.msra.mxu0 0.0
        %1571 = vmatprep.subr.mxu0 0.0
        %1572 = vmatpush1.msra.mxu0 0.0
        %1573 = vmatprep.subr.mxu0 0.0
        %1574 = vmatpush1.msra.mxu0 0.0
        %1575 = vmatprep.subr.mxu0 0.0
        %1576 = vmatpush1.msra.mxu0 0.0
        %1577 = vmatprep.subr.mxu0 0.0
        %1578 = vmatpush1.msra.mxu0 0.0
        %1579 = vmatprep.subr.mxu0 0.0
        %1580 = vmatpush1.msra.mxu0 0.0
        %1581 = vmatprep.subr.mxu0 0.0
        %1582 = vmatpush1.msra.mxu0 0.0
        %1583 = vmatprep.subr.mxu0 0.0
        %1584 = vmatpush1.msra.mxu0 0.0
        %1585 = vmatprep.subr.mxu0 0.0
        %1586 = vmatpush1.msra.mxu0 0.0
        %1587 = vmatprep.subr.mxu0 0.0
        %1588 = vmatpush1.msra.mxu0 0.0
        %1589 = vmatprep.subr.mxu0 0.0
        %1590 = vmatpush1.msra.mxu0 0.0
        %1591 = vmatprep.subr.mxu0 0.0
        %1592 = vmatpush1.msra.mxu0 0.0
        %1593 = vmatprep.subr.mxu0 0.0
        %1594 = vmatpush1.msra.mxu0 0.0
        %1595 = vmatprep.subr.mxu0 0.0
        %1596 = vmatpush1.msra.mxu0 0.0
        %1597 = vmatprep.subr.mxu0 0.0
        %1598 = vmatpush1.msra.mxu0 0.0
        %1599 = vmatprep.subr.mxu0 0.0
        %1600 = vmatpush1.msra.mxu0 0.0
        %1601 = vmatprep.subr.mxu0 0.0
        %1602 = vmatpush1.msra.mxu0 0.0
        %1603 = vmatprep.mubr.f32.mxu0 0.0
        %1604 = vmatmul.mubr.f32.gmra.mrb[0].mxu0 %v1512
        %v1605 = vpop.f32.mrb[0].mxu0
        %v1606 = vadd.f32 %v1454, %v1605
        %v1607 = vpop.f32.mrb[0].mxu0
        %1608 = vmatprep.mubr.f32.mxu0 0.0
        %1609 = vmatmul.mubr.f32.gmra.mrb[0].mxu0 %v1514
        %v1610 = vpop.f32.mrb[0].mxu0
        %v1611 = vadd.f32 %v1459, %v1610
        %v1612 = vpop.f32.mrb[0].mxu0
        %1613 = vmatprep.mubr.f32.mxu0 0.0
        %1614 = vmatmul.mubr.f32.gmra.mrb[0].mxu0 %v1516
        %v1615 = vpop.f32.mrb[0].mxu0
        %v1616 = vadd.f32 %v1464, %v1615
        %v1617 = vpop.f32.mrb[0].mxu0
        %1618 = vmatprep.mubr.f32.mxu0 0.0
        %1619 = vmatmul.mubr.f32.gmra.mrb[0].mxu0 %v1518
        %v1620 = vpop.f32.mrb[0].mxu0
        %v1621 = vadd.f32 %v1469, %v1620
        %v1622 = vpop.f32.mrb[0].mxu0
        %1623 = vmatprep.mubr.f32.mxu0 0.0
        %1624 = vmatmul.mubr.f32.gmra.mrb[0].mxu0 %v1520
        %v1625 = vpop.f32.mrb[0].mxu0
        %v1626 = vadd.f32 %v1474, %v1625
        %v1627 = vpop.f32.mrb[0].mxu0
        %1628 = vmatprep.mubr.f32.mxu0 0.0
        %1629 = vmatmul.mubr.f32.gmra.mrb[0].mxu0 %v1522
        %v1630 = vpop.f32.mrb[0].mxu0
        %v1631 = vadd.f32 %v1479, %v1630
        %v1632 = vpop.f32.mrb[0].mxu0
        %1633 = vmatprep.mubr.f32.mxu0 0.0
        %1634 = vmatmul.mubr.f32.gmra.mrb[0].mxu0 %v1524
        %v1635 = vpop.f32.mrb[0].mxu0
        %v1636 = vadd.f32 %v1484, %v1635
        %v1637 = vpop.f32.mrb[0].mxu0
        %1638 = vmatprep.mubr.f32.mxu0 0.0
        %1639 = vmatmul.mubr.f32.gmra.mrb[0].mxu0 %v1526
        %v1640 = vpop.f32.mrb[0].mxu0
        %v1641 = vadd.f32 %v1489, %v1640
        %v1642 = vpop.f32.mrb[0].mxu0
        %1643 = vmatprep.mubr.f32.mxu0 0.0
        %1644 = vmatmul.mubr.f32.gmra.mrb[0].mxu0 %v1528
        %v1645 = vpop.f32.mrb[0].mxu0
        %v1646 = vadd.f32 %v1494, %v1645
        %v1647 = vpop.f32.mrb[0].mxu0
        %1648 = vmatprep.mubr.f32.mxu0 0.0
        %1649 = vmatmul.mubr.f32.gmra.mrb[0].mxu0 %v1530
        %v1650 = vpop.f32.mrb[0].mxu0
        %v1651 = vadd.f32 %v1499, %v1650
        %v1652 = vpop.f32.mrb[0].mxu0
        %1653 = vmatprep.mubr.f32.mxu0 0.0
        %1654 = vmatmul.mubr.f32.gmra.mrb[0].mxu0 %v1532
        %v1655 = vpop.f32.mrb[0].mxu0
        %v1656 = vadd.f32 %v1504, %v1655
        %v1657 = vpop.f32.mrb[0].mxu0
        %1658 = vmatprep.mubr.f32.mxu0 0.0
        %1659 = vmatmul.mubr.f32.gmra.mrb[0].mxu0 %v1534
        %v1660 = vpop.f32.mrb[0].mxu0
        %v1661 = vadd.f32 %v1509, %v1660
        %v1662 = vpop.f32.mrb[0].mxu0
        %1663 = vdwg.mxu0
        %s1664 = scalar_lea.vmem %s3, 32
        %v1665 = vld [vmem:[%s1664] sm:$0xff]
        %v1666 = vld [vmem:[%s1664 + $0x8] sm:$0x3]
        %vm1667 = vcmask 1045504
        %v1668 = vrot.slane %v1299, 2
        %v1669 = vrot.slane %v1300, 2
        %v1670 = vsel %vm1667, %v1668, %v1669
        %v1671 = vrot.slane %v1301, 2
        %v1672 = vsel %vm1667, %v1669, %v1671
        %v1673 = vrot.slane %v1302, 2
        %v1674 = vsel %vm1667, %v1671, %v1673
        %v1675 = vrot.slane %v1303, 2
        %v1676 = vsel %vm1667, %v1673, %v1675
        %v1677 = vrot.slane %v1304, 2
        %v1678 = vsel %vm1667, %v1675, %v1677
        %v1679 = vrot.slane %v1305, 2
        %v1680 = vsel %vm1667, %v1677, %v1679
        %v1681 = vrot.slane %v1306, 2
        %v1682 = vsel %vm1667, %v1679, %v1681
        %v1683 = vrot.slane %v1307, 2
        %v1684 = vsel %vm1667, %v1681, %v1683
        %v1685 = vrot.slane %v1308, 2
        %v1686 = vsel %vm1667, %v1683, %v1685
        %v1687 = vrot.slane %v1309, 2
        %v1688 = vsel %vm1667, %v1685, %v1687
        %v1689 = vrot.slane %v1310, 2
        %v1690 = vsel %vm1667, %v1687, %v1689
        %v1691 = vsel %vm1358, %v1670, 0
        %v1693 = vsel %vm1358, %v1672, 0
        %v1695 = vsel %vm1358, %v1674, 0
        %v1697 = vsel %vm1358, %v1676, 0
        %v1699 = vsel %vm1358, %v1678, 0
        %v1701 = vsel %vm1358, %v1680, 0
        %v1703 = vsel %vm1358, %v1682, 0
        %v1705 = vsel %vm1358, %v1684, 0
        %v1707 = vsel %vm1358, %v1686, 0
        %v1709 = vsel %vm1358, %v1688, 0
        %v1711 = vsel %vm1358, %v1690, 0
        %v1713 = vsel %vm1358, %v1689, 0
        %v1716 = vsel %vm1383, %v1666, 0
        %1718 = vmatprep.subr.mxu0 0.0
        %1719 = vmatpush1.msra.mxu0 %v1665
        %1720 = vmatprep.subr.mxu0 0.0
        %1721 = vmatpush1.msra.mxu0 %v1716
        %1722 = vmatprep.subr.mxu0 0.0
        %1723 = vmatpush1.msra.mxu0 0.0
        %1724 = vmatprep.subr.mxu0 0.0
        %1725 = vmatpush1.msra.mxu0 0.0
        %1726 = vmatprep.subr.mxu0 0.0
        %1727 = vmatpush1.msra.mxu0 0.0
        %1728 = vmatprep.subr.mxu0 0.0
        %1729 = vmatpush1.msra.mxu0 0.0
        %1730 = vmatprep.subr.mxu0 0.0
        %1731 = vmatpush1.msra.mxu0 0.0
        %1732 = vmatprep.subr.mxu0 0.0
        %1733 = vmatpush1.msra.mxu0 0.0
        %1734 = vmatprep.subr.mxu0 0.0
        %1735 = vmatpush1.msra.mxu0 0.0
        %1736 = vmatprep.subr.mxu0 0.0
        %1737 = vmatpush1.msra.mxu0 0.0
        %1738 = vmatprep.subr.mxu0 0.0
        %1739 = vmatpush1.msra.mxu0 0.0
        %1740 = vmatprep.subr.mxu0 0.0
        %1741 = vmatpush1.msra.mxu0 0.0
        %1742 = vmatprep.subr.mxu0 0.0
        %1743 = vmatpush1.msra.mxu0 0.0
        %1744 = vmatprep.subr.mxu0 0.0
        %1745 = vmatpush1.msra.mxu0 0.0
        %1746 = vmatprep.subr.mxu0 0.0
        %1747 = vmatpush1.msra.mxu0 0.0
        %1748 = vmatprep.subr.mxu0 0.0
        %1749 = vmatpush1.msra.mxu0 0.0
        %1750 = vmatprep.subr.mxu0 0.0
        %1751 = vmatpush1.msra.mxu0 0.0
        %1752 = vmatprep.subr.mxu0 0.0
        %1753 = vmatpush1.msra.mxu0 0.0
        %1754 = vmatprep.subr.mxu0 0.0
        %1755 = vmatpush1.msra.mxu0 0.0
        %1756 = vmatprep.subr.mxu0 0.0
        %1757 = vmatpush1.msra.mxu0 0.0
        %1758 = vmatprep.subr.mxu0 0.0
        %1759 = vmatpush1.msra.mxu0 0.0
        %1760 = vmatprep.subr.mxu0 0.0
        %1761 = vmatpush1.msra.mxu0 0.0
        %1762 = vmatprep.subr.mxu0 0.0
        %1763 = vmatpush1.msra.mxu0 0.0
        %1764 = vmatprep.subr.mxu0 0.0
        %1765 = vmatpush1.msra.mxu0 0.0
        %1766 = vmatprep.subr.mxu0 0.0
        %1767 = vmatpush1.msra.mxu0 0.0
        %1768 = vmatprep.subr.mxu0 0.0
        %1769 = vmatpush1.msra.mxu0 0.0
        %1770 = vmatprep.subr.mxu0 0.0
        %1771 = vmatpush1.msra.mxu0 0.0
        %1772 = vmatprep.subr.mxu0 0.0
        %1773 = vmatpush1.msra.mxu0 0.0
        %1774 = vmatprep.subr.mxu0 0.0
        %1775 = vmatpush1.msra.mxu0 0.0
        %1776 = vmatprep.subr.mxu0 0.0
        %1777 = vmatpush1.msra.mxu0 0.0
        %1778 = vmatprep.subr.mxu0 0.0
        %1779 = vmatpush1.msra.mxu0 0.0
        %1780 = vmatprep.subr.mxu0 0.0
        %1781 = vmatpush1.msra.mxu0 0.0
        %1782 = vmatprep.mubr.f32.mxu0 0.0
        %1783 = vmatmul.mubr.f32.gmra.mrb[0].mxu0 %v1691
        %v1784 = vpop.f32.mrb[0].mxu0
        %v1785 = vadd.f32 0.0, %v1784
        %v1786 = vpop.f32.mrb[0].mxu0
        %1787 = vmatprep.mubr.f32.mxu0 0.0
        %1788 = vmatmul.mubr.f32.gmra.mrb[0].mxu0 %v1693
        %v1789 = vpop.f32.mrb[0].mxu0
        %v1790 = vadd.f32 0.0, %v1789
        %v1791 = vpop.f32.mrb[0].mxu0
        %1792 = vmatprep.mubr.f32.mxu0 0.0
        %1793 = vmatmul.mubr.f32.gmra.mrb[0].mxu0 %v1695
        %v1794 = vpop.f32.mrb[0].mxu0
        %v1795 = vadd.f32 0.0, %v1794
        %v1796 = vpop.f32.mrb[0].mxu0
        %1797 = vmatprep.mubr.f32.mxu0 0.0
        %1798 = vmatmul.mubr.f32.gmra.mrb[0].mxu0 %v1697
        %v1799 = vpop.f32.mrb[0].mxu0
        %v1800 = vadd.f32 0.0, %v1799
        %v1801 = vpop.f32.mrb[0].mxu0
        %1802 = vmatprep.mubr.f32.mxu0 0.0
        %1803 = vmatmul.mubr.f32.gmra.mrb[0].mxu0 %v1699
        %v1804 = vpop.f32.mrb[0].mxu0
        %v1805 = vadd.f32 0.0, %v1804
        %v1806 = vpop.f32.mrb[0].mxu0
        %1807 = vmatprep.mubr.f32.mxu0 0.0
        %1808 = vmatmul.mubr.f32.gmra.mrb[0].mxu0 %v1701
        %v1809 = vpop.f32.mrb[0].mxu0
        %v1810 = vadd.f32 0.0, %v1809
        %v1811 = vpop.f32.mrb[0].mxu0
        %1812 = vmatprep.mubr.f32.mxu0 0.0
        %1813 = vmatmul.mubr.f32.gmra.mrb[0].mxu0 %v1703
        %v1814 = vpop.f32.mrb[0].mxu0
        %v1815 = vadd.f32 0.0, %v1814
        %v1816 = vpop.f32.mrb[0].mxu0
        %1817 = vmatprep.mubr.f32.mxu0 0.0
        %1818 = vmatmul.mubr.f32.gmra.mrb[0].mxu0 %v1705
        %v1819 = vpop.f32.mrb[0].mxu0
        %v1820 = vadd.f32 0.0, %v1819
        %v1821 = vpop.f32.mrb[0].mxu0
        %1822 = vmatprep.mubr.f32.mxu0 0.0
        %1823 = vmatmul.mubr.f32.gmra.mrb[0].mxu0 %v1707
        %v1824 = vpop.f32.mrb[0].mxu0
        %v1825 = vadd.f32 0.0, %v1824
        %v1826 = vpop.f32.mrb[0].mxu0
        %1827 = vmatprep.mubr.f32.mxu0 0.0
        %1828 = vmatmul.mubr.f32.gmra.mrb[0].mxu0 %v1709
        %v1829 = vpop.f32.mrb[0].mxu0
        %v1830 = vadd.f32 0.0, %v1829
        %v1831 = vpop.f32.mrb[0].mxu0
        %1832 = vmatprep.mubr.f32.mxu0 0.0
        %1833 = vmatmul.mubr.f32.gmra.mrb[0].mxu0 %v1711
        %v1834 = vpop.f32.mrb[0].mxu0
        %v1835 = vadd.f32 0.0, %v1834
        %v1836 = vpop.f32.mrb[0].mxu0
        %1837 = vmatprep.mubr.f32.mxu0 0.0
        %1838 = vmatmul.mubr.f32.gmra.mrb[0].mxu0 %v1713
        %v1839 = vpop.f32.mrb[0].mxu0
        %v1840 = vadd.f32 0.0, %v1839
        %v1841 = vpop.f32.mrb[0].mxu0
        %1842 = vdwg.mxu0
        %v1843 = vadd.f32 %v1606, %v1785
        %v1844 = vadd.f32 %v1611, %v1790
        %v1845 = vadd.f32 %v1616, %v1795
        %v1846 = vadd.f32 %v1621, %v1800
        %v1847 = vadd.f32 %v1626, %v1805
        %v1848 = vadd.f32 %v1631, %v1810
        %v1849 = vadd.f32 %v1636, %v1815
        %v1850 = vadd.f32 %v1641, %v1820
        %v1851 = vadd.f32 %v1646, %v1825
        %v1852 = vadd.f32 %v1651, %v1830
        %v1853 = vadd.f32 %v1656, %v1835
        %v1854 = vadd.f32 %v1661, %v1840
        %s1855 = scalar_lea.vmem %s3, 48
        %v1856 = vld [vmem:[%s1855] sm:$0xff]
        %v1857 = vld [vmem:[%s1855 + $0x8] sm:$0x3]
        %vm1858 = vcmask 1044480
        %v1859 = vrot.slane %v1299, 3
        %v1860 = vrot.slane %v1300, 3
        %v1861 = vsel %vm1858, %v1859, %v1860
        %v1862 = vrot.slane %v1301, 3
        %v1863 = vsel %vm1858, %v1860, %v1862
        %v1864 = vrot.slane %v1302, 3
        %v1865 = vsel %vm1858, %v1862, %v1864
        %v1866 = vrot.slane %v1303, 3
        %v1867 = vsel %vm1858, %v1864, %v1866
        %v1868 = vrot.slane %v1304, 3
        %v1869 = vsel %vm1858, %v1866, %v1868
        %v1870 = vrot.slane %v1305, 3
        %v1871 = vsel %vm1858, %v1868, %v1870
        %v1872 = vrot.slane %v1306, 3
        %v1873 = vsel %vm1858, %v1870, %v1872
        %v1874 = vrot.slane %v1307, 3
        %v1875 = vsel %vm1858, %v1872, %v1874
        %v1876 = vrot.slane %v1308, 3
        %v1877 = vsel %vm1858, %v1874, %v1876
        %v1878 = vrot.slane %v1309, 3
        %v1879 = vsel %vm1858, %v1876, %v1878
        %v1880 = vrot.slane %v1310, 3
        %v1881 = vsel %vm1858, %v1878, %v1880
        %v1882 = vsel %vm1358, %v1861, 0
        %v1884 = vsel %vm1358, %v1863, 0
        %v1886 = vsel %vm1358, %v1865, 0
        %v1888 = vsel %vm1358, %v1867, 0
        %v1890 = vsel %vm1358, %v1869, 0
        %v1892 = vsel %vm1358, %v1871, 0
        %v1894 = vsel %vm1358, %v1873, 0
        %v1896 = vsel %vm1358, %v1875, 0
        %v1898 = vsel %vm1358, %v1877, 0
        %v1900 = vsel %vm1358, %v1879, 0
        %v1902 = vsel %vm1358, %v1881, 0
        %v1904 = vsel %vm1358, %v1880, 0
        %v1907 = vsel %vm1383, %v1857, 0
        %1909 = vmatprep.subr.mxu0 0.0
        %1910 = vmatpush1.msra.mxu0 %v1856
        %1911 = vmatprep.subr.mxu0 0.0
        %1912 = vmatpush1.msra.mxu0 %v1907
        %1913 = vmatprep.subr.mxu0 0.0
        %1914 = vmatpush1.msra.mxu0 0.0
        %1915 = vmatprep.subr.mxu0 0.0
        %1916 = vmatpush1.msra.mxu0 0.0
        %1917 = vmatprep.subr.mxu0 0.0
        %1918 = vmatpush1.msra.mxu0 0.0
        %1919 = vmatprep.subr.mxu0 0.0
        %1920 = vmatpush1.msra.mxu0 0.0
        %1921 = vmatprep.subr.mxu0 0.0
        %1922 = vmatpush1.msra.mxu0 0.0
        %1923 = vmatprep.subr.mxu0 0.0
        %1924 = vmatpush1.msra.mxu0 0.0
        %1925 = vmatprep.subr.mxu0 0.0
        %1926 = vmatpush1.msra.mxu0 0.0
        %1927 = vmatprep.subr.mxu0 0.0
        %1928 = vmatpush1.msra.mxu0 0.0
        %1929 = vmatprep.subr.mxu0 0.0
        %1930 = vmatpush1.msra.mxu0 0.0
        %1931 = vmatprep.subr.mxu0 0.0
        %1932 = vmatpush1.msra.mxu0 0.0
        %1933 = vmatprep.subr.mxu0 0.0
        %1934 = vmatpush1.msra.mxu0 0.0
        %1935 = vmatprep.subr.mxu0 0.0
        %1936 = vmatpush1.msra.mxu0 0.0
        %1937 = vmatprep.subr.mxu0 0.0
        %1938 = vmatpush1.msra.mxu0 0.0
        %1939 = vmatprep.subr.mxu0 0.0
        %1940 = vmatpush1.msra.mxu0 0.0
        %1941 = vmatprep.subr.mxu0 0.0
        %1942 = vmatpush1.msra.mxu0 0.0
        %1943 = vmatprep.subr.mxu0 0.0
        %1944 = vmatpush1.msra.mxu0 0.0
        %1945 = vmatprep.subr.mxu0 0.0
        %1946 = vmatpush1.msra.mxu0 0.0
        %1947 = vmatprep.subr.mxu0 0.0
        %1948 = vmatpush1.msra.mxu0 0.0
        %1949 = vmatprep.subr.mxu0 0.0
        %1950 = vmatpush1.msra.mxu0 0.0
        %1951 = vmatprep.subr.mxu0 0.0
        %1952 = vmatpush1.msra.mxu0 0.0
        %1953 = vmatprep.subr.mxu0 0.0
        %1954 = vmatpush1.msra.mxu0 0.0
        %1955 = vmatprep.subr.mxu0 0.0
        %1956 = vmatpush1.msra.mxu0 0.0
        %1957 = vmatprep.subr.mxu0 0.0
        %1958 = vmatpush1.msra.mxu0 0.0
        %1959 = vmatprep.subr.mxu0 0.0
        %1960 = vmatpush1.msra.mxu0 0.0
        %1961 = vmatprep.subr.mxu0 0.0
        %1962 = vmatpush1.msra.mxu0 0.0
        %1963 = vmatprep.subr.mxu0 0.0
        %1964 = vmatpush1.msra.mxu0 0.0
        %1965 = vmatprep.subr.mxu0 0.0
        %1966 = vmatpush1.msra.mxu0 0.0
        %1967 = vmatprep.subr.mxu0 0.0
        %1968 = vmatpush1.msra.mxu0 0.0
        %1969 = vmatprep.subr.mxu0 0.0
        %1970 = vmatpush1.msra.mxu0 0.0
        %1971 = vmatprep.subr.mxu0 0.0
        %1972 = vmatpush1.msra.mxu0 0.0
        %1973 = vmatprep.mubr.f32.mxu0 0.0
        %1974 = vmatmul.mubr.f32.gmra.mrb[0].mxu0 %v1882
        %v1975 = vpop.f32.mrb[0].mxu0
        %v1976 = vadd.f32 0.0, %v1975
        %v1977 = vpop.f32.mrb[0].mxu0
        %1978 = vmatprep.mubr.f32.mxu0 0.0
        %1979 = vmatmul.mubr.f32.gmra.mrb[0].mxu0 %v1884
        %v1980 = vpop.f32.mrb[0].mxu0
        %v1981 = vadd.f32 0.0, %v1980
        %v1982 = vpop.f32.mrb[0].mxu0
        %1983 = vmatprep.mubr.f32.mxu0 0.0
        %1984 = vmatmul.mubr.f32.gmra.mrb[0].mxu0 %v1886
        %v1985 = vpop.f32.mrb[0].mxu0
        %v1986 = vadd.f32 0.0, %v1985
        %v1987 = vpop.f32.mrb[0].mxu0
        %1988 = vmatprep.mubr.f32.mxu0 0.0
        %1989 = vmatmul.mubr.f32.gmra.mrb[0].mxu0 %v1888
        %v1990 = vpop.f32.mrb[0].mxu0
        %v1991 = vadd.f32 0.0, %v1990
        %v1992 = vpop.f32.mrb[0].mxu0
        %1993 = vmatprep.mubr.f32.mxu0 0.0
        %1994 = vmatmul.mubr.f32.gmra.mrb[0].mxu0 %v1890
        %v1995 = vpop.f32.mrb[0].mxu0
        %v1996 = vadd.f32 0.0, %v1995
        %v1997 = vpop.f32.mrb[0].mxu0
        %1998 = vmatprep.mubr.f32.mxu0 0.0
        %1999 = vmatmul.mubr.f32.gmra.mrb[0].mxu0 %v1892
        %v2000 = vpop.f32.mrb[0].mxu0
        %v2001 = vadd.f32 0.0, %v2000
        %v2002 = vpop.f32.mrb[0].mxu0
        %2003 = vmatprep.mubr.f32.mxu0 0.0
        %2004 = vmatmul.mubr.f32.gmra.mrb[0].mxu0 %v1894
        %v2005 = vpop.f32.mrb[0].mxu0
        %v2006 = vadd.f32 0.0, %v2005
        %v2007 = vpop.f32.mrb[0].mxu0
        %2008 = vmatprep.mubr.f32.mxu0 0.0
        %2009 = vmatmul.mubr.f32.gmra.mrb[0].mxu0 %v1896
        %v2010 = vpop.f32.mrb[0].mxu0
        %v2011 = vadd.f32 0.0, %v2010
        %v2012 = vpop.f32.mrb[0].mxu0
        %2013 = vmatprep.mubr.f32.mxu0 0.0
        %2014 = vmatmul.mubr.f32.gmra.mrb[0].mxu0 %v1898
        %v2015 = vpop.f32.mrb[0].mxu0
        %v2016 = vadd.f32 0.0, %v2015
        %v2017 = vpop.f32.mrb[0].mxu0
        %2018 = vmatprep.mubr.f32.mxu0 0.0
        %2019 = vmatmul.mubr.f32.gmra.mrb[0].mxu0 %v1900
        %v2020 = vpop.f32.mrb[0].mxu0
        %v2021 = vadd.f32 0.0, %v2020
        %v2022 = vpop.f32.mrb[0].mxu0
        %2023 = vmatprep.mubr.f32.mxu0 0.0
        %2024 = vmatmul.mubr.f32.gmra.mrb[0].mxu0 %v1902
        %v2025 = vpop.f32.mrb[0].mxu0
        %v2026 = vadd.f32 0.0, %v2025
        %v2027 = vpop.f32.mrb[0].mxu0
        %2028 = vmatprep.mubr.f32.mxu0 0.0
        %2029 = vmatmul.mubr.f32.gmra.mrb[0].mxu0 %v1904
        %v2030 = vpop.f32.mrb[0].mxu0
        %v2031 = vadd.f32 0.0, %v2030
        %v2032 = vpop.f32.mrb[0].mxu0
        %2033 = vdwg.mxu0
        %v2034 = vadd.f32 %v1843, %v1976
        %v2035 = vadd.f32 %v1844, %v1981
        %v2036 = vadd.f32 %v1845, %v1986
        %v2037 = vadd.f32 %v1846, %v1991
        %v2038 = vadd.f32 %v1847, %v1996
        %v2039 = vadd.f32 %v1848, %v2001
        %v2040 = vadd.f32 %v1849, %v2006
        %v2041 = vadd.f32 %v1850, %v2011
        %v2042 = vadd.f32 %v1851, %v2016
        %v2043 = vadd.f32 %v1852, %v2021
        %v2044 = vadd.f32 %v1853, %v2026
        %v2045 = vadd.f32 %v1854, %v2031
        %s2046 = scalar_lea.vmem %s3, 64
        %v2047 = vld [vmem:[%s2046] sm:$0xff]
        %v2048 = vld [vmem:[%s2046 + $0x8] sm:$0x3]
        %vm2049 = vcmask 1043456
        %v2050 = vrot.slane %v1299, 4
        %v2051 = vrot.slane %v1300, 4
        %v2052 = vsel %vm2049, %v2050, %v2051
        %v2053 = vrot.slane %v1301, 4
        %v2054 = vsel %vm2049, %v2051, %v2053
        %v2055 = vrot.slane %v1302, 4
        %v2056 = vsel %vm2049, %v2053, %v2055
        %v2057 = vrot.slane %v1303, 4
        %v2058 = vsel %vm2049, %v2055, %v2057
        %v2059 = vrot.slane %v1304, 4
        %v2060 = vsel %vm2049, %v2057, %v2059
        %v2061 = vrot.slane %v1305, 4
        %v2062 = vsel %vm2049, %v2059, %v2061
        %v2063 = vrot.slane %v1306, 4
        %v2064 = vsel %vm2049, %v2061, %v2063
        %v2065 = vrot.slane %v1307, 4
        %v2066 = vsel %vm2049, %v2063, %v2065
        %v2067 = vrot.slane %v1308, 4
        %v2068 = vsel %vm2049, %v2065, %v2067
        %v2069 = vrot.slane %v1309, 4
        %v2070 = vsel %vm2049, %v2067, %v2069
        %v2071 = vrot.slane %v1310, 4
        %v2072 = vsel %vm2049, %v2069, %v2071
        %v2073 = vsel %vm1358, %v2052, 0
        %v2075 = vsel %vm1358, %v2054, 0
        %v2077 = vsel %vm1358, %v2056, 0
        %v2079 = vsel %vm1358, %v2058, 0
        %v2081 = vsel %vm1358, %v2060, 0
        %v2083 = vsel %vm1358, %v2062, 0
        %v2085 = vsel %vm1358, %v2064, 0
        %v2087 = vsel %vm1358, %v2066, 0
        %v2089 = vsel %vm1358, %v2068, 0
        %v2091 = vsel %vm1358, %v2070, 0
        %v2093 = vsel %vm1358, %v2072, 0
        %v2095 = vsel %vm1358, %v2071, 0
        %v2098 = vsel %vm1383, %v2048, 0
        %2100 = vmatprep.subr.mxu0 0.0
        %2101 = vmatpush1.msra.mxu0 %v2047
        %2102 = vmatprep.subr.mxu0 0.0
        %2103 = vmatpush1.msra.mxu0 %v2098
        %2104 = vmatprep.subr.mxu0 0.0
        %2105 = vmatpush1.msra.mxu0 0.0
        %2106 = vmatprep.subr.mxu0 0.0
        %2107 = vmatpush1.msra.mxu0 0.0
        %2108 = vmatprep.subr.mxu0 0.0
        %2109 = vmatpush1.msra.mxu0 0.0
        %2110 = vmatprep.subr.mxu0 0.0
        %2111 = vmatpush1.msra.mxu0 0.0
        %2112 = vmatprep.subr.mxu0 0.0
        %2113 = vmatpush1.msra.mxu0 0.0
        %2114 = vmatprep.subr.mxu0 0.0
        %2115 = vmatpush1.msra.mxu0 0.0
        %2116 = vmatprep.subr.mxu0 0.0
        %2117 = vmatpush1.msra.mxu0 0.0
        %2118 = vmatprep.subr.mxu0 0.0
        %2119 = vmatpush1.msra.mxu0 0.0
        %2120 = vmatprep.subr.mxu0 0.0
        %2121 = vmatpush1.msra.mxu0 0.0
        %2122 = vmatprep.subr.mxu0 0.0
        %2123 = vmatpush1.msra.mxu0 0.0
        %2124 = vmatprep.subr.mxu0 0.0
        %2125 = vmatpush1.msra.mxu0 0.0
        %2126 = vmatprep.subr.mxu0 0.0
        %2127 = vmatpush1.msra.mxu0 0.0
        %2128 = vmatprep.subr.mxu0 0.0
        %2129 = vmatpush1.msra.mxu0 0.0
        %2130 = vmatprep.subr.mxu0 0.0
        %2131 = vmatpush1.msra.mxu0 0.0
        %2132 = vmatprep.subr.mxu0 0.0
        %2133 = vmatpush1.msra.mxu0 0.0
        %2134 = vmatprep.subr.mxu0 0.0
        %2135 = vmatpush1.msra.mxu0 0.0
        %2136 = vmatprep.subr.mxu0 0.0
        %2137 = vmatpush1.msra.mxu0 0.0
        %2138 = vmatprep.subr.mxu0 0.0
        %2139 = vmatpush1.msra.mxu0 0.0
        %2140 = vmatprep.subr.mxu0 0.0
        %2141 = vmatpush1.msra.mxu0 0.0
        %2142 = vmatprep.subr.mxu0 0.0
        %2143 = vmatpush1.msra.mxu0 0.0
        %2144 = vmatprep.subr.mxu0 0.0
        %2145 = vmatpush1.msra.mxu0 0.0
        %2146 = vmatprep.subr.mxu0 0.0
        %2147 = vmatpush1.msra.mxu0 0.0
        %2148 = vmatprep.subr.mxu0 0.0
        %2149 = vmatpush1.msra.mxu0 0.0
        %2150 = vmatprep.subr.mxu0 0.0
        %2151 = vmatpush1.msra.mxu0 0.0
        %2152 = vmatprep.subr.mxu0 0.0
        %2153 = vmatpush1.msra.mxu0 0.0
        %2154 = vmatprep.subr.mxu0 0.0
        %2155 = vmatpush1.msra.mxu0 0.0
        %2156 = vmatprep.subr.mxu0 0.0
        %2157 = vmatpush1.msra.mxu0 0.0
        %2158 = vmatprep.subr.mxu0 0.0
        %2159 = vmatpush1.msra.mxu0 0.0
        %2160 = vmatprep.subr.mxu0 0.0
        %2161 = vmatpush1.msra.mxu0 0.0
        %2162 = vmatprep.subr.mxu0 0.0
        %2163 = vmatpush1.msra.mxu0 0.0
        %2164 = vmatprep.mubr.f32.mxu0 0.0
        %2165 = vmatmul.mubr.f32.gmra.mrb[0].mxu0 %v2073
        %v2166 = vpop.f32.mrb[0].mxu0
        %v2167 = vadd.f32 0.0, %v2166
        %v2168 = vpop.f32.mrb[0].mxu0
        %2169 = vmatprep.mubr.f32.mxu0 0.0
        %2170 = vmatmul.mubr.f32.gmra.mrb[0].mxu0 %v2075
        %v2171 = vpop.f32.mrb[0].mxu0
        %v2172 = vadd.f32 0.0, %v2171
        %v2173 = vpop.f32.mrb[0].mxu0
        %2174 = vmatprep.mubr.f32.mxu0 0.0
        %2175 = vmatmul.mubr.f32.gmra.mrb[0].mxu0 %v2077
        %v2176 = vpop.f32.mrb[0].mxu0
        %v2177 = vadd.f32 0.0, %v2176
        %v2178 = vpop.f32.mrb[0].mxu0
        %2179 = vmatprep.mubr.f32.mxu0 0.0
        %2180 = vmatmul.mubr.f32.gmra.mrb[0].mxu0 %v2079
        %v2181 = vpop.f32.mrb[0].mxu0
        %v2182 = vadd.f32 0.0, %v2181
        %v2183 = vpop.f32.mrb[0].mxu0
        %2184 = vmatprep.mubr.f32.mxu0 0.0
        %2185 = vmatmul.mubr.f32.gmra.mrb[0].mxu0 %v2081
        %v2186 = vpop.f32.mrb[0].mxu0
        %v2187 = vadd.f32 0.0, %v2186
        %v2188 = vpop.f32.mrb[0].mxu0
        %2189 = vmatprep.mubr.f32.mxu0 0.0
        %2190 = vmatmul.mubr.f32.gmra.mrb[0].mxu0 %v2083
        %v2191 = vpop.f32.mrb[0].mxu0
        %v2192 = vadd.f32 0.0, %v2191
        %v2193 = vpop.f32.mrb[0].mxu0
        %2194 = vmatprep.mubr.f32.mxu0 0.0
        %2195 = vmatmul.mubr.f32.gmra.mrb[0].mxu0 %v2085
        %v2196 = vpop.f32.mrb[0].mxu0
        %v2197 = vadd.f32 0.0, %v2196
        %v2198 = vpop.f32.mrb[0].mxu0
        %2199 = vmatprep.mubr.f32.mxu0 0.0
        %2200 = vmatmul.mubr.f32.gmra.mrb[0].mxu0 %v2087
        %v2201 = vpop.f32.mrb[0].mxu0
        %v2202 = vadd.f32 0.0, %v2201
        %v2203 = vpop.f32.mrb[0].mxu0
        %2204 = vmatprep.mubr.f32.mxu0 0.0
        %2205 = vmatmul.mubr.f32.gmra.mrb[0].mxu0 %v2089
        %v2206 = vpop.f32.mrb[0].mxu0
        %v2207 = vadd.f32 0.0, %v2206
        %v2208 = vpop.f32.mrb[0].mxu0
        %2209 = vmatprep.mubr.f32.mxu0 0.0
        %2210 = vmatmul.mubr.f32.gmra.mrb[0].mxu0 %v2091
        %v2211 = vpop.f32.mrb[0].mxu0
        %v2212 = vadd.f32 0.0, %v2211
        %v2213 = vpop.f32.mrb[0].mxu0
        %2214 = vmatprep.mubr.f32.mxu0 0.0
        %2215 = vmatmul.mubr.f32.gmra.mrb[0].mxu0 %v2093
        %v2216 = vpop.f32.mrb[0].mxu0
        %v2217 = vadd.f32 0.0, %v2216
        %v2218 = vpop.f32.mrb[0].mxu0
        %2219 = vmatprep.mubr.f32.mxu0 0.0
        %2220 = vmatmul.mubr.f32.gmra.mrb[0].mxu0 %v2095
        %v2221 = vpop.f32.mrb[0].mxu0
        %v2222 = vadd.f32 0.0, %v2221
        %v2223 = vpop.f32.mrb[0].mxu0
        %2224 = vdwg.mxu0
        %v2225 = vadd.f32 %v2034, %v2167
        %v2226 = vadd.f32 %v2035, %v2172
        %v2227 = vadd.f32 %v2036, %v2177
        %v2228 = vadd.f32 %v2037, %v2182
        %v2229 = vadd.f32 %v2038, %v2187
        %v2230 = vadd.f32 %v2039, %v2192
        %v2231 = vadd.f32 %v2040, %v2197
        %v2232 = vadd.f32 %v2041, %v2202
        %v2233 = vadd.f32 %v2042, %v2207
        %v2234 = vadd.f32 %v2043, %v2212
        %v2235 = vadd.f32 %v2044, %v2217
        %v2236 = vadd.f32 %v2045, %v2222
        %s2237 = scalar_lea.vmem %s3, 80
        %v2238 = vld [vmem:[%s2237] sm:$0xff]
        %v2239 = vld [vmem:[%s2237 + $0x8] sm:$0x3]
        %v2241 = vrot.slane %v1311, 4
        %v2242 = vsel %vm2049, %v2071, %v2241
        %v2243 = vsel %vm1358, %v2242, 0
        %v2245 = vsel %vm1358, %v2241, 0
        %v2248 = vsel %vm1383, %v2239, 0
        %2250 = vmatprep.subr.mxu0 0.0
        %2251 = vmatpush1.msra.mxu0 %v2238
        %2252 = vmatprep.subr.mxu0 0.0
        %2253 = vmatpush1.msra.mxu0 %v2248
        %2254 = vmatprep.subr.mxu0 0.0
        %2255 = vmatpush1.msra.mxu0 0.0
        %2256 = vmatprep.subr.mxu0 0.0
        %2257 = vmatpush1.msra.mxu0 0.0
        %2258 = vmatprep.subr.mxu0 0.0
        %2259 = vmatpush1.msra.mxu0 0.0
        %2260 = vmatprep.subr.mxu0 0.0
        %2261 = vmatpush1.msra.mxu0 0.0
        %2262 = vmatprep.subr.mxu0 0.0
        %2263 = vmatpush1.msra.mxu0 0.0
        %2264 = vmatprep.subr.mxu0 0.0
        %2265 = vmatpush1.msra.mxu0 0.0
        %2266 = vmatprep.subr.mxu0 0.0
        %2267 = vmatpush1.msra.mxu0 0.0
        %2268 = vmatprep.subr.mxu0 0.0
        %2269 = vmatpush1.msra.mxu0 0.0
        %2270 = vmatprep.subr.mxu0 0.0
        %2271 = vmatpush1.msra.mxu0 0.0
        %2272 = vmatprep.subr.mxu0 0.0
        %2273 = vmatpush1.msra.mxu0 0.0
        %2274 = vmatprep.subr.mxu0 0.0
        %2275 = vmatpush1.msra.mxu0 0.0
        %2276 = vmatprep.subr.mxu0 0.0
        %2277 = vmatpush1.msra.mxu0 0.0
        %2278 = vmatprep.subr.mxu0 0.0
        %2279 = vmatpush1.msra.mxu0 0.0
        %2280 = vmatprep.subr.mxu0 0.0
        %2281 = vmatpush1.msra.mxu0 0.0
        %2282 = vmatprep.subr.mxu0 0.0
        %2283 = vmatpush1.msra.mxu0 0.0
        %2284 = vmatprep.subr.mxu0 0.0
        %2285 = vmatpush1.msra.mxu0 0.0
        %2286 = vmatprep.subr.mxu0 0.0
        %2287 = vmatpush1.msra.mxu0 0.0
        %2288 = vmatprep.subr.mxu0 0.0
        %2289 = vmatpush1.msra.mxu0 0.0
        %2290 = vmatprep.subr.mxu0 0.0
        %2291 = vmatpush1.msra.mxu0 0.0
        %2292 = vmatprep.subr.mxu0 0.0
        %2293 = vmatpush1.msra.mxu0 0.0
        %2294 = vmatprep.subr.mxu0 0.0
        %2295 = vmatpush1.msra.mxu0 0.0
        %2296 = vmatprep.subr.mxu0 0.0
        %2297 = vmatpush1.msra.mxu0 0.0
        %2298 = vmatprep.subr.mxu0 0.0
        %2299 = vmatpush1.msra.mxu0 0.0
        %2300 = vmatprep.subr.mxu0 0.0
        %2301 = vmatpush1.msra.mxu0 0.0
        %2302 = vmatprep.subr.mxu0 0.0
        %2303 = vmatpush1.msra.mxu0 0.0
        %2304 = vmatprep.subr.mxu0 0.0
        %2305 = vmatpush1.msra.mxu0 0.0
        %2306 = vmatprep.subr.mxu0 0.0
        %2307 = vmatpush1.msra.mxu0 0.0
        %2308 = vmatprep.subr.mxu0 0.0
        %2309 = vmatpush1.msra.mxu0 0.0
        %2310 = vmatprep.subr.mxu0 0.0
        %2311 = vmatpush1.msra.mxu0 0.0
        %2312 = vmatprep.subr.mxu0 0.0
        %2313 = vmatpush1.msra.mxu0 0.0
        %2314 = vmatprep.mubr.f32.mxu0 0.0
        %2315 = vmatmul.mubr.f32.gmra.mrb[0].mxu0 %v2075
        %v2316 = vpop.f32.mrb[0].mxu0
        %v2317 = vadd.f32 0.0, %v2316
        %v2318 = vpop.f32.mrb[0].mxu0
        %2319 = vmatprep.mubr.f32.mxu0 0.0
        %2320 = vmatmul.mubr.f32.gmra.mrb[0].mxu0 %v2077
        %v2321 = vpop.f32.mrb[0].mxu0
        %v2322 = vadd.f32 0.0, %v2321
        %v2323 = vpop.f32.mrb[0].mxu0
        %2324 = vmatprep.mubr.f32.mxu0 0.0
        %2325 = vmatmul.mubr.f32.gmra.mrb[0].mxu0 %v2079
        %v2326 = vpop.f32.mrb[0].mxu0
        %v2327 = vadd.f32 0.0, %v2326
        %v2328 = vpop.f32.mrb[0].mxu0
        %2329 = vmatprep.mubr.f32.mxu0 0.0
        %2330 = vmatmul.mubr.f32.gmra.mrb[0].mxu0 %v2081
        %v2331 = vpop.f32.mrb[0].mxu0
        %v2332 = vadd.f32 0.0, %v2331
        %v2333 = vpop.f32.mrb[0].mxu0
        %2334 = vmatprep.mubr.f32.mxu0 0.0
        %2335 = vmatmul.mubr.f32.gmra.mrb[0].mxu0 %v2083
        %v2336 = vpop.f32.mrb[0].mxu0
        %v2337 = vadd.f32 0.0, %v2336
        %v2338 = vpop.f32.mrb[0].mxu0
        %2339 = vmatprep.mubr.f32.mxu0 0.0
        %2340 = vmatmul.mubr.f32.gmra.mrb[0].mxu0 %v2085
        %v2341 = vpop.f32.mrb[0].mxu0
        %v2342 = vadd.f32 0.0, %v2341
        %v2343 = vpop.f32.mrb[0].mxu0
        %2344 = vmatprep.mubr.f32.mxu0 0.0
        %2345 = vmatmul.mubr.f32.gmra.mrb[0].mxu0 %v2087
        %v2346 = vpop.f32.mrb[0].mxu0
        %v2347 = vadd.f32 0.0, %v2346
        %v2348 = vpop.f32.mrb[0].mxu0
        %2349 = vmatprep.mubr.f32.mxu0 0.0
        %2350 = vmatmul.mubr.f32.gmra.mrb[0].mxu0 %v2089
        %v2351 = vpop.f32.mrb[0].mxu0
        %v2352 = vadd.f32 0.0, %v2351
        %v2353 = vpop.f32.mrb[0].mxu0
        %2354 = vmatprep.mubr.f32.mxu0 0.0
        %2355 = vmatmul.mubr.f32.gmra.mrb[0].mxu0 %v2091
        %v2356 = vpop.f32.mrb[0].mxu0
        %v2357 = vadd.f32 0.0, %v2356
        %v2358 = vpop.f32.mrb[0].mxu0
        %2359 = vmatprep.mubr.f32.mxu0 0.0
        %2360 = vmatmul.mubr.f32.gmra.mrb[0].mxu0 %v2093
        %v2361 = vpop.f32.mrb[0].mxu0
        %v2362 = vadd.f32 0.0, %v2361
        %v2363 = vpop.f32.mrb[0].mxu0
        %2364 = vmatprep.mubr.f32.mxu0 0.0
        %2365 = vmatmul.mubr.f32.gmra.mrb[0].mxu0 %v2243
        %v2366 = vpop.f32.mrb[0].mxu0
        %v2367 = vadd.f32 0.0, %v2366
        %v2368 = vpop.f32.mrb[0].mxu0
        %2369 = vmatprep.mubr.f32.mxu0 0.0
        %2370 = vmatmul.mubr.f32.gmra.mrb[0].mxu0 %v2245
        %v2371 = vpop.f32.mrb[0].mxu0
        %v2372 = vadd.f32 0.0, %v2371
        %v2373 = vpop.f32.mrb[0].mxu0
        %2374 = vdwg.mxu0
        %v2375 = vadd.f32 %v2225, %v2317
        %v2376 = vadd.f32 %v2226, %v2322
        %v2377 = vadd.f32 %v2227, %v2327
        %v2378 = vadd.f32 %v2228, %v2332
        %v2379 = vadd.f32 %v2229, %v2337
        %v2380 = vadd.f32 %v2230, %v2342
        %v2381 = vadd.f32 %v2231, %v2347
        %v2382 = vadd.f32 %v2232, %v2352
        %v2383 = vadd.f32 %v2233, %v2357
        %v2384 = vadd.f32 %v2234, %v2362
        %v2385 = vadd.f32 %v2235, %v2367
        %v2386 = vadd.f32 %v2236, %v2372
        %s2387 = scalar_lea.vmem %s3, 96
        %v2388 = vld [vmem:[%s2387] sm:$0xff]
        %v2389 = vld [vmem:[%s2387 + $0x8] sm:$0x3]
        %vm2391 = vcmask 1042432
        %v2392 = vrot.slane %v1300, 5
        %v2393 = vrot.slane %v1301, 5
        %v2394 = vsel %vm2391, %v2392, %v2393
        %v2395 = vrot.slane %v1302, 5
        %v2396 = vsel %vm2391, %v2393, %v2395
        %v2397 = vrot.slane %v1303, 5
        %v2398 = vsel %vm2391, %v2395, %v2397
        %v2399 = vrot.slane %v1304, 5
        %v2400 = vsel %vm2391, %v2397, %v2399
        %v2401 = vrot.slane %v1305, 5
        %v2402 = vsel %vm2391, %v2399, %v2401
        %v2403 = vrot.slane %v1306, 5
        %v2404 = vsel %vm2391, %v2401, %v2403
        %v2405 = vrot.slane %v1307, 5
        %v2406 = vsel %vm2391, %v2403, %v2405
        %v2407 = vrot.slane %v1308, 5
        %v2408 = vsel %vm2391, %v2405, %v2407
        %v2409 = vrot.slane %v1309, 5
        %v2410 = vsel %vm2391, %v2407, %v2409
        %v2411 = vrot.slane %v1310, 5
        %v2412 = vsel %vm2391, %v2409, %v2411
        %v2413 = vrot.slane %v1311, 5
        %v2414 = vsel %vm2391, %v2411, %v2413
        %v2415 = vrot.slane %v1312, 5
        %v2416 = vsel %vm2391, %v2413, %v2415
        %v2417 = vsel %vm1358, %v2394, 0
        %v2419 = vsel %vm1358, %v2396, 0
        %v2421 = vsel %vm1358, %v2398, 0
        %v2423 = vsel %vm1358, %v2400, 0
        %v2425 = vsel %vm1358, %v2402, 0
        %v2427 = vsel %vm1358, %v2404, 0
        %v2429 = vsel %vm1358, %v2406, 0
        %v2431 = vsel %vm1358, %v2408, 0
        %v2433 = vsel %vm1358, %v2410, 0
        %v2435 = vsel %vm1358, %v2412, 0
        %v2437 = vsel %vm1358, %v2414, 0
        %v2439 = vsel %vm1358, %v2416, 0
        %v2442 = vsel %vm1383, %v2389, 0
        %2444 = vmatprep.subr.mxu0 0.0
        %2445 = vmatpush1.msra.mxu0 %v2388
        %2446 = vmatprep.subr.mxu0 0.0
        %2447 = vmatpush1.msra.mxu0 %v2442
        %2448 = vmatprep.subr.mxu0 0.0
        %2449 = vmatpush1.msra.mxu0 0.0
        %2450 = vmatprep.subr.mxu0 0.0
        %2451 = vmatpush1.msra.mxu0 0.0
        %2452 = vmatprep.subr.mxu0 0.0
        %2453 = vmatpush1.msra.mxu0 0.0
        %2454 = vmatprep.subr.mxu0 0.0
        %2455 = vmatpush1.msra.mxu0 0.0
        %2456 = vmatprep.subr.mxu0 0.0
        %2457 = vmatpush1.msra.mxu0 0.0
        %2458 = vmatprep.subr.mxu0 0.0
        %2459 = vmatpush1.msra.mxu0 0.0
        %2460 = vmatprep.subr.mxu0 0.0
        %2461 = vmatpush1.msra.mxu0 0.0
        %2462 = vmatprep.subr.mxu0 0.0
        %2463 = vmatpush1.msra.mxu0 0.0
        %2464 = vmatprep.subr.mxu0 0.0
        %2465 = vmatpush1.msra.mxu0 0.0
        %2466 = vmatprep.subr.mxu0 0.0
        %2467 = vmatpush1.msra.mxu0 0.0
        %2468 = vmatprep.subr.mxu0 0.0
        %2469 = vmatpush1.msra.mxu0 0.0
        %2470 = vmatprep.subr.mxu0 0.0
        %2471 = vmatpush1.msra.mxu0 0.0
        %2472 = vmatprep.subr.mxu0 0.0
        %2473 = vmatpush1.msra.mxu0 0.0
        %2474 = vmatprep.subr.mxu0 0.0
        %2475 = vmatpush1.msra.mxu0 0.0
        %2476 = vmatprep.subr.mxu0 0.0
        %2477 = vmatpush1.msra.mxu0 0.0
        %2478 = vmatprep.subr.mxu0 0.0
        %2479 = vmatpush1.msra.mxu0 0.0
        %2480 = vmatprep.subr.mxu0 0.0
        %2481 = vmatpush1.msra.mxu0 0.0
        %2482 = vmatprep.subr.mxu0 0.0
        %2483 = vmatpush1.msra.mxu0 0.0
        %2484 = vmatprep.subr.mxu0 0.0
        %2485 = vmatpush1.msra.mxu0 0.0
        %2486 = vmatprep.subr.mxu0 0.0
        %2487 = vmatpush1.msra.mxu0 0.0
        %2488 = vmatprep.subr.mxu0 0.0
        %2489 = vmatpush1.msra.mxu0 0.0
        %2490 = vmatprep.subr.mxu0 0.0
        %2491 = vmatpush1.msra.mxu0 0.0
        %2492 = vmatprep.subr.mxu0 0.0
        %2493 = vmatpush1.msra.mxu0 0.0
        %2494 = vmatprep.subr.mxu0 0.0
        %2495 = vmatpush1.msra.mxu0 0.0
        %2496 = vmatprep.subr.mxu0 0.0
        %2497 = vmatpush1.msra.mxu0 0.0
        %2498 = vmatprep.subr.mxu0 0.0
        %2499 = vmatpush1.msra.mxu0 0.0
        %2500 = vmatprep.subr.mxu0 0.0
        %2501 = vmatpush1.msra.mxu0 0.0
        %2502 = vmatprep.subr.mxu0 0.0
        %2503 = vmatpush1.msra.mxu0 0.0
        %2504 = vmatprep.subr.mxu0 0.0
        %2505 = vmatpush1.msra.mxu0 0.0
        %2506 = vmatprep.subr.mxu0 0.0
        %2507 = vmatpush1.msra.mxu0 0.0
        %2508 = vmatprep.mubr.f32.mxu0 0.0
        %2509 = vmatmul.mubr.f32.gmra.mrb[0].mxu0 %v2417
        %v2510 = vpop.f32.mrb[0].mxu0
        %v2511 = vadd.f32 0.0, %v2510
        %v2512 = vpop.f32.mrb[0].mxu0
        %2513 = vmatprep.mubr.f32.mxu0 0.0
        %2514 = vmatmul.mubr.f32.gmra.mrb[0].mxu0 %v2419
        %v2515 = vpop.f32.mrb[0].mxu0
        %v2516 = vadd.f32 0.0, %v2515
        %v2517 = vpop.f32.mrb[0].mxu0
        %2518 = vmatprep.mubr.f32.mxu0 0.0
        %2519 = vmatmul.mubr.f32.gmra.mrb[0].mxu0 %v2421
        %v2520 = vpop.f32.mrb[0].mxu0
        %v2521 = vadd.f32 0.0, %v2520
        %v2522 = vpop.f32.mrb[0].mxu0
        %2523 = vmatprep.mubr.f32.mxu0 0.0
        %2524 = vmatmul.mubr.f32.gmra.mrb[0].mxu0 %v2423
        %v2525 = vpop.f32.mrb[0].mxu0
        %v2526 = vadd.f32 0.0, %v2525
        %v2527 = vpop.f32.mrb[0].mxu0
        %2528 = vmatprep.mubr.f32.mxu0 0.0
        %2529 = vmatmul.mubr.f32.gmra.mrb[0].mxu0 %v2425
        %v2530 = vpop.f32.mrb[0].mxu0
        %v2531 = vadd.f32 0.0, %v2530
        %v2532 = vpop.f32.mrb[0].mxu0
        %2533 = vmatprep.mubr.f32.mxu0 0.0
        %2534 = vmatmul.mubr.f32.gmra.mrb[0].mxu0 %v2427
        %v2535 = vpop.f32.mrb[0].mxu0
        %v2536 = vadd.f32 0.0, %v2535
        %v2537 = vpop.f32.mrb[0].mxu0
        %2538 = vmatprep.mubr.f32.mxu0 0.0
        %2539 = vmatmul.mubr.f32.gmra.mrb[0].mxu0 %v2429
        %v2540 = vpop.f32.mrb[0].mxu0
        %v2541 = vadd.f32 0.0, %v2540
        %v2542 = vpop.f32.mrb[0].mxu0
        %2543 = vmatprep.mubr.f32.mxu0 0.0
        %2544 = vmatmul.mubr.f32.gmra.mrb[0].mxu0 %v2431
        %v2545 = vpop.f32.mrb[0].mxu0
        %v2546 = vadd.f32 0.0, %v2545
        %v2547 = vpop.f32.mrb[0].mxu0
        %2548 = vmatprep.mubr.f32.mxu0 0.0
        %2549 = vmatmul.mubr.f32.gmra.mrb[0].mxu0 %v2433
        %v2550 = vpop.f32.mrb[0].mxu0
        %v2551 = vadd.f32 0.0, %v2550
        %v2552 = vpop.f32.mrb[0].mxu0
        %2553 = vmatprep.mubr.f32.mxu0 0.0
        %2554 = vmatmul.mubr.f32.gmra.mrb[0].mxu0 %v2435
        %v2555 = vpop.f32.mrb[0].mxu0
        %v2556 = vadd.f32 0.0, %v2555
        %v2557 = vpop.f32.mrb[0].mxu0
        %2558 = vmatprep.mubr.f32.mxu0 0.0
        %2559 = vmatmul.mubr.f32.gmra.mrb[0].mxu0 %v2437
        %v2560 = vpop.f32.mrb[0].mxu0
        %v2561 = vadd.f32 0.0, %v2560
        %v2562 = vpop.f32.mrb[0].mxu0
        %2563 = vmatprep.mubr.f32.mxu0 0.0
        %2564 = vmatmul.mubr.f32.gmra.mrb[0].mxu0 %v2439
        %v2565 = vpop.f32.mrb[0].mxu0
        %v2566 = vadd.f32 0.0, %v2565
        %v2567 = vpop.f32.mrb[0].mxu0
        %2568 = vdwg.mxu0
        %v2569 = vadd.f32 %v2375, %v2511
        %v2570 = vadd.f32 %v2376, %v2516
        %v2571 = vadd.f32 %v2377, %v2521
        %v2572 = vadd.f32 %v2378, %v2526
        %v2573 = vadd.f32 %v2379, %v2531
        %v2574 = vadd.f32 %v2380, %v2536
        %v2575 = vadd.f32 %v2381, %v2541
        %v2576 = vadd.f32 %v2382, %v2546
        %v2577 = vadd.f32 %v2383, %v2551
        %v2578 = vadd.f32 %v2384, %v2556
        %v2579 = vadd.f32 %v2385, %v2561
        %v2580 = vadd.f32 %v2386, %v2566
        %s2581 = scalar_lea.vmem %s3, 112
        %v2582 = vld [vmem:[%s2581] sm:$0xff]
        %v2583 = vld [vmem:[%s2581 + $0x8] sm:$0x3]
        %v2584 = vrot.slane %v1300, 6
        %v2585 = vrot.slane %v1301, 6
        %v2586 = vsel %vm1383, %v2584, %v2585
        %v2587 = vrot.slane %v1302, 6
        %v2588 = vsel %vm1383, %v2585, %v2587
        %v2589 = vrot.slane %v1303, 6
        %v2590 = vsel %vm1383, %v2587, %v2589
        %v2591 = vrot.slane %v1304, 6
        %v2592 = vsel %vm1383, %v2589, %v2591
        %v2593 = vrot.slane %v1305, 6
        %v2594 = vsel %vm1383, %v2591, %v2593
        %v2595 = vrot.slane %v1306, 6
        %v2596 = vsel %vm1383, %v2593, %v2595
        %v2597 = vrot.slane %v1307, 6
        %v2598 = vsel %vm1383, %v2595, %v2597
        %v2599 = vrot.slane %v1308, 6
        %v2600 = vsel %vm1383, %v2597, %v2599
        %v2601 = vrot.slane %v1309, 6
        %v2602 = vsel %vm1383, %v2599, %v2601
        %v2603 = vrot.slane %v1310, 6
        %v2604 = vsel %vm1383, %v2601, %v2603
        %v2605 = vrot.slane %v1311, 6
        %v2606 = vsel %vm1383, %v2603, %v2605
        %v2607 = vrot.slane %v1312, 6
        %v2608 = vsel %vm1383, %v2605, %v2607
        %v2609 = vsel %vm1358, %v2586, 0
        %v2611 = vsel %vm1358, %v2588, 0
        %v2613 = vsel %vm1358, %v2590, 0
        %v2615 = vsel %vm1358, %v2592, 0
        %v2617 = vsel %vm1358, %v2594, 0
        %v2619 = vsel %vm1358, %v2596, 0
        %v2621 = vsel %vm1358, %v2598, 0
        %v2623 = vsel %vm1358, %v2600, 0
        %v2625 = vsel %vm1358, %v2602, 0
        %v2627 = vsel %vm1358, %v2604, 0
        %v2629 = vsel %vm1358, %v2606, 0
        %v2631 = vsel %vm1358, %v2608, 0
        %v2634 = vsel %vm1383, %v2583, 0
        %2636 = vmatprep.subr.mxu0 0.0
        %2637 = vmatpush1.msra.mxu0 %v2582
        %2638 = vmatprep.subr.mxu0 0.0
        %2639 = vmatpush1.msra.mxu0 %v2634
        %2640 = vmatprep.subr.mxu0 0.0
        %2641 = vmatpush1.msra.mxu0 0.0
        %2642 = vmatprep.subr.mxu0 0.0
        %2643 = vmatpush1.msra.mxu0 0.0
        %2644 = vmatprep.subr.mxu0 0.0
        %2645 = vmatpush1.msra.mxu0 0.0
        %2646 = vmatprep.subr.mxu0 0.0
        %2647 = vmatpush1.msra.mxu0 0.0
        %2648 = vmatprep.subr.mxu0 0.0
        %2649 = vmatpush1.msra.mxu0 0.0
        %2650 = vmatprep.subr.mxu0 0.0
        %2651 = vmatpush1.msra.mxu0 0.0
        %2652 = vmatprep.subr.mxu0 0.0
        %2653 = vmatpush1.msra.mxu0 0.0
        %2654 = vmatprep.subr.mxu0 0.0
        %2655 = vmatpush1.msra.mxu0 0.0
        %2656 = vmatprep.subr.mxu0 0.0
        %2657 = vmatpush1.msra.mxu0 0.0
        %2658 = vmatprep.subr.mxu0 0.0
        %2659 = vmatpush1.msra.mxu0 0.0
        %2660 = vmatprep.subr.mxu0 0.0
        %2661 = vmatpush1.msra.mxu0 0.0
        %2662 = vmatprep.subr.mxu0 0.0
        %2663 = vmatpush1.msra.mxu0 0.0
        %2664 = vmatprep.subr.mxu0 0.0
        %2665 = vmatpush1.msra.mxu0 0.0
        %2666 = vmatprep.subr.mxu0 0.0
        %2667 = vmatpush1.msra.mxu0 0.0
        %2668 = vmatprep.subr.mxu0 0.0
        %2669 = vmatpush1.msra.mxu0 0.0
        %2670 = vmatprep.subr.mxu0 0.0
        %2671 = vmatpush1.msra.mxu0 0.0
        %2672 = vmatprep.subr.mxu0 0.0
        %2673 = vmatpush1.msra.mxu0 0.0
        %2674 = vmatprep.subr.mxu0 0.0
        %2675 = vmatpush1.msra.mxu0 0.0
        %2676 = vmatprep.subr.mxu0 0.0
        %2677 = vmatpush1.msra.mxu0 0.0
        %2678 = vmatprep.subr.mxu0 0.0
        %2679 = vmatpush1.msra.mxu0 0.0
        %2680 = vmatprep.subr.mxu0 0.0
        %2681 = vmatpush1.msra.mxu0 0.0
        %2682 = vmatprep.subr.mxu0 0.0
        %2683 = vmatpush1.msra.mxu0 0.0
        %2684 = vmatprep.subr.mxu0 0.0
        %2685 = vmatpush1.msra.mxu0 0.0
        %2686 = vmatprep.subr.mxu0 0.0
        %2687 = vmatpush1.msra.mxu0 0.0
        %2688 = vmatprep.subr.mxu0 0.0
        %2689 = vmatpush1.msra.mxu0 0.0
        %2690 = vmatprep.subr.mxu0 0.0
        %2691 = vmatpush1.msra.mxu0 0.0
        %2692 = vmatprep.subr.mxu0 0.0
        %2693 = vmatpush1.msra.mxu0 0.0
        %2694 = vmatprep.subr.mxu0 0.0
        %2695 = vmatpush1.msra.mxu0 0.0
        %2696 = vmatprep.subr.mxu0 0.0
        %2697 = vmatpush1.msra.mxu0 0.0
        %2698 = vmatprep.subr.mxu0 0.0
        %2699 = vmatpush1.msra.mxu0 0.0
        %2700 = vmatprep.mubr.f32.mxu0 0.0
        %2701 = vmatmul.mubr.f32.gmra.mrb[0].mxu0 %v2609
        %v2702 = vpop.f32.mrb[0].mxu0
        %v2703 = vadd.f32 0.0, %v2702
        %v2704 = vpop.f32.mrb[0].mxu0
        %2705 = vmatprep.mubr.f32.mxu0 0.0
        %2706 = vmatmul.mubr.f32.gmra.mrb[0].mxu0 %v2611
        %v2707 = vpop.f32.mrb[0].mxu0
        %v2708 = vadd.f32 0.0, %v2707
        %v2709 = vpop.f32.mrb[0].mxu0
        %2710 = vmatprep.mubr.f32.mxu0 0.0
        %2711 = vmatmul.mubr.f32.gmra.mrb[0].mxu0 %v2613
        %v2712 = vpop.f32.mrb[0].mxu0
        %v2713 = vadd.f32 0.0, %v2712
        %v2714 = vpop.f32.mrb[0].mxu0
        %2715 = vmatprep.mubr.f32.mxu0 0.0
        %2716 = vmatmul.mubr.f32.gmra.mrb[0].mxu0 %v2615
        %v2717 = vpop.f32.mrb[0].mxu0
        %v2718 = vadd.f32 0.0, %v2717
        %v2719 = vpop.f32.mrb[0].mxu0
        %2720 = vmatprep.mubr.f32.mxu0 0.0
        %2721 = vmatmul.mubr.f32.gmra.mrb[0].mxu0 %v2617
        %v2722 = vpop.f32.mrb[0].mxu0
        %v2723 = vadd.f32 0.0, %v2722
        %v2724 = vpop.f32.mrb[0].mxu0
        %2725 = vmatprep.mubr.f32.mxu0 0.0
        %2726 = vmatmul.mubr.f32.gmra.mrb[0].mxu0 %v2619
        %v2727 = vpop.f32.mrb[0].mxu0
        %v2728 = vadd.f32 0.0, %v2727
        %v2729 = vpop.f32.mrb[0].mxu0
        %2730 = vmatprep.mubr.f32.mxu0 0.0
        %2731 = vmatmul.mubr.f32.gmra.mrb[0].mxu0 %v2621
        %v2732 = vpop.f32.mrb[0].mxu0
        %v2733 = vadd.f32 0.0, %v2732
        %v2734 = vpop.f32.mrb[0].mxu0
        %2735 = vmatprep.mubr.f32.mxu0 0.0
        %2736 = vmatmul.mubr.f32.gmra.mrb[0].mxu0 %v2623
        %v2737 = vpop.f32.mrb[0].mxu0
        %v2738 = vadd.f32 0.0, %v2737
        %v2739 = vpop.f32.mrb[0].mxu0
        %2740 = vmatprep.mubr.f32.mxu0 0.0
        %2741 = vmatmul.mubr.f32.gmra.mrb[0].mxu0 %v2625
        %v2742 = vpop.f32.mrb[0].mxu0
        %v2743 = vadd.f32 0.0, %v2742
        %v2744 = vpop.f32.mrb[0].mxu0
        %2745 = vmatprep.mubr.f32.mxu0 0.0
        %2746 = vmatmul.mubr.f32.gmra.mrb[0].mxu0 %v2627
        %v2747 = vpop.f32.mrb[0].mxu0
        %v2748 = vadd.f32 0.0, %v2747
        %v2749 = vpop.f32.mrb[0].mxu0
        %2750 = vmatprep.mubr.f32.mxu0 0.0
        %2751 = vmatmul.mubr.f32.gmra.mrb[0].mxu0 %v2629
        %v2752 = vpop.f32.mrb[0].mxu0
        %v2753 = vadd.f32 0.0, %v2752
        %v2754 = vpop.f32.mrb[0].mxu0
        %2755 = vmatprep.mubr.f32.mxu0 0.0
        %2756 = vmatmul.mubr.f32.gmra.mrb[0].mxu0 %v2631
        %v2757 = vpop.f32.mrb[0].mxu0
        %v2758 = vadd.f32 0.0, %v2757
        %v2759 = vpop.f32.mrb[0].mxu0
        %2760 = vdwg.mxu0
        %v2761 = vadd.f32 %v2569, %v2703
        %v2762 = vadd.f32 %v2570, %v2708
        %v2763 = vadd.f32 %v2571, %v2713
        %v2764 = vadd.f32 %v2572, %v2718
        %v2765 = vadd.f32 %v2573, %v2723
        %v2766 = vadd.f32 %v2574, %v2728
        %v2767 = vadd.f32 %v2575, %v2733
        %v2768 = vadd.f32 %v2576, %v2738
        %v2769 = vadd.f32 %v2577, %v2743
        %v2770 = vadd.f32 %v2578, %v2748
        %v2771 = vadd.f32 %v2579, %v2753
        %v2772 = vadd.f32 %v2580, %v2758
        %s2773 = scalar_lea.vmem %s3, 128
        %v2774 = vld [vmem:[%s2773] sm:$0xff]
        %v2775 = vld [vmem:[%s2773 + $0x8] sm:$0x3]
        %v2776 = vrot.slane %v1300, 7
        %v2777 = vrot.slane %v1301, 7
        %v2778 = vsel %vm380, %v2776, %v2777
        %v2779 = vrot.slane %v1302, 7
        %v2780 = vsel %vm380, %v2777, %v2779
        %v2781 = vrot.slane %v1303, 7
        %v2782 = vsel %vm380, %v2779, %v2781
        %v2783 = vrot.slane %v1304, 7
        %v2784 = vsel %vm380, %v2781, %v2783
        %v2785 = vrot.slane %v1305, 7
        %v2786 = vsel %vm380, %v2783, %v2785
        %v2787 = vrot.slane %v1306, 7
        %v2788 = vsel %vm380, %v2785, %v2787
        %v2789 = vrot.slane %v1307, 7
        %v2790 = vsel %vm380, %v2787, %v2789
        %v2791 = vrot.slane %v1308, 7
        %v2792 = vsel %vm380, %v2789, %v2791
        %v2793 = vrot.slane %v1309, 7
        %v2794 = vsel %vm380, %v2791, %v2793
        %v2795 = vrot.slane %v1310, 7
        %v2796 = vsel %vm380, %v2793, %v2795
        %v2797 = vrot.slane %v1311, 7
        %v2798 = vsel %vm380, %v2795, %v2797
        %v2799 = vrot.slane %v1312, 7
        %v2800 = vsel %vm380, %v2797, %v2799
        %v2801 = vsel %vm1358, %v2778, 0
        %v2803 = vsel %vm1358, %v2780, 0
        %v2805 = vsel %vm1358, %v2782, 0
        %v2807 = vsel %vm1358, %v2784, 0
        %v2809 = vsel %vm1358, %v2786, 0
        %v2811 = vsel %vm1358, %v2788, 0
        %v2813 = vsel %vm1358, %v2790, 0
        %v2815 = vsel %vm1358, %v2792, 0
        %v2817 = vsel %vm1358, %v2794, 0
        %v2819 = vsel %vm1358, %v2796, 0
        %v2821 = vsel %vm1358, %v2798, 0
        %v2823 = vsel %vm1358, %v2800, 0
        %v2826 = vsel %vm1383, %v2775, 0
        %2828 = vmatprep.subr.mxu0 0.0
        %2829 = vmatpush1.msra.mxu0 %v2774
        %2830 = vmatprep.subr.mxu0 0.0
        %2831 = vmatpush1.msra.mxu0 %v2826
        %2832 = vmatprep.subr.mxu0 0.0
        %2833 = vmatpush1.msra.mxu0 0.0
        %2834 = vmatprep.subr.mxu0 0.0
        %2835 = vmatpush1.msra.mxu0 0.0
        %2836 = vmatprep.subr.mxu0 0.0
        %2837 = vmatpush1.msra.mxu0 0.0
        %2838 = vmatprep.subr.mxu0 0.0
        %2839 = vmatpush1.msra.mxu0 0.0
        %2840 = vmatprep.subr.mxu0 0.0
        %2841 = vmatpush1.msra.mxu0 0.0
        %2842 = vmatprep.subr.mxu0 0.0
        %2843 = vmatpush1.msra.mxu0 0.0
        %2844 = vmatprep.subr.mxu0 0.0
        %2845 = vmatpush1.msra.mxu0 0.0
        %2846 = vmatprep.subr.mxu0 0.0
        %2847 = vmatpush1.msra.mxu0 0.0
        %2848 = vmatprep.subr.mxu0 0.0
        %2849 = vmatpush1.msra.mxu0 0.0
        %2850 = vmatprep.subr.mxu0 0.0
        %2851 = vmatpush1.msra.mxu0 0.0
        %2852 = vmatprep.subr.mxu0 0.0
        %2853 = vmatpush1.msra.mxu0 0.0
        %2854 = vmatprep.subr.mxu0 0.0
        %2855 = vmatpush1.msra.mxu0 0.0
        %2856 = vmatprep.subr.mxu0 0.0
        %2857 = vmatpush1.msra.mxu0 0.0
        %2858 = vmatprep.subr.mxu0 0.0
        %2859 = vmatpush1.msra.mxu0 0.0
        %2860 = vmatprep.subr.mxu0 0.0
        %2861 = vmatpush1.msra.mxu0 0.0
        %2862 = vmatprep.subr.mxu0 0.0
        %2863 = vmatpush1.msra.mxu0 0.0
        %2864 = vmatprep.subr.mxu0 0.0
        %2865 = vmatpush1.msra.mxu0 0.0
        %2866 = vmatprep.subr.mxu0 0.0
        %2867 = vmatpush1.msra.mxu0 0.0
        %2868 = vmatprep.subr.mxu0 0.0
        %2869 = vmatpush1.msra.mxu0 0.0
        %2870 = vmatprep.subr.mxu0 0.0
        %2871 = vmatpush1.msra.mxu0 0.0
        %2872 = vmatprep.subr.mxu0 0.0
        %2873 = vmatpush1.msra.mxu0 0.0
        %2874 = vmatprep.subr.mxu0 0.0
        %2875 = vmatpush1.msra.mxu0 0.0
        %2876 = vmatprep.subr.mxu0 0.0
        %2877 = vmatpush1.msra.mxu0 0.0
        %2878 = vmatprep.subr.mxu0 0.0
        %2879 = vmatpush1.msra.mxu0 0.0
        %2880 = vmatprep.subr.mxu0 0.0
        %2881 = vmatpush1.msra.mxu0 0.0
        %2882 = vmatprep.subr.mxu0 0.0
        %2883 = vmatpush1.msra.mxu0 0.0
        %2884 = vmatprep.subr.mxu0 0.0
        %2885 = vmatpush1.msra.mxu0 0.0
        %2886 = vmatprep.subr.mxu0 0.0
        %2887 = vmatpush1.msra.mxu0 0.0
        %2888 = vmatprep.subr.mxu0 0.0
        %2889 = vmatpush1.msra.mxu0 0.0
        %2890 = vmatprep.subr.mxu0 0.0
        %2891 = vmatpush1.msra.mxu0 0.0
        %2892 = vmatprep.mubr.f32.mxu0 0.0
        %2893 = vmatmul.mubr.f32.gmra.mrb[0].mxu0 %v2801
        %v2894 = vpop.f32.mrb[0].mxu0
        %v2895 = vadd.f32 0.0, %v2894
        %v2896 = vpop.f32.mrb[0].mxu0
        %2897 = vmatprep.mubr.f32.mxu0 0.0
        %2898 = vmatmul.mubr.f32.gmra.mrb[0].mxu0 %v2803
        %v2899 = vpop.f32.mrb[0].mxu0
        %v2900 = vadd.f32 0.0, %v2899
        %v2901 = vpop.f32.mrb[0].mxu0
        %2902 = vmatprep.mubr.f32.mxu0 0.0
        %2903 = vmatmul.mubr.f32.gmra.mrb[0].mxu0 %v2805
        %v2904 = vpop.f32.mrb[0].mxu0
        %v2905 = vadd.f32 0.0, %v2904
        %v2906 = vpop.f32.mrb[0].mxu0
        %2907 = vmatprep.mubr.f32.mxu0 0.0
        %2908 = vmatmul.mubr.f32.gmra.mrb[0].mxu0 %v2807
        %v2909 = vpop.f32.mrb[0].mxu0
        %v2910 = vadd.f32 0.0, %v2909
        %v2911 = vpop.f32.mrb[0].mxu0
        %2912 = vmatprep.mubr.f32.mxu0 0.0
        %2913 = vmatmul.mubr.f32.gmra.mrb[0].mxu0 %v2809
        %v2914 = vpop.f32.mrb[0].mxu0
        %v2915 = vadd.f32 0.0, %v2914
        %v2916 = vpop.f32.mrb[0].mxu0
        %2917 = vmatprep.mubr.f32.mxu0 0.0
        %2918 = vmatmul.mubr.f32.gmra.mrb[0].mxu0 %v2811
        %v2919 = vpop.f32.mrb[0].mxu0
        %v2920 = vadd.f32 0.0, %v2919
        %v2921 = vpop.f32.mrb[0].mxu0
        %2922 = vmatprep.mubr.f32.mxu0 0.0
        %2923 = vmatmul.mubr.f32.gmra.mrb[0].mxu0 %v2813
        %v2924 = vpop.f32.mrb[0].mxu0
        %v2925 = vadd.f32 0.0, %v2924
        %v2926 = vpop.f32.mrb[0].mxu0
        %2927 = vmatprep.mubr.f32.mxu0 0.0
        %2928 = vmatmul.mubr.f32.gmra.mrb[0].mxu0 %v2815
        %v2929 = vpop.f32.mrb[0].mxu0
        %v2930 = vadd.f32 0.0, %v2929
        %v2931 = vpop.f32.mrb[0].mxu0
        %2932 = vmatprep.mubr.f32.mxu0 0.0
        %2933 = vmatmul.mubr.f32.gmra.mrb[0].mxu0 %v2817
        %v2934 = vpop.f32.mrb[0].mxu0
        %v2935 = vadd.f32 0.0, %v2934
        %v2936 = vpop.f32.mrb[0].mxu0
        %2937 = vmatprep.mubr.f32.mxu0 0.0
        %2938 = vmatmul.mubr.f32.gmra.mrb[0].mxu0 %v2819
        %v2939 = vpop.f32.mrb[0].mxu0
        %v2940 = vadd.f32 0.0, %v2939
        %v2941 = vpop.f32.mrb[0].mxu0
        %2942 = vmatprep.mubr.f32.mxu0 0.0
        %2943 = vmatmul.mubr.f32.gmra.mrb[0].mxu0 %v2821
        %v2944 = vpop.f32.mrb[0].mxu0
        %v2945 = vadd.f32 0.0, %v2944
        %v2946 = vpop.f32.mrb[0].mxu0
        %2947 = vmatprep.mubr.f32.mxu0 0.0
        %2948 = vmatmul.mubr.f32.gmra.mrb[0].mxu0 %v2823
        %v2949 = vpop.f32.mrb[0].mxu0
        %v2950 = vadd.f32 0.0, %v2949
        %v2951 = vpop.f32.mrb[0].mxu0
        %2952 = vdwg.mxu0
        %v2953 = vadd.f32 %v2761, %v2895
        %v2954 = vadd.f32 %v2762, %v2900
        %v2955 = vadd.f32 %v2763, %v2905
        %v2956 = vadd.f32 %v2764, %v2910
        %v2957 = vadd.f32 %v2765, %v2915
        %v2958 = vadd.f32 %v2766, %v2920
        %v2959 = vadd.f32 %v2767, %v2925
        %v2960 = vadd.f32 %v2768, %v2930
        %v2961 = vadd.f32 %v2769, %v2935
        %v2962 = vadd.f32 %v2770, %v2940
        %v2963 = vadd.f32 %v2771, %v2945
        %v2964 = vadd.f32 %v2772, %v2950
        %s2965 = scalar_lea.vmem %s3, 144
        %v2966 = vld [vmem:[%s2965] sm:$0xff]
        %v2967 = vld [vmem:[%s2965 + $0x8] sm:$0x3]
        %v2968 = vsel %vm1358, %v1311, 0
        %v2970 = vsel %vm1358, %v1312, 0
        %v2973 = vsel %vm1383, %v2967, 0
        %2975 = vmatprep.subr.mxu0 0.0
        %2976 = vmatpush1.msra.mxu0 %v2966
        %2977 = vmatprep.subr.mxu0 0.0
        %2978 = vmatpush1.msra.mxu0 %v2973
        %2979 = vmatprep.subr.mxu0 0.0
        %2980 = vmatpush1.msra.mxu0 0.0
        %2981 = vmatprep.subr.mxu0 0.0
        %2982 = vmatpush1.msra.mxu0 0.0
        %2983 = vmatprep.subr.mxu0 0.0
        %2984 = vmatpush1.msra.mxu0 0.0
        %2985 = vmatprep.subr.mxu0 0.0
        %2986 = vmatpush1.msra.mxu0 0.0
        %2987 = vmatprep.subr.mxu0 0.0
        %2988 = vmatpush1.msra.mxu0 0.0
        %2989 = vmatprep.subr.mxu0 0.0
        %2990 = vmatpush1.msra.mxu0 0.0
        %2991 = vmatprep.subr.mxu0 0.0
        %2992 = vmatpush1.msra.mxu0 0.0
        %2993 = vmatprep.subr.mxu0 0.0
        %2994 = vmatpush1.msra.mxu0 0.0
        %2995 = vmatprep.subr.mxu0 0.0
        %2996 = vmatpush1.msra.mxu0 0.0
        %2997 = vmatprep.subr.mxu0 0.0
        %2998 = vmatpush1.msra.mxu0 0.0
        %2999 = vmatprep.subr.mxu0 0.0
        %3000 = vmatpush1.msra.mxu0 0.0
        %3001 = vmatprep.subr.mxu0 0.0
        %3002 = vmatpush1.msra.mxu0 0.0
        %3003 = vmatprep.subr.mxu0 0.0
        %3004 = vmatpush1.msra.mxu0 0.0
        %3005 = vmatprep.subr.mxu0 0.0
        %3006 = vmatpush1.msra.mxu0 0.0
        %3007 = vmatprep.subr.mxu0 0.0
        %3008 = vmatpush1.msra.mxu0 0.0
        %3009 = vmatprep.subr.mxu0 0.0
        %3010 = vmatpush1.msra.mxu0 0.0
        %3011 = vmatprep.subr.mxu0 0.0
        %3012 = vmatpush1.msra.mxu0 0.0
        %3013 = vmatprep.subr.mxu0 0.0
        %3014 = vmatpush1.msra.mxu0 0.0
        %3015 = vmatprep.subr.mxu0 0.0
        %3016 = vmatpush1.msra.mxu0 0.0
        %3017 = vmatprep.subr.mxu0 0.0
        %3018 = vmatpush1.msra.mxu0 0.0
        %3019 = vmatprep.subr.mxu0 0.0
        %3020 = vmatpush1.msra.mxu0 0.0
        %3021 = vmatprep.subr.mxu0 0.0
        %3022 = vmatpush1.msra.mxu0 0.0
        %3023 = vmatprep.subr.mxu0 0.0
        %3024 = vmatpush1.msra.mxu0 0.0
        %3025 = vmatprep.subr.mxu0 0.0
        %3026 = vmatpush1.msra.mxu0 0.0
        %3027 = vmatprep.subr.mxu0 0.0
        %3028 = vmatpush1.msra.mxu0 0.0
        %3029 = vmatprep.subr.mxu0 0.0
        %3030 = vmatpush1.msra.mxu0 0.0
        %3031 = vmatprep.subr.mxu0 0.0
        %3032 = vmatpush1.msra.mxu0 0.0
        %3033 = vmatprep.subr.mxu0 0.0
        %3034 = vmatpush1.msra.mxu0 0.0
        %3035 = vmatprep.subr.mxu0 0.0
        %3036 = vmatpush1.msra.mxu0 0.0
        %3037 = vmatprep.subr.mxu0 0.0
        %3038 = vmatpush1.msra.mxu0 0.0
        %3039 = vmatprep.mubr.f32.mxu0 0.0
        %3040 = vmatmul.mubr.f32.gmra.mrb[0].mxu0 %v1516
        %v3041 = vpop.f32.mrb[0].mxu0
        %v3042 = vadd.f32 0.0, %v3041
        %v3043 = vpop.f32.mrb[0].mxu0
        %3044 = vmatprep.mubr.f32.mxu0 0.0
        %3045 = vmatmul.mubr.f32.gmra.mrb[0].mxu0 %v1518
        %v3046 = vpop.f32.mrb[0].mxu0
        %v3047 = vadd.f32 0.0, %v3046
        %v3048 = vpop.f32.mrb[0].mxu0
        %3049 = vmatprep.mubr.f32.mxu0 0.0
        %3050 = vmatmul.mubr.f32.gmra.mrb[0].mxu0 %v1520
        %v3051 = vpop.f32.mrb[0].mxu0
        %v3052 = vadd.f32 0.0, %v3051
        %v3053 = vpop.f32.mrb[0].mxu0
        %3054 = vmatprep.mubr.f32.mxu0 0.0
        %3055 = vmatmul.mubr.f32.gmra.mrb[0].mxu0 %v1522
        %v3056 = vpop.f32.mrb[0].mxu0
        %v3057 = vadd.f32 0.0, %v3056
        %v3058 = vpop.f32.mrb[0].mxu0
        %3059 = vmatprep.mubr.f32.mxu0 0.0
        %3060 = vmatmul.mubr.f32.gmra.mrb[0].mxu0 %v1524
        %v3061 = vpop.f32.mrb[0].mxu0
        %v3062 = vadd.f32 0.0, %v3061
        %v3063 = vpop.f32.mrb[0].mxu0
        %3064 = vmatprep.mubr.f32.mxu0 0.0
        %3065 = vmatmul.mubr.f32.gmra.mrb[0].mxu0 %v1526
        %v3066 = vpop.f32.mrb[0].mxu0
        %v3067 = vadd.f32 0.0, %v3066
        %v3068 = vpop.f32.mrb[0].mxu0
        %3069 = vmatprep.mubr.f32.mxu0 0.0
        %3070 = vmatmul.mubr.f32.gmra.mrb[0].mxu0 %v1528
        %v3071 = vpop.f32.mrb[0].mxu0
        %v3072 = vadd.f32 0.0, %v3071
        %v3073 = vpop.f32.mrb[0].mxu0
        %3074 = vmatprep.mubr.f32.mxu0 0.0
        %3075 = vmatmul.mubr.f32.gmra.mrb[0].mxu0 %v1530
        %v3076 = vpop.f32.mrb[0].mxu0
        %v3077 = vadd.f32 0.0, %v3076
        %v3078 = vpop.f32.mrb[0].mxu0
        %3079 = vmatprep.mubr.f32.mxu0 0.0
        %3080 = vmatmul.mubr.f32.gmra.mrb[0].mxu0 %v1532
        %v3081 = vpop.f32.mrb[0].mxu0
        %v3082 = vadd.f32 0.0, %v3081
        %v3083 = vpop.f32.mrb[0].mxu0
        %3084 = vmatprep.mubr.f32.mxu0 0.0
        %3085 = vmatmul.mubr.f32.gmra.mrb[0].mxu0 %v1534
        %v3086 = vpop.f32.mrb[0].mxu0
        %v3087 = vadd.f32 0.0, %v3086
        %v3088 = vpop.f32.mrb[0].mxu0
        %3089 = vmatprep.mubr.f32.mxu0 0.0
        %3090 = vmatmul.mubr.f32.gmra.mrb[0].mxu0 %v2968
        %v3091 = vpop.f32.mrb[0].mxu0
        %v3092 = vadd.f32 0.0, %v3091
        %v3093 = vpop.f32.mrb[0].mxu0
        %3094 = vmatprep.mubr.f32.mxu0 0.0
        %3095 = vmatmul.mubr.f32.gmra.mrb[0].mxu0 %v2970
        %v3096 = vpop.f32.mrb[0].mxu0
        %v3097 = vadd.f32 0.0, %v3096
        %v3098 = vpop.f32.mrb[0].mxu0
        %3099 = vdwg.mxu0
        %v3100 = vadd.f32 %v2953, %v3042
        %v3101 = vadd.f32 %v2954, %v3047
        %v3102 = vadd.f32 %v2955, %v3052
        %v3103 = vadd.f32 %v2956, %v3057
        %v3104 = vadd.f32 %v2957, %v3062
        %v3105 = vadd.f32 %v2958, %v3067
        %v3106 = vadd.f32 %v2959, %v3072
        %v3107 = vadd.f32 %v2960, %v3077
        %v3108 = vadd.f32 %v2961, %v3082
        %v3109 = vadd.f32 %v2962, %v3087
        %v3110 = vadd.f32 %v2963, %v3092
        %v3111 = vadd.f32 %v2964, %v3097
        %s3112 = scalar_lea.vmem %s3, 160
        %v3113 = vld [vmem:[%s3112] sm:$0xff]
        %v3114 = vld [vmem:[%s3112 + $0x8] sm:$0x3]
        %v3116 = vsel %vm1358, %v1313, 0
        %v3119 = vsel %vm1383, %v3114, 0
        %3121 = vmatprep.subr.mxu0 0.0
        %3122 = vmatpush1.msra.mxu0 %v3113
        %3123 = vmatprep.subr.mxu0 0.0
        %3124 = vmatpush1.msra.mxu0 %v3119
        %3125 = vmatprep.subr.mxu0 0.0
        %3126 = vmatpush1.msra.mxu0 0.0
        %3127 = vmatprep.subr.mxu0 0.0
        %3128 = vmatpush1.msra.mxu0 0.0
        %3129 = vmatprep.subr.mxu0 0.0
        %3130 = vmatpush1.msra.mxu0 0.0
        %3131 = vmatprep.subr.mxu0 0.0
        %3132 = vmatpush1.msra.mxu0 0.0
        %3133 = vmatprep.subr.mxu0 0.0
        %3134 = vmatpush1.msra.mxu0 0.0
        %3135 = vmatprep.subr.mxu0 0.0
        %3136 = vmatpush1.msra.mxu0 0.0
        %3137 = vmatprep.subr.mxu0 0.0
        %3138 = vmatpush1.msra.mxu0 0.0
        %3139 = vmatprep.subr.mxu0 0.0
        %3140 = vmatpush1.msra.mxu0 0.0
        %3141 = vmatprep.subr.mxu0 0.0
        %3142 = vmatpush1.msra.mxu0 0.0
        %3143 = vmatprep.subr.mxu0 0.0
        %3144 = vmatpush1.msra.mxu0 0.0
        %3145 = vmatprep.subr.mxu0 0.0
        %3146 = vmatpush1.msra.mxu0 0.0
        %3147 = vmatprep.subr.mxu0 0.0
        %3148 = vmatpush1.msra.mxu0 0.0
        %3149 = vmatprep.subr.mxu0 0.0
        %3150 = vmatpush1.msra.mxu0 0.0
        %3151 = vmatprep.subr.mxu0 0.0
        %3152 = vmatpush1.msra.mxu0 0.0
        %3153 = vmatprep.subr.mxu0 0.0
        %3154 = vmatpush1.msra.mxu0 0.0
        %3155 = vmatprep.subr.mxu0 0.0
        %3156 = vmatpush1.msra.mxu0 0.0
        %3157 = vmatprep.subr.mxu0 0.0
        %3158 = vmatpush1.msra.mxu0 0.0
        %3159 = vmatprep.subr.mxu0 0.0
        %3160 = vmatpush1.msra.mxu0 0.0
        %3161 = vmatprep.subr.mxu0 0.0
        %3162 = vmatpush1.msra.mxu0 0.0
        %3163 = vmatprep.subr.mxu0 0.0
        %3164 = vmatpush1.msra.mxu0 0.0
        %3165 = vmatprep.subr.mxu0 0.0
        %3166 = vmatpush1.msra.mxu0 0.0
        %3167 = vmatprep.subr.mxu0 0.0
        %3168 = vmatpush1.msra.mxu0 0.0
        %3169 = vmatprep.subr.mxu0 0.0
        %3170 = vmatpush1.msra.mxu0 0.0
        %3171 = vmatprep.subr.mxu0 0.0
        %3172 = vmatpush1.msra.mxu0 0.0
        %3173 = vmatprep.subr.mxu0 0.0
        %3174 = vmatpush1.msra.mxu0 0.0
        %3175 = vmatprep.subr.mxu0 0.0
        %3176 = vmatpush1.msra.mxu0 0.0
        %3177 = vmatprep.subr.mxu0 0.0
        %3178 = vmatpush1.msra.mxu0 0.0
        %3179 = vmatprep.subr.mxu0 0.0
        %3180 = vmatpush1.msra.mxu0 0.0
        %3181 = vmatprep.subr.mxu0 0.0
        %3182 = vmatpush1.msra.mxu0 0.0
        %3183 = vmatprep.subr.mxu0 0.0
        %3184 = vmatpush1.msra.mxu0 0.0
        %3185 = vmatprep.mubr.f32.mxu0 0.0
        %3186 = vmatmul.mubr.f32.gmra.mrb[0].mxu0 %v1518
        %v3187 = vpop.f32.mrb[0].mxu0
        %v3188 = vadd.f32 0.0, %v3187
        %v3189 = vpop.f32.mrb[0].mxu0
        %3190 = vmatprep.mubr.f32.mxu0 0.0
        %3191 = vmatmul.mubr.f32.gmra.mrb[0].mxu0 %v1520
        %v3192 = vpop.f32.mrb[0].mxu0
        %v3193 = vadd.f32 0.0, %v3192
        %v3194 = vpop.f32.mrb[0].mxu0
        %3195 = vmatprep.mubr.f32.mxu0 0.0
        %3196 = vmatmul.mubr.f32.gmra.mrb[0].mxu0 %v1522
        %v3197 = vpop.f32.mrb[0].mxu0
        %v3198 = vadd.f32 0.0, %v3197
        %v3199 = vpop.f32.mrb[0].mxu0
        %3200 = vmatprep.mubr.f32.mxu0 0.0
        %3201 = vmatmul.mubr.f32.gmra.mrb[0].mxu0 %v1524
        %v3202 = vpop.f32.mrb[0].mxu0
        %v3203 = vadd.f32 0.0, %v3202
        %v3204 = vpop.f32.mrb[0].mxu0
        %3205 = vmatprep.mubr.f32.mxu0 0.0
        %3206 = vmatmul.mubr.f32.gmra.mrb[0].mxu0 %v1526
        %v3207 = vpop.f32.mrb[0].mxu0
        %v3208 = vadd.f32 0.0, %v3207
        %v3209 = vpop.f32.mrb[0].mxu0
        %3210 = vmatprep.mubr.f32.mxu0 0.0
        %3211 = vmatmul.mubr.f32.gmra.mrb[0].mxu0 %v1528
        %v3212 = vpop.f32.mrb[0].mxu0
        %v3213 = vadd.f32 0.0, %v3212
        %v3214 = vpop.f32.mrb[0].mxu0
        %3215 = vmatprep.mubr.f32.mxu0 0.0
        %3216 = vmatmul.mubr.f32.gmra.mrb[0].mxu0 %v1530
        %v3217 = vpop.f32.mrb[0].mxu0
        %v3218 = vadd.f32 0.0, %v3217
        %v3219 = vpop.f32.mrb[0].mxu0
        %3220 = vmatprep.mubr.f32.mxu0 0.0
        %3221 = vmatmul.mubr.f32.gmra.mrb[0].mxu0 %v1532
        %v3222 = vpop.f32.mrb[0].mxu0
        %v3223 = vadd.f32 0.0, %v3222
        %v3224 = vpop.f32.mrb[0].mxu0
        %3225 = vmatprep.mubr.f32.mxu0 0.0
        %3226 = vmatmul.mubr.f32.gmra.mrb[0].mxu0 %v1534
        %v3227 = vpop.f32.mrb[0].mxu0
        %v3228 = vadd.f32 0.0, %v3227
        %v3229 = vpop.f32.mrb[0].mxu0
        %3230 = vmatprep.mubr.f32.mxu0 0.0
        %3231 = vmatmul.mubr.f32.gmra.mrb[0].mxu0 %v2968
        %v3232 = vpop.f32.mrb[0].mxu0
        %v3233 = vadd.f32 0.0, %v3232
        %v3234 = vpop.f32.mrb[0].mxu0
        %3235 = vmatprep.mubr.f32.mxu0 0.0
        %3236 = vmatmul.mubr.f32.gmra.mrb[0].mxu0 %v2970
        %v3237 = vpop.f32.mrb[0].mxu0
        %v3238 = vadd.f32 0.0, %v3237
        %v3239 = vpop.f32.mrb[0].mxu0
        %3240 = vmatprep.mubr.f32.mxu0 0.0
        %3241 = vmatmul.mubr.f32.gmra.mrb[0].mxu0 %v3116
        %v3242 = vpop.f32.mrb[0].mxu0
        %v3243 = vadd.f32 0.0, %v3242
        %v3244 = vpop.f32.mrb[0].mxu0
        %3245 = vdwg.mxu0
        %v3246 = vadd.f32 %v3100, %v3188
        %v3247 = vadd.f32 %v3101, %v3193
        %v3248 = vadd.f32 %v3102, %v3198
        %v3249 = vadd.f32 %v3103, %v3203
        %v3250 = vadd.f32 %v3104, %v3208
        %v3251 = vadd.f32 %v3105, %v3213
        %v3252 = vadd.f32 %v3106, %v3218
        %v3253 = vadd.f32 %v3107, %v3223
        %v3254 = vadd.f32 %v3108, %v3228
        %v3255 = vadd.f32 %v3109, %v3233
        %v3256 = vadd.f32 %v3110, %v3238
        %v3257 = vadd.f32 %v3111, %v3243
        %s3258 = scalar_lea.vmem %s3, 176
        %v3259 = vld [vmem:[%s3258] sm:$0xff]
        %v3260 = vld [vmem:[%s3258 + $0x8] sm:$0x3]
        %v3261 = vrot.slane %v1311, 1
        %v3262 = vsel %vm1334, %v1356, %v3261
        %v3263 = vrot.slane %v1312, 1
        %v3264 = vsel %vm1334, %v3261, %v3263
        %v3265 = vrot.slane %v1313, 1
        %v3266 = vsel %vm1334, %v3263, %v3265
        %v3267 = vsel %vm1358, %v3262, 0
        %v3269 = vsel %vm1358, %v3264, 0
        %v3271 = vsel %vm1358, %v3266, 0
        %v3273 = vsel %vm1358, %v3265, 0
        %v3276 = vsel %vm1383, %v3260, 0
        %3278 = vmatprep.subr.mxu0 0.0
        %3279 = vmatpush1.msra.mxu0 %v3259
        %3280 = vmatprep.subr.mxu0 0.0
        %3281 = vmatpush1.msra.mxu0 %v3276
        %3282 = vmatprep.subr.mxu0 0.0
        %3283 = vmatpush1.msra.mxu0 0.0
        %3284 = vmatprep.subr.mxu0 0.0
        %3285 = vmatpush1.msra.mxu0 0.0
        %3286 = vmatprep.subr.mxu0 0.0
        %3287 = vmatpush1.msra.mxu0 0.0
        %3288 = vmatprep.subr.mxu0 0.0
        %3289 = vmatpush1.msra.mxu0 0.0
        %3290 = vmatprep.subr.mxu0 0.0
        %3291 = vmatpush1.msra.mxu0 0.0
        %3292 = vmatprep.subr.mxu0 0.0
        %3293 = vmatpush1.msra.mxu0 0.0
        %3294 = vmatprep.subr.mxu0 0.0
        %3295 = vmatpush1.msra.mxu0 0.0
        %3296 = vmatprep.subr.mxu0 0.0
        %3297 = vmatpush1.msra.mxu0 0.0
        %3298 = vmatprep.subr.mxu0 0.0
        %3299 = vmatpush1.msra.mxu0 0.0
        %3300 = vmatprep.subr.mxu0 0.0
        %3301 = vmatpush1.msra.mxu0 0.0
        %3302 = vmatprep.subr.mxu0 0.0
        %3303 = vmatpush1.msra.mxu0 0.0
        %3304 = vmatprep.subr.mxu0 0.0
        %3305 = vmatpush1.msra.mxu0 0.0
        %3306 = vmatprep.subr.mxu0 0.0
        %3307 = vmatpush1.msra.mxu0 0.0
        %3308 = vmatprep.subr.mxu0 0.0
        %3309 = vmatpush1.msra.mxu0 0.0
        %3310 = vmatprep.subr.mxu0 0.0
        %3311 = vmatpush1.msra.mxu0 0.0
        %3312 = vmatprep.subr.mxu0 0.0
        %3313 = vmatpush1.msra.mxu0 0.0
        %3314 = vmatprep.subr.mxu0 0.0
        %3315 = vmatpush1.msra.mxu0 0.0
        %3316 = vmatprep.subr.mxu0 0.0
        %3317 = vmatpush1.msra.mxu0 0.0
        %3318 = vmatprep.subr.mxu0 0.0
        %3319 = vmatpush1.msra.mxu0 0.0
        %3320 = vmatprep.subr.mxu0 0.0
        %3321 = vmatpush1.msra.mxu0 0.0
        %3322 = vmatprep.subr.mxu0 0.0
        %3323 = vmatpush1.msra.mxu0 0.0
        %3324 = vmatprep.subr.mxu0 0.0
        %3325 = vmatpush1.msra.mxu0 0.0
        %3326 = vmatprep.subr.mxu0 0.0
        %3327 = vmatpush1.msra.mxu0 0.0
        %3328 = vmatprep.subr.mxu0 0.0
        %3329 = vmatpush1.msra.mxu0 0.0
        %3330 = vmatprep.subr.mxu0 0.0
        %3331 = vmatpush1.msra.mxu0 0.0
        %3332 = vmatprep.subr.mxu0 0.0
        %3333 = vmatpush1.msra.mxu0 0.0
        %3334 = vmatprep.subr.mxu0 0.0
        %3335 = vmatpush1.msra.mxu0 0.0
        %3336 = vmatprep.subr.mxu0 0.0
        %3337 = vmatpush1.msra.mxu0 0.0
        %3338 = vmatprep.subr.mxu0 0.0
        %3339 = vmatpush1.msra.mxu0 0.0
        %3340 = vmatprep.subr.mxu0 0.0
        %3341 = vmatpush1.msra.mxu0 0.0
        %3342 = vmatprep.mubr.f32.mxu0 0.0
        %3343 = vmatmul.mubr.f32.gmra.mrb[0].mxu0 %v1365
        %v3344 = vpop.f32.mrb[0].mxu0
        %v3345 = vadd.f32 0.0, %v3344
        %v3346 = vpop.f32.mrb[0].mxu0
        %3347 = vmatprep.mubr.f32.mxu0 0.0
        %3348 = vmatmul.mubr.f32.gmra.mrb[0].mxu0 %v1367
        %v3349 = vpop.f32.mrb[0].mxu0
        %v3350 = vadd.f32 0.0, %v3349
        %v3351 = vpop.f32.mrb[0].mxu0
        %3352 = vmatprep.mubr.f32.mxu0 0.0
        %3353 = vmatmul.mubr.f32.gmra.mrb[0].mxu0 %v1369
        %v3354 = vpop.f32.mrb[0].mxu0
        %v3355 = vadd.f32 0.0, %v3354
        %v3356 = vpop.f32.mrb[0].mxu0
        %3357 = vmatprep.mubr.f32.mxu0 0.0
        %3358 = vmatmul.mubr.f32.gmra.mrb[0].mxu0 %v1371
        %v3359 = vpop.f32.mrb[0].mxu0
        %v3360 = vadd.f32 0.0, %v3359
        %v3361 = vpop.f32.mrb[0].mxu0
        %3362 = vmatprep.mubr.f32.mxu0 0.0
        %3363 = vmatmul.mubr.f32.gmra.mrb[0].mxu0 %v1373
        %v3364 = vpop.f32.mrb[0].mxu0
        %v3365 = vadd.f32 0.0, %v3364
        %v3366 = vpop.f32.mrb[0].mxu0
        %3367 = vmatprep.mubr.f32.mxu0 0.0
        %3368 = vmatmul.mubr.f32.gmra.mrb[0].mxu0 %v1375
        %v3369 = vpop.f32.mrb[0].mxu0
        %v3370 = vadd.f32 0.0, %v3369
        %v3371 = vpop.f32.mrb[0].mxu0
        %3372 = vmatprep.mubr.f32.mxu0 0.0
        %3373 = vmatmul.mubr.f32.gmra.mrb[0].mxu0 %v1377
        %v3374 = vpop.f32.mrb[0].mxu0
        %v3375 = vadd.f32 0.0, %v3374
        %v3376 = vpop.f32.mrb[0].mxu0
        %3377 = vmatprep.mubr.f32.mxu0 0.0
        %3378 = vmatmul.mubr.f32.gmra.mrb[0].mxu0 %v1379
        %v3379 = vpop.f32.mrb[0].mxu0
        %v3380 = vadd.f32 0.0, %v3379
        %v3381 = vpop.f32.mrb[0].mxu0
        %3382 = vmatprep.mubr.f32.mxu0 0.0
        %3383 = vmatmul.mubr.f32.gmra.mrb[0].mxu0 %v3267
        %v3384 = vpop.f32.mrb[0].mxu0
        %v3385 = vadd.f32 0.0, %v3384
        %v3386 = vpop.f32.mrb[0].mxu0
        %3387 = vmatprep.mubr.f32.mxu0 0.0
        %3388 = vmatmul.mubr.f32.gmra.mrb[0].mxu0 %v3269
        %v3389 = vpop.f32.mrb[0].mxu0
        %v3390 = vadd.f32 0.0, %v3389
        %v3391 = vpop.f32.mrb[0].mxu0
        %3392 = vmatprep.mubr.f32.mxu0 0.0
        %3393 = vmatmul.mubr.f32.gmra.mrb[0].mxu0 %v3271
        %v3394 = vpop.f32.mrb[0].mxu0
        %v3395 = vadd.f32 0.0, %v3394
        %v3396 = vpop.f32.mrb[0].mxu0
        %3397 = vmatprep.mubr.f32.mxu0 0.0
        %3398 = vmatmul.mubr.f32.gmra.mrb[0].mxu0 %v3273
        %v3399 = vpop.f32.mrb[0].mxu0
        %v3400 = vadd.f32 0.0, %v3399
        %v3401 = vpop.f32.mrb[0].mxu0
        %3402 = vdwg.mxu0
        %v3403 = vadd.f32 %v3246, %v3345
        %v3404 = vadd.f32 %v3247, %v3350
        %v3405 = vadd.f32 %v3248, %v3355
        %v3406 = vadd.f32 %v3249, %v3360
        %v3407 = vadd.f32 %v3250, %v3365
        %v3408 = vadd.f32 %v3251, %v3370
        %v3409 = vadd.f32 %v3252, %v3375
        %v3410 = vadd.f32 %v3253, %v3380
        %v3411 = vadd.f32 %v3254, %v3385
        %v3412 = vadd.f32 %v3255, %v3390
        %v3413 = vadd.f32 %v3256, %v3395
        %v3414 = vadd.f32 %v3257, %v3400
        %s3415 = scalar_lea.vmem %s3, 192
        %v3416 = vld [vmem:[%s3415] sm:$0xff]
        %v3417 = vld [vmem:[%s3415 + $0x8] sm:$0x3]
        %v3418 = vrot.slane %v1311, 2
        %v3419 = vsel %vm1667, %v1689, %v3418
        %v3420 = vrot.slane %v1312, 2
        %v3421 = vsel %vm1667, %v3418, %v3420
        %v3422 = vrot.slane %v1313, 2
        %v3423 = vsel %vm1667, %v3420, %v3422
        %v3424 = vsel %vm1358, %v3419, 0
        %v3426 = vsel %vm1358, %v3421, 0
        %v3428 = vsel %vm1358, %v3423, 0
        %v3430 = vsel %vm1358, %v3422, 0
        %v3433 = vsel %vm1383, %v3417, 0
        %3435 = vmatprep.subr.mxu0 0.0
        %3436 = vmatpush1.msra.mxu0 %v3416
        %3437 = vmatprep.subr.mxu0 0.0
        %3438 = vmatpush1.msra.mxu0 %v3433
        %3439 = vmatprep.subr.mxu0 0.0
        %3440 = vmatpush1.msra.mxu0 0.0
        %3441 = vmatprep.subr.mxu0 0.0
        %3442 = vmatpush1.msra.mxu0 0.0
        %3443 = vmatprep.subr.mxu0 0.0
        %3444 = vmatpush1.msra.mxu0 0.0
        %3445 = vmatprep.subr.mxu0 0.0
        %3446 = vmatpush1.msra.mxu0 0.0
        %3447 = vmatprep.subr.mxu0 0.0
        %3448 = vmatpush1.msra.mxu0 0.0
        %3449 = vmatprep.subr.mxu0 0.0
        %3450 = vmatpush1.msra.mxu0 0.0
        %3451 = vmatprep.subr.mxu0 0.0
        %3452 = vmatpush1.msra.mxu0 0.0
        %3453 = vmatprep.subr.mxu0 0.0
        %3454 = vmatpush1.msra.mxu0 0.0
        %3455 = vmatprep.subr.mxu0 0.0
        %3456 = vmatpush1.msra.mxu0 0.0
        %3457 = vmatprep.subr.mxu0 0.0
        %3458 = vmatpush1.msra.mxu0 0.0
        %3459 = vmatprep.subr.mxu0 0.0
        %3460 = vmatpush1.msra.mxu0 0.0
        %3461 = vmatprep.subr.mxu0 0.0
        %3462 = vmatpush1.msra.mxu0 0.0
        %3463 = vmatprep.subr.mxu0 0.0
        %3464 = vmatpush1.msra.mxu0 0.0
        %3465 = vmatprep.subr.mxu0 0.0
        %3466 = vmatpush1.msra.mxu0 0.0
        %3467 = vmatprep.subr.mxu0 0.0
        %3468 = vmatpush1.msra.mxu0 0.0
        %3469 = vmatprep.subr.mxu0 0.0
        %3470 = vmatpush1.msra.mxu0 0.0
        %3471 = vmatprep.subr.mxu0 0.0
        %3472 = vmatpush1.msra.mxu0 0.0
        %3473 = vmatprep.subr.mxu0 0.0
        %3474 = vmatpush1.msra.mxu0 0.0
        %3475 = vmatprep.subr.mxu0 0.0
        %3476 = vmatpush1.msra.mxu0 0.0
        %3477 = vmatprep.subr.mxu0 0.0
        %3478 = vmatpush1.msra.mxu0 0.0
        %3479 = vmatprep.subr.mxu0 0.0
        %3480 = vmatpush1.msra.mxu0 0.0
        %3481 = vmatprep.subr.mxu0 0.0
        %3482 = vmatpush1.msra.mxu0 0.0
        %3483 = vmatprep.subr.mxu0 0.0
        %3484 = vmatpush1.msra.mxu0 0.0
        %3485 = vmatprep.subr.mxu0 0.0
        %3486 = vmatpush1.msra.mxu0 0.0
        %3487 = vmatprep.subr.mxu0 0.0
        %3488 = vmatpush1.msra.mxu0 0.0
        %3489 = vmatprep.subr.mxu0 0.0
        %3490 = vmatpush1.msra.mxu0 0.0
        %3491 = vmatprep.subr.mxu0 0.0
        %3492 = vmatpush1.msra.mxu0 0.0
        %3493 = vmatprep.subr.mxu0 0.0
        %3494 = vmatpush1.msra.mxu0 0.0
        %3495 = vmatprep.subr.mxu0 0.0
        %3496 = vmatpush1.msra.mxu0 0.0
        %3497 = vmatprep.subr.mxu0 0.0
        %3498 = vmatpush1.msra.mxu0 0.0
        %3499 = vmatprep.mubr.f32.mxu0 0.0
        %3500 = vmatmul.mubr.f32.gmra.mrb[0].mxu0 %v1697
        %v3501 = vpop.f32.mrb[0].mxu0
        %v3502 = vadd.f32 0.0, %v3501
        %v3503 = vpop.f32.mrb[0].mxu0
        %3504 = vmatprep.mubr.f32.mxu0 0.0
        %3505 = vmatmul.mubr.f32.gmra.mrb[0].mxu0 %v1699
        %v3506 = vpop.f32.mrb[0].mxu0
        %v3507 = vadd.f32 0.0, %v3506
        %v3508 = vpop.f32.mrb[0].mxu0
        %3509 = vmatprep.mubr.f32.mxu0 0.0
        %3510 = vmatmul.mubr.f32.gmra.mrb[0].mxu0 %v1701
        %v3511 = vpop.f32.mrb[0].mxu0
        %v3512 = vadd.f32 0.0, %v3511
        %v3513 = vpop.f32.mrb[0].mxu0
        %3514 = vmatprep.mubr.f32.mxu0 0.0
        %3515 = vmatmul.mubr.f32.gmra.mrb[0].mxu0 %v1703
        %v3516 = vpop.f32.mrb[0].mxu0
        %v3517 = vadd.f32 0.0, %v3516
        %v3518 = vpop.f32.mrb[0].mxu0
        %3519 = vmatprep.mubr.f32.mxu0 0.0
        %3520 = vmatmul.mubr.f32.gmra.mrb[0].mxu0 %v1705
        %v3521 = vpop.f32.mrb[0].mxu0
        %v3522 = vadd.f32 0.0, %v3521
        %v3523 = vpop.f32.mrb[0].mxu0
        %3524 = vmatprep.mubr.f32.mxu0 0.0
        %3525 = vmatmul.mubr.f32.gmra.mrb[0].mxu0 %v1707
        %v3526 = vpop.f32.mrb[0].mxu0
        %v3527 = vadd.f32 0.0, %v3526
        %v3528 = vpop.f32.mrb[0].mxu0
        %3529 = vmatprep.mubr.f32.mxu0 0.0
        %3530 = vmatmul.mubr.f32.gmra.mrb[0].mxu0 %v1709
        %v3531 = vpop.f32.mrb[0].mxu0
        %v3532 = vadd.f32 0.0, %v3531
        %v3533 = vpop.f32.mrb[0].mxu0
        %3534 = vmatprep.mubr.f32.mxu0 0.0
        %3535 = vmatmul.mubr.f32.gmra.mrb[0].mxu0 %v1711
        %v3536 = vpop.f32.mrb[0].mxu0
        %v3537 = vadd.f32 0.0, %v3536
        %v3538 = vpop.f32.mrb[0].mxu0
        %3539 = vmatprep.mubr.f32.mxu0 0.0
        %3540 = vmatmul.mubr.f32.gmra.mrb[0].mxu0 %v3424
        %v3541 = vpop.f32.mrb[0].mxu0
        %v3542 = vadd.f32 0.0, %v3541
        %v3543 = vpop.f32.mrb[0].mxu0
        %3544 = vmatprep.mubr.f32.mxu0 0.0
        %3545 = vmatmul.mubr.f32.gmra.mrb[0].mxu0 %v3426
        %v3546 = vpop.f32.mrb[0].mxu0
        %v3547 = vadd.f32 0.0, %v3546
        %v3548 = vpop.f32.mrb[0].mxu0
        %3549 = vmatprep.mubr.f32.mxu0 0.0
        %3550 = vmatmul.mubr.f32.gmra.mrb[0].mxu0 %v3428
        %v3551 = vpop.f32.mrb[0].mxu0
        %v3552 = vadd.f32 0.0, %v3551
        %v3553 = vpop.f32.mrb[0].mxu0
        %3554 = vmatprep.mubr.f32.mxu0 0.0
        %3555 = vmatmul.mubr.f32.gmra.mrb[0].mxu0 %v3430
        %v3556 = vpop.f32.mrb[0].mxu0
        %v3557 = vadd.f32 0.0, %v3556
        %v3558 = vpop.f32.mrb[0].mxu0
        %3559 = vdwg.mxu0
        %v3560 = vadd.f32 %v3403, %v3502
        %v3561 = vadd.f32 %v3404, %v3507
        %v3562 = vadd.f32 %v3405, %v3512
        %v3563 = vadd.f32 %v3406, %v3517
        %v3564 = vadd.f32 %v3407, %v3522
        %v3565 = vadd.f32 %v3408, %v3527
        %v3566 = vadd.f32 %v3409, %v3532
        %v3567 = vadd.f32 %v3410, %v3537
        %v3568 = vadd.f32 %v3411, %v3542
        %v3569 = vadd.f32 %v3412, %v3547
        %v3570 = vadd.f32 %v3413, %v3552
        %v3571 = vadd.f32 %v3414, %v3557
        %s3572 = scalar_lea.vmem %s3, 208
        %v3573 = vld [vmem:[%s3572] sm:$0xff]
        %v3574 = vld [vmem:[%s3572 + $0x8] sm:$0x3]
        %v3575 = vrot.slane %v1311, 3
        %v3576 = vsel %vm1858, %v1880, %v3575
        %v3577 = vrot.slane %v1312, 3
        %v3578 = vsel %vm1858, %v3575, %v3577
        %v3579 = vrot.slane %v1313, 3
        %v3580 = vsel %vm1858, %v3577, %v3579
        %v3581 = vsel %vm1358, %v3576, 0
        %v3583 = vsel %vm1358, %v3578, 0
        %v3585 = vsel %vm1358, %v3580, 0
        %v3587 = vsel %vm1358, %v3579, 0
        %v3590 = vsel %vm1383, %v3574, 0
        %3592 = vmatprep.subr.mxu0 0.0
        %3593 = vmatpush1.msra.mxu0 %v3573
        %3594 = vmatprep.subr.mxu0 0.0
        %3595 = vmatpush1.msra.mxu0 %v3590
        %3596 = vmatprep.subr.mxu0 0.0
        %3597 = vmatpush1.msra.mxu0 0.0
        %3598 = vmatprep.subr.mxu0 0.0
        %3599 = vmatpush1.msra.mxu0 0.0
        %3600 = vmatprep.subr.mxu0 0.0
        %3601 = vmatpush1.msra.mxu0 0.0
        %3602 = vmatprep.subr.mxu0 0.0
        %3603 = vmatpush1.msra.mxu0 0.0
        %3604 = vmatprep.subr.mxu0 0.0
        %3605 = vmatpush1.msra.mxu0 0.0
        %3606 = vmatprep.subr.mxu0 0.0
        %3607 = vmatpush1.msra.mxu0 0.0
        %3608 = vmatprep.subr.mxu0 0.0
        %3609 = vmatpush1.msra.mxu0 0.0
        %3610 = vmatprep.subr.mxu0 0.0
        %3611 = vmatpush1.msra.mxu0 0.0
        %3612 = vmatprep.subr.mxu0 0.0
        %3613 = vmatpush1.msra.mxu0 0.0
        %3614 = vmatprep.subr.mxu0 0.0
        %3615 = vmatpush1.msra.mxu0 0.0
        %3616 = vmatprep.subr.mxu0 0.0
        %3617 = vmatpush1.msra.mxu0 0.0
        %3618 = vmatprep.subr.mxu0 0.0
        %3619 = vmatpush1.msra.mxu0 0.0
        %3620 = vmatprep.subr.mxu0 0.0
        %3621 = vmatpush1.msra.mxu0 0.0
        %3622 = vmatprep.subr.mxu0 0.0
        %3623 = vmatpush1.msra.mxu0 0.0
        %3624 = vmatprep.subr.mxu0 0.0
        %3625 = vmatpush1.msra.mxu0 0.0
        %3626 = vmatprep.subr.mxu0 0.0
        %3627 = vmatpush1.msra.mxu0 0.0
        %3628 = vmatprep.subr.mxu0 0.0
        %3629 = vmatpush1.msra.mxu0 0.0
        %3630 = vmatprep.subr.mxu0 0.0
        %3631 = vmatpush1.msra.mxu0 0.0
        %3632 = vmatprep.subr.mxu0 0.0
        %3633 = vmatpush1.msra.mxu0 0.0
        %3634 = vmatprep.subr.mxu0 0.0
        %3635 = vmatpush1.msra.mxu0 0.0
        %3636 = vmatprep.subr.mxu0 0.0
        %3637 = vmatpush1.msra.mxu0 0.0
        %3638 = vmatprep.subr.mxu0 0.0
        %3639 = vmatpush1.msra.mxu0 0.0
        %3640 = vmatprep.subr.mxu0 0.0
        %3641 = vmatpush1.msra.mxu0 0.0
        %3642 = vmatprep.subr.mxu0 0.0
        %3643 = vmatpush1.msra.mxu0 0.0
        %3644 = vmatprep.subr.mxu0 0.0
        %3645 = vmatpush1.msra.mxu0 0.0
        %3646 = vmatprep.subr.mxu0 0.0
        %3647 = vmatpush1.msra.mxu0 0.0
        %3648 = vmatprep.subr.mxu0 0.0
        %3649 = vmatpush1.msra.mxu0 0.0
        %3650 = vmatprep.subr.mxu0 0.0
        %3651 = vmatpush1.msra.mxu0 0.0
        %3652 = vmatprep.subr.mxu0 0.0
        %3653 = vmatpush1.msra.mxu0 0.0
        %3654 = vmatprep.subr.mxu0 0.0
        %3655 = vmatpush1.msra.mxu0 0.0
        %3656 = vmatprep.mubr.f32.mxu0 0.0
        %3657 = vmatmul.mubr.f32.gmra.mrb[0].mxu0 %v1888
        %v3658 = vpop.f32.mrb[0].mxu0
        %v3659 = vadd.f32 0.0, %v3658
        %v3660 = vpop.f32.mrb[0].mxu0
        %3661 = vmatprep.mubr.f32.mxu0 0.0
        %3662 = vmatmul.mubr.f32.gmra.mrb[0].mxu0 %v1890
        %v3663 = vpop.f32.mrb[0].mxu0
        %v3664 = vadd.f32 0.0, %v3663
        %v3665 = vpop.f32.mrb[0].mxu0
        %3666 = vmatprep.mubr.f32.mxu0 0.0
        %3667 = vmatmul.mubr.f32.gmra.mrb[0].mxu0 %v1892
        %v3668 = vpop.f32.mrb[0].mxu0
        %v3669 = vadd.f32 0.0, %v3668
        %v3670 = vpop.f32.mrb[0].mxu0
        %3671 = vmatprep.mubr.f32.mxu0 0.0
        %3672 = vmatmul.mubr.f32.gmra.mrb[0].mxu0 %v1894
        %v3673 = vpop.f32.mrb[0].mxu0
        %v3674 = vadd.f32 0.0, %v3673
        %v3675 = vpop.f32.mrb[0].mxu0
        %3676 = vmatprep.mubr.f32.mxu0 0.0
        %3677 = vmatmul.mubr.f32.gmra.mrb[0].mxu0 %v1896
        %v3678 = vpop.f32.mrb[0].mxu0
        %v3679 = vadd.f32 0.0, %v3678
        %v3680 = vpop.f32.mrb[0].mxu0
        %3681 = vmatprep.mubr.f32.mxu0 0.0
        %3682 = vmatmul.mubr.f32.gmra.mrb[0].mxu0 %v1898
        %v3683 = vpop.f32.mrb[0].mxu0
        %v3684 = vadd.f32 0.0, %v3683
        %v3685 = vpop.f32.mrb[0].mxu0
        %3686 = vmatprep.mubr.f32.mxu0 0.0
        %3687 = vmatmul.mubr.f32.gmra.mrb[0].mxu0 %v1900
        %v3688 = vpop.f32.mrb[0].mxu0
        %v3689 = vadd.f32 0.0, %v3688
        %v3690 = vpop.f32.mrb[0].mxu0
        %3691 = vmatprep.mubr.f32.mxu0 0.0
        %3692 = vmatmul.mubr.f32.gmra.mrb[0].mxu0 %v1902
        %v3693 = vpop.f32.mrb[0].mxu0
        %v3694 = vadd.f32 0.0, %v3693
        %v3695 = vpop.f32.mrb[0].mxu0
        %3696 = vmatprep.mubr.f32.mxu0 0.0
        %3697 = vmatmul.mubr.f32.gmra.mrb[0].mxu0 %v3581
        %v3698 = vpop.f32.mrb[0].mxu0
        %v3699 = vadd.f32 0.0, %v3698
        %v3700 = vpop.f32.mrb[0].mxu0
        %3701 = vmatprep.mubr.f32.mxu0 0.0
        %3702 = vmatmul.mubr.f32.gmra.mrb[0].mxu0 %v3583
        %v3703 = vpop.f32.mrb[0].mxu0
        %v3704 = vadd.f32 0.0, %v3703
        %v3705 = vpop.f32.mrb[0].mxu0
        %3706 = vmatprep.mubr.f32.mxu0 0.0
        %3707 = vmatmul.mubr.f32.gmra.mrb[0].mxu0 %v3585
        %v3708 = vpop.f32.mrb[0].mxu0
        %v3709 = vadd.f32 0.0, %v3708
        %v3710 = vpop.f32.mrb[0].mxu0
        %3711 = vmatprep.mubr.f32.mxu0 0.0
        %3712 = vmatmul.mubr.f32.gmra.mrb[0].mxu0 %v3587
        %v3713 = vpop.f32.mrb[0].mxu0
        %v3714 = vadd.f32 0.0, %v3713
        %v3715 = vpop.f32.mrb[0].mxu0
        %3716 = vdwg.mxu0
        %v3717 = vadd.f32 %v3560, %v3659
        %v3718 = vadd.f32 %v3561, %v3664
        %v3719 = vadd.f32 %v3562, %v3669
        %v3720 = vadd.f32 %v3563, %v3674
        %v3721 = vadd.f32 %v3564, %v3679
        %v3722 = vadd.f32 %v3565, %v3684
        %v3723 = vadd.f32 %v3566, %v3689
        %v3724 = vadd.f32 %v3567, %v3694
        %v3725 = vadd.f32 %v3568, %v3699
        %v3726 = vadd.f32 %v3569, %v3704
        %v3727 = vadd.f32 %v3570, %v3709
        %v3728 = vadd.f32 %v3571, %v3714
        %s3729 = scalar_lea.vmem %s3, 224
        %v3730 = vld [vmem:[%s3729] sm:$0xff]
        %v3731 = vld [vmem:[%s3729 + $0x8] sm:$0x3]
        %v3732 = vrot.slane %v1312, 4
        %v3733 = vsel %vm2049, %v2241, %v3732
        %v3734 = vrot.slane %v1313, 4
        %v3735 = vsel %vm2049, %v3732, %v3734
        %v3736 = vsel %vm1358, %v3733, 0
        %v3738 = vsel %vm1358, %v3735, 0
        %v3740 = vsel %vm1358, %v3734, 0
        %v3743 = vsel %vm1383, %v3731, 0
        %3745 = vmatprep.subr.mxu0 0.0
        %3746 = vmatpush1.msra.mxu0 %v3730
        %3747 = vmatprep.subr.mxu0 0.0
        %3748 = vmatpush1.msra.mxu0 %v3743
        %3749 = vmatprep.subr.mxu0 0.0
        %3750 = vmatpush1.msra.mxu0 0.0
        %3751 = vmatprep.subr.mxu0 0.0
        %3752 = vmatpush1.msra.mxu0 0.0
        %3753 = vmatprep.subr.mxu0 0.0
        %3754 = vmatpush1.msra.mxu0 0.0
        %3755 = vmatprep.subr.mxu0 0.0
        %3756 = vmatpush1.msra.mxu0 0.0
        %3757 = vmatprep.subr.mxu0 0.0
        %3758 = vmatpush1.msra.mxu0 0.0
        %3759 = vmatprep.subr.mxu0 0.0
        %3760 = vmatpush1.msra.mxu0 0.0
        %3761 = vmatprep.subr.mxu0 0.0
        %3762 = vmatpush1.msra.mxu0 0.0
        %3763 = vmatprep.subr.mxu0 0.0
        %3764 = vmatpush1.msra.mxu0 0.0
        %3765 = vmatprep.subr.mxu0 0.0
        %3766 = vmatpush1.msra.mxu0 0.0
        %3767 = vmatprep.subr.mxu0 0.0
        %3768 = vmatpush1.msra.mxu0 0.0
        %3769 = vmatprep.subr.mxu0 0.0
        %3770 = vmatpush1.msra.mxu0 0.0
        %3771 = vmatprep.subr.mxu0 0.0
        %3772 = vmatpush1.msra.mxu0 0.0
        %3773 = vmatprep.subr.mxu0 0.0
        %3774 = vmatpush1.msra.mxu0 0.0
        %3775 = vmatprep.subr.mxu0 0.0
        %3776 = vmatpush1.msra.mxu0 0.0
        %3777 = vmatprep.subr.mxu0 0.0
        %3778 = vmatpush1.msra.mxu0 0.0
        %3779 = vmatprep.subr.mxu0 0.0
        %3780 = vmatpush1.msra.mxu0 0.0
        %3781 = vmatprep.subr.mxu0 0.0
        %3782 = vmatpush1.msra.mxu0 0.0
        %3783 = vmatprep.subr.mxu0 0.0
        %3784 = vmatpush1.msra.mxu0 0.0
        %3785 = vmatprep.subr.mxu0 0.0
        %3786 = vmatpush1.msra.mxu0 0.0
        %3787 = vmatprep.subr.mxu0 0.0
        %3788 = vmatpush1.msra.mxu0 0.0
        %3789 = vmatprep.subr.mxu0 0.0
        %3790 = vmatpush1.msra.mxu0 0.0
        %3791 = vmatprep.subr.mxu0 0.0
        %3792 = vmatpush1.msra.mxu0 0.0
        %3793 = vmatprep.subr.mxu0 0.0
        %3794 = vmatpush1.msra.mxu0 0.0
        %3795 = vmatprep.subr.mxu0 0.0
        %3796 = vmatpush1.msra.mxu0 0.0
        %3797 = vmatprep.subr.mxu0 0.0
        %3798 = vmatpush1.msra.mxu0 0.0
        %3799 = vmatprep.subr.mxu0 0.0
        %3800 = vmatpush1.msra.mxu0 0.0
        %3801 = vmatprep.subr.mxu0 0.0
        %3802 = vmatpush1.msra.mxu0 0.0
        %3803 = vmatprep.subr.mxu0 0.0
        %3804 = vmatpush1.msra.mxu0 0.0
        %3805 = vmatprep.subr.mxu0 0.0
        %3806 = vmatpush1.msra.mxu0 0.0
        %3807 = vmatprep.subr.mxu0 0.0
        %3808 = vmatpush1.msra.mxu0 0.0
        %3809 = vmatprep.mubr.f32.mxu0 0.0
        %3810 = vmatmul.mubr.f32.gmra.mrb[0].mxu0 %v2079
        %v3811 = vpop.f32.mrb[0].mxu0
        %v3812 = vadd.f32 0.0, %v3811
        %v3813 = vpop.f32.mrb[0].mxu0
        %3814 = vmatprep.mubr.f32.mxu0 0.0
        %3815 = vmatmul.mubr.f32.gmra.mrb[0].mxu0 %v2081
        %v3816 = vpop.f32.mrb[0].mxu0
        %v3817 = vadd.f32 0.0, %v3816
        %v3818 = vpop.f32.mrb[0].mxu0
        %3819 = vmatprep.mubr.f32.mxu0 0.0
        %3820 = vmatmul.mubr.f32.gmra.mrb[0].mxu0 %v2083
        %v3821 = vpop.f32.mrb[0].mxu0
        %v3822 = vadd.f32 0.0, %v3821
        %v3823 = vpop.f32.mrb[0].mxu0
        %3824 = vmatprep.mubr.f32.mxu0 0.0
        %3825 = vmatmul.mubr.f32.gmra.mrb[0].mxu0 %v2085
        %v3826 = vpop.f32.mrb[0].mxu0
        %v3827 = vadd.f32 0.0, %v3826
        %v3828 = vpop.f32.mrb[0].mxu0
        %3829 = vmatprep.mubr.f32.mxu0 0.0
        %3830 = vmatmul.mubr.f32.gmra.mrb[0].mxu0 %v2087
        %v3831 = vpop.f32.mrb[0].mxu0
        %v3832 = vadd.f32 0.0, %v3831
        %v3833 = vpop.f32.mrb[0].mxu0
        %3834 = vmatprep.mubr.f32.mxu0 0.0
        %3835 = vmatmul.mubr.f32.gmra.mrb[0].mxu0 %v2089
        %v3836 = vpop.f32.mrb[0].mxu0
        %v3837 = vadd.f32 0.0, %v3836
        %v3838 = vpop.f32.mrb[0].mxu0
        %3839 = vmatprep.mubr.f32.mxu0 0.0
        %3840 = vmatmul.mubr.f32.gmra.mrb[0].mxu0 %v2091
        %v3841 = vpop.f32.mrb[0].mxu0
        %v3842 = vadd.f32 0.0, %v3841
        %v3843 = vpop.f32.mrb[0].mxu0
        %3844 = vmatprep.mubr.f32.mxu0 0.0
        %3845 = vmatmul.mubr.f32.gmra.mrb[0].mxu0 %v2093
        %v3846 = vpop.f32.mrb[0].mxu0
        %v3847 = vadd.f32 0.0, %v3846
        %v3848 = vpop.f32.mrb[0].mxu0
        %3849 = vmatprep.mubr.f32.mxu0 0.0
        %3850 = vmatmul.mubr.f32.gmra.mrb[0].mxu0 %v2243
        %v3851 = vpop.f32.mrb[0].mxu0
        %v3852 = vadd.f32 0.0, %v3851
        %v3853 = vpop.f32.mrb[0].mxu0
        %3854 = vmatprep.mubr.f32.mxu0 0.0
        %3855 = vmatmul.mubr.f32.gmra.mrb[0].mxu0 %v3736
        %v3856 = vpop.f32.mrb[0].mxu0
        %v3857 = vadd.f32 0.0, %v3856
        %v3858 = vpop.f32.mrb[0].mxu0
        %3859 = vmatprep.mubr.f32.mxu0 0.0
        %3860 = vmatmul.mubr.f32.gmra.mrb[0].mxu0 %v3738
        %v3861 = vpop.f32.mrb[0].mxu0
        %v3862 = vadd.f32 0.0, %v3861
        %v3863 = vpop.f32.mrb[0].mxu0
        %3864 = vmatprep.mubr.f32.mxu0 0.0
        %3865 = vmatmul.mubr.f32.gmra.mrb[0].mxu0 %v3740
        %v3866 = vpop.f32.mrb[0].mxu0
        %v3867 = vadd.f32 0.0, %v3866
        %v3868 = vpop.f32.mrb[0].mxu0
        %3869 = vdwg.mxu0
        %v3870 = vadd.f32 %v3717, %v3812
        %v3871 = vadd.f32 %v3718, %v3817
        %v3872 = vadd.f32 %v3719, %v3822
        %v3873 = vadd.f32 %v3720, %v3827
        %v3874 = vadd.f32 %v3721, %v3832
        %v3875 = vadd.f32 %v3722, %v3837
        %v3876 = vadd.f32 %v3723, %v3842
        %v3877 = vadd.f32 %v3724, %v3847
        %v3878 = vadd.f32 %v3725, %v3852
        %v3879 = vadd.f32 %v3726, %v3857
        %v3880 = vadd.f32 %v3727, %v3862
        %v3881 = vadd.f32 %v3728, %v3867
        %s3882 = scalar_lea.vmem %s3, 240
        %v3883 = vld [vmem:[%s3882] sm:$0xff]
        %v3884 = vld [vmem:[%s3882 + $0x8] sm:$0x3]
        %v3886 = vrot.slane %v1314, 4
        %v3887 = vsel %vm2049, %v3734, %v3886
        %v3888 = vsel %vm1358, %v3887, 0
        %v3890 = vsel %vm1358, %v3886, 0
        %v3893 = vsel %vm1383, %v3884, 0
        %3895 = vmatprep.subr.mxu0 0.0
        %3896 = vmatpush1.msra.mxu0 %v3883
        %3897 = vmatprep.subr.mxu0 0.0
        %3898 = vmatpush1.msra.mxu0 %v3893
        %3899 = vmatprep.subr.mxu0 0.0
        %3900 = vmatpush1.msra.mxu0 0.0
        %3901 = vmatprep.subr.mxu0 0.0
        %3902 = vmatpush1.msra.mxu0 0.0
        %3903 = vmatprep.subr.mxu0 0.0
        %3904 = vmatpush1.msra.mxu0 0.0
        %3905 = vmatprep.subr.mxu0 0.0
        %3906 = vmatpush1.msra.mxu0 0.0
        %3907 = vmatprep.subr.mxu0 0.0
        %3908 = vmatpush1.msra.mxu0 0.0
        %3909 = vmatprep.subr.mxu0 0.0
        %3910 = vmatpush1.msra.mxu0 0.0
        %3911 = vmatprep.subr.mxu0 0.0
        %3912 = vmatpush1.msra.mxu0 0.0
        %3913 = vmatprep.subr.mxu0 0.0
        %3914 = vmatpush1.msra.mxu0 0.0
        %3915 = vmatprep.subr.mxu0 0.0
        %3916 = vmatpush1.msra.mxu0 0.0
        %3917 = vmatprep.subr.mxu0 0.0
        %3918 = vmatpush1.msra.mxu0 0.0
        %3919 = vmatprep.subr.mxu0 0.0
        %3920 = vmatpush1.msra.mxu0 0.0
        %3921 = vmatprep.subr.mxu0 0.0
        %3922 = vmatpush1.msra.mxu0 0.0
        %3923 = vmatprep.subr.mxu0 0.0
        %3924 = vmatpush1.msra.mxu0 0.0
        %3925 = vmatprep.subr.mxu0 0.0
        %3926 = vmatpush1.msra.mxu0 0.0
        %3927 = vmatprep.subr.mxu0 0.0
        %3928 = vmatpush1.msra.mxu0 0.0
        %3929 = vmatprep.subr.mxu0 0.0
        %3930 = vmatpush1.msra.mxu0 0.0
        %3931 = vmatprep.subr.mxu0 0.0
        %3932 = vmatpush1.msra.mxu0 0.0
        %3933 = vmatprep.subr.mxu0 0.0
        %3934 = vmatpush1.msra.mxu0 0.0
        %3935 = vmatprep.subr.mxu0 0.0
        %3936 = vmatpush1.msra.mxu0 0.0
        %3937 = vmatprep.subr.mxu0 0.0
        %3938 = vmatpush1.msra.mxu0 0.0
        %3939 = vmatprep.subr.mxu0 0.0
        %3940 = vmatpush1.msra.mxu0 0.0
        %3941 = vmatprep.subr.mxu0 0.0
        %3942 = vmatpush1.msra.mxu0 0.0
        %3943 = vmatprep.subr.mxu0 0.0
        %3944 = vmatpush1.msra.mxu0 0.0
        %3945 = vmatprep.subr.mxu0 0.0
        %3946 = vmatpush1.msra.mxu0 0.0
        %3947 = vmatprep.subr.mxu0 0.0
        %3948 = vmatpush1.msra.mxu0 0.0
        %3949 = vmatprep.subr.mxu0 0.0
        %3950 = vmatpush1.msra.mxu0 0.0
        %3951 = vmatprep.subr.mxu0 0.0
        %3952 = vmatpush1.msra.mxu0 0.0
        %3953 = vmatprep.subr.mxu0 0.0
        %3954 = vmatpush1.msra.mxu0 0.0
        %3955 = vmatprep.subr.mxu0 0.0
        %3956 = vmatpush1.msra.mxu0 0.0
        %3957 = vmatprep.subr.mxu0 0.0
        %3958 = vmatpush1.msra.mxu0 0.0
        %3959 = vmatprep.mubr.f32.mxu0 0.0
        %3960 = vmatmul.mubr.f32.gmra.mrb[0].mxu0 %v2081
        %v3961 = vpop.f32.mrb[0].mxu0
        %v3962 = vadd.f32 0.0, %v3961
        %v3963 = vpop.f32.mrb[0].mxu0
        %3964 = vmatprep.mubr.f32.mxu0 0.0
        %3965 = vmatmul.mubr.f32.gmra.mrb[0].mxu0 %v2083
        %v3966 = vpop.f32.mrb[0].mxu0
        %v3967 = vadd.f32 0.0, %v3966
        %v3968 = vpop.f32.mrb[0].mxu0
        %3969 = vmatprep.mubr.f32.mxu0 0.0
        %3970 = vmatmul.mubr.f32.gmra.mrb[0].mxu0 %v2085
        %v3971 = vpop.f32.mrb[0].mxu0
        %v3972 = vadd.f32 0.0, %v3971
        %v3973 = vpop.f32.mrb[0].mxu0
        %3974 = vmatprep.mubr.f32.mxu0 0.0
        %3975 = vmatmul.mubr.f32.gmra.mrb[0].mxu0 %v2087
        %v3976 = vpop.f32.mrb[0].mxu0
        %v3977 = vadd.f32 0.0, %v3976
        %v3978 = vpop.f32.mrb[0].mxu0
        %3979 = vmatprep.mubr.f32.mxu0 0.0
        %3980 = vmatmul.mubr.f32.gmra.mrb[0].mxu0 %v2089
        %v3981 = vpop.f32.mrb[0].mxu0
        %v3982 = vadd.f32 0.0, %v3981
        %v3983 = vpop.f32.mrb[0].mxu0
        %3984 = vmatprep.mubr.f32.mxu0 0.0
        %3985 = vmatmul.mubr.f32.gmra.mrb[0].mxu0 %v2091
        %v3986 = vpop.f32.mrb[0].mxu0
        %v3987 = vadd.f32 0.0, %v3986
        %v3988 = vpop.f32.mrb[0].mxu0
        %3989 = vmatprep.mubr.f32.mxu0 0.0
        %3990 = vmatmul.mubr.f32.gmra.mrb[0].mxu0 %v2093
        %v3991 = vpop.f32.mrb[0].mxu0
        %v3992 = vadd.f32 0.0, %v3991
        %v3993 = vpop.f32.mrb[0].mxu0
        %3994 = vmatprep.mubr.f32.mxu0 0.0
        %3995 = vmatmul.mubr.f32.gmra.mrb[0].mxu0 %v2243
        %v3996 = vpop.f32.mrb[0].mxu0
        %v3997 = vadd.f32 0.0, %v3996
        %v3998 = vpop.f32.mrb[0].mxu0
        %3999 = vmatprep.mubr.f32.mxu0 0.0
        %4000 = vmatmul.mubr.f32.gmra.mrb[0].mxu0 %v3736
        %v4001 = vpop.f32.mrb[0].mxu0
        %v4002 = vadd.f32 0.0, %v4001
        %v4003 = vpop.f32.mrb[0].mxu0
        %4004 = vmatprep.mubr.f32.mxu0 0.0
        %4005 = vmatmul.mubr.f32.gmra.mrb[0].mxu0 %v3738
        %v4006 = vpop.f32.mrb[0].mxu0
        %v4007 = vadd.f32 0.0, %v4006
        %v4008 = vpop.f32.mrb[0].mxu0
        %4009 = vmatprep.mubr.f32.mxu0 0.0
        %4010 = vmatmul.mubr.f32.gmra.mrb[0].mxu0 %v3888
        %v4011 = vpop.f32.mrb[0].mxu0
        %v4012 = vadd.f32 0.0, %v4011
        %v4013 = vpop.f32.mrb[0].mxu0
        %4014 = vmatprep.mubr.f32.mxu0 0.0
        %4015 = vmatmul.mubr.f32.gmra.mrb[0].mxu0 %v3890
        %v4016 = vpop.f32.mrb[0].mxu0
        %v4017 = vadd.f32 0.0, %v4016
        %v4018 = vpop.f32.mrb[0].mxu0
        %4019 = vdwg.mxu0
        %v4020 = vadd.f32 %v3870, %v3962
        %v4021 = vadd.f32 %v3871, %v3967
        %v4022 = vadd.f32 %v3872, %v3972
        %v4023 = vadd.f32 %v3873, %v3977
        %v4024 = vadd.f32 %v3874, %v3982
        %v4025 = vadd.f32 %v3875, %v3987
        %v4026 = vadd.f32 %v3876, %v3992
        %v4027 = vadd.f32 %v3877, %v3997
        %v4028 = vadd.f32 %v3878, %v4002
        %v4029 = vadd.f32 %v3879, %v4007
        %v4030 = vadd.f32 %v3880, %v4012
        %v4031 = vadd.f32 %v3881, %v4017
        %s4032 = scalar_lea.vmem %s3, 256
        %v4033 = vld [vmem:[%s4032] sm:$0xff]
        %v4034 = vld [vmem:[%s4032 + $0x8] sm:$0x3]
        %v4036 = vrot.slane %v1313, 5
        %v4037 = vsel %vm2391, %v2415, %v4036
        %v4038 = vrot.slane %v1314, 5
        %v4039 = vsel %vm2391, %v4036, %v4038
        %v4040 = vrot.slane %v1315, 5
        %v4041 = vsel %vm2391, %v4038, %v4040
        %v4042 = vsel %vm1358, %v4037, 0
        %v4044 = vsel %vm1358, %v4039, 0
        %v4046 = vsel %vm1358, %v4041, 0
        %v4049 = vsel %vm1383, %v4034, 0
        %4051 = vmatprep.subr.mxu0 0.0
        %4052 = vmatpush1.msra.mxu0 %v4033
        %4053 = vmatprep.subr.mxu0 0.0
        %4054 = vmatpush1.msra.mxu0 %v4049
        %4055 = vmatprep.subr.mxu0 0.0
        %4056 = vmatpush1.msra.mxu0 0.0
        %4057 = vmatprep.subr.mxu0 0.0
        %4058 = vmatpush1.msra.mxu0 0.0
        %4059 = vmatprep.subr.mxu0 0.0
        %4060 = vmatpush1.msra.mxu0 0.0
        %4061 = vmatprep.subr.mxu0 0.0
        %4062 = vmatpush1.msra.mxu0 0.0
        %4063 = vmatprep.subr.mxu0 0.0
        %4064 = vmatpush1.msra.mxu0 0.0
        %4065 = vmatprep.subr.mxu0 0.0
        %4066 = vmatpush1.msra.mxu0 0.0
        %4067 = vmatprep.subr.mxu0 0.0
        %4068 = vmatpush1.msra.mxu0 0.0
        %4069 = vmatprep.subr.mxu0 0.0
        %4070 = vmatpush1.msra.mxu0 0.0
        %4071 = vmatprep.subr.mxu0 0.0
        %4072 = vmatpush1.msra.mxu0 0.0
        %4073 = vmatprep.subr.mxu0 0.0
        %4074 = vmatpush1.msra.mxu0 0.0
        %4075 = vmatprep.subr.mxu0 0.0
        %4076 = vmatpush1.msra.mxu0 0.0
        %4077 = vmatprep.subr.mxu0 0.0
        %4078 = vmatpush1.msra.mxu0 0.0
        %4079 = vmatprep.subr.mxu0 0.0
        %4080 = vmatpush1.msra.mxu0 0.0
        %4081 = vmatprep.subr.mxu0 0.0
        %4082 = vmatpush1.msra.mxu0 0.0
        %4083 = vmatprep.subr.mxu0 0.0
        %4084 = vmatpush1.msra.mxu0 0.0
        %4085 = vmatprep.subr.mxu0 0.0
        %4086 = vmatpush1.msra.mxu0 0.0
        %4087 = vmatprep.subr.mxu0 0.0
        %4088 = vmatpush1.msra.mxu0 0.0
        %4089 = vmatprep.subr.mxu0 0.0
        %4090 = vmatpush1.msra.mxu0 0.0
        %4091 = vmatprep.subr.mxu0 0.0
        %4092 = vmatpush1.msra.mxu0 0.0
        %4093 = vmatprep.subr.mxu0 0.0
        %4094 = vmatpush1.msra.mxu0 0.0
        %4095 = vmatprep.subr.mxu0 0.0
        %4096 = vmatpush1.msra.mxu0 0.0
        %4097 = vmatprep.subr.mxu0 0.0
        %4098 = vmatpush1.msra.mxu0 0.0
        %4099 = vmatprep.subr.mxu0 0.0
        %4100 = vmatpush1.msra.mxu0 0.0
        %4101 = vmatprep.subr.mxu0 0.0
        %4102 = vmatpush1.msra.mxu0 0.0
        %4103 = vmatprep.subr.mxu0 0.0
        %4104 = vmatpush1.msra.mxu0 0.0
        %4105 = vmatprep.subr.mxu0 0.0
        %4106 = vmatpush1.msra.mxu0 0.0
        %4107 = vmatprep.subr.mxu0 0.0
        %4108 = vmatpush1.msra.mxu0 0.0
        %4109 = vmatprep.subr.mxu0 0.0
        %4110 = vmatpush1.msra.mxu0 0.0
        %4111 = vmatprep.subr.mxu0 0.0
        %4112 = vmatpush1.msra.mxu0 0.0
        %4113 = vmatprep.subr.mxu0 0.0
        %4114 = vmatpush1.msra.mxu0 0.0
        %4115 = vmatprep.mubr.f32.mxu0 0.0
        %4116 = vmatmul.mubr.f32.gmra.mrb[0].mxu0 %v2423
        %v4117 = vpop.f32.mrb[0].mxu0
        %v4118 = vadd.f32 0.0, %v4117
        %v4119 = vpop.f32.mrb[0].mxu0
        %4120 = vmatprep.mubr.f32.mxu0 0.0
        %4121 = vmatmul.mubr.f32.gmra.mrb[0].mxu0 %v2425
        %v4122 = vpop.f32.mrb[0].mxu0
        %v4123 = vadd.f32 0.0, %v4122
        %v4124 = vpop.f32.mrb[0].mxu0
        %4125 = vmatprep.mubr.f32.mxu0 0.0
        %4126 = vmatmul.mubr.f32.gmra.mrb[0].mxu0 %v2427
        %v4127 = vpop.f32.mrb[0].mxu0
        %v4128 = vadd.f32 0.0, %v4127
        %v4129 = vpop.f32.mrb[0].mxu0
        %4130 = vmatprep.mubr.f32.mxu0 0.0
        %4131 = vmatmul.mubr.f32.gmra.mrb[0].mxu0 %v2429
        %v4132 = vpop.f32.mrb[0].mxu0
        %v4133 = vadd.f32 0.0, %v4132
        %v4134 = vpop.f32.mrb[0].mxu0
        %4135 = vmatprep.mubr.f32.mxu0 0.0
        %4136 = vmatmul.mubr.f32.gmra.mrb[0].mxu0 %v2431
        %v4137 = vpop.f32.mrb[0].mxu0
        %v4138 = vadd.f32 0.0, %v4137
        %v4139 = vpop.f32.mrb[0].mxu0
        %4140 = vmatprep.mubr.f32.mxu0 0.0
        %4141 = vmatmul.mubr.f32.gmra.mrb[0].mxu0 %v2433
        %v4142 = vpop.f32.mrb[0].mxu0
        %v4143 = vadd.f32 0.0, %v4142
        %v4144 = vpop.f32.mrb[0].mxu0
        %4145 = vmatprep.mubr.f32.mxu0 0.0
        %4146 = vmatmul.mubr.f32.gmra.mrb[0].mxu0 %v2435
        %v4147 = vpop.f32.mrb[0].mxu0
        %v4148 = vadd.f32 0.0, %v4147
        %v4149 = vpop.f32.mrb[0].mxu0
        %4150 = vmatprep.mubr.f32.mxu0 0.0
        %4151 = vmatmul.mubr.f32.gmra.mrb[0].mxu0 %v2437
        %v4152 = vpop.f32.mrb[0].mxu0
        %v4153 = vadd.f32 0.0, %v4152
        %v4154 = vpop.f32.mrb[0].mxu0
        %4155 = vmatprep.mubr.f32.mxu0 0.0
        %4156 = vmatmul.mubr.f32.gmra.mrb[0].mxu0 %v2439
        %v4157 = vpop.f32.mrb[0].mxu0
        %v4158 = vadd.f32 0.0, %v4157
        %v4159 = vpop.f32.mrb[0].mxu0
        %4160 = vmatprep.mubr.f32.mxu0 0.0
        %4161 = vmatmul.mubr.f32.gmra.mrb[0].mxu0 %v4042
        %v4162 = vpop.f32.mrb[0].mxu0
        %v4163 = vadd.f32 0.0, %v4162
        %v4164 = vpop.f32.mrb[0].mxu0
        %4165 = vmatprep.mubr.f32.mxu0 0.0
        %4166 = vmatmul.mubr.f32.gmra.mrb[0].mxu0 %v4044
        %v4167 = vpop.f32.mrb[0].mxu0
        %v4168 = vadd.f32 0.0, %v4167
        %v4169 = vpop.f32.mrb[0].mxu0
        %4170 = vmatprep.mubr.f32.mxu0 0.0
        %4171 = vmatmul.mubr.f32.gmra.mrb[0].mxu0 %v4046
        %v4172 = vpop.f32.mrb[0].mxu0
        %v4173 = vadd.f32 0.0, %v4172
        %v4174 = vpop.f32.mrb[0].mxu0
        %4175 = vdwg.mxu0
        %v4176 = vadd.f32 %v4020, %v4118
        %v4177 = vadd.f32 %v4021, %v4123
        %v4178 = vadd.f32 %v4022, %v4128
        %v4179 = vadd.f32 %v4023, %v4133
        %v4180 = vadd.f32 %v4024, %v4138
        %v4181 = vadd.f32 %v4025, %v4143
        %v4182 = vadd.f32 %v4026, %v4148
        %v4183 = vadd.f32 %v4027, %v4153
        %v4184 = vadd.f32 %v4028, %v4158
        %v4185 = vadd.f32 %v4029, %v4163
        %v4186 = vadd.f32 %v4030, %v4168
        %v4187 = vadd.f32 %v4031, %v4173
        %s4188 = scalar_lea.vmem %s3, 272
        %v4189 = vld [vmem:[%s4188] sm:$0xff]
        %v4190 = vld [vmem:[%s4188 + $0x8] sm:$0x3]
        %v4191 = vrot.slane %v1313, 6
        %v4192 = vsel %vm1383, %v2607, %v4191
        %v4193 = vrot.slane %v1314, 6
        %v4194 = vsel %vm1383, %v4191, %v4193
        %v4195 = vrot.slane %v1315, 6
        %v4196 = vsel %vm1383, %v4193, %v4195
        %v4197 = vsel %vm1358, %v4192, 0
        %v4199 = vsel %vm1358, %v4194, 0
        %v4201 = vsel %vm1358, %v4196, 0
        %v4204 = vsel %vm1383, %v4190, 0
        %4206 = vmatprep.subr.mxu0 0.0
        %4207 = vmatpush1.msra.mxu0 %v4189
        %4208 = vmatprep.subr.mxu0 0.0
        %4209 = vmatpush1.msra.mxu0 %v4204
        %4210 = vmatprep.subr.mxu0 0.0
        %4211 = vmatpush1.msra.mxu0 0.0
        %4212 = vmatprep.subr.mxu0 0.0
        %4213 = vmatpush1.msra.mxu0 0.0
        %4214 = vmatprep.subr.mxu0 0.0
        %4215 = vmatpush1.msra.mxu0 0.0
        %4216 = vmatprep.subr.mxu0 0.0
        %4217 = vmatpush1.msra.mxu0 0.0
        %4218 = vmatprep.subr.mxu0 0.0
        %4219 = vmatpush1.msra.mxu0 0.0
        %4220 = vmatprep.subr.mxu0 0.0
        %4221 = vmatpush1.msra.mxu0 0.0
        %4222 = vmatprep.subr.mxu0 0.0
        %4223 = vmatpush1.msra.mxu0 0.0
        %4224 = vmatprep.subr.mxu0 0.0
        %4225 = vmatpush1.msra.mxu0 0.0
        %4226 = vmatprep.subr.mxu0 0.0
        %4227 = vmatpush1.msra.mxu0 0.0
        %4228 = vmatprep.subr.mxu0 0.0
        %4229 = vmatpush1.msra.mxu0 0.0
        %4230 = vmatprep.subr.mxu0 0.0
        %4231 = vmatpush1.msra.mxu0 0.0
        %4232 = vmatprep.subr.mxu0 0.0
        %4233 = vmatpush1.msra.mxu0 0.0
        %4234 = vmatprep.subr.mxu0 0.0
        %4235 = vmatpush1.msra.mxu0 0.0
        %4236 = vmatprep.subr.mxu0 0.0
        %4237 = vmatpush1.msra.mxu0 0.0
        %4238 = vmatprep.subr.mxu0 0.0
        %4239 = vmatpush1.msra.mxu0 0.0
        %4240 = vmatprep.subr.mxu0 0.0
        %4241 = vmatpush1.msra.mxu0 0.0
        %4242 = vmatprep.subr.mxu0 0.0
        %4243 = vmatpush1.msra.mxu0 0.0
        %4244 = vmatprep.subr.mxu0 0.0
        %4245 = vmatpush1.msra.mxu0 0.0
        %4246 = vmatprep.subr.mxu0 0.0
        %4247 = vmatpush1.msra.mxu0 0.0
        %4248 = vmatprep.subr.mxu0 0.0
        %4249 = vmatpush1.msra.mxu0 0.0
        %4250 = vmatprep.subr.mxu0 0.0
        %4251 = vmatpush1.msra.mxu0 0.0
        %4252 = vmatprep.subr.mxu0 0.0
        %4253 = vmatpush1.msra.mxu0 0.0
        %4254 = vmatprep.subr.mxu0 0.0
        %4255 = vmatpush1.msra.mxu0 0.0
        %4256 = vmatprep.subr.mxu0 0.0
        %4257 = vmatpush1.msra.mxu0 0.0
        %4258 = vmatprep.subr.mxu0 0.0
        %4259 = vmatpush1.msra.mxu0 0.0
        %4260 = vmatprep.subr.mxu0 0.0
        %4261 = vmatpush1.msra.mxu0 0.0
        %4262 = vmatprep.subr.mxu0 0.0
        %4263 = vmatpush1.msra.mxu0 0.0
        %4264 = vmatprep.subr.mxu0 0.0
        %4265 = vmatpush1.msra.mxu0 0.0
        %4266 = vmatprep.subr.mxu0 0.0
        %4267 = vmatpush1.msra.mxu0 0.0
        %4268 = vmatprep.subr.mxu0 0.0
        %4269 = vmatpush1.msra.mxu0 0.0
        %4270 = vmatprep.mubr.f32.mxu0 0.0
        %4271 = vmatmul.mubr.f32.gmra.mrb[0].mxu0 %v2615
        %v4272 = vpop.f32.mrb[0].mxu0
        %v4273 = vadd.f32 0.0, %v4272
        %v4274 = vpop.f32.mrb[0].mxu0
        %4275 = vmatprep.mubr.f32.mxu0 0.0
        %4276 = vmatmul.mubr.f32.gmra.mrb[0].mxu0 %v2617
        %v4277 = vpop.f32.mrb[0].mxu0
        %v4278 = vadd.f32 0.0, %v4277
        %v4279 = vpop.f32.mrb[0].mxu0
        %4280 = vmatprep.mubr.f32.mxu0 0.0
        %4281 = vmatmul.mubr.f32.gmra.mrb[0].mxu0 %v2619
        %v4282 = vpop.f32.mrb[0].mxu0
        %v4283 = vadd.f32 0.0, %v4282
        %v4284 = vpop.f32.mrb[0].mxu0
        %4285 = vmatprep.mubr.f32.mxu0 0.0
        %4286 = vmatmul.mubr.f32.gmra.mrb[0].mxu0 %v2621
        %v4287 = vpop.f32.mrb[0].mxu0
        %v4288 = vadd.f32 0.0, %v4287
        %v4289 = vpop.f32.mrb[0].mxu0
        %4290 = vmatprep.mubr.f32.mxu0 0.0
        %4291 = vmatmul.mubr.f32.gmra.mrb[0].mxu0 %v2623
        %v4292 = vpop.f32.mrb[0].mxu0
        %v4293 = vadd.f32 0.0, %v4292
        %v4294 = vpop.f32.mrb[0].mxu0
        %4295 = vmatprep.mubr.f32.mxu0 0.0
        %4296 = vmatmul.mubr.f32.gmra.mrb[0].mxu0 %v2625
        %v4297 = vpop.f32.mrb[0].mxu0
        %v4298 = vadd.f32 0.0, %v4297
        %v4299 = vpop.f32.mrb[0].mxu0
        %4300 = vmatprep.mubr.f32.mxu0 0.0
        %4301 = vmatmul.mubr.f32.gmra.mrb[0].mxu0 %v2627
        %v4302 = vpop.f32.mrb[0].mxu0
        %v4303 = vadd.f32 0.0, %v4302
        %v4304 = vpop.f32.mrb[0].mxu0
        %4305 = vmatprep.mubr.f32.mxu0 0.0
        %4306 = vmatmul.mubr.f32.gmra.mrb[0].mxu0 %v2629
        %v4307 = vpop.f32.mrb[0].mxu0
        %v4308 = vadd.f32 0.0, %v4307
        %v4309 = vpop.f32.mrb[0].mxu0
        %4310 = vmatprep.mubr.f32.mxu0 0.0
        %4311 = vmatmul.mubr.f32.gmra.mrb[0].mxu0 %v2631
        %v4312 = vpop.f32.mrb[0].mxu0
        %v4313 = vadd.f32 0.0, %v4312
        %v4314 = vpop.f32.mrb[0].mxu0
        %4315 = vmatprep.mubr.f32.mxu0 0.0
        %4316 = vmatmul.mubr.f32.gmra.mrb[0].mxu0 %v4197
        %v4317 = vpop.f32.mrb[0].mxu0
        %v4318 = vadd.f32 0.0, %v4317
        %v4319 = vpop.f32.mrb[0].mxu0
        %4320 = vmatprep.mubr.f32.mxu0 0.0
        %4321 = vmatmul.mubr.f32.gmra.mrb[0].mxu0 %v4199
        %v4322 = vpop.f32.mrb[0].mxu0
        %v4323 = vadd.f32 0.0, %v4322
        %v4324 = vpop.f32.mrb[0].mxu0
        %4325 = vmatprep.mubr.f32.mxu0 0.0
        %4326 = vmatmul.mubr.f32.gmra.mrb[0].mxu0 %v4201
        %v4327 = vpop.f32.mrb[0].mxu0
        %v4328 = vadd.f32 0.0, %v4327
        %v4329 = vpop.f32.mrb[0].mxu0
        %4330 = vdwg.mxu0
        %v4331 = vadd.f32 %v4176, %v4273
        %v4332 = vadd.f32 %v4177, %v4278
        %v4333 = vadd.f32 %v4178, %v4283
        %v4334 = vadd.f32 %v4179, %v4288
        %v4335 = vadd.f32 %v4180, %v4293
        %v4336 = vadd.f32 %v4181, %v4298
        %v4337 = vadd.f32 %v4182, %v4303
        %v4338 = vadd.f32 %v4183, %v4308
        %v4339 = vadd.f32 %v4184, %v4313
        %v4340 = vadd.f32 %v4185, %v4318
        %v4341 = vadd.f32 %v4186, %v4323
        %v4342 = vadd.f32 %v4187, %v4328
        %s4343 = scalar_lea.vmem %s3, 288
        %v4344 = vld [vmem:[%s4343] sm:$0xff]
        %v4345 = vld [vmem:[%s4343 + $0x8] sm:$0x3]
        %v4346 = vrot.slane %v1313, 7
        %v4347 = vsel %vm380, %v2799, %v4346
        %v4348 = vrot.slane %v1314, 7
        %v4349 = vsel %vm380, %v4346, %v4348
        %v4350 = vrot.slane %v1315, 7
        %v4351 = vsel %vm380, %v4348, %v4350
        %v4352 = vsel %vm1358, %v4347, 0
        %v4354 = vsel %vm1358, %v4349, 0
        %v4356 = vsel %vm1358, %v4351, 0
        %v4359 = vsel %vm1383, %v4345, 0
        %4361 = vmatprep.subr.mxu0 0.0
        %4362 = vmatpush1.msra.mxu0 %v4344
        %4363 = vmatprep.subr.mxu0 0.0
        %4364 = vmatpush1.msra.mxu0 %v4359
        %4365 = vmatprep.subr.mxu0 0.0
        %4366 = vmatpush1.msra.mxu0 0.0
        %4367 = vmatprep.subr.mxu0 0.0
        %4368 = vmatpush1.msra.mxu0 0.0
        %4369 = vmatprep.subr.mxu0 0.0
        %4370 = vmatpush1.msra.mxu0 0.0
        %4371 = vmatprep.subr.mxu0 0.0
        %4372 = vmatpush1.msra.mxu0 0.0
        %4373 = vmatprep.subr.mxu0 0.0
        %4374 = vmatpush1.msra.mxu0 0.0
        %4375 = vmatprep.subr.mxu0 0.0
        %4376 = vmatpush1.msra.mxu0 0.0
        %4377 = vmatprep.subr.mxu0 0.0
        %4378 = vmatpush1.msra.mxu0 0.0
        %4379 = vmatprep.subr.mxu0 0.0
        %4380 = vmatpush1.msra.mxu0 0.0
        %4381 = vmatprep.subr.mxu0 0.0
        %4382 = vmatpush1.msra.mxu0 0.0
        %4383 = vmatprep.subr.mxu0 0.0
        %4384 = vmatpush1.msra.mxu0 0.0
        %4385 = vmatprep.subr.mxu0 0.0
        %4386 = vmatpush1.msra.mxu0 0.0
        %4387 = vmatprep.subr.mxu0 0.0
        %4388 = vmatpush1.msra.mxu0 0.0
        %4389 = vmatprep.subr.mxu0 0.0
        %4390 = vmatpush1.msra.mxu0 0.0
        %4391 = vmatprep.subr.mxu0 0.0
        %4392 = vmatpush1.msra.mxu0 0.0
        %4393 = vmatprep.subr.mxu0 0.0
        %4394 = vmatpush1.msra.mxu0 0.0
        %4395 = vmatprep.subr.mxu0 0.0
        %4396 = vmatpush1.msra.mxu0 0.0
        %4397 = vmatprep.subr.mxu0 0.0
        %4398 = vmatpush1.msra.mxu0 0.0
        %4399 = vmatprep.subr.mxu0 0.0
        %4400 = vmatpush1.msra.mxu0 0.0
        %4401 = vmatprep.subr.mxu0 0.0
        %4402 = vmatpush1.msra.mxu0 0.0
        %4403 = vmatprep.subr.mxu0 0.0
        %4404 = vmatpush1.msra.mxu0 0.0
        %4405 = vmatprep.subr.mxu0 0.0
        %4406 = vmatpush1.msra.mxu0 0.0
        %4407 = vmatprep.subr.mxu0 0.0
        %4408 = vmatpush1.msra.mxu0 0.0
        %4409 = vmatprep.subr.mxu0 0.0
        %4410 = vmatpush1.msra.mxu0 0.0
        %4411 = vmatprep.subr.mxu0 0.0
        %4412 = vmatpush1.msra.mxu0 0.0
        %4413 = vmatprep.subr.mxu0 0.0
        %4414 = vmatpush1.msra.mxu0 0.0
        %4415 = vmatprep.subr.mxu0 0.0
        %4416 = vmatpush1.msra.mxu0 0.0
        %4417 = vmatprep.subr.mxu0 0.0
        %4418 = vmatpush1.msra.mxu0 0.0
        %4419 = vmatprep.subr.mxu0 0.0
        %4420 = vmatpush1.msra.mxu0 0.0
        %4421 = vmatprep.subr.mxu0 0.0
        %4422 = vmatpush1.msra.mxu0 0.0
        %4423 = vmatprep.subr.mxu0 0.0
        %4424 = vmatpush1.msra.mxu0 0.0
        %4425 = vmatprep.mubr.f32.mxu0 0.0
        %4426 = vmatmul.mubr.f32.gmra.mrb[0].mxu0 %v2807
        %v4427 = vpop.f32.mrb[0].mxu0
        %v4428 = vadd.f32 0.0, %v4427
        %v4429 = vpop.f32.mrb[0].mxu0
        %4430 = vmatprep.mubr.f32.mxu0 0.0
        %4431 = vmatmul.mubr.f32.gmra.mrb[0].mxu0 %v2809
        %v4432 = vpop.f32.mrb[0].mxu0
        %v4433 = vadd.f32 0.0, %v4432
        %v4434 = vpop.f32.mrb[0].mxu0
        %4435 = vmatprep.mubr.f32.mxu0 0.0
        %4436 = vmatmul.mubr.f32.gmra.mrb[0].mxu0 %v2811
        %v4437 = vpop.f32.mrb[0].mxu0
        %v4438 = vadd.f32 0.0, %v4437
        %v4439 = vpop.f32.mrb[0].mxu0
        %4440 = vmatprep.mubr.f32.mxu0 0.0
        %4441 = vmatmul.mubr.f32.gmra.mrb[0].mxu0 %v2813
        %v4442 = vpop.f32.mrb[0].mxu0
        %v4443 = vadd.f32 0.0, %v4442
        %v4444 = vpop.f32.mrb[0].mxu0
        %4445 = vmatprep.mubr.f32.mxu0 0.0
        %4446 = vmatmul.mubr.f32.gmra.mrb[0].mxu0 %v2815
        %v4447 = vpop.f32.mrb[0].mxu0
        %v4448 = vadd.f32 0.0, %v4447
        %v4449 = vpop.f32.mrb[0].mxu0
        %4450 = vmatprep.mubr.f32.mxu0 0.0
        %4451 = vmatmul.mubr.f32.gmra.mrb[0].mxu0 %v2817
        %v4452 = vpop.f32.mrb[0].mxu0
        %v4453 = vadd.f32 0.0, %v4452
        %v4454 = vpop.f32.mrb[0].mxu0
        %4455 = vmatprep.mubr.f32.mxu0 0.0
        %4456 = vmatmul.mubr.f32.gmra.mrb[0].mxu0 %v2819
        %v4457 = vpop.f32.mrb[0].mxu0
        %v4458 = vadd.f32 0.0, %v4457
        %v4459 = vpop.f32.mrb[0].mxu0
        %4460 = vmatprep.mubr.f32.mxu0 0.0
        %4461 = vmatmul.mubr.f32.gmra.mrb[0].mxu0 %v2821
        %v4462 = vpop.f32.mrb[0].mxu0
        %v4463 = vadd.f32 0.0, %v4462
        %v4464 = vpop.f32.mrb[0].mxu0
        %4465 = vmatprep.mubr.f32.mxu0 0.0
        %4466 = vmatmul.mubr.f32.gmra.mrb[0].mxu0 %v2823
        %v4467 = vpop.f32.mrb[0].mxu0
        %v4468 = vadd.f32 0.0, %v4467
        %v4469 = vpop.f32.mrb[0].mxu0
        %4470 = vmatprep.mubr.f32.mxu0 0.0
        %4471 = vmatmul.mubr.f32.gmra.mrb[0].mxu0 %v4352
        %v4472 = vpop.f32.mrb[0].mxu0
        %v4473 = vadd.f32 0.0, %v4472
        %v4474 = vpop.f32.mrb[0].mxu0
        %4475 = vmatprep.mubr.f32.mxu0 0.0
        %4476 = vmatmul.mubr.f32.gmra.mrb[0].mxu0 %v4354
        %v4477 = vpop.f32.mrb[0].mxu0
        %v4478 = vadd.f32 0.0, %v4477
        %v4479 = vpop.f32.mrb[0].mxu0
        %4480 = vmatprep.mubr.f32.mxu0 0.0
        %4481 = vmatmul.mubr.f32.gmra.mrb[0].mxu0 %v4356
        %v4482 = vpop.f32.mrb[0].mxu0
        %v4483 = vadd.f32 0.0, %v4482
        %v4484 = vpop.f32.mrb[0].mxu0
        %4485 = vdwg.mxu0
        %v4486 = vadd.f32 %v4331, %v4428
        %v4487 = vadd.f32 %v4332, %v4433
        %v4488 = vadd.f32 %v4333, %v4438
        %v4489 = vadd.f32 %v4334, %v4443
        %v4490 = vadd.f32 %v4335, %v4448
        %v4491 = vadd.f32 %v4336, %v4453
        %v4492 = vadd.f32 %v4337, %v4458
        %v4493 = vadd.f32 %v4338, %v4463
        %v4494 = vadd.f32 %v4339, %v4468
        %v4495 = vadd.f32 %v4340, %v4473
        %v4496 = vadd.f32 %v4341, %v4478
        %v4497 = vadd.f32 %v4342, %v4483
        %s4498 = scalar_lea.vmem %s3, 304
        %v4499 = vld [vmem:[%s4498] sm:$0xff]
        %v4500 = vld [vmem:[%s4498 + $0x8] sm:$0x3]
        %v4501 = vsel %vm1358, %v1314, 0
        %v4503 = vsel %vm1358, %v1315, 0
        %v4506 = vsel %vm1383, %v4500, 0
        %4508 = vmatprep.subr.mxu0 0.0
        %4509 = vmatpush1.msra.mxu0 %v4499
        %4510 = vmatprep.subr.mxu0 0.0
        %4511 = vmatpush1.msra.mxu0 %v4506
        %4512 = vmatprep.subr.mxu0 0.0
        %4513 = vmatpush1.msra.mxu0 0.0
        %4514 = vmatprep.subr.mxu0 0.0
        %4515 = vmatpush1.msra.mxu0 0.0
        %4516 = vmatprep.subr.mxu0 0.0
        %4517 = vmatpush1.msra.mxu0 0.0
        %4518 = vmatprep.subr.mxu0 0.0
        %4519 = vmatpush1.msra.mxu0 0.0
        %4520 = vmatprep.subr.mxu0 0.0
        %4521 = vmatpush1.msra.mxu0 0.0
        %4522 = vmatprep.subr.mxu0 0.0
        %4523 = vmatpush1.msra.mxu0 0.0
        %4524 = vmatprep.subr.mxu0 0.0
        %4525 = vmatpush1.msra.mxu0 0.0
        %4526 = vmatprep.subr.mxu0 0.0
        %4527 = vmatpush1.msra.mxu0 0.0
        %4528 = vmatprep.subr.mxu0 0.0
        %4529 = vmatpush1.msra.mxu0 0.0
        %4530 = vmatprep.subr.mxu0 0.0
        %4531 = vmatpush1.msra.mxu0 0.0
        %4532 = vmatprep.subr.mxu0 0.0
        %4533 = vmatpush1.msra.mxu0 0.0
        %4534 = vmatprep.subr.mxu0 0.0
        %4535 = vmatpush1.msra.mxu0 0.0
        %4536 = vmatprep.subr.mxu0 0.0
        %4537 = vmatpush1.msra.mxu0 0.0
        %4538 = vmatprep.subr.mxu0 0.0
        %4539 = vmatpush1.msra.mxu0 0.0
        %4540 = vmatprep.subr.mxu0 0.0
        %4541 = vmatpush1.msra.mxu0 0.0
        %4542 = vmatprep.subr.mxu0 0.0
        %4543 = vmatpush1.msra.mxu0 0.0
        %4544 = vmatprep.subr.mxu0 0.0
        %4545 = vmatpush1.msra.mxu0 0.0
        %4546 = vmatprep.subr.mxu0 0.0
        %4547 = vmatpush1.msra.mxu0 0.0
        %4548 = vmatprep.subr.mxu0 0.0
        %4549 = vmatpush1.msra.mxu0 0.0
        %4550 = vmatprep.subr.mxu0 0.0
        %4551 = vmatpush1.msra.mxu0 0.0
        %4552 = vmatprep.subr.mxu0 0.0
        %4553 = vmatpush1.msra.mxu0 0.0
        %4554 = vmatprep.subr.mxu0 0.0
        %4555 = vmatpush1.msra.mxu0 0.0
        %4556 = vmatprep.subr.mxu0 0.0
        %4557 = vmatpush1.msra.mxu0 0.0
        %4558 = vmatprep.subr.mxu0 0.0
        %4559 = vmatpush1.msra.mxu0 0.0
        %4560 = vmatprep.subr.mxu0 0.0
        %4561 = vmatpush1.msra.mxu0 0.0
        %4562 = vmatprep.subr.mxu0 0.0
        %4563 = vmatpush1.msra.mxu0 0.0
        %4564 = vmatprep.subr.mxu0 0.0
        %4565 = vmatpush1.msra.mxu0 0.0
        %4566 = vmatprep.subr.mxu0 0.0
        %4567 = vmatpush1.msra.mxu0 0.0
        %4568 = vmatprep.subr.mxu0 0.0
        %4569 = vmatpush1.msra.mxu0 0.0
        %4570 = vmatprep.subr.mxu0 0.0
        %4571 = vmatpush1.msra.mxu0 0.0
        %4572 = vmatprep.mubr.f32.mxu0 0.0
        %4573 = vmatmul.mubr.f32.gmra.mrb[0].mxu0 %v1522
        %v4574 = vpop.f32.mrb[0].mxu0
        %v4575 = vadd.f32 0.0, %v4574
        %v4576 = vpop.f32.mrb[0].mxu0
        %4577 = vmatprep.mubr.f32.mxu0 0.0
        %4578 = vmatmul.mubr.f32.gmra.mrb[0].mxu0 %v1524
        %v4579 = vpop.f32.mrb[0].mxu0
        %v4580 = vadd.f32 0.0, %v4579
        %v4581 = vpop.f32.mrb[0].mxu0
        %4582 = vmatprep.mubr.f32.mxu0 0.0
        %4583 = vmatmul.mubr.f32.gmra.mrb[0].mxu0 %v1526
        %v4584 = vpop.f32.mrb[0].mxu0
        %v4585 = vadd.f32 0.0, %v4584
        %v4586 = vpop.f32.mrb[0].mxu0
        %4587 = vmatprep.mubr.f32.mxu0 0.0
        %4588 = vmatmul.mubr.f32.gmra.mrb[0].mxu0 %v1528
        %v4589 = vpop.f32.mrb[0].mxu0
        %v4590 = vadd.f32 0.0, %v4589
        %v4591 = vpop.f32.mrb[0].mxu0
        %4592 = vmatprep.mubr.f32.mxu0 0.0
        %4593 = vmatmul.mubr.f32.gmra.mrb[0].mxu0 %v1530
        %v4594 = vpop.f32.mrb[0].mxu0
        %v4595 = vadd.f32 0.0, %v4594
        %v4596 = vpop.f32.mrb[0].mxu0
        %4597 = vmatprep.mubr.f32.mxu0 0.0
        %4598 = vmatmul.mubr.f32.gmra.mrb[0].mxu0 %v1532
        %v4599 = vpop.f32.mrb[0].mxu0
        %v4600 = vadd.f32 0.0, %v4599
        %v4601 = vpop.f32.mrb[0].mxu0
        %4602 = vmatprep.mubr.f32.mxu0 0.0
        %4603 = vmatmul.mubr.f32.gmra.mrb[0].mxu0 %v1534
        %v4604 = vpop.f32.mrb[0].mxu0
        %v4605 = vadd.f32 0.0, %v4604
        %v4606 = vpop.f32.mrb[0].mxu0
        %4607 = vmatprep.mubr.f32.mxu0 0.0
        %4608 = vmatmul.mubr.f32.gmra.mrb[0].mxu0 %v2968
        %v4609 = vpop.f32.mrb[0].mxu0
        %v4610 = vadd.f32 0.0, %v4609
        %v4611 = vpop.f32.mrb[0].mxu0
        %4612 = vmatprep.mubr.f32.mxu0 0.0
        %4613 = vmatmul.mubr.f32.gmra.mrb[0].mxu0 %v2970
        %v4614 = vpop.f32.mrb[0].mxu0
        %v4615 = vadd.f32 0.0, %v4614
        %v4616 = vpop.f32.mrb[0].mxu0
        %4617 = vmatprep.mubr.f32.mxu0 0.0
        %4618 = vmatmul.mubr.f32.gmra.mrb[0].mxu0 %v3116
        %v4619 = vpop.f32.mrb[0].mxu0
        %v4620 = vadd.f32 0.0, %v4619
        %v4621 = vpop.f32.mrb[0].mxu0
        %4622 = vmatprep.mubr.f32.mxu0 0.0
        %4623 = vmatmul.mubr.f32.gmra.mrb[0].mxu0 %v4501
        %v4624 = vpop.f32.mrb[0].mxu0
        %v4625 = vadd.f32 0.0, %v4624
        %v4626 = vpop.f32.mrb[0].mxu0
        %4627 = vmatprep.mubr.f32.mxu0 0.0
        %4628 = vmatmul.mubr.f32.gmra.mrb[0].mxu0 %v4503
        %v4629 = vpop.f32.mrb[0].mxu0
        %v4630 = vadd.f32 0.0, %v4629
        %v4631 = vpop.f32.mrb[0].mxu0
        %4632 = vdwg.mxu0
        %v4633 = vadd.f32 %v4486, %v4575
        %v4634 = vadd.f32 %v4487, %v4580
        %v4635 = vadd.f32 %v4488, %v4585
        %v4636 = vadd.f32 %v4489, %v4590
        %v4637 = vadd.f32 %v4490, %v4595
        %v4638 = vadd.f32 %v4491, %v4600
        %v4639 = vadd.f32 %v4492, %v4605
        %v4640 = vadd.f32 %v4493, %v4610
        %v4641 = vadd.f32 %v4494, %v4615
        %v4642 = vadd.f32 %v4495, %v4620
        %v4643 = vadd.f32 %v4496, %v4625
        %v4644 = vadd.f32 %v4497, %v4630
        %s4645 = scalar_lea.vmem %s3, 320
        %v4646 = vld [vmem:[%s4645] sm:$0xff]
        %v4647 = vld [vmem:[%s4645 + $0x8] sm:$0x3]
        %v4649 = vsel %vm1358, %v1316, 0
        %v4652 = vsel %vm1383, %v4647, 0
        %4654 = vmatprep.subr.mxu0 0.0
        %4655 = vmatpush1.msra.mxu0 %v4646
        %4656 = vmatprep.subr.mxu0 0.0
        %4657 = vmatpush1.msra.mxu0 %v4652
        %4658 = vmatprep.subr.mxu0 0.0
        %4659 = vmatpush1.msra.mxu0 0.0
        %4660 = vmatprep.subr.mxu0 0.0
        %4661 = vmatpush1.msra.mxu0 0.0
        %4662 = vmatprep.subr.mxu0 0.0
        %4663 = vmatpush1.msra.mxu0 0.0
        %4664 = vmatprep.subr.mxu0 0.0
        %4665 = vmatpush1.msra.mxu0 0.0
        %4666 = vmatprep.subr.mxu0 0.0
        %4667 = vmatpush1.msra.mxu0 0.0
        %4668 = vmatprep.subr.mxu0 0.0
        %4669 = vmatpush1.msra.mxu0 0.0
        %4670 = vmatprep.subr.mxu0 0.0
        %4671 = vmatpush1.msra.mxu0 0.0
        %4672 = vmatprep.subr.mxu0 0.0
        %4673 = vmatpush1.msra.mxu0 0.0
        %4674 = vmatprep.subr.mxu0 0.0
        %4675 = vmatpush1.msra.mxu0 0.0
        %4676 = vmatprep.subr.mxu0 0.0
        %4677 = vmatpush1.msra.mxu0 0.0
        %4678 = vmatprep.subr.mxu0 0.0
        %4679 = vmatpush1.msra.mxu0 0.0
        %4680 = vmatprep.subr.mxu0 0.0
        %4681 = vmatpush1.msra.mxu0 0.0
        %4682 = vmatprep.subr.mxu0 0.0
        %4683 = vmatpush1.msra.mxu0 0.0
        %4684 = vmatprep.subr.mxu0 0.0
        %4685 = vmatpush1.msra.mxu0 0.0
        %4686 = vmatprep.subr.mxu0 0.0
        %4687 = vmatpush1.msra.mxu0 0.0
        %4688 = vmatprep.subr.mxu0 0.0
        %4689 = vmatpush1.msra.mxu0 0.0
        %4690 = vmatprep.subr.mxu0 0.0
        %4691 = vmatpush1.msra.mxu0 0.0
        %4692 = vmatprep.subr.mxu0 0.0
        %4693 = vmatpush1.msra.mxu0 0.0
        %4694 = vmatprep.subr.mxu0 0.0
        %4695 = vmatpush1.msra.mxu0 0.0
        %4696 = vmatprep.subr.mxu0 0.0
        %4697 = vmatpush1.msra.mxu0 0.0
        %4698 = vmatprep.subr.mxu0 0.0
        %4699 = vmatpush1.msra.mxu0 0.0
        %4700 = vmatprep.subr.mxu0 0.0
        %4701 = vmatpush1.msra.mxu0 0.0
        %4702 = vmatprep.subr.mxu0 0.0
        %4703 = vmatpush1.msra.mxu0 0.0
        %4704 = vmatprep.subr.mxu0 0.0
        %4705 = vmatpush1.msra.mxu0 0.0
        %4706 = vmatprep.subr.mxu0 0.0
        %4707 = vmatpush1.msra.mxu0 0.0
        %4708 = vmatprep.subr.mxu0 0.0
        %4709 = vmatpush1.msra.mxu0 0.0
        %4710 = vmatprep.subr.mxu0 0.0
        %4711 = vmatpush1.msra.mxu0 0.0
        %4712 = vmatprep.subr.mxu0 0.0
        %4713 = vmatpush1.msra.mxu0 0.0
        %4714 = vmatprep.subr.mxu0 0.0
        %4715 = vmatpush1.msra.mxu0 0.0
        %4716 = vmatprep.subr.mxu0 0.0
        %4717 = vmatpush1.msra.mxu0 0.0
        %4718 = vmatprep.mubr.f32.mxu0 0.0
        %4719 = vmatmul.mubr.f32.gmra.mrb[0].mxu0 %v1524
        %v4720 = vpop.f32.mrb[0].mxu0
        %v4721 = vadd.f32 0.0, %v4720
        %v4722 = vpop.f32.mrb[0].mxu0
        %4723 = vmatprep.mubr.f32.mxu0 0.0
        %4724 = vmatmul.mubr.f32.gmra.mrb[0].mxu0 %v1526
        %v4725 = vpop.f32.mrb[0].mxu0
        %v4726 = vadd.f32 0.0, %v4725
        %v4727 = vpop.f32.mrb[0].mxu0
        %4728 = vmatprep.mubr.f32.mxu0 0.0
        %4729 = vmatmul.mubr.f32.gmra.mrb[0].mxu0 %v1528
        %v4730 = vpop.f32.mrb[0].mxu0
        %v4731 = vadd.f32 0.0, %v4730
        %v4732 = vpop.f32.mrb[0].mxu0
        %4733 = vmatprep.mubr.f32.mxu0 0.0
        %4734 = vmatmul.mubr.f32.gmra.mrb[0].mxu0 %v1530
        %v4735 = vpop.f32.mrb[0].mxu0
        %v4736 = vadd.f32 0.0, %v4735
        %v4737 = vpop.f32.mrb[0].mxu0
        %4738 = vmatprep.mubr.f32.mxu0 0.0
        %4739 = vmatmul.mubr.f32.gmra.mrb[0].mxu0 %v1532
        %v4740 = vpop.f32.mrb[0].mxu0
        %v4741 = vadd.f32 0.0, %v4740
        %v4742 = vpop.f32.mrb[0].mxu0
        %4743 = vmatprep.mubr.f32.mxu0 0.0
        %4744 = vmatmul.mubr.f32.gmra.mrb[0].mxu0 %v1534
        %v4745 = vpop.f32.mrb[0].mxu0
        %v4746 = vadd.f32 0.0, %v4745
        %v4747 = vpop.f32.mrb[0].mxu0
        %4748 = vmatprep.mubr.f32.mxu0 0.0
        %4749 = vmatmul.mubr.f32.gmra.mrb[0].mxu0 %v2968
        %v4750 = vpop.f32.mrb[0].mxu0
        %v4751 = vadd.f32 0.0, %v4750
        %v4752 = vpop.f32.mrb[0].mxu0
        %4753 = vmatprep.mubr.f32.mxu0 0.0
        %4754 = vmatmul.mubr.f32.gmra.mrb[0].mxu0 %v2970
        %v4755 = vpop.f32.mrb[0].mxu0
        %v4756 = vadd.f32 0.0, %v4755
        %v4757 = vpop.f32.mrb[0].mxu0
        %4758 = vmatprep.mubr.f32.mxu0 0.0
        %4759 = vmatmul.mubr.f32.gmra.mrb[0].mxu0 %v3116
        %v4760 = vpop.f32.mrb[0].mxu0
        %v4761 = vadd.f32 0.0, %v4760
        %v4762 = vpop.f32.mrb[0].mxu0
        %4763 = vmatprep.mubr.f32.mxu0 0.0
        %4764 = vmatmul.mubr.f32.gmra.mrb[0].mxu0 %v4501
        %v4765 = vpop.f32.mrb[0].mxu0
        %v4766 = vadd.f32 0.0, %v4765
        %v4767 = vpop.f32.mrb[0].mxu0
        %4768 = vmatprep.mubr.f32.mxu0 0.0
        %4769 = vmatmul.mubr.f32.gmra.mrb[0].mxu0 %v4503
        %v4770 = vpop.f32.mrb[0].mxu0
        %v4771 = vadd.f32 0.0, %v4770
        %v4772 = vpop.f32.mrb[0].mxu0
        %4773 = vmatprep.mubr.f32.mxu0 0.0
        %4774 = vmatmul.mubr.f32.gmra.mrb[0].mxu0 %v4649
        %v4775 = vpop.f32.mrb[0].mxu0
        %v4776 = vadd.f32 0.0, %v4775
        %v4777 = vpop.f32.mrb[0].mxu0
        %4778 = vdwg.mxu0
        %v4779 = vadd.f32 %v4633, %v4721
        %v4780 = vadd.f32 %v4634, %v4726
        %v4781 = vadd.f32 %v4635, %v4731
        %v4782 = vadd.f32 %v4636, %v4736
        %v4783 = vadd.f32 %v4637, %v4741
        %v4784 = vadd.f32 %v4638, %v4746
        %v4785 = vadd.f32 %v4639, %v4751
        %v4786 = vadd.f32 %v4640, %v4756
        %v4787 = vadd.f32 %v4641, %v4761
        %v4788 = vadd.f32 %v4642, %v4766
        %v4789 = vadd.f32 %v4643, %v4771
        %v4790 = vadd.f32 %v4644, %v4776
        %s4791 = scalar_lea.vmem %s3, 336
        %v4792 = vld [vmem:[%s4791] sm:$0xff]
        %v4793 = vld [vmem:[%s4791 + $0x8] sm:$0x3]
        %v4794 = vrot.slane %v1314, 1
        %v4795 = vsel %vm1334, %v3265, %v4794
        %v4796 = vrot.slane %v1315, 1
        %v4797 = vsel %vm1334, %v4794, %v4796
        %v4798 = vrot.slane %v1316, 1
        %v4799 = vsel %vm1334, %v4796, %v4798
        %v4800 = vsel %vm1358, %v4795, 0
        %v4802 = vsel %vm1358, %v4797, 0
        %v4804 = vsel %vm1358, %v4799, 0
        %v4806 = vsel %vm1358, %v4798, 0
        %v4809 = vsel %vm1383, %v4793, 0
        %4811 = vmatprep.subr.mxu0 0.0
        %4812 = vmatpush1.msra.mxu0 %v4792
        %4813 = vmatprep.subr.mxu0 0.0
        %4814 = vmatpush1.msra.mxu0 %v4809
        %4815 = vmatprep.subr.mxu0 0.0
        %4816 = vmatpush1.msra.mxu0 0.0
        %4817 = vmatprep.subr.mxu0 0.0
        %4818 = vmatpush1.msra.mxu0 0.0
        %4819 = vmatprep.subr.mxu0 0.0
        %4820 = vmatpush1.msra.mxu0 0.0
        %4821 = vmatprep.subr.mxu0 0.0
        %4822 = vmatpush1.msra.mxu0 0.0
        %4823 = vmatprep.subr.mxu0 0.0
        %4824 = vmatpush1.msra.mxu0 0.0
        %4825 = vmatprep.subr.mxu0 0.0
        %4826 = vmatpush1.msra.mxu0 0.0
        %4827 = vmatprep.subr.mxu0 0.0
        %4828 = vmatpush1.msra.mxu0 0.0
        %4829 = vmatprep.subr.mxu0 0.0
        %4830 = vmatpush1.msra.mxu0 0.0
        %4831 = vmatprep.subr.mxu0 0.0
        %4832 = vmatpush1.msra.mxu0 0.0
        %4833 = vmatprep.subr.mxu0 0.0
        %4834 = vmatpush1.msra.mxu0 0.0
        %4835 = vmatprep.subr.mxu0 0.0
        %4836 = vmatpush1.msra.mxu0 0.0
        %4837 = vmatprep.subr.mxu0 0.0
        %4838 = vmatpush1.msra.mxu0 0.0
        %4839 = vmatprep.subr.mxu0 0.0
        %4840 = vmatpush1.msra.mxu0 0.0
        %4841 = vmatprep.subr.mxu0 0.0
        %4842 = vmatpush1.msra.mxu0 0.0
        %4843 = vmatprep.subr.mxu0 0.0
        %4844 = vmatpush1.msra.mxu0 0.0
        %4845 = vmatprep.subr.mxu0 0.0
        %4846 = vmatpush1.msra.mxu0 0.0
        %4847 = vmatprep.subr.mxu0 0.0
        %4848 = vmatpush1.msra.mxu0 0.0
        %4849 = vmatprep.subr.mxu0 0.0
        %4850 = vmatpush1.msra.mxu0 0.0
        %4851 = vmatprep.subr.mxu0 0.0
        %4852 = vmatpush1.msra.mxu0 0.0
        %4853 = vmatprep.subr.mxu0 0.0
        %4854 = vmatpush1.msra.mxu0 0.0
        %4855 = vmatprep.subr.mxu0 0.0
        %4856 = vmatpush1.msra.mxu0 0.0
        %4857 = vmatprep.subr.mxu0 0.0
        %4858 = vmatpush1.msra.mxu0 0.0
        %4859 = vmatprep.subr.mxu0 0.0
        %4860 = vmatpush1.msra.mxu0 0.0
        %4861 = vmatprep.subr.mxu0 0.0
        %4862 = vmatpush1.msra.mxu0 0.0
        %4863 = vmatprep.subr.mxu0 0.0
        %4864 = vmatpush1.msra.mxu0 0.0
        %4865 = vmatprep.subr.mxu0 0.0
        %4866 = vmatpush1.msra.mxu0 0.0
        %4867 = vmatprep.subr.mxu0 0.0
        %4868 = vmatpush1.msra.mxu0 0.0
        %4869 = vmatprep.subr.mxu0 0.0
        %4870 = vmatpush1.msra.mxu0 0.0
        %4871 = vmatprep.subr.mxu0 0.0
        %4872 = vmatpush1.msra.mxu0 0.0
        %4873 = vmatprep.subr.mxu0 0.0
        %4874 = vmatpush1.msra.mxu0 0.0
        %4875 = vmatprep.mubr.f32.mxu0 0.0
        %4876 = vmatmul.mubr.f32.gmra.mrb[0].mxu0 %v1371
        %v4877 = vpop.f32.mrb[0].mxu0
        %v4878 = vadd.f32 0.0, %v4877
        %v4879 = vpop.f32.mrb[0].mxu0
        %4880 = vmatprep.mubr.f32.mxu0 0.0
        %4881 = vmatmul.mubr.f32.gmra.mrb[0].mxu0 %v1373
        %v4882 = vpop.f32.mrb[0].mxu0
        %v4883 = vadd.f32 0.0, %v4882
        %v4884 = vpop.f32.mrb[0].mxu0
        %4885 = vmatprep.mubr.f32.mxu0 0.0
        %4886 = vmatmul.mubr.f32.gmra.mrb[0].mxu0 %v1375
        %v4887 = vpop.f32.mrb[0].mxu0
        %v4888 = vadd.f32 0.0, %v4887
        %v4889 = vpop.f32.mrb[0].mxu0
        %4890 = vmatprep.mubr.f32.mxu0 0.0
        %4891 = vmatmul.mubr.f32.gmra.mrb[0].mxu0 %v1377
        %v4892 = vpop.f32.mrb[0].mxu0
        %v4893 = vadd.f32 0.0, %v4892
        %v4894 = vpop.f32.mrb[0].mxu0
        %4895 = vmatprep.mubr.f32.mxu0 0.0
        %4896 = vmatmul.mubr.f32.gmra.mrb[0].mxu0 %v1379
        %v4897 = vpop.f32.mrb[0].mxu0
        %v4898 = vadd.f32 0.0, %v4897
        %v4899 = vpop.f32.mrb[0].mxu0
        %4900 = vmatprep.mubr.f32.mxu0 0.0
        %4901 = vmatmul.mubr.f32.gmra.mrb[0].mxu0 %v3267
        %v4902 = vpop.f32.mrb[0].mxu0
        %v4903 = vadd.f32 0.0, %v4902
        %v4904 = vpop.f32.mrb[0].mxu0
        %4905 = vmatprep.mubr.f32.mxu0 0.0
        %4906 = vmatmul.mubr.f32.gmra.mrb[0].mxu0 %v3269
        %v4907 = vpop.f32.mrb[0].mxu0
        %v4908 = vadd.f32 0.0, %v4907
        %v4909 = vpop.f32.mrb[0].mxu0
        %4910 = vmatprep.mubr.f32.mxu0 0.0
        %4911 = vmatmul.mubr.f32.gmra.mrb[0].mxu0 %v3271
        %v4912 = vpop.f32.mrb[0].mxu0
        %v4913 = vadd.f32 0.0, %v4912
        %v4914 = vpop.f32.mrb[0].mxu0
        %4915 = vmatprep.mubr.f32.mxu0 0.0
        %4916 = vmatmul.mubr.f32.gmra.mrb[0].mxu0 %v4800
        %v4917 = vpop.f32.mrb[0].mxu0
        %v4918 = vadd.f32 0.0, %v4917
        %v4919 = vpop.f32.mrb[0].mxu0
        %4920 = vmatprep.mubr.f32.mxu0 0.0
        %4921 = vmatmul.mubr.f32.gmra.mrb[0].mxu0 %v4802
        %v4922 = vpop.f32.mrb[0].mxu0
        %v4923 = vadd.f32 0.0, %v4922
        %v4924 = vpop.f32.mrb[0].mxu0
        %4925 = vmatprep.mubr.f32.mxu0 0.0
        %4926 = vmatmul.mubr.f32.gmra.mrb[0].mxu0 %v4804
        %v4927 = vpop.f32.mrb[0].mxu0
        %v4928 = vadd.f32 0.0, %v4927
        %v4929 = vpop.f32.mrb[0].mxu0
        %4930 = vmatprep.mubr.f32.mxu0 0.0
        %4931 = vmatmul.mubr.f32.gmra.mrb[0].mxu0 %v4806
        %v4932 = vpop.f32.mrb[0].mxu0
        %v4933 = vadd.f32 0.0, %v4932
        %v4934 = vpop.f32.mrb[0].mxu0
        %4935 = vdwg.mxu0
        %v4936 = vadd.f32 %v4779, %v4878
        %v4937 = vadd.f32 %v4780, %v4883
        %v4938 = vadd.f32 %v4781, %v4888
        %v4939 = vadd.f32 %v4782, %v4893
        %v4940 = vadd.f32 %v4783, %v4898
        %v4941 = vadd.f32 %v4784, %v4903
        %v4942 = vadd.f32 %v4785, %v4908
        %v4943 = vadd.f32 %v4786, %v4913
        %v4944 = vadd.f32 %v4787, %v4918
        %v4945 = vadd.f32 %v4788, %v4923
        %v4946 = vadd.f32 %v4789, %v4928
        %v4947 = vadd.f32 %v4790, %v4933
        %s4948 = scalar_lea.vmem %s3, 352
        %v4949 = vld [vmem:[%s4948] sm:$0xff]
        %v4950 = vld [vmem:[%s4948 + $0x8] sm:$0x3]
        %v4951 = vrot.slane %v1314, 2
        %v4952 = vsel %vm1667, %v3422, %v4951
        %v4953 = vrot.slane %v1315, 2
        %v4954 = vsel %vm1667, %v4951, %v4953
        %v4955 = vrot.slane %v1316, 2
        %v4956 = vsel %vm1667, %v4953, %v4955
        %v4957 = vsel %vm1358, %v4952, 0
        %v4959 = vsel %vm1358, %v4954, 0
        %v4961 = vsel %vm1358, %v4956, 0
        %v4963 = vsel %vm1358, %v4955, 0
        %v4966 = vsel %vm1383, %v4950, 0
        %4968 = vmatprep.subr.mxu0 0.0
        %4969 = vmatpush1.msra.mxu0 %v4949
        %4970 = vmatprep.subr.mxu0 0.0
        %4971 = vmatpush1.msra.mxu0 %v4966
        %4972 = vmatprep.subr.mxu0 0.0
        %4973 = vmatpush1.msra.mxu0 0.0
        %4974 = vmatprep.subr.mxu0 0.0
        %4975 = vmatpush1.msra.mxu0 0.0
        %4976 = vmatprep.subr.mxu0 0.0
        %4977 = vmatpush1.msra.mxu0 0.0
        %4978 = vmatprep.subr.mxu0 0.0
        %4979 = vmatpush1.msra.mxu0 0.0
        %4980 = vmatprep.subr.mxu0 0.0
        %4981 = vmatpush1.msra.mxu0 0.0
        %4982 = vmatprep.subr.mxu0 0.0
        %4983 = vmatpush1.msra.mxu0 0.0
        %4984 = vmatprep.subr.mxu0 0.0
        %4985 = vmatpush1.msra.mxu0 0.0
        %4986 = vmatprep.subr.mxu0 0.0
        %4987 = vmatpush1.msra.mxu0 0.0
        %4988 = vmatprep.subr.mxu0 0.0
        %4989 = vmatpush1.msra.mxu0 0.0
        %4990 = vmatprep.subr.mxu0 0.0
        %4991 = vmatpush1.msra.mxu0 0.0
        %4992 = vmatprep.subr.mxu0 0.0
        %4993 = vmatpush1.msra.mxu0 0.0
        %4994 = vmatprep.subr.mxu0 0.0
        %4995 = vmatpush1.msra.mxu0 0.0
        %4996 = vmatprep.subr.mxu0 0.0
        %4997 = vmatpush1.msra.mxu0 0.0
        %4998 = vmatprep.subr.mxu0 0.0
        %4999 = vmatpush1.msra.mxu0 0.0
        %5000 = vmatprep.subr.mxu0 0.0
        %5001 = vmatpush1.msra.mxu0 0.0
        %5002 = vmatprep.subr.mxu0 0.0
        %5003 = vmatpush1.msra.mxu0 0.0
        %5004 = vmatprep.subr.mxu0 0.0
        %5005 = vmatpush1.msra.mxu0 0.0
        %5006 = vmatprep.subr.mxu0 0.0
        %5007 = vmatpush1.msra.mxu0 0.0
        %5008 = vmatprep.subr.mxu0 0.0
        %5009 = vmatpush1.msra.mxu0 0.0
        %5010 = vmatprep.subr.mxu0 0.0
        %5011 = vmatpush1.msra.mxu0 0.0
        %5012 = vmatprep.subr.mxu0 0.0
        %5013 = vmatpush1.msra.mxu0 0.0
        %5014 = vmatprep.subr.mxu0 0.0
        %5015 = vmatpush1.msra.mxu0 0.0
        %5016 = vmatprep.subr.mxu0 0.0
        %5017 = vmatpush1.msra.mxu0 0.0
        %5018 = vmatprep.subr.mxu0 0.0
        %5019 = vmatpush1.msra.mxu0 0.0
        %5020 = vmatprep.subr.mxu0 0.0
        %5021 = vmatpush1.msra.mxu0 0.0
        %5022 = vmatprep.subr.mxu0 0.0
        %5023 = vmatpush1.msra.mxu0 0.0
        %5024 = vmatprep.subr.mxu0 0.0
        %5025 = vmatpush1.msra.mxu0 0.0
        %5026 = vmatprep.subr.mxu0 0.0
        %5027 = vmatpush1.msra.mxu0 0.0
        %5028 = vmatprep.subr.mxu0 0.0
        %5029 = vmatpush1.msra.mxu0 0.0
        %5030 = vmatprep.subr.mxu0 0.0
        %5031 = vmatpush1.msra.mxu0 0.0
        %5032 = vmatprep.mubr.f32.mxu0 0.0
        %5033 = vmatmul.mubr.f32.gmra.mrb[0].mxu0 %v1703
        %v5034 = vpop.f32.mrb[0].mxu0
        %v5035 = vadd.f32 0.0, %v5034
        %v5036 = vpop.f32.mrb[0].mxu0
        %5037 = vmatprep.mubr.f32.mxu0 0.0
        %5038 = vmatmul.mubr.f32.gmra.mrb[0].mxu0 %v1705
        %v5039 = vpop.f32.mrb[0].mxu0
        %v5040 = vadd.f32 0.0, %v5039
        %v5041 = vpop.f32.mrb[0].mxu0
        %5042 = vmatprep.mubr.f32.mxu0 0.0
        %5043 = vmatmul.mubr.f32.gmra.mrb[0].mxu0 %v1707
        %v5044 = vpop.f32.mrb[0].mxu0
        %v5045 = vadd.f32 0.0, %v5044
        %v5046 = vpop.f32.mrb[0].mxu0
        %5047 = vmatprep.mubr.f32.mxu0 0.0
        %5048 = vmatmul.mubr.f32.gmra.mrb[0].mxu0 %v1709
        %v5049 = vpop.f32.mrb[0].mxu0
        %v5050 = vadd.f32 0.0, %v5049
        %v5051 = vpop.f32.mrb[0].mxu0
        %5052 = vmatprep.mubr.f32.mxu0 0.0
        %5053 = vmatmul.mubr.f32.gmra.mrb[0].mxu0 %v1711
        %v5054 = vpop.f32.mrb[0].mxu0
        %v5055 = vadd.f32 0.0, %v5054
        %v5056 = vpop.f32.mrb[0].mxu0
        %5057 = vmatprep.mubr.f32.mxu0 0.0
        %5058 = vmatmul.mubr.f32.gmra.mrb[0].mxu0 %v3424
        %v5059 = vpop.f32.mrb[0].mxu0
        %v5060 = vadd.f32 0.0, %v5059
        %v5061 = vpop.f32.mrb[0].mxu0
        %5062 = vmatprep.mubr.f32.mxu0 0.0
        %5063 = vmatmul.mubr.f32.gmra.mrb[0].mxu0 %v3426
        %v5064 = vpop.f32.mrb[0].mxu0
        %v5065 = vadd.f32 0.0, %v5064
        %v5066 = vpop.f32.mrb[0].mxu0
        %5067 = vmatprep.mubr.f32.mxu0 0.0
        %5068 = vmatmul.mubr.f32.gmra.mrb[0].mxu0 %v3428
        %v5069 = vpop.f32.mrb[0].mxu0
        %v5070 = vadd.f32 0.0, %v5069
        %v5071 = vpop.f32.mrb[0].mxu0
        %5072 = vmatprep.mubr.f32.mxu0 0.0
        %5073 = vmatmul.mubr.f32.gmra.mrb[0].mxu0 %v4957
        %v5074 = vpop.f32.mrb[0].mxu0
        %v5075 = vadd.f32 0.0, %v5074
        %v5076 = vpop.f32.mrb[0].mxu0
        %5077 = vmatprep.mubr.f32.mxu0 0.0
        %5078 = vmatmul.mubr.f32.gmra.mrb[0].mxu0 %v4959
        %v5079 = vpop.f32.mrb[0].mxu0
        %v5080 = vadd.f32 0.0, %v5079
        %v5081 = vpop.f32.mrb[0].mxu0
        %5082 = vmatprep.mubr.f32.mxu0 0.0
        %5083 = vmatmul.mubr.f32.gmra.mrb[0].mxu0 %v4961
        %v5084 = vpop.f32.mrb[0].mxu0
        %v5085 = vadd.f32 0.0, %v5084
        %v5086 = vpop.f32.mrb[0].mxu0
        %5087 = vmatprep.mubr.f32.mxu0 0.0
        %5088 = vmatmul.mubr.f32.gmra.mrb[0].mxu0 %v4963
        %v5089 = vpop.f32.mrb[0].mxu0
        %v5090 = vadd.f32 0.0, %v5089
        %v5091 = vpop.f32.mrb[0].mxu0
        %5092 = vdwg.mxu0
        %v5093 = vadd.f32 %v4936, %v5035
        %v5094 = vadd.f32 %v4937, %v5040
        %v5095 = vadd.f32 %v4938, %v5045
        %v5096 = vadd.f32 %v4939, %v5050
        %v5097 = vadd.f32 %v4940, %v5055
        %v5098 = vadd.f32 %v4941, %v5060
        %v5099 = vadd.f32 %v4942, %v5065
        %v5100 = vadd.f32 %v4943, %v5070
        %v5101 = vadd.f32 %v4944, %v5075
        %v5102 = vadd.f32 %v4945, %v5080
        %v5103 = vadd.f32 %v4946, %v5085
        %v5104 = vadd.f32 %v4947, %v5090
        %s5105 = scalar_lea.vmem %s3, 368
        %v5106 = vld [vmem:[%s5105] sm:$0xff]
        %v5107 = vld [vmem:[%s5105 + $0x8] sm:$0x3]
        %v5108 = vrot.slane %v1314, 3
        %v5109 = vsel %vm1858, %v3579, %v5108
        %v5110 = vrot.slane %v1315, 3
        %v5111 = vsel %vm1858, %v5108, %v5110
        %v5112 = vrot.slane %v1316, 3
        %v5113 = vsel %vm1858, %v5110, %v5112
        %v5114 = vsel %vm1358, %v5109, 0
        %v5116 = vsel %vm1358, %v5111, 0
        %v5118 = vsel %vm1358, %v5113, 0
        %v5120 = vsel %vm1358, %v5112, 0
        %v5123 = vsel %vm1383, %v5107, 0
        %5125 = vmatprep.subr.mxu0 0.0
        %5126 = vmatpush1.msra.mxu0 %v5106
        %5127 = vmatprep.subr.mxu0 0.0
        %5128 = vmatpush1.msra.mxu0 %v5123
        %5129 = vmatprep.subr.mxu0 0.0
        %5130 = vmatpush1.msra.mxu0 0.0
        %5131 = vmatprep.subr.mxu0 0.0
        %5132 = vmatpush1.msra.mxu0 0.0
        %5133 = vmatprep.subr.mxu0 0.0
        %5134 = vmatpush1.msra.mxu0 0.0
        %5135 = vmatprep.subr.mxu0 0.0
        %5136 = vmatpush1.msra.mxu0 0.0
        %5137 = vmatprep.subr.mxu0 0.0
        %5138 = vmatpush1.msra.mxu0 0.0
        %5139 = vmatprep.subr.mxu0 0.0
        %5140 = vmatpush1.msra.mxu0 0.0
        %5141 = vmatprep.subr.mxu0 0.0
        %5142 = vmatpush1.msra.mxu0 0.0
        %5143 = vmatprep.subr.mxu0 0.0
        %5144 = vmatpush1.msra.mxu0 0.0
        %5145 = vmatprep.subr.mxu0 0.0
        %5146 = vmatpush1.msra.mxu0 0.0
        %5147 = vmatprep.subr.mxu0 0.0
        %5148 = vmatpush1.msra.mxu0 0.0
        %5149 = vmatprep.subr.mxu0 0.0
        %5150 = vmatpush1.msra.mxu0 0.0
        %5151 = vmatprep.subr.mxu0 0.0
        %5152 = vmatpush1.msra.mxu0 0.0
        %5153 = vmatprep.subr.mxu0 0.0
        %5154 = vmatpush1.msra.mxu0 0.0
        %5155 = vmatprep.subr.mxu0 0.0
        %5156 = vmatpush1.msra.mxu0 0.0
        %5157 = vmatprep.subr.mxu0 0.0
        %5158 = vmatpush1.msra.mxu0 0.0
        %5159 = vmatprep.subr.mxu0 0.0
        %5160 = vmatpush1.msra.mxu0 0.0
        %5161 = vmatprep.subr.mxu0 0.0
        %5162 = vmatpush1.msra.mxu0 0.0
        %5163 = vmatprep.subr.mxu0 0.0
        %5164 = vmatpush1.msra.mxu0 0.0
        %5165 = vmatprep.subr.mxu0 0.0
        %5166 = vmatpush1.msra.mxu0 0.0
        %5167 = vmatprep.subr.mxu0 0.0
        %5168 = vmatpush1.msra.mxu0 0.0
        %5169 = vmatprep.subr.mxu0 0.0
        %5170 = vmatpush1.msra.mxu0 0.0
        %5171 = vmatprep.subr.mxu0 0.0
        %5172 = vmatpush1.msra.mxu0 0.0
        %5173 = vmatprep.subr.mxu0 0.0
        %5174 = vmatpush1.msra.mxu0 0.0
        %5175 = vmatprep.subr.mxu0 0.0
        %5176 = vmatpush1.msra.mxu0 0.0
        %5177 = vmatprep.subr.mxu0 0.0
        %5178 = vmatpush1.msra.mxu0 0.0
        %5179 = vmatprep.subr.mxu0 0.0
        %5180 = vmatpush1.msra.mxu0 0.0
        %5181 = vmatprep.subr.mxu0 0.0
        %5182 = vmatpush1.msra.mxu0 0.0
        %5183 = vmatprep.subr.mxu0 0.0
        %5184 = vmatpush1.msra.mxu0 0.0
        %5185 = vmatprep.subr.mxu0 0.0
        %5186 = vmatpush1.msra.mxu0 0.0
        %5187 = vmatprep.subr.mxu0 0.0
        %5188 = vmatpush1.msra.mxu0 0.0
        %5189 = vmatprep.mubr.f32.mxu0 0.0
        %5190 = vmatmul.mubr.f32.gmra.mrb[0].mxu0 %v1894
        %v5191 = vpop.f32.mrb[0].mxu0
        %v5192 = vadd.f32 0.0, %v5191
        %v5193 = vpop.f32.mrb[0].mxu0
        %5194 = vmatprep.mubr.f32.mxu0 0.0
        %5195 = vmatmul.mubr.f32.gmra.mrb[0].mxu0 %v1896
        %v5196 = vpop.f32.mrb[0].mxu0
        %v5197 = vadd.f32 0.0, %v5196
        %v5198 = vpop.f32.mrb[0].mxu0
        %5199 = vmatprep.mubr.f32.mxu0 0.0
        %5200 = vmatmul.mubr.f32.gmra.mrb[0].mxu0 %v1898
        %v5201 = vpop.f32.mrb[0].mxu0
        %v5202 = vadd.f32 0.0, %v5201
        %v5203 = vpop.f32.mrb[0].mxu0
        %5204 = vmatprep.mubr.f32.mxu0 0.0
        %5205 = vmatmul.mubr.f32.gmra.mrb[0].mxu0 %v1900
        %v5206 = vpop.f32.mrb[0].mxu0
        %v5207 = vadd.f32 0.0, %v5206
        %v5208 = vpop.f32.mrb[0].mxu0
        %5209 = vmatprep.mubr.f32.mxu0 0.0
        %5210 = vmatmul.mubr.f32.gmra.mrb[0].mxu0 %v1902
        %v5211 = vpop.f32.mrb[0].mxu0
        %v5212 = vadd.f32 0.0, %v5211
        %v5213 = vpop.f32.mrb[0].mxu0
        %5214 = vmatprep.mubr.f32.mxu0 0.0
        %5215 = vmatmul.mubr.f32.gmra.mrb[0].mxu0 %v3581
        %v5216 = vpop.f32.mrb[0].mxu0
        %v5217 = vadd.f32 0.0, %v5216
        %v5218 = vpop.f32.mrb[0].mxu0
        %5219 = vmatprep.mubr.f32.mxu0 0.0
        %5220 = vmatmul.mubr.f32.gmra.mrb[0].mxu0 %v3583
        %v5221 = vpop.f32.mrb[0].mxu0
        %v5222 = vadd.f32 0.0, %v5221
        %v5223 = vpop.f32.mrb[0].mxu0
        %5224 = vmatprep.mubr.f32.mxu0 0.0
        %5225 = vmatmul.mubr.f32.gmra.mrb[0].mxu0 %v3585
        %v5226 = vpop.f32.mrb[0].mxu0
        %v5227 = vadd.f32 0.0, %v5226
        %v5228 = vpop.f32.mrb[0].mxu0
        %5229 = vmatprep.mubr.f32.mxu0 0.0
        %5230 = vmatmul.mubr.f32.gmra.mrb[0].mxu0 %v5114
        %v5231 = vpop.f32.mrb[0].mxu0
        %v5232 = vadd.f32 0.0, %v5231
        %v5233 = vpop.f32.mrb[0].mxu0
        %5234 = vmatprep.mubr.f32.mxu0 0.0
        %5235 = vmatmul.mubr.f32.gmra.mrb[0].mxu0 %v5116
        %v5236 = vpop.f32.mrb[0].mxu0
        %v5237 = vadd.f32 0.0, %v5236
        %v5238 = vpop.f32.mrb[0].mxu0
        %5239 = vmatprep.mubr.f32.mxu0 0.0
        %5240 = vmatmul.mubr.f32.gmra.mrb[0].mxu0 %v5118
        %v5241 = vpop.f32.mrb[0].mxu0
        %v5242 = vadd.f32 0.0, %v5241
        %v5243 = vpop.f32.mrb[0].mxu0
        %5244 = vmatprep.mubr.f32.mxu0 0.0
        %5245 = vmatmul.mubr.f32.gmra.mrb[0].mxu0 %v5120
        %v5246 = vpop.f32.mrb[0].mxu0
        %v5247 = vadd.f32 0.0, %v5246
        %v5248 = vpop.f32.mrb[0].mxu0
        %5249 = vdwg.mxu0
        %v5250 = vadd.f32 %v5093, %v5192
        %v5251 = vadd.f32 %v5094, %v5197
        %v5252 = vadd.f32 %v5095, %v5202
        %v5253 = vadd.f32 %v5096, %v5207
        %v5254 = vadd.f32 %v5097, %v5212
        %v5255 = vadd.f32 %v5098, %v5217
        %v5256 = vadd.f32 %v5099, %v5222
        %v5257 = vadd.f32 %v5100, %v5227
        %v5258 = vadd.f32 %v5101, %v5232
        %v5259 = vadd.f32 %v5102, %v5237
        %v5260 = vadd.f32 %v5103, %v5242
        %v5261 = vadd.f32 %v5104, %v5247
        %s5262 = scalar_lea.vmem %s3, 384
        %v5263 = vld [vmem:[%s5262] sm:$0xff]
        %v5264 = vld [vmem:[%s5262 + $0x8] sm:$0x3]
        %v5265 = vrot.slane %v1315, 4
        %v5266 = vsel %vm2049, %v3886, %v5265
        %v5267 = vrot.slane %v1316, 4
        %v5268 = vsel %vm2049, %v5265, %v5267
        %v5269 = vsel %vm1358, %v5266, 0
        %v5271 = vsel %vm1358, %v5268, 0
        %v5273 = vsel %vm1358, %v5267, 0
        %v5276 = vsel %vm1383, %v5264, 0
        %5278 = vmatprep.subr.mxu0 0.0
        %5279 = vmatpush1.msra.mxu0 %v5263
        %5280 = vmatprep.subr.mxu0 0.0
        %5281 = vmatpush1.msra.mxu0 %v5276
        %5282 = vmatprep.subr.mxu0 0.0
        %5283 = vmatpush1.msra.mxu0 0.0
        %5284 = vmatprep.subr.mxu0 0.0
        %5285 = vmatpush1.msra.mxu0 0.0
        %5286 = vmatprep.subr.mxu0 0.0
        %5287 = vmatpush1.msra.mxu0 0.0
        %5288 = vmatprep.subr.mxu0 0.0
        %5289 = vmatpush1.msra.mxu0 0.0
        %5290 = vmatprep.subr.mxu0 0.0
        %5291 = vmatpush1.msra.mxu0 0.0
        %5292 = vmatprep.subr.mxu0 0.0
        %5293 = vmatpush1.msra.mxu0 0.0
        %5294 = vmatprep.subr.mxu0 0.0
        %5295 = vmatpush1.msra.mxu0 0.0
        %5296 = vmatprep.subr.mxu0 0.0
        %5297 = vmatpush1.msra.mxu0 0.0
        %5298 = vmatprep.subr.mxu0 0.0
        %5299 = vmatpush1.msra.mxu0 0.0
        %5300 = vmatprep.subr.mxu0 0.0
        %5301 = vmatpush1.msra.mxu0 0.0
        %5302 = vmatprep.subr.mxu0 0.0
        %5303 = vmatpush1.msra.mxu0 0.0
        %5304 = vmatprep.subr.mxu0 0.0
        %5305 = vmatpush1.msra.mxu0 0.0
        %5306 = vmatprep.subr.mxu0 0.0
        %5307 = vmatpush1.msra.mxu0 0.0
        %5308 = vmatprep.subr.mxu0 0.0
        %5309 = vmatpush1.msra.mxu0 0.0
        %5310 = vmatprep.subr.mxu0 0.0
        %5311 = vmatpush1.msra.mxu0 0.0
        %5312 = vmatprep.subr.mxu0 0.0
        %5313 = vmatpush1.msra.mxu0 0.0
        %5314 = vmatprep.subr.mxu0 0.0
        %5315 = vmatpush1.msra.mxu0 0.0
        %5316 = vmatprep.subr.mxu0 0.0
        %5317 = vmatpush1.msra.mxu0 0.0
        %5318 = vmatprep.subr.mxu0 0.0
        %5319 = vmatpush1.msra.mxu0 0.0
        %5320 = vmatprep.subr.mxu0 0.0
        %5321 = vmatpush1.msra.mxu0 0.0
        %5322 = vmatprep.subr.mxu0 0.0
        %5323 = vmatpush1.msra.mxu0 0.0
        %5324 = vmatprep.subr.mxu0 0.0
        %5325 = vmatpush1.msra.mxu0 0.0
        %5326 = vmatprep.subr.mxu0 0.0
        %5327 = vmatpush1.msra.mxu0 0.0
        %5328 = vmatprep.subr.mxu0 0.0
        %5329 = vmatpush1.msra.mxu0 0.0
        %5330 = vmatprep.subr.mxu0 0.0
        %5331 = vmatpush1.msra.mxu0 0.0
        %5332 = vmatprep.subr.mxu0 0.0
        %5333 = vmatpush1.msra.mxu0 0.0
        %5334 = vmatprep.subr.mxu0 0.0
        %5335 = vmatpush1.msra.mxu0 0.0
        %5336 = vmatprep.subr.mxu0 0.0
        %5337 = vmatpush1.msra.mxu0 0.0
        %5338 = vmatprep.subr.mxu0 0.0
        %5339 = vmatpush1.msra.mxu0 0.0
        %5340 = vmatprep.subr.mxu0 0.0
        %5341 = vmatpush1.msra.mxu0 0.0
        %5342 = vmatprep.mubr.f32.mxu0 0.0
        %5343 = vmatmul.mubr.f32.gmra.mrb[0].mxu0 %v2085
        %v5344 = vpop.f32.mrb[0].mxu0
        %v5345 = vadd.f32 0.0, %v5344
        %v5346 = vpop.f32.mrb[0].mxu0
        %5347 = vmatprep.mubr.f32.mxu0 0.0
        %5348 = vmatmul.mubr.f32.gmra.mrb[0].mxu0 %v2087
        %v5349 = vpop.f32.mrb[0].mxu0
        %v5350 = vadd.f32 0.0, %v5349
        %v5351 = vpop.f32.mrb[0].mxu0
        %5352 = vmatprep.mubr.f32.mxu0 0.0
        %5353 = vmatmul.mubr.f32.gmra.mrb[0].mxu0 %v2089
        %v5354 = vpop.f32.mrb[0].mxu0
        %v5355 = vadd.f32 0.0, %v5354
        %v5356 = vpop.f32.mrb[0].mxu0
        %5357 = vmatprep.mubr.f32.mxu0 0.0
        %5358 = vmatmul.mubr.f32.gmra.mrb[0].mxu0 %v2091
        %v5359 = vpop.f32.mrb[0].mxu0
        %v5360 = vadd.f32 0.0, %v5359
        %v5361 = vpop.f32.mrb[0].mxu0
        %5362 = vmatprep.mubr.f32.mxu0 0.0
        %5363 = vmatmul.mubr.f32.gmra.mrb[0].mxu0 %v2093
        %v5364 = vpop.f32.mrb[0].mxu0
        %v5365 = vadd.f32 0.0, %v5364
        %v5366 = vpop.f32.mrb[0].mxu0
        %5367 = vmatprep.mubr.f32.mxu0 0.0
        %5368 = vmatmul.mubr.f32.gmra.mrb[0].mxu0 %v2243
        %v5369 = vpop.f32.mrb[0].mxu0
        %v5370 = vadd.f32 0.0, %v5369
        %v5371 = vpop.f32.mrb[0].mxu0
        %5372 = vmatprep.mubr.f32.mxu0 0.0
        %5373 = vmatmul.mubr.f32.gmra.mrb[0].mxu0 %v3736
        %v5374 = vpop.f32.mrb[0].mxu0
        %v5375 = vadd.f32 0.0, %v5374
        %v5376 = vpop.f32.mrb[0].mxu0
        %5377 = vmatprep.mubr.f32.mxu0 0.0
        %5378 = vmatmul.mubr.f32.gmra.mrb[0].mxu0 %v3738
        %v5379 = vpop.f32.mrb[0].mxu0
        %v5380 = vadd.f32 0.0, %v5379
        %v5381 = vpop.f32.mrb[0].mxu0
        %5382 = vmatprep.mubr.f32.mxu0 0.0
        %5383 = vmatmul.mubr.f32.gmra.mrb[0].mxu0 %v3888
        %v5384 = vpop.f32.mrb[0].mxu0
        %v5385 = vadd.f32 0.0, %v5384
        %v5386 = vpop.f32.mrb[0].mxu0
        %5387 = vmatprep.mubr.f32.mxu0 0.0
        %5388 = vmatmul.mubr.f32.gmra.mrb[0].mxu0 %v5269
        %v5389 = vpop.f32.mrb[0].mxu0
        %v5390 = vadd.f32 0.0, %v5389
        %v5391 = vpop.f32.mrb[0].mxu0
        %5392 = vmatprep.mubr.f32.mxu0 0.0
        %5393 = vmatmul.mubr.f32.gmra.mrb[0].mxu0 %v5271
        %v5394 = vpop.f32.mrb[0].mxu0
        %v5395 = vadd.f32 0.0, %v5394
        %v5396 = vpop.f32.mrb[0].mxu0
        %5397 = vmatprep.mubr.f32.mxu0 0.0
        %5398 = vmatmul.mubr.f32.gmra.mrb[0].mxu0 %v5273
        %v5399 = vpop.f32.mrb[0].mxu0
        %v5400 = vadd.f32 0.0, %v5399
        %v5401 = vpop.f32.mrb[0].mxu0
        %5402 = vdwg.mxu0
        %v5403 = vadd.f32 %v5250, %v5345
        %v5404 = vadd.f32 %v5251, %v5350
        %v5405 = vadd.f32 %v5252, %v5355
        %v5406 = vadd.f32 %v5253, %v5360
        %v5407 = vadd.f32 %v5254, %v5365
        %v5408 = vadd.f32 %v5255, %v5370
        %v5409 = vadd.f32 %v5256, %v5375
        %v5410 = vadd.f32 %v5257, %v5380
        %v5411 = vadd.f32 %v5258, %v5385
        %v5412 = vadd.f32 %v5259, %v5390
        %v5413 = vadd.f32 %v5260, %v5395
        %v5414 = vadd.f32 %v5261, %v5400
        %v5415 = vld [vmem:[%s5] sm:$0xff]
        %v5416 = vld [vmem:[%s5 + $0x8] sm:$0xff]
        %v5417 = vld [vmem:[%s5 + $0x10] sm:$0xff]
        %v5418 = vld [vmem:[%s5 + $0x18] sm:$0xff]
        %v5419 = vld [vmem:[%s5 + $0x20] sm:$0xff]
        %v5420 = vld [vmem:[%s5 + $0x28] sm:$0xff]
        %v5421 = vld [vmem:[%s5 + $0x30] sm:$0xff]
        %v5422 = vld [vmem:[%s5 + $0x38] sm:$0xff]
        %v5423 = vld [vmem:[%s4] sm:$0x1]
        %v5425 = vlaneseq
        %v5426 = vshrl.u32 %v5425, 7
        %v5427 = vsub.s32 0, %v5426
        %v5428 = vrot.slane %v5423, %v5427
        %vm5430 = vcmask 752640
        %v5432 = vsel %vm5430, %v5415, 0
        %v5435 = vsel %vm5430, %v5416, 0
        %v5438 = vsel %vm5430, %v5417, 0
        %v5441 = vsel %vm5430, %v5418, 0
        %v5444 = vsel %vm5430, %v5419, 0
        %v5447 = vsel %vm5430, %v5420, 0
        %v5450 = vsel %vm5430, %v5421, 0
        %v5453 = vsel %vm5430, %v5422, 0
        %v5456 = vsel %vm2049, %v5414, 0
        %5458 = vmatprep.subr.mxu0 0.0
        %5459 = vmatpush1.msra.mxu0 %v5403
        %5460 = vmatprep.subr.mxu0 0.0
        %5461 = vmatpush1.msra.mxu0 %v5404
        %5462 = vmatprep.subr.mxu0 0.0
        %5463 = vmatpush1.msra.mxu0 %v5405
        %5464 = vmatprep.subr.mxu0 0.0
        %5465 = vmatpush1.msra.mxu0 %v5406
        %5466 = vmatprep.subr.mxu0 0.0
        %5467 = vmatpush1.msra.mxu0 %v5407
        %5468 = vmatprep.subr.mxu0 0.0
        %5469 = vmatpush1.msra.mxu0 %v5408
        %5470 = vmatprep.subr.mxu0 0.0
        %5471 = vmatpush1.msra.mxu0 %v5409
        %5472 = vmatprep.subr.mxu0 0.0
        %5473 = vmatpush1.msra.mxu0 %v5410
        %5474 = vmatprep.subr.mxu0 0.0
        %5475 = vmatpush1.msra.mxu0 %v5411
        %5476 = vmatprep.subr.mxu0 0.0
        %5477 = vmatpush1.msra.mxu0 %v5412
        %5478 = vmatprep.subr.mxu0 0.0
        %5479 = vmatpush1.msra.mxu0 %v5413
        %5480 = vmatprep.subr.mxu0 0.0
        %5481 = vmatpush1.msra.mxu0 %v5456
        %5482 = vmatprep.subr.mxu0 0.0
        %5483 = vmatpush1.msra.mxu0 0.0
        %5484 = vmatprep.subr.mxu0 0.0
        %5485 = vmatpush1.msra.mxu0 0.0
        %5486 = vmatprep.subr.mxu0 0.0
        %5487 = vmatpush1.msra.mxu0 0.0
        %5488 = vmatprep.subr.mxu0 0.0
        %5489 = vmatpush1.msra.mxu0 0.0
        %5490 = vmatprep.subr.mxu0 0.0
        %5491 = vmatpush1.msra.mxu0 0.0
        %5492 = vmatprep.subr.mxu0 0.0
        %5493 = vmatpush1.msra.mxu0 0.0
        %5494 = vmatprep.subr.mxu0 0.0
        %5495 = vmatpush1.msra.mxu0 0.0
        %5496 = vmatprep.subr.mxu0 0.0
        %5497 = vmatpush1.msra.mxu0 0.0
        %5498 = vmatprep.subr.mxu0 0.0
        %5499 = vmatpush1.msra.mxu0 0.0
        %5500 = vmatprep.subr.mxu0 0.0
        %5501 = vmatpush1.msra.mxu0 0.0
        %5502 = vmatprep.subr.mxu0 0.0
        %5503 = vmatpush1.msra.mxu0 0.0
        %5504 = vmatprep.subr.mxu0 0.0
        %5505 = vmatpush1.msra.mxu0 0.0
        %5506 = vmatprep.subr.mxu0 0.0
        %5507 = vmatpush1.msra.mxu0 0.0
        %5508 = vmatprep.subr.mxu0 0.0
        %5509 = vmatpush1.msra.mxu0 0.0
        %5510 = vmatprep.subr.mxu0 0.0
        %5511 = vmatpush1.msra.mxu0 0.0
        %5512 = vmatprep.subr.mxu0 0.0
        %5513 = vmatpush1.msra.mxu0 0.0
        %5514 = vmatprep.subr.mxu0 0.0
        %5515 = vmatpush1.msra.mxu0 0.0
        %5516 = vmatprep.subr.mxu0 0.0
        %5517 = vmatpush1.msra.mxu0 0.0
        %5518 = vmatprep.subr.mxu0 0.0
        %5519 = vmatpush1.msra.mxu0 0.0
        %5520 = vmatprep.subr.mxu0 0.0
        %5521 = vmatpush1.msra.mxu0 0.0
        %5522 = vmatprep.mubr.f32.mxu0 0.0
        %5523 = vmatmul.mubr.f32.gmra.mrb[0].mxu0 %v5432
        %v5524 = vpop.f32.mrb[0].mxu0
        %v5525 = vadd.f32 %v5428, %v5524
        %v5526 = vpop.f32.mrb[0].mxu0
        %5527 = vmatprep.mubr.f32.mxu0 0.0
        %5528 = vmatmul.mubr.f32.gmra.mrb[0].mxu0 %v5435
        %v5529 = vpop.f32.mrb[0].mxu0
        %v5530 = vadd.f32 %v5428, %v5529
        %v5531 = vpop.f32.mrb[0].mxu0
        %5532 = vmatprep.mubr.f32.mxu0 0.0
        %5533 = vmatmul.mubr.f32.gmra.mrb[0].mxu0 %v5438
        %v5534 = vpop.f32.mrb[0].mxu0
        %v5535 = vadd.f32 %v5428, %v5534
        %v5536 = vpop.f32.mrb[0].mxu0
        %5537 = vmatprep.mubr.f32.mxu0 0.0
        %5538 = vmatmul.mubr.f32.gmra.mrb[0].mxu0 %v5441
        %v5539 = vpop.f32.mrb[0].mxu0
        %v5540 = vadd.f32 %v5428, %v5539
        %v5541 = vpop.f32.mrb[0].mxu0
        %5542 = vmatprep.mubr.f32.mxu0 0.0
        %5543 = vmatmul.mubr.f32.gmra.mrb[0].mxu0 %v5444
        %v5544 = vpop.f32.mrb[0].mxu0
        %v5545 = vadd.f32 %v5428, %v5544
        %v5546 = vpop.f32.mrb[0].mxu0
        %5547 = vmatprep.mubr.f32.mxu0 0.0
        %5548 = vmatmul.mubr.f32.gmra.mrb[0].mxu0 %v5447
        %v5549 = vpop.f32.mrb[0].mxu0
        %v5550 = vadd.f32 %v5428, %v5549
        %v5551 = vpop.f32.mrb[0].mxu0
        %5552 = vmatprep.mubr.f32.mxu0 0.0
        %5553 = vmatmul.mubr.f32.gmra.mrb[0].mxu0 %v5450
        %v5554 = vpop.f32.mrb[0].mxu0
        %v5555 = vadd.f32 %v5428, %v5554
        %v5556 = vpop.f32.mrb[0].mxu0
        %5557 = vmatprep.mubr.f32.mxu0 0.0
        %5558 = vmatmul.mubr.f32.gmra.mrb[0].mxu0 %v5453
        %v5559 = vpop.f32.mrb[0].mxu0
        %v5560 = vadd.f32 %v5428, %v5559
        %v5561 = vpop.f32.mrb[0].mxu0
        %5562 = vdwg.mxu0
        %v5563 = vmax.f32 %v5525, %v5535
        %v5564 = vmax.f32 %v5530, %v5540
        %v5565 = vmax.f32 %v5545, %v5555
        %v5566 = vmax.f32 %v5550, %v5560
        %v5567 = vmax.f32 %v5563, %v5565
        %v5568 = vmax.f32 %v5564, %v5566
        %v5569 = vmax.f32 %v5567, 0.0
        %v5570 = vmax.f32 %v5568, 0.0
        %v5571 = vld [vmem:[%s7] sm:$0x1]
        %v5572 = vld [vmem:[%s6] sm:$0xff]
        %v5573 = vld [vmem:[%s6 + $0x8] sm:$0xff]
        %v5574 = vld [vmem:[%s6 + $0x10] sm:$0xf]
        %vm5575 = vcmask 162816
        %v5577 = vsel %vm5575, %v5569, 0
        %v5580 = vsel %vm2049, %v5574, 0
        %5582 = vmatprep.subr.mxu0 0.0
        %5583 = vmatpush1.msra.mxu0 %v5572
        %5584 = vmatprep.subr.mxu0 0.0
        %5585 = vmatpush1.msra.mxu0 %v5573
        %5586 = vmatprep.subr.mxu0 0.0
        %5587 = vmatpush1.msra.mxu0 %v5580
        %5588 = vmatprep.subr.mxu0 0.0
        %5589 = vmatpush1.msra.mxu0 0.0
        %5590 = vmatprep.subr.mxu0 0.0
        %5591 = vmatpush1.msra.mxu0 0.0
        %5592 = vmatprep.subr.mxu0 0.0
        %5593 = vmatpush1.msra.mxu0 0.0
        %5594 = vmatprep.subr.mxu0 0.0
        %5595 = vmatpush1.msra.mxu0 0.0
        %5596 = vmatprep.subr.mxu0 0.0
        %5597 = vmatpush1.msra.mxu0 0.0
        %5598 = vmatprep.subr.mxu0 0.0
        %5599 = vmatpush1.msra.mxu0 0.0
        %5600 = vmatprep.subr.mxu0 0.0
        %5601 = vmatpush1.msra.mxu0 0.0
        %5602 = vmatprep.subr.mxu0 0.0
        %5603 = vmatpush1.msra.mxu0 0.0
        %5604 = vmatprep.subr.mxu0 0.0
        %5605 = vmatpush1.msra.mxu0 0.0
        %5606 = vmatprep.subr.mxu0 0.0
        %5607 = vmatpush1.msra.mxu0 0.0
        %5608 = vmatprep.subr.mxu0 0.0
        %5609 = vmatpush1.msra.mxu0 0.0
        %5610 = vmatprep.subr.mxu0 0.0
        %5611 = vmatpush1.msra.mxu0 0.0
        %5612 = vmatprep.subr.mxu0 0.0
        %5613 = vmatpush1.msra.mxu0 0.0
        %5614 = vmatprep.subr.mxu0 0.0
        %5615 = vmatpush1.msra.mxu0 0.0
        %5616 = vmatprep.subr.mxu0 0.0
        %5617 = vmatpush1.msra.mxu0 0.0
        %5618 = vmatprep.subr.mxu0 0.0
        %5619 = vmatpush1.msra.mxu0 0.0
        %5620 = vmatprep.subr.mxu0 0.0
        %5621 = vmatpush1.msra.mxu0 0.0
        %5622 = vmatprep.subr.mxu0 0.0
        %5623 = vmatpush1.msra.mxu0 0.0
        %5624 = vmatprep.subr.mxu0 0.0
        %5625 = vmatpush1.msra.mxu0 0.0
        %5626 = vmatprep.subr.mxu0 0.0
        %5627 = vmatpush1.msra.mxu0 0.0
        %5628 = vmatprep.subr.mxu0 0.0
        %5629 = vmatpush1.msra.mxu0 0.0
        %5630 = vmatprep.subr.mxu0 0.0
        %5631 = vmatpush1.msra.mxu0 0.0
        %5632 = vmatprep.subr.mxu0 0.0
        %5633 = vmatpush1.msra.mxu0 0.0
        %5634 = vmatprep.subr.mxu0 0.0
        %5635 = vmatpush1.msra.mxu0 0.0
        %5636 = vmatprep.subr.mxu0 0.0
        %5637 = vmatpush1.msra.mxu0 0.0
        %5638 = vmatprep.subr.mxu0 0.0
        %5639 = vmatpush1.msra.mxu0 0.0
        %5640 = vmatprep.subr.mxu0 0.0
        %5641 = vmatpush1.msra.mxu0 0.0
        %5642 = vmatprep.subr.mxu0 0.0
        %5643 = vmatpush1.msra.mxu0 0.0
        %5644 = vmatprep.subr.mxu0 0.0
        %5645 = vmatpush1.msra.mxu0 0.0
        %5646 = vmatprep.mubr.f32.mxu0 0.0
        %5647 = vmatmul.mubr.f32.gmra.mrb[0].mxu0 %v5577
        %v5648 = vpop.f32.mrb[0].mxu0
        %v5649 = vadd.f32 0.0, %v5648
        %v5650 = vpop.f32.mrb[0].mxu0
        %5651 = vdwg.mxu0
        %v5652 = vadd.f32 %v5571, %v5649
        %s5653 = scalar_lea.vmem %s6, 24
        %v5654 = vld [vmem:[%s5653] sm:$0xff]
        %v5655 = vld [vmem:[%s5653 + $0x8] sm:$0xff]
        %v5656 = vld [vmem:[%s5653 + $0x10] sm:$0xf]
        %v5657 = vrot.slane %v5569, 1
        %v5658 = vsel %vm5575, %v5657, 0
        %v5661 = vsel %vm2049, %v5656, 0
        %5663 = vmatprep.subr.mxu0 0.0
        %5664 = vmatpush1.msra.mxu0 %v5654
        %5665 = vmatprep.subr.mxu0 0.0
        %5666 = vmatpush1.msra.mxu0 %v5655
        %5667 = vmatprep.subr.mxu0 0.0
        %5668 = vmatpush1.msra.mxu0 %v5661
        %5669 = vmatprep.subr.mxu0 0.0
        %5670 = vmatpush1.msra.mxu0 0.0
        %5671 = vmatprep.subr.mxu0 0.0
        %5672 = vmatpush1.msra.mxu0 0.0
        %5673 = vmatprep.subr.mxu0 0.0
        %5674 = vmatpush1.msra.mxu0 0.0
        %5675 = vmatprep.subr.mxu0 0.0
        %5676 = vmatpush1.msra.mxu0 0.0
        %5677 = vmatprep.subr.mxu0 0.0
        %5678 = vmatpush1.msra.mxu0 0.0
        %5679 = vmatprep.subr.mxu0 0.0
        %5680 = vmatpush1.msra.mxu0 0.0
        %5681 = vmatprep.subr.mxu0 0.0
        %5682 = vmatpush1.msra.mxu0 0.0
        %5683 = vmatprep.subr.mxu0 0.0
        %5684 = vmatpush1.msra.mxu0 0.0
        %5685 = vmatprep.subr.mxu0 0.0
        %5686 = vmatpush1.msra.mxu0 0.0
        %5687 = vmatprep.subr.mxu0 0.0
        %5688 = vmatpush1.msra.mxu0 0.0
        %5689 = vmatprep.subr.mxu0 0.0
        %5690 = vmatpush1.msra.mxu0 0.0
        %5691 = vmatprep.subr.mxu0 0.0
        %5692 = vmatpush1.msra.mxu0 0.0
        %5693 = vmatprep.subr.mxu0 0.0
        %5694 = vmatpush1.msra.mxu0 0.0
        %5695 = vmatprep.subr.mxu0 0.0
        %5696 = vmatpush1.msra.mxu0 0.0
        %5697 = vmatprep.subr.mxu0 0.0
        %5698 = vmatpush1.msra.mxu0 0.0
        %5699 = vmatprep.subr.mxu0 0.0
        %5700 = vmatpush1.msra.mxu0 0.0
        %5701 = vmatprep.subr.mxu0 0.0
        %5702 = vmatpush1.msra.mxu0 0.0
        %5703 = vmatprep.subr.mxu0 0.0
        %5704 = vmatpush1.msra.mxu0 0.0
        %5705 = vmatprep.subr.mxu0 0.0
        %5706 = vmatpush1.msra.mxu0 0.0
        %5707 = vmatprep.subr.mxu0 0.0
        %5708 = vmatpush1.msra.mxu0 0.0
        %5709 = vmatprep.subr.mxu0 0.0
        %5710 = vmatpush1.msra.mxu0 0.0
        %5711 = vmatprep.subr.mxu0 0.0
        %5712 = vmatpush1.msra.mxu0 0.0
        %5713 = vmatprep.subr.mxu0 0.0
        %5714 = vmatpush1.msra.mxu0 0.0
        %5715 = vmatprep.subr.mxu0 0.0
        %5716 = vmatpush1.msra.mxu0 0.0
        %5717 = vmatprep.subr.mxu0 0.0
        %5718 = vmatpush1.msra.mxu0 0.0
        %5719 = vmatprep.subr.mxu0 0.0
        %5720 = vmatpush1.msra.mxu0 0.0
        %5721 = vmatprep.subr.mxu0 0.0
        %5722 = vmatpush1.msra.mxu0 0.0
        %5723 = vmatprep.subr.mxu0 0.0
        %5724 = vmatpush1.msra.mxu0 0.0
        %5725 = vmatprep.subr.mxu0 0.0
        %5726 = vmatpush1.msra.mxu0 0.0
        %5727 = vmatprep.mubr.f32.mxu0 0.0
        %5728 = vmatmul.mubr.f32.gmra.mrb[0].mxu0 %v5658
        %v5729 = vpop.f32.mrb[0].mxu0
        %v5730 = vadd.f32 0.0, %v5729
        %v5731 = vpop.f32.mrb[0].mxu0
        %5732 = vdwg.mxu0
        %v5733 = vadd.f32 %v5652, %v5730
        %s5734 = scalar_lea.vmem %s6, 48
        %v5735 = vld [vmem:[%s5734] sm:$0xff]
        %v5736 = vld [vmem:[%s5734 + $0x8] sm:$0xff]
        %v5737 = vld [vmem:[%s5734 + $0x10] sm:$0xf]
        %v5738 = vrot.slane %v5569, 2
        %v5739 = vsel %vm5575, %v5738, 0
        %v5742 = vsel %vm2049, %v5737, 0
        %5744 = vmatprep.subr.mxu0 0.0
        %5745 = vmatpush1.msra.mxu0 %v5735
        %5746 = vmatprep.subr.mxu0 0.0
        %5747 = vmatpush1.msra.mxu0 %v5736
        %5748 = vmatprep.subr.mxu0 0.0
        %5749 = vmatpush1.msra.mxu0 %v5742
        %5750 = vmatprep.subr.mxu0 0.0
        %5751 = vmatpush1.msra.mxu0 0.0
        %5752 = vmatprep.subr.mxu0 0.0
        %5753 = vmatpush1.msra.mxu0 0.0
        %5754 = vmatprep.subr.mxu0 0.0
        %5755 = vmatpush1.msra.mxu0 0.0
        %5756 = vmatprep.subr.mxu0 0.0
        %5757 = vmatpush1.msra.mxu0 0.0
        %5758 = vmatprep.subr.mxu0 0.0
        %5759 = vmatpush1.msra.mxu0 0.0
        %5760 = vmatprep.subr.mxu0 0.0
        %5761 = vmatpush1.msra.mxu0 0.0
        %5762 = vmatprep.subr.mxu0 0.0
        %5763 = vmatpush1.msra.mxu0 0.0
        %5764 = vmatprep.subr.mxu0 0.0
        %5765 = vmatpush1.msra.mxu0 0.0
        %5766 = vmatprep.subr.mxu0 0.0
        %5767 = vmatpush1.msra.mxu0 0.0
        %5768 = vmatprep.subr.mxu0 0.0
        %5769 = vmatpush1.msra.mxu0 0.0
        %5770 = vmatprep.subr.mxu0 0.0
        %5771 = vmatpush1.msra.mxu0 0.0
        %5772 = vmatprep.subr.mxu0 0.0
        %5773 = vmatpush1.msra.mxu0 0.0
        %5774 = vmatprep.subr.mxu0 0.0
        %5775 = vmatpush1.msra.mxu0 0.0
        %5776 = vmatprep.subr.mxu0 0.0
        %5777 = vmatpush1.msra.mxu0 0.0
        %5778 = vmatprep.subr.mxu0 0.0
        %5779 = vmatpush1.msra.mxu0 0.0
        %5780 = vmatprep.subr.mxu0 0.0
        %5781 = vmatpush1.msra.mxu0 0.0
        %5782 = vmatprep.subr.mxu0 0.0
        %5783 = vmatpush1.msra.mxu0 0.0
        %5784 = vmatprep.subr.mxu0 0.0
        %5785 = vmatpush1.msra.mxu0 0.0
        %5786 = vmatprep.subr.mxu0 0.0
        %5787 = vmatpush1.msra.mxu0 0.0
        %5788 = vmatprep.subr.mxu0 0.0
        %5789 = vmatpush1.msra.mxu0 0.0
        %5790 = vmatprep.subr.mxu0 0.0
        %5791 = vmatpush1.msra.mxu0 0.0
        %5792 = vmatprep.subr.mxu0 0.0
        %5793 = vmatpush1.msra.mxu0 0.0
        %5794 = vmatprep.subr.mxu0 0.0
        %5795 = vmatpush1.msra.mxu0 0.0
        %5796 = vmatprep.subr.mxu0 0.0
        %5797 = vmatpush1.msra.mxu0 0.0
        %5798 = vmatprep.subr.mxu0 0.0
        %5799 = vmatpush1.msra.mxu0 0.0
        %5800 = vmatprep.subr.mxu0 0.0
        %5801 = vmatpush1.msra.mxu0 0.0
        %5802 = vmatprep.subr.mxu0 0.0
        %5803 = vmatpush1.msra.mxu0 0.0
        %5804 = vmatprep.subr.mxu0 0.0
        %5805 = vmatpush1.msra.mxu0 0.0
        %5806 = vmatprep.subr.mxu0 0.0
        %5807 = vmatpush1.msra.mxu0 0.0
        %5808 = vmatprep.mubr.f32.mxu0 0.0
        %5809 = vmatmul.mubr.f32.gmra.mrb[0].mxu0 %v5739
        %v5810 = vpop.f32.mrb[0].mxu0
        %v5811 = vadd.f32 0.0, %v5810
        %v5812 = vpop.f32.mrb[0].mxu0
        %5813 = vdwg.mxu0
        %v5814 = vadd.f32 %v5733, %v5811
        %s5815 = scalar_lea.vmem %s6, 72
        %v5816 = vld [vmem:[%s5815] sm:$0xff]
        %v5817 = vld [vmem:[%s5815 + $0x8] sm:$0xff]
        %v5818 = vld [vmem:[%s5815 + $0x10] sm:$0xf]
        %v5819 = vrot.slane %v5569, 3
        %v5820 = vsel %vm5575, %v5819, 0
        %v5823 = vsel %vm2049, %v5818, 0
        %5825 = vmatprep.subr.mxu0 0.0
        %5826 = vmatpush1.msra.mxu0 %v5816
        %5827 = vmatprep.subr.mxu0 0.0
        %5828 = vmatpush1.msra.mxu0 %v5817
        %5829 = vmatprep.subr.mxu0 0.0
        %5830 = vmatpush1.msra.mxu0 %v5823
        %5831 = vmatprep.subr.mxu0 0.0
        %5832 = vmatpush1.msra.mxu0 0.0
        %5833 = vmatprep.subr.mxu0 0.0
        %5834 = vmatpush1.msra.mxu0 0.0
        %5835 = vmatprep.subr.mxu0 0.0
        %5836 = vmatpush1.msra.mxu0 0.0
        %5837 = vmatprep.subr.mxu0 0.0
        %5838 = vmatpush1.msra.mxu0 0.0
        %5839 = vmatprep.subr.mxu0 0.0
        %5840 = vmatpush1.msra.mxu0 0.0
        %5841 = vmatprep.subr.mxu0 0.0
        %5842 = vmatpush1.msra.mxu0 0.0
        %5843 = vmatprep.subr.mxu0 0.0
        %5844 = vmatpush1.msra.mxu0 0.0
        %5845 = vmatprep.subr.mxu0 0.0
        %5846 = vmatpush1.msra.mxu0 0.0
        %5847 = vmatprep.subr.mxu0 0.0
        %5848 = vmatpush1.msra.mxu0 0.0
        %5849 = vmatprep.subr.mxu0 0.0
        %5850 = vmatpush1.msra.mxu0 0.0
        %5851 = vmatprep.subr.mxu0 0.0
        %5852 = vmatpush1.msra.mxu0 0.0
        %5853 = vmatprep.subr.mxu0 0.0
        %5854 = vmatpush1.msra.mxu0 0.0
        %5855 = vmatprep.subr.mxu0 0.0
        %5856 = vmatpush1.msra.mxu0 0.0
        %5857 = vmatprep.subr.mxu0 0.0
        %5858 = vmatpush1.msra.mxu0 0.0
        %5859 = vmatprep.subr.mxu0 0.0
        %5860 = vmatpush1.msra.mxu0 0.0
        %5861 = vmatprep.subr.mxu0 0.0
        %5862 = vmatpush1.msra.mxu0 0.0
        %5863 = vmatprep.subr.mxu0 0.0
        %5864 = vmatpush1.msra.mxu0 0.0
        %5865 = vmatprep.subr.mxu0 0.0
        %5866 = vmatpush1.msra.mxu0 0.0
        %5867 = vmatprep.subr.mxu0 0.0
        %5868 = vmatpush1.msra.mxu0 0.0
        %5869 = vmatprep.subr.mxu0 0.0
        %5870 = vmatpush1.msra.mxu0 0.0
        %5871 = vmatprep.subr.mxu0 0.0
        %5872 = vmatpush1.msra.mxu0 0.0
        %5873 = vmatprep.subr.mxu0 0.0
        %5874 = vmatpush1.msra.mxu0 0.0
        %5875 = vmatprep.subr.mxu0 0.0
        %5876 = vmatpush1.msra.mxu0 0.0
        %5877 = vmatprep.subr.mxu0 0.0
        %5878 = vmatpush1.msra.mxu0 0.0
        %5879 = vmatprep.subr.mxu0 0.0
        %5880 = vmatpush1.msra.mxu0 0.0
        %5881 = vmatprep.subr.mxu0 0.0
        %5882 = vmatpush1.msra.mxu0 0.0
        %5883 = vmatprep.subr.mxu0 0.0
        %5884 = vmatpush1.msra.mxu0 0.0
        %5885 = vmatprep.subr.mxu0 0.0
        %5886 = vmatpush1.msra.mxu0 0.0
        %5887 = vmatprep.subr.mxu0 0.0
        %5888 = vmatpush1.msra.mxu0 0.0
        %5889 = vmatprep.mubr.f32.mxu0 0.0
        %5890 = vmatmul.mubr.f32.gmra.mrb[0].mxu0 %v5820
        %v5891 = vpop.f32.mrb[0].mxu0
        %v5892 = vadd.f32 0.0, %v5891
        %v5893 = vpop.f32.mrb[0].mxu0
        %5894 = vdwg.mxu0
        %v5895 = vadd.f32 %v5814, %v5892
        %s5896 = scalar_lea.vmem %s6, 96
        %v5897 = vld [vmem:[%s5896] sm:$0xff]
        %v5898 = vld [vmem:[%s5896 + $0x8] sm:$0xff]
        %v5899 = vld [vmem:[%s5896 + $0x10] sm:$0xf]
        %v5900 = vrot.slane %v5569, 4
        %v5901 = vsel %vm5575, %v5900, 0
        %v5904 = vsel %vm2049, %v5899, 0
        %5906 = vmatprep.subr.mxu0 0.0
        %5907 = vmatpush1.msra.mxu0 %v5897
        %5908 = vmatprep.subr.mxu0 0.0
        %5909 = vmatpush1.msra.mxu0 %v5898
        %5910 = vmatprep.subr.mxu0 0.0
        %5911 = vmatpush1.msra.mxu0 %v5904
        %5912 = vmatprep.subr.mxu0 0.0
        %5913 = vmatpush1.msra.mxu0 0.0
        %5914 = vmatprep.subr.mxu0 0.0
        %5915 = vmatpush1.msra.mxu0 0.0
        %5916 = vmatprep.subr.mxu0 0.0
        %5917 = vmatpush1.msra.mxu0 0.0
        %5918 = vmatprep.subr.mxu0 0.0
        %5919 = vmatpush1.msra.mxu0 0.0
        %5920 = vmatprep.subr.mxu0 0.0
        %5921 = vmatpush1.msra.mxu0 0.0
        %5922 = vmatprep.subr.mxu0 0.0
        %5923 = vmatpush1.msra.mxu0 0.0
        %5924 = vmatprep.subr.mxu0 0.0
        %5925 = vmatpush1.msra.mxu0 0.0
        %5926 = vmatprep.subr.mxu0 0.0
        %5927 = vmatpush1.msra.mxu0 0.0
        %5928 = vmatprep.subr.mxu0 0.0
        %5929 = vmatpush1.msra.mxu0 0.0
        %5930 = vmatprep.subr.mxu0 0.0
        %5931 = vmatpush1.msra.mxu0 0.0
        %5932 = vmatprep.subr.mxu0 0.0
        %5933 = vmatpush1.msra.mxu0 0.0
        %5934 = vmatprep.subr.mxu0 0.0
        %5935 = vmatpush1.msra.mxu0 0.0
        %5936 = vmatprep.subr.mxu0 0.0
        %5937 = vmatpush1.msra.mxu0 0.0
        %5938 = vmatprep.subr.mxu0 0.0
        %5939 = vmatpush1.msra.mxu0 0.0
        %5940 = vmatprep.subr.mxu0 0.0
        %5941 = vmatpush1.msra.mxu0 0.0
        %5942 = vmatprep.subr.mxu0 0.0
        %5943 = vmatpush1.msra.mxu0 0.0
        %5944 = vmatprep.subr.mxu0 0.0
        %5945 = vmatpush1.msra.mxu0 0.0
        %5946 = vmatprep.subr.mxu0 0.0
        %5947 = vmatpush1.msra.mxu0 0.0
        %5948 = vmatprep.subr.mxu0 0.0
        %5949 = vmatpush1.msra.mxu0 0.0
        %5950 = vmatprep.subr.mxu0 0.0
        %5951 = vmatpush1.msra.mxu0 0.0
        %5952 = vmatprep.subr.mxu0 0.0
        %5953 = vmatpush1.msra.mxu0 0.0
        %5954 = vmatprep.subr.mxu0 0.0
        %5955 = vmatpush1.msra.mxu0 0.0
        %5956 = vmatprep.subr.mxu0 0.0
        %5957 = vmatpush1.msra.mxu0 0.0
        %5958 = vmatprep.subr.mxu0 0.0
        %5959 = vmatpush1.msra.mxu0 0.0
        %5960 = vmatprep.subr.mxu0 0.0
        %5961 = vmatpush1.msra.mxu0 0.0
        %5962 = vmatprep.subr.mxu0 0.0
        %5963 = vmatpush1.msra.mxu0 0.0
        %5964 = vmatprep.subr.mxu0 0.0
        %5965 = vmatpush1.msra.mxu0 0.0
        %5966 = vmatprep.subr.mxu0 0.0
        %5967 = vmatpush1.msra.mxu0 0.0
        %5968 = vmatprep.subr.mxu0 0.0
        %5969 = vmatpush1.msra.mxu0 0.0
        %5970 = vmatprep.mubr.f32.mxu0 0.0
        %5971 = vmatmul.mubr.f32.gmra.mrb[0].mxu0 %v5901
        %v5972 = vpop.f32.mrb[0].mxu0
        %v5973 = vadd.f32 0.0, %v5972
        %v5974 = vpop.f32.mrb[0].mxu0
        %5975 = vdwg.mxu0
        %v5976 = vadd.f32 %v5895, %v5973
        %s5977 = scalar_lea.vmem %s6, 120
        %v5978 = vld [vmem:[%s5977] sm:$0xff]
        %v5979 = vld [vmem:[%s5977 + $0x8] sm:$0xff]
        %v5980 = vld [vmem:[%s5977 + $0x10] sm:$0xf]
        %v5981 = vrot.slane %v5569, 5
        %v5982 = vsel %vm5575, %v5981, 0
        %v5985 = vsel %vm2049, %v5980, 0
        %5987 = vmatprep.subr.mxu0 0.0
        %5988 = vmatpush1.msra.mxu0 %v5978
        %5989 = vmatprep.subr.mxu0 0.0
        %5990 = vmatpush1.msra.mxu0 %v5979
        %5991 = vmatprep.subr.mxu0 0.0
        %5992 = vmatpush1.msra.mxu0 %v5985
        %5993 = vmatprep.subr.mxu0 0.0
        %5994 = vmatpush1.msra.mxu0 0.0
        %5995 = vmatprep.subr.mxu0 0.0
        %5996 = vmatpush1.msra.mxu0 0.0
        %5997 = vmatprep.subr.mxu0 0.0
        %5998 = vmatpush1.msra.mxu0 0.0
        %5999 = vmatprep.subr.mxu0 0.0
        %6000 = vmatpush1.msra.mxu0 0.0
        %6001 = vmatprep.subr.mxu0 0.0
        %6002 = vmatpush1.msra.mxu0 0.0
        %6003 = vmatprep.subr.mxu0 0.0
        %6004 = vmatpush1.msra.mxu0 0.0
        %6005 = vmatprep.subr.mxu0 0.0
        %6006 = vmatpush1.msra.mxu0 0.0
        %6007 = vmatprep.subr.mxu0 0.0
        %6008 = vmatpush1.msra.mxu0 0.0
        %6009 = vmatprep.subr.mxu0 0.0
        %6010 = vmatpush1.msra.mxu0 0.0
        %6011 = vmatprep.subr.mxu0 0.0
        %6012 = vmatpush1.msra.mxu0 0.0
        %6013 = vmatprep.subr.mxu0 0.0
        %6014 = vmatpush1.msra.mxu0 0.0
        %6015 = vmatprep.subr.mxu0 0.0
        %6016 = vmatpush1.msra.mxu0 0.0
        %6017 = vmatprep.subr.mxu0 0.0
        %6018 = vmatpush1.msra.mxu0 0.0
        %6019 = vmatprep.subr.mxu0 0.0
        %6020 = vmatpush1.msra.mxu0 0.0
        %6021 = vmatprep.subr.mxu0 0.0
        %6022 = vmatpush1.msra.mxu0 0.0
        %6023 = vmatprep.subr.mxu0 0.0
        %6024 = vmatpush1.msra.mxu0 0.0
        %6025 = vmatprep.subr.mxu0 0.0
        %6026 = vmatpush1.msra.mxu0 0.0
        %6027 = vmatprep.subr.mxu0 0.0
        %6028 = vmatpush1.msra.mxu0 0.0
        %6029 = vmatprep.subr.mxu0 0.0
        %6030 = vmatpush1.msra.mxu0 0.0
        %6031 = vmatprep.subr.mxu0 0.0
        %6032 = vmatpush1.msra.mxu0 0.0
        %6033 = vmatprep.subr.mxu0 0.0
        %6034 = vmatpush1.msra.mxu0 0.0
        %6035 = vmatprep.subr.mxu0 0.0
        %6036 = vmatpush1.msra.mxu0 0.0
        %6037 = vmatprep.subr.mxu0 0.0
        %6038 = vmatpush1.msra.mxu0 0.0
        %6039 = vmatprep.subr.mxu0 0.0
        %6040 = vmatpush1.msra.mxu0 0.0
        %6041 = vmatprep.subr.mxu0 0.0
        %6042 = vmatpush1.msra.mxu0 0.0
        %6043 = vmatprep.subr.mxu0 0.0
        %6044 = vmatpush1.msra.mxu0 0.0
        %6045 = vmatprep.subr.mxu0 0.0
        %6046 = vmatpush1.msra.mxu0 0.0
        %6047 = vmatprep.subr.mxu0 0.0
        %6048 = vmatpush1.msra.mxu0 0.0
        %6049 = vmatprep.subr.mxu0 0.0
        %6050 = vmatpush1.msra.mxu0 0.0
        %6051 = vmatprep.mubr.f32.mxu0 0.0
        %6052 = vmatmul.mubr.f32.gmra.mrb[0].mxu0 %v5982
        %v6053 = vpop.f32.mrb[0].mxu0
        %v6054 = vadd.f32 0.0, %v6053
        %v6055 = vpop.f32.mrb[0].mxu0
        %6056 = vdwg.mxu0
        %v6057 = vadd.f32 %v5976, %v6054
        %s6058 = scalar_lea.vmem %s6, 144
        %v6059 = vld [vmem:[%s6058] sm:$0xff]
        %v6060 = vld [vmem:[%s6058 + $0x8] sm:$0xff]
        %v6061 = vld [vmem:[%s6058 + $0x10] sm:$0xf]
        %v6062 = vrot.slane %v5569, 6
        %v6063 = vsel %vm5575, %v6062, 0
        %v6066 = vsel %vm2049, %v6061, 0
        %6068 = vmatprep.subr.mxu0 0.0
        %6069 = vmatpush1.msra.mxu0 %v6059
        %6070 = vmatprep.subr.mxu0 0.0
        %6071 = vmatpush1.msra.mxu0 %v6060
        %6072 = vmatprep.subr.mxu0 0.0
        %6073 = vmatpush1.msra.mxu0 %v6066
        %6074 = vmatprep.subr.mxu0 0.0
        %6075 = vmatpush1.msra.mxu0 0.0
        %6076 = vmatprep.subr.mxu0 0.0
        %6077 = vmatpush1.msra.mxu0 0.0
        %6078 = vmatprep.subr.mxu0 0.0
        %6079 = vmatpush1.msra.mxu0 0.0
        %6080 = vmatprep.subr.mxu0 0.0
        %6081 = vmatpush1.msra.mxu0 0.0
        %6082 = vmatprep.subr.mxu0 0.0
        %6083 = vmatpush1.msra.mxu0 0.0
        %6084 = vmatprep.subr.mxu0 0.0
        %6085 = vmatpush1.msra.mxu0 0.0
        %6086 = vmatprep.subr.mxu0 0.0
        %6087 = vmatpush1.msra.mxu0 0.0
        %6088 = vmatprep.subr.mxu0 0.0
        %6089 = vmatpush1.msra.mxu0 0.0
        %6090 = vmatprep.subr.mxu0 0.0
        %6091 = vmatpush1.msra.mxu0 0.0
        %6092 = vmatprep.subr.mxu0 0.0
        %6093 = vmatpush1.msra.mxu0 0.0
        %6094 = vmatprep.subr.mxu0 0.0
        %6095 = vmatpush1.msra.mxu0 0.0
        %6096 = vmatprep.subr.mxu0 0.0
        %6097 = vmatpush1.msra.mxu0 0.0
        %6098 = vmatprep.subr.mxu0 0.0
        %6099 = vmatpush1.msra.mxu0 0.0
        %6100 = vmatprep.subr.mxu0 0.0
        %6101 = vmatpush1.msra.mxu0 0.0
        %6102 = vmatprep.subr.mxu0 0.0
        %6103 = vmatpush1.msra.mxu0 0.0
        %6104 = vmatprep.subr.mxu0 0.0
        %6105 = vmatpush1.msra.mxu0 0.0
        %6106 = vmatprep.subr.mxu0 0.0
        %6107 = vmatpush1.msra.mxu0 0.0
        %6108 = vmatprep.subr.mxu0 0.0
        %6109 = vmatpush1.msra.mxu0 0.0
        %6110 = vmatprep.subr.mxu0 0.0
        %6111 = vmatpush1.msra.mxu0 0.0
        %6112 = vmatprep.subr.mxu0 0.0
        %6113 = vmatpush1.msra.mxu0 0.0
        %6114 = vmatprep.subr.mxu0 0.0
        %6115 = vmatpush1.msra.mxu0 0.0
        %6116 = vmatprep.subr.mxu0 0.0
        %6117 = vmatpush1.msra.mxu0 0.0
        %6118 = vmatprep.subr.mxu0 0.0
        %6119 = vmatpush1.msra.mxu0 0.0
        %6120 = vmatprep.subr.mxu0 0.0
        %6121 = vmatpush1.msra.mxu0 0.0
        %6122 = vmatprep.subr.mxu0 0.0
        %6123 = vmatpush1.msra.mxu0 0.0
        %6124 = vmatprep.subr.mxu0 0.0
        %6125 = vmatpush1.msra.mxu0 0.0
        %6126 = vmatprep.subr.mxu0 0.0
        %6127 = vmatpush1.msra.mxu0 0.0
        %6128 = vmatprep.subr.mxu0 0.0
        %6129 = vmatpush1.msra.mxu0 0.0
        %6130 = vmatprep.subr.mxu0 0.0
        %6131 = vmatpush1.msra.mxu0 0.0
        %6132 = vmatprep.mubr.f32.mxu0 0.0
        %6133 = vmatmul.mubr.f32.gmra.mrb[0].mxu0 %v6063
        %v6134 = vpop.f32.mrb[0].mxu0
        %v6135 = vadd.f32 0.0, %v6134
        %v6136 = vpop.f32.mrb[0].mxu0
        %6137 = vdwg.mxu0
        %v6138 = vadd.f32 %v6057, %v6135
        %s6139 = scalar_lea.vmem %s6, 168
        %v6140 = vld [vmem:[%s6139] sm:$0xff]
        %v6141 = vld [vmem:[%s6139 + $0x8] sm:$0xff]
        %v6142 = vld [vmem:[%s6139 + $0x10] sm:$0xf]
        %v6143 = vrot.slane %v5569, 7
        %v6144 = vsel %vm5575, %v6143, 0
        %v6147 = vsel %vm2049, %v6142, 0
        %6149 = vmatprep.subr.mxu0 0.0
        %6150 = vmatpush1.msra.mxu0 %v6140
        %6151 = vmatprep.subr.mxu0 0.0
        %6152 = vmatpush1.msra.mxu0 %v6141
        %6153 = vmatprep.subr.mxu0 0.0
        %6154 = vmatpush1.msra.mxu0 %v6147
        %6155 = vmatprep.subr.mxu0 0.0
        %6156 = vmatpush1.msra.mxu0 0.0
        %6157 = vmatprep.subr.mxu0 0.0
        %6158 = vmatpush1.msra.mxu0 0.0
        %6159 = vmatprep.subr.mxu0 0.0
        %6160 = vmatpush1.msra.mxu0 0.0
        %6161 = vmatprep.subr.mxu0 0.0
        %6162 = vmatpush1.msra.mxu0 0.0
        %6163 = vmatprep.subr.mxu0 0.0
        %6164 = vmatpush1.msra.mxu0 0.0
        %6165 = vmatprep.subr.mxu0 0.0
        %6166 = vmatpush1.msra.mxu0 0.0
        %6167 = vmatprep.subr.mxu0 0.0
        %6168 = vmatpush1.msra.mxu0 0.0
        %6169 = vmatprep.subr.mxu0 0.0
        %6170 = vmatpush1.msra.mxu0 0.0
        %6171 = vmatprep.subr.mxu0 0.0
        %6172 = vmatpush1.msra.mxu0 0.0
        %6173 = vmatprep.subr.mxu0 0.0
        %6174 = vmatpush1.msra.mxu0 0.0
        %6175 = vmatprep.subr.mxu0 0.0
        %6176 = vmatpush1.msra.mxu0 0.0
        %6177 = vmatprep.subr.mxu0 0.0
        %6178 = vmatpush1.msra.mxu0 0.0
        %6179 = vmatprep.subr.mxu0 0.0
        %6180 = vmatpush1.msra.mxu0 0.0
        %6181 = vmatprep.subr.mxu0 0.0
        %6182 = vmatpush1.msra.mxu0 0.0
        %6183 = vmatprep.subr.mxu0 0.0
        %6184 = vmatpush1.msra.mxu0 0.0
        %6185 = vmatprep.subr.mxu0 0.0
        %6186 = vmatpush1.msra.mxu0 0.0
        %6187 = vmatprep.subr.mxu0 0.0
        %6188 = vmatpush1.msra.mxu0 0.0
        %6189 = vmatprep.subr.mxu0 0.0
        %6190 = vmatpush1.msra.mxu0 0.0
        %6191 = vmatprep.subr.mxu0 0.0
        %6192 = vmatpush1.msra.mxu0 0.0
        %6193 = vmatprep.subr.mxu0 0.0
        %6194 = vmatpush1.msra.mxu0 0.0
        %6195 = vmatprep.subr.mxu0 0.0
        %6196 = vmatpush1.msra.mxu0 0.0
        %6197 = vmatprep.subr.mxu0 0.0
        %6198 = vmatpush1.msra.mxu0 0.0
        %6199 = vmatprep.subr.mxu0 0.0
        %6200 = vmatpush1.msra.mxu0 0.0
        %6201 = vmatprep.subr.mxu0 0.0
        %6202 = vmatpush1.msra.mxu0 0.0
        %6203 = vmatprep.subr.mxu0 0.0
        %6204 = vmatpush1.msra.mxu0 0.0
        %6205 = vmatprep.subr.mxu0 0.0
        %6206 = vmatpush1.msra.mxu0 0.0
        %6207 = vmatprep.subr.mxu0 0.0
        %6208 = vmatpush1.msra.mxu0 0.0
        %6209 = vmatprep.subr.mxu0 0.0
        %6210 = vmatpush1.msra.mxu0 0.0
        %6211 = vmatprep.subr.mxu0 0.0
        %6212 = vmatpush1.msra.mxu0 0.0
        %6213 = vmatprep.mubr.f32.mxu0 0.0
        %6214 = vmatmul.mubr.f32.gmra.mrb[0].mxu0 %v6144
        %v6215 = vpop.f32.mrb[0].mxu0
        %v6216 = vadd.f32 0.0, %v6215
        %v6217 = vpop.f32.mrb[0].mxu0
        %6218 = vdwg.mxu0
        %v6219 = vadd.f32 %v6138, %v6216
        %s6220 = scalar_lea.vmem %s6, 192
        %v6221 = vld [vmem:[%s6220] sm:$0xff]
        %v6222 = vld [vmem:[%s6220 + $0x8] sm:$0xff]
        %v6223 = vld [vmem:[%s6220 + $0x10] sm:$0xf]
        %v6225 = vsel %vm5575, %v5570, 0
        %v6228 = vsel %vm2049, %v6223, 0
        %6230 = vmatprep.subr.mxu0 0.0
        %6231 = vmatpush1.msra.mxu0 %v6221
        %6232 = vmatprep.subr.mxu0 0.0
        %6233 = vmatpush1.msra.mxu0 %v6222
        %6234 = vmatprep.subr.mxu0 0.0
        %6235 = vmatpush1.msra.mxu0 %v6228
        %6236 = vmatprep.subr.mxu0 0.0
        %6237 = vmatpush1.msra.mxu0 0.0
        %6238 = vmatprep.subr.mxu0 0.0
        %6239 = vmatpush1.msra.mxu0 0.0
        %6240 = vmatprep.subr.mxu0 0.0
        %6241 = vmatpush1.msra.mxu0 0.0
        %6242 = vmatprep.subr.mxu0 0.0
        %6243 = vmatpush1.msra.mxu0 0.0
        %6244 = vmatprep.subr.mxu0 0.0
        %6245 = vmatpush1.msra.mxu0 0.0
        %6246 = vmatprep.subr.mxu0 0.0
        %6247 = vmatpush1.msra.mxu0 0.0
        %6248 = vmatprep.subr.mxu0 0.0
        %6249 = vmatpush1.msra.mxu0 0.0
        %6250 = vmatprep.subr.mxu0 0.0
        %6251 = vmatpush1.msra.mxu0 0.0
        %6252 = vmatprep.subr.mxu0 0.0
        %6253 = vmatpush1.msra.mxu0 0.0
        %6254 = vmatprep.subr.mxu0 0.0
        %6255 = vmatpush1.msra.mxu0 0.0
        %6256 = vmatprep.subr.mxu0 0.0
        %6257 = vmatpush1.msra.mxu0 0.0
        %6258 = vmatprep.subr.mxu0 0.0
        %6259 = vmatpush1.msra.mxu0 0.0
        %6260 = vmatprep.subr.mxu0 0.0
        %6261 = vmatpush1.msra.mxu0 0.0
        %6262 = vmatprep.subr.mxu0 0.0
        %6263 = vmatpush1.msra.mxu0 0.0
        %6264 = vmatprep.subr.mxu0 0.0
        %6265 = vmatpush1.msra.mxu0 0.0
        %6266 = vmatprep.subr.mxu0 0.0
        %6267 = vmatpush1.msra.mxu0 0.0
        %6268 = vmatprep.subr.mxu0 0.0
        %6269 = vmatpush1.msra.mxu0 0.0
        %6270 = vmatprep.subr.mxu0 0.0
        %6271 = vmatpush1.msra.mxu0 0.0
        %6272 = vmatprep.subr.mxu0 0.0
        %6273 = vmatpush1.msra.mxu0 0.0
        %6274 = vmatprep.subr.mxu0 0.0
        %6275 = vmatpush1.msra.mxu0 0.0
        %6276 = vmatprep.subr.mxu0 0.0
        %6277 = vmatpush1.msra.mxu0 0.0
        %6278 = vmatprep.subr.mxu0 0.0
        %6279 = vmatpush1.msra.mxu0 0.0
        %6280 = vmatprep.subr.mxu0 0.0
        %6281 = vmatpush1.msra.mxu0 0.0
        %6282 = vmatprep.subr.mxu0 0.0
        %6283 = vmatpush1.msra.mxu0 0.0
        %6284 = vmatprep.subr.mxu0 0.0
        %6285 = vmatpush1.msra.mxu0 0.0
        %6286 = vmatprep.subr.mxu0 0.0
        %6287 = vmatpush1.msra.mxu0 0.0
        %6288 = vmatprep.subr.mxu0 0.0
        %6289 = vmatpush1.msra.mxu0 0.0
        %6290 = vmatprep.subr.mxu0 0.0
        %6291 = vmatpush1.msra.mxu0 0.0
        %6292 = vmatprep.subr.mxu0 0.0
        %6293 = vmatpush1.msra.mxu0 0.0
        %6294 = vmatprep.mubr.f32.mxu0 0.0
        %6295 = vmatmul.mubr.f32.gmra.mrb[0].mxu0 %v6225
        %v6296 = vpop.f32.mrb[0].mxu0
        %v6297 = vadd.f32 0.0, %v6296
        %v6298 = vpop.f32.mrb[0].mxu0
        %6299 = vdwg.mxu0
        %v6300 = vadd.f32 %v6219, %v6297
        %s6301 = scalar_lea.vmem %s6, 216
        %v6302 = vld [vmem:[%s6301] sm:$0xff]
        %v6303 = vld [vmem:[%s6301 + $0x8] sm:$0xff]
        %v6304 = vld [vmem:[%s6301 + $0x10] sm:$0xf]
        %v6305 = vrot.slane %v5570, 1
        %v6306 = vsel %vm5575, %v6305, 0
        %v6309 = vsel %vm2049, %v6304, 0
        %6311 = vmatprep.subr.mxu0 0.0
        %6312 = vmatpush1.msra.mxu0 %v6302
        %6313 = vmatprep.subr.mxu0 0.0
        %6314 = vmatpush1.msra.mxu0 %v6303
        %6315 = vmatprep.subr.mxu0 0.0
        %6316 = vmatpush1.msra.mxu0 %v6309
        %6317 = vmatprep.subr.mxu0 0.0
        %6318 = vmatpush1.msra.mxu0 0.0
        %6319 = vmatprep.subr.mxu0 0.0
        %6320 = vmatpush1.msra.mxu0 0.0
        %6321 = vmatprep.subr.mxu0 0.0
        %6322 = vmatpush1.msra.mxu0 0.0
        %6323 = vmatprep.subr.mxu0 0.0
        %6324 = vmatpush1.msra.mxu0 0.0
        %6325 = vmatprep.subr.mxu0 0.0
        %6326 = vmatpush1.msra.mxu0 0.0
        %6327 = vmatprep.subr.mxu0 0.0
        %6328 = vmatpush1.msra.mxu0 0.0
        %6329 = vmatprep.subr.mxu0 0.0
        %6330 = vmatpush1.msra.mxu0 0.0
        %6331 = vmatprep.subr.mxu0 0.0
        %6332 = vmatpush1.msra.mxu0 0.0
        %6333 = vmatprep.subr.mxu0 0.0
        %6334 = vmatpush1.msra.mxu0 0.0
        %6335 = vmatprep.subr.mxu0 0.0
        %6336 = vmatpush1.msra.mxu0 0.0
        %6337 = vmatprep.subr.mxu0 0.0
        %6338 = vmatpush1.msra.mxu0 0.0
        %6339 = vmatprep.subr.mxu0 0.0
        %6340 = vmatpush1.msra.mxu0 0.0
        %6341 = vmatprep.subr.mxu0 0.0
        %6342 = vmatpush1.msra.mxu0 0.0
        %6343 = vmatprep.subr.mxu0 0.0
        %6344 = vmatpush1.msra.mxu0 0.0
        %6345 = vmatprep.subr.mxu0 0.0
        %6346 = vmatpush1.msra.mxu0 0.0
        %6347 = vmatprep.subr.mxu0 0.0
        %6348 = vmatpush1.msra.mxu0 0.0
        %6349 = vmatprep.subr.mxu0 0.0
        %6350 = vmatpush1.msra.mxu0 0.0
        %6351 = vmatprep.subr.mxu0 0.0
        %6352 = vmatpush1.msra.mxu0 0.0
        %6353 = vmatprep.subr.mxu0 0.0
        %6354 = vmatpush1.msra.mxu0 0.0
        %6355 = vmatprep.subr.mxu0 0.0
        %6356 = vmatpush1.msra.mxu0 0.0
        %6357 = vmatprep.subr.mxu0 0.0
        %6358 = vmatpush1.msra.mxu0 0.0
        %6359 = vmatprep.subr.mxu0 0.0
        %6360 = vmatpush1.msra.mxu0 0.0
        %6361 = vmatprep.subr.mxu0 0.0
        %6362 = vmatpush1.msra.mxu0 0.0
        %6363 = vmatprep.subr.mxu0 0.0
        %6364 = vmatpush1.msra.mxu0 0.0
        %6365 = vmatprep.subr.mxu0 0.0
        %6366 = vmatpush1.msra.mxu0 0.0
        %6367 = vmatprep.subr.mxu0 0.0
        %6368 = vmatpush1.msra.mxu0 0.0
        %6369 = vmatprep.subr.mxu0 0.0
        %6370 = vmatpush1.msra.mxu0 0.0
        %6371 = vmatprep.subr.mxu0 0.0
        %6372 = vmatpush1.msra.mxu0 0.0
        %6373 = vmatprep.subr.mxu0 0.0
        %6374 = vmatpush1.msra.mxu0 0.0
        %6375 = vmatprep.mubr.f32.mxu0 0.0
        %6376 = vmatmul.mubr.f32.gmra.mrb[0].mxu0 %v6306
        %v6377 = vpop.f32.mrb[0].mxu0
        %v6378 = vadd.f32 0.0, %v6377
        %v6379 = vpop.f32.mrb[0].mxu0
        %6380 = vdwg.mxu0
        %v6381 = vadd.f32 %v6300, %v6378
        %s6382 = scalar_lea.vmem %s6, 240
        %v6383 = vld [vmem:[%s6382] sm:$0xff]
        %v6384 = vld [vmem:[%s6382 + $0x8] sm:$0xff]
        %v6385 = vld [vmem:[%s6382 + $0x10] sm:$0xf]
        %v6386 = vrot.slane %v5570, 2
        %v6387 = vsel %vm5575, %v6386, 0
        %v6390 = vsel %vm2049, %v6385, 0
        %6392 = vmatprep.subr.mxu0 0.0
        %6393 = vmatpush1.msra.mxu0 %v6383
        %6394 = vmatprep.subr.mxu0 0.0
        %6395 = vmatpush1.msra.mxu0 %v6384
        %6396 = vmatprep.subr.mxu0 0.0
        %6397 = vmatpush1.msra.mxu0 %v6390
        %6398 = vmatprep.subr.mxu0 0.0
        %6399 = vmatpush1.msra.mxu0 0.0
        %6400 = vmatprep.subr.mxu0 0.0
        %6401 = vmatpush1.msra.mxu0 0.0
        %6402 = vmatprep.subr.mxu0 0.0
        %6403 = vmatpush1.msra.mxu0 0.0
        %6404 = vmatprep.subr.mxu0 0.0
        %6405 = vmatpush1.msra.mxu0 0.0
        %6406 = vmatprep.subr.mxu0 0.0
        %6407 = vmatpush1.msra.mxu0 0.0
        %6408 = vmatprep.subr.mxu0 0.0
        %6409 = vmatpush1.msra.mxu0 0.0
        %6410 = vmatprep.subr.mxu0 0.0
        %6411 = vmatpush1.msra.mxu0 0.0
        %6412 = vmatprep.subr.mxu0 0.0
        %6413 = vmatpush1.msra.mxu0 0.0
        %6414 = vmatprep.subr.mxu0 0.0
        %6415 = vmatpush1.msra.mxu0 0.0
        %6416 = vmatprep.subr.mxu0 0.0
        %6417 = vmatpush1.msra.mxu0 0.0
        %6418 = vmatprep.subr.mxu0 0.0
        %6419 = vmatpush1.msra.mxu0 0.0
        %6420 = vmatprep.subr.mxu0 0.0
        %6421 = vmatpush1.msra.mxu0 0.0
        %6422 = vmatprep.subr.mxu0 0.0
        %6423 = vmatpush1.msra.mxu0 0.0
        %6424 = vmatprep.subr.mxu0 0.0
        %6425 = vmatpush1.msra.mxu0 0.0
        %6426 = vmatprep.subr.mxu0 0.0
        %6427 = vmatpush1.msra.mxu0 0.0
        %6428 = vmatprep.subr.mxu0 0.0
        %6429 = vmatpush1.msra.mxu0 0.0
        %6430 = vmatprep.subr.mxu0 0.0
        %6431 = vmatpush1.msra.mxu0 0.0
        %6432 = vmatprep.subr.mxu0 0.0
        %6433 = vmatpush1.msra.mxu0 0.0
        %6434 = vmatprep.subr.mxu0 0.0
        %6435 = vmatpush1.msra.mxu0 0.0
        %6436 = vmatprep.subr.mxu0 0.0
        %6437 = vmatpush1.msra.mxu0 0.0
        %6438 = vmatprep.subr.mxu0 0.0
        %6439 = vmatpush1.msra.mxu0 0.0
        %6440 = vmatprep.subr.mxu0 0.0
        %6441 = vmatpush1.msra.mxu0 0.0
        %6442 = vmatprep.subr.mxu0 0.0
        %6443 = vmatpush1.msra.mxu0 0.0
        %6444 = vmatprep.subr.mxu0 0.0
        %6445 = vmatpush1.msra.mxu0 0.0
        %6446 = vmatprep.subr.mxu0 0.0
        %6447 = vmatpush1.msra.mxu0 0.0
        %6448 = vmatprep.subr.mxu0 0.0
        %6449 = vmatpush1.msra.mxu0 0.0
        %6450 = vmatprep.subr.mxu0 0.0
        %6451 = vmatpush1.msra.mxu0 0.0
        %6452 = vmatprep.subr.mxu0 0.0
        %6453 = vmatpush1.msra.mxu0 0.0
        %6454 = vmatprep.subr.mxu0 0.0
        %6455 = vmatpush1.msra.mxu0 0.0
        %6456 = vmatprep.mubr.f32.mxu0 0.0
        %6457 = vmatmul.mubr.f32.gmra.mrb[0].mxu0 %v6387
        %v6458 = vpop.f32.mrb[0].mxu0
        %v6459 = vadd.f32 0.0, %v6458
        %v6460 = vpop.f32.mrb[0].mxu0
        %6461 = vdwg.mxu0
        %v6462 = vadd.f32 %v6381, %v6459
        %s6463 = scalar_lea.vmem %s6, 264
        %v6464 = vld [vmem:[%s6463] sm:$0xff]
        %v6465 = vld [vmem:[%s6463 + $0x8] sm:$0xff]
        %v6466 = vld [vmem:[%s6463 + $0x10] sm:$0xf]
        %v6467 = vrot.slane %v5570, 3
        %v6468 = vsel %vm5575, %v6467, 0
        %v6471 = vsel %vm2049, %v6466, 0
        %6473 = vmatprep.subr.mxu0 0.0
        %6474 = vmatpush1.msra.mxu0 %v6464
        %6475 = vmatprep.subr.mxu0 0.0
        %6476 = vmatpush1.msra.mxu0 %v6465
        %6477 = vmatprep.subr.mxu0 0.0
        %6478 = vmatpush1.msra.mxu0 %v6471
        %6479 = vmatprep.subr.mxu0 0.0
        %6480 = vmatpush1.msra.mxu0 0.0
        %6481 = vmatprep.subr.mxu0 0.0
        %6482 = vmatpush1.msra.mxu0 0.0
        %6483 = vmatprep.subr.mxu0 0.0
        %6484 = vmatpush1.msra.mxu0 0.0
        %6485 = vmatprep.subr.mxu0 0.0
        %6486 = vmatpush1.msra.mxu0 0.0
        %6487 = vmatprep.subr.mxu0 0.0
        %6488 = vmatpush1.msra.mxu0 0.0
        %6489 = vmatprep.subr.mxu0 0.0
        %6490 = vmatpush1.msra.mxu0 0.0
        %6491 = vmatprep.subr.mxu0 0.0
        %6492 = vmatpush1.msra.mxu0 0.0
        %6493 = vmatprep.subr.mxu0 0.0
        %6494 = vmatpush1.msra.mxu0 0.0
        %6495 = vmatprep.subr.mxu0 0.0
        %6496 = vmatpush1.msra.mxu0 0.0
        %6497 = vmatprep.subr.mxu0 0.0
        %6498 = vmatpush1.msra.mxu0 0.0
        %6499 = vmatprep.subr.mxu0 0.0
        %6500 = vmatpush1.msra.mxu0 0.0
        %6501 = vmatprep.subr.mxu0 0.0
        %6502 = vmatpush1.msra.mxu0 0.0
        %6503 = vmatprep.subr.mxu0 0.0
        %6504 = vmatpush1.msra.mxu0 0.0
        %6505 = vmatprep.subr.mxu0 0.0
        %6506 = vmatpush1.msra.mxu0 0.0
        %6507 = vmatprep.subr.mxu0 0.0
        %6508 = vmatpush1.msra.mxu0 0.0
        %6509 = vmatprep.subr.mxu0 0.0
        %6510 = vmatpush1.msra.mxu0 0.0
        %6511 = vmatprep.subr.mxu0 0.0
        %6512 = vmatpush1.msra.mxu0 0.0
        %6513 = vmatprep.subr.mxu0 0.0
        %6514 = vmatpush1.msra.mxu0 0.0
        %6515 = vmatprep.subr.mxu0 0.0
        %6516 = vmatpush1.msra.mxu0 0.0
        %6517 = vmatprep.subr.mxu0 0.0
        %6518 = vmatpush1.msra.mxu0 0.0
        %6519 = vmatprep.subr.mxu0 0.0
        %6520 = vmatpush1.msra.mxu0 0.0
        %6521 = vmatprep.subr.mxu0 0.0
        %6522 = vmatpush1.msra.mxu0 0.0
        %6523 = vmatprep.subr.mxu0 0.0
        %6524 = vmatpush1.msra.mxu0 0.0
        %6525 = vmatprep.subr.mxu0 0.0
        %6526 = vmatpush1.msra.mxu0 0.0
        %6527 = vmatprep.subr.mxu0 0.0
        %6528 = vmatpush1.msra.mxu0 0.0
        %6529 = vmatprep.subr.mxu0 0.0
        %6530 = vmatpush1.msra.mxu0 0.0
        %6531 = vmatprep.subr.mxu0 0.0
        %6532 = vmatpush1.msra.mxu0 0.0
        %6533 = vmatprep.subr.mxu0 0.0
        %6534 = vmatpush1.msra.mxu0 0.0
        %6535 = vmatprep.subr.mxu0 0.0
        %6536 = vmatpush1.msra.mxu0 0.0
        %6537 = vmatprep.mubr.f32.mxu0 0.0
        %6538 = vmatmul.mubr.f32.gmra.mrb[0].mxu0 %v6468
        %v6539 = vpop.f32.mrb[0].mxu0
        %v6540 = vadd.f32 0.0, %v6539
        %v6541 = vpop.f32.mrb[0].mxu0
        %6542 = vdwg.mxu0
        %v6543 = vadd.f32 %v6462, %v6540
        %s6544 = scalar_lea.vmem %s6, 288
        %v6545 = vld [vmem:[%s6544] sm:$0xff]
        %v6546 = vld [vmem:[%s6544 + $0x8] sm:$0xff]
        %v6547 = vld [vmem:[%s6544 + $0x10] sm:$0xf]
        %v6548 = vrot.slane %v5570, 4
        %v6549 = vsel %vm5575, %v6548, 0
        %v6552 = vsel %vm2049, %v6547, 0
        %6554 = vmatprep.subr.mxu0 0.0
        %6555 = vmatpush1.msra.mxu0 %v6545
        %6556 = vmatprep.subr.mxu0 0.0
        %6557 = vmatpush1.msra.mxu0 %v6546
        %6558 = vmatprep.subr.mxu0 0.0
        %6559 = vmatpush1.msra.mxu0 %v6552
        %6560 = vmatprep.subr.mxu0 0.0
        %6561 = vmatpush1.msra.mxu0 0.0
        %6562 = vmatprep.subr.mxu0 0.0
        %6563 = vmatpush1.msra.mxu0 0.0
        %6564 = vmatprep.subr.mxu0 0.0
        %6565 = vmatpush1.msra.mxu0 0.0
        %6566 = vmatprep.subr.mxu0 0.0
        %6567 = vmatpush1.msra.mxu0 0.0
        %6568 = vmatprep.subr.mxu0 0.0
        %6569 = vmatpush1.msra.mxu0 0.0
        %6570 = vmatprep.subr.mxu0 0.0
        %6571 = vmatpush1.msra.mxu0 0.0
        %6572 = vmatprep.subr.mxu0 0.0
        %6573 = vmatpush1.msra.mxu0 0.0
        %6574 = vmatprep.subr.mxu0 0.0
        %6575 = vmatpush1.msra.mxu0 0.0
        %6576 = vmatprep.subr.mxu0 0.0
        %6577 = vmatpush1.msra.mxu0 0.0
        %6578 = vmatprep.subr.mxu0 0.0
        %6579 = vmatpush1.msra.mxu0 0.0
        %6580 = vmatprep.subr.mxu0 0.0
        %6581 = vmatpush1.msra.mxu0 0.0
        %6582 = vmatprep.subr.mxu0 0.0
        %6583 = vmatpush1.msra.mxu0 0.0
        %6584 = vmatprep.subr.mxu0 0.0
        %6585 = vmatpush1.msra.mxu0 0.0
        %6586 = vmatprep.subr.mxu0 0.0
        %6587 = vmatpush1.msra.mxu0 0.0
        %6588 = vmatprep.subr.mxu0 0.0
        %6589 = vmatpush1.msra.mxu0 0.0
        %6590 = vmatprep.subr.mxu0 0.0
        %6591 = vmatpush1.msra.mxu0 0.0
        %6592 = vmatprep.subr.mxu0 0.0
        %6593 = vmatpush1.msra.mxu0 0.0
        %6594 = vmatprep.subr.mxu0 0.0
        %6595 = vmatpush1.msra.mxu0 0.0
        %6596 = vmatprep.subr.mxu0 0.0
        %6597 = vmatpush1.msra.mxu0 0.0
        %6598 = vmatprep.subr.mxu0 0.0
        %6599 = vmatpush1.msra.mxu0 0.0
        %6600 = vmatprep.subr.mxu0 0.0
        %6601 = vmatpush1.msra.mxu0 0.0
        %6602 = vmatprep.subr.mxu0 0.0
        %6603 = vmatpush1.msra.mxu0 0.0
        %6604 = vmatprep.subr.mxu0 0.0
        %6605 = vmatpush1.msra.mxu0 0.0
        %6606 = vmatprep.subr.mxu0 0.0
        %6607 = vmatpush1.msra.mxu0 0.0
        %6608 = vmatprep.subr.mxu0 0.0
        %6609 = vmatpush1.msra.mxu0 0.0
        %6610 = vmatprep.subr.mxu0 0.0
        %6611 = vmatpush1.msra.mxu0 0.0
        %6612 = vmatprep.subr.mxu0 0.0
        %6613 = vmatpush1.msra.mxu0 0.0
        %6614 = vmatprep.subr.mxu0 0.0
        %6615 = vmatpush1.msra.mxu0 0.0
        %6616 = vmatprep.subr.mxu0 0.0
        %6617 = vmatpush1.msra.mxu0 0.0
        %6618 = vmatprep.mubr.f32.mxu0 0.0
        %6619 = vmatmul.mubr.f32.gmra.mrb[0].mxu0 %v6549
        %v6620 = vpop.f32.mrb[0].mxu0
        %v6621 = vadd.f32 0.0, %v6620
        %v6622 = vpop.f32.mrb[0].mxu0
        %6623 = vdwg.mxu0
        %v6624 = vadd.f32 %v6543, %v6621
        %s6625 = scalar_lea.vmem %s6, 312
        %v6626 = vld [vmem:[%s6625] sm:$0xff]
        %v6627 = vld [vmem:[%s6625 + $0x8] sm:$0xff]
        %v6628 = vld [vmem:[%s6625 + $0x10] sm:$0xf]
        %v6629 = vrot.slane %v5570, 5
        %v6630 = vsel %vm5575, %v6629, 0
        %v6633 = vsel %vm2049, %v6628, 0
        %6635 = vmatprep.subr.mxu0 0.0
        %6636 = vmatpush1.msra.mxu0 %v6626
        %6637 = vmatprep.subr.mxu0 0.0
        %6638 = vmatpush1.msra.mxu0 %v6627
        %6639 = vmatprep.subr.mxu0 0.0
        %6640 = vmatpush1.msra.mxu0 %v6633
        %6641 = vmatprep.subr.mxu0 0.0
        %6642 = vmatpush1.msra.mxu0 0.0
        %6643 = vmatprep.subr.mxu0 0.0
        %6644 = vmatpush1.msra.mxu0 0.0
        %6645 = vmatprep.subr.mxu0 0.0
        %6646 = vmatpush1.msra.mxu0 0.0
        %6647 = vmatprep.subr.mxu0 0.0
        %6648 = vmatpush1.msra.mxu0 0.0
        %6649 = vmatprep.subr.mxu0 0.0
        %6650 = vmatpush1.msra.mxu0 0.0
        %6651 = vmatprep.subr.mxu0 0.0
        %6652 = vmatpush1.msra.mxu0 0.0
        %6653 = vmatprep.subr.mxu0 0.0
        %6654 = vmatpush1.msra.mxu0 0.0
        %6655 = vmatprep.subr.mxu0 0.0
        %6656 = vmatpush1.msra.mxu0 0.0
        %6657 = vmatprep.subr.mxu0 0.0
        %6658 = vmatpush1.msra.mxu0 0.0
        %6659 = vmatprep.subr.mxu0 0.0
        %6660 = vmatpush1.msra.mxu0 0.0
        %6661 = vmatprep.subr.mxu0 0.0
        %6662 = vmatpush1.msra.mxu0 0.0
        %6663 = vmatprep.subr.mxu0 0.0
        %6664 = vmatpush1.msra.mxu0 0.0
        %6665 = vmatprep.subr.mxu0 0.0
        %6666 = vmatpush1.msra.mxu0 0.0
        %6667 = vmatprep.subr.mxu0 0.0
        %6668 = vmatpush1.msra.mxu0 0.0
        %6669 = vmatprep.subr.mxu0 0.0
        %6670 = vmatpush1.msra.mxu0 0.0
        %6671 = vmatprep.subr.mxu0 0.0
        %6672 = vmatpush1.msra.mxu0 0.0
        %6673 = vmatprep.subr.mxu0 0.0
        %6674 = vmatpush1.msra.mxu0 0.0
        %6675 = vmatprep.subr.mxu0 0.0
        %6676 = vmatpush1.msra.mxu0 0.0
        %6677 = vmatprep.subr.mxu0 0.0
        %6678 = vmatpush1.msra.mxu0 0.0
        %6679 = vmatprep.subr.mxu0 0.0
        %6680 = vmatpush1.msra.mxu0 0.0
        %6681 = vmatprep.subr.mxu0 0.0
        %6682 = vmatpush1.msra.mxu0 0.0
        %6683 = vmatprep.subr.mxu0 0.0
        %6684 = vmatpush1.msra.mxu0 0.0
        %6685 = vmatprep.subr.mxu0 0.0
        %6686 = vmatpush1.msra.mxu0 0.0
        %6687 = vmatprep.subr.mxu0 0.0
        %6688 = vmatpush1.msra.mxu0 0.0
        %6689 = vmatprep.subr.mxu0 0.0
        %6690 = vmatpush1.msra.mxu0 0.0
        %6691 = vmatprep.subr.mxu0 0.0
        %6692 = vmatpush1.msra.mxu0 0.0
        %6693 = vmatprep.subr.mxu0 0.0
        %6694 = vmatpush1.msra.mxu0 0.0
        %6695 = vmatprep.subr.mxu0 0.0
        %6696 = vmatpush1.msra.mxu0 0.0
        %6697 = vmatprep.subr.mxu0 0.0
        %6698 = vmatpush1.msra.mxu0 0.0
        %6699 = vmatprep.mubr.f32.mxu0 0.0
        %6700 = vmatmul.mubr.f32.gmra.mrb[0].mxu0 %v6630
        %v6701 = vpop.f32.mrb[0].mxu0
        %v6702 = vadd.f32 0.0, %v6701
        %v6703 = vpop.f32.mrb[0].mxu0
        %6704 = vdwg.mxu0
        %v6705 = vadd.f32 %v6624, %v6702
        %s6706 = scalar_lea.vmem %s6, 336
        %v6707 = vld [vmem:[%s6706] sm:$0xff]
        %v6708 = vld [vmem:[%s6706 + $0x8] sm:$0xff]
        %v6709 = vld [vmem:[%s6706 + $0x10] sm:$0xf]
        %v6710 = vrot.slane %v5570, 6
        %v6711 = vsel %vm5575, %v6710, 0
        %v6714 = vsel %vm2049, %v6709, 0
        %6716 = vmatprep.subr.mxu0 0.0
        %6717 = vmatpush1.msra.mxu0 %v6707
        %6718 = vmatprep.subr.mxu0 0.0
        %6719 = vmatpush1.msra.mxu0 %v6708
        %6720 = vmatprep.subr.mxu0 0.0
        %6721 = vmatpush1.msra.mxu0 %v6714
        %6722 = vmatprep.subr.mxu0 0.0
        %6723 = vmatpush1.msra.mxu0 0.0
        %6724 = vmatprep.subr.mxu0 0.0
        %6725 = vmatpush1.msra.mxu0 0.0
        %6726 = vmatprep.subr.mxu0 0.0
        %6727 = vmatpush1.msra.mxu0 0.0
        %6728 = vmatprep.subr.mxu0 0.0
        %6729 = vmatpush1.msra.mxu0 0.0
        %6730 = vmatprep.subr.mxu0 0.0
        %6731 = vmatpush1.msra.mxu0 0.0
        %6732 = vmatprep.subr.mxu0 0.0
        %6733 = vmatpush1.msra.mxu0 0.0
        %6734 = vmatprep.subr.mxu0 0.0
        %6735 = vmatpush1.msra.mxu0 0.0
        %6736 = vmatprep.subr.mxu0 0.0
        %6737 = vmatpush1.msra.mxu0 0.0
        %6738 = vmatprep.subr.mxu0 0.0
        %6739 = vmatpush1.msra.mxu0 0.0
        %6740 = vmatprep.subr.mxu0 0.0
        %6741 = vmatpush1.msra.mxu0 0.0
        %6742 = vmatprep.subr.mxu0 0.0
        %6743 = vmatpush1.msra.mxu0 0.0
        %6744 = vmatprep.subr.mxu0 0.0
        %6745 = vmatpush1.msra.mxu0 0.0
        %6746 = vmatprep.subr.mxu0 0.0
        %6747 = vmatpush1.msra.mxu0 0.0
        %6748 = vmatprep.subr.mxu0 0.0
        %6749 = vmatpush1.msra.mxu0 0.0
        %6750 = vmatprep.subr.mxu0 0.0
        %6751 = vmatpush1.msra.mxu0 0.0
        %6752 = vmatprep.subr.mxu0 0.0
        %6753 = vmatpush1.msra.mxu0 0.0
        %6754 = vmatprep.subr.mxu0 0.0
        %6755 = vmatpush1.msra.mxu0 0.0
        %6756 = vmatprep.subr.mxu0 0.0
        %6757 = vmatpush1.msra.mxu0 0.0
        %6758 = vmatprep.subr.mxu0 0.0
        %6759 = vmatpush1.msra.mxu0 0.0
        %6760 = vmatprep.subr.mxu0 0.0
        %6761 = vmatpush1.msra.mxu0 0.0
        %6762 = vmatprep.subr.mxu0 0.0
        %6763 = vmatpush1.msra.mxu0 0.0
        %6764 = vmatprep.subr.mxu0 0.0
        %6765 = vmatpush1.msra.mxu0 0.0
        %6766 = vmatprep.subr.mxu0 0.0
        %6767 = vmatpush1.msra.mxu0 0.0
        %6768 = vmatprep.subr.mxu0 0.0
        %6769 = vmatpush1.msra.mxu0 0.0
        %6770 = vmatprep.subr.mxu0 0.0
        %6771 = vmatpush1.msra.mxu0 0.0
        %6772 = vmatprep.subr.mxu0 0.0
        %6773 = vmatpush1.msra.mxu0 0.0
        %6774 = vmatprep.subr.mxu0 0.0
        %6775 = vmatpush1.msra.mxu0 0.0
        %6776 = vmatprep.subr.mxu0 0.0
        %6777 = vmatpush1.msra.mxu0 0.0
        %6778 = vmatprep.subr.mxu0 0.0
        %6779 = vmatpush1.msra.mxu0 0.0
        %6780 = vmatprep.mubr.f32.mxu0 0.0
        %6781 = vmatmul.mubr.f32.gmra.mrb[0].mxu0 %v6711
        %v6782 = vpop.f32.mrb[0].mxu0
        %v6783 = vadd.f32 0.0, %v6782
        %v6784 = vpop.f32.mrb[0].mxu0
        %6785 = vdwg.mxu0
        %v6786 = vadd.f32 %v6705, %v6783
        %s6787 = scalar_lea.vmem %s6, 360
        %v6788 = vld [vmem:[%s6787] sm:$0xff]
        %v6789 = vld [vmem:[%s6787 + $0x8] sm:$0xff]
        %v6790 = vld [vmem:[%s6787 + $0x10] sm:$0xf]
        %v6791 = vrot.slane %v5570, 7
        %v6792 = vsel %vm5575, %v6791, 0
        %v6795 = vsel %vm2049, %v6790, 0
        %6797 = vmatprep.subr.mxu0 0.0
        %6798 = vmatpush1.msra.mxu0 %v6788
        %6799 = vmatprep.subr.mxu0 0.0
        %6800 = vmatpush1.msra.mxu0 %v6789
        %6801 = vmatprep.subr.mxu0 0.0
        %6802 = vmatpush1.msra.mxu0 %v6795
        %6803 = vmatprep.subr.mxu0 0.0
        %6804 = vmatpush1.msra.mxu0 0.0
        %6805 = vmatprep.subr.mxu0 0.0
        %6806 = vmatpush1.msra.mxu0 0.0
        %6807 = vmatprep.subr.mxu0 0.0
        %6808 = vmatpush1.msra.mxu0 0.0
        %6809 = vmatprep.subr.mxu0 0.0
        %6810 = vmatpush1.msra.mxu0 0.0
        %6811 = vmatprep.subr.mxu0 0.0
        %6812 = vmatpush1.msra.mxu0 0.0
        %6813 = vmatprep.subr.mxu0 0.0
        %6814 = vmatpush1.msra.mxu0 0.0
        %6815 = vmatprep.subr.mxu0 0.0
        %6816 = vmatpush1.msra.mxu0 0.0
        %6817 = vmatprep.subr.mxu0 0.0
        %6818 = vmatpush1.msra.mxu0 0.0
        %6819 = vmatprep.subr.mxu0 0.0
        %6820 = vmatpush1.msra.mxu0 0.0
        %6821 = vmatprep.subr.mxu0 0.0
        %6822 = vmatpush1.msra.mxu0 0.0
        %6823 = vmatprep.subr.mxu0 0.0
        %6824 = vmatpush1.msra.mxu0 0.0
        %6825 = vmatprep.subr.mxu0 0.0
        %6826 = vmatpush1.msra.mxu0 0.0
        %6827 = vmatprep.subr.mxu0 0.0
        %6828 = vmatpush1.msra.mxu0 0.0
        %6829 = vmatprep.subr.mxu0 0.0
        %6830 = vmatpush1.msra.mxu0 0.0
        %6831 = vmatprep.subr.mxu0 0.0
        %6832 = vmatpush1.msra.mxu0 0.0
        %6833 = vmatprep.subr.mxu0 0.0
        %6834 = vmatpush1.msra.mxu0 0.0
        %6835 = vmatprep.subr.mxu0 0.0
        %6836 = vmatpush1.msra.mxu0 0.0
        %6837 = vmatprep.subr.mxu0 0.0
        %6838 = vmatpush1.msra.mxu0 0.0
        %6839 = vmatprep.subr.mxu0 0.0
        %6840 = vmatpush1.msra.mxu0 0.0
        %6841 = vmatprep.subr.mxu0 0.0
        %6842 = vmatpush1.msra.mxu0 0.0
        %6843 = vmatprep.subr.mxu0 0.0
        %6844 = vmatpush1.msra.mxu0 0.0
        %6845 = vmatprep.subr.mxu0 0.0
        %6846 = vmatpush1.msra.mxu0 0.0
        %6847 = vmatprep.subr.mxu0 0.0
        %6848 = vmatpush1.msra.mxu0 0.0
        %6849 = vmatprep.subr.mxu0 0.0
        %6850 = vmatpush1.msra.mxu0 0.0
        %6851 = vmatprep.subr.mxu0 0.0
        %6852 = vmatpush1.msra.mxu0 0.0
        %6853 = vmatprep.subr.mxu0 0.0
        %6854 = vmatpush1.msra.mxu0 0.0
        %6855 = vmatprep.subr.mxu0 0.0
        %6856 = vmatpush1.msra.mxu0 0.0
        %6857 = vmatprep.subr.mxu0 0.0
        %6858 = vmatpush1.msra.mxu0 0.0
        %6859 = vmatprep.subr.mxu0 0.0
        %6860 = vmatpush1.msra.mxu0 0.0
        %6861 = vmatprep.mubr.f32.mxu0 0.0
        %6862 = vmatmul.mubr.f32.gmra.mrb[0].mxu0 %v6792
        %v6863 = vpop.f32.mrb[0].mxu0
        %v6864 = vadd.f32 0.0, %v6863
        %v6865 = vpop.f32.mrb[0].mxu0
        %6866 = vdwg.mxu0
        %v6867 = vadd.f32 %v6786, %v6864
        %v6868 = vmax.f32 %v6867, 0.0
        %vm6869 = vcmask 401408
        %6870 = vst.msk [vmem:[%s297] sm:$0x1] %vm6869, %v6868
        %s6871 = sand.u32 %s203, 1
        %s6872 = scalar_lea.sflag [#allocation3], %s6871
        %s6873 = sand.u32 %s203, 1
        %s6874 = scalar_lea.vmem [#allocation2], %s6873
        // Predicated region
        $region53: #{net_without_last_forward.1} parent=51 // pred_check
          %p6875 = pneg %p213
        $region54: #{net_without_last_forward.1} parent=51 // pred_check_branch
          %6877 = sbr.rel (%p6875) target = $region56
        $region55: #{net_without_last_forward.1} parent=51 // pred_region
          %s6879 = ssub.s32 16, 16
          %6880 = vsyncadd %s6872, %s6879
          %s6881 = smul.addr %s22, 16
          %s6882 = scalar_lea.hbm %s8, %s6881
          %s6884 = sshll.u32 %s6874, 4
          %s6885 = int_to_ptr.vmem [resolvable:$true] %s6884
          %6887 = dma.vmem_to_hbm [thread:$0]  %s6885, 16, %s6882, %s6872
        $region56: #{net_without_last_forward.1} parent=51 // pred_fallthru
          _
      $region52: #{net_without_last_forward.1} parent=5 // pred_fallthru
        _
      %p6888 = scmp.le.s32.totalorder 2, %s17
      // Predicated region
      $region57: #{net_without_last_forward.1} parent=5 // pred_check
        %p6889 = pneg %p6888
      $region58: #{net_without_last_forward.1} parent=5 // pred_check_branch
        %6891 = sbr.rel (%p6889) target = $region60
      $region59: #{net_without_last_forward.1} parent=5 // pred_region
        %s6892 = ssub.s32 %s17, 2
        // Predicated region
        $region61: #{net_without_last_forward.1} parent=59 // pred_check
          %p6893 = pneg %p219
        $region62: #{net_without_last_forward.1} parent=59 // pred_check_branch
          %6895 = sbr.rel (%p6893) target = $region64
        $region63: #{net_without_last_forward.1} parent=59 // pred_region
          %s6896 = sand.u32 %s204, 1
          %s6897 = scalar_lea.sflag [#allocation3], %s6896
          %s6898 = sand.u32 %s204, 1
          %s6899 = scalar_lea.vmem [#allocation2], %s6898
          %6900 = dma.done %s6897, 16
        $region64: #{net_without_last_forward.1} parent=59 // pred_fallthru
          _
      $region60: #{net_without_last_forward.1} parent=5 // pred_fallthru
        _
    $region6: #{net_without_last_forward.1} parent=1 // loop_footer
      %s21 = sadd.s32 1, %s17
    $region7: #{net_without_last_forward.1} parent=1 // loop_footer_branch
      %16 = sbr.rel target = $region3
    $region8: #{net_without_last_forward.1} parent=1 // loop_exit
      _
    %6901 = vsyncpa [#allocation3], 1
    %s6902 = scalar_lea.sflag [#allocation3], 1
    %6903 = vsyncpa %s6902, 1

</llo_original>
